<compile_context>
chip_gen: v7x
topology: tpu7x:2x2x1
jax: 0.10.0
libtpu: 0.0.40
codegen_flags: <defaults>
</compile_context>

<pallas_src>
import math

import numpy as np
import jax
import jax.numpy as jnp
from jax import lax
from jax.experimental import pallas as pl
from jax.experimental.pallas import tpu as pltpu

# ----------------------------- config -----------------------------
D_MODEL    = 32
HEADS      = 4
D_K        = D_MODEL // HEADS
NUM_LAYERS = 2
VOCAB      = 64
MAX_LEN    = 16
MIDDLE     = 64
BATCH      = 2
SRC_LEN    = 8
TGT_LEN    = 8
LN_EPS     = 1e-5            # PyTorch nn.LayerNorm default
NEG_INF    = -1000000000.0   # matches masked_fill(-1e9) in the reference
SQRT_D     = math.sqrt(D_MODEL)
QKV_W      = 3 * D_MODEL     # 96
KV_W       = 2 * D_MODEL     # 64
LOGIT_PAD  = 128             # lane-dense padded logits width


# ----------------------------- in-kernel helpers -----------------------------
def _layernorm(z, g, b):
    # LayerNorm over the last (feature) dim; g/b are (1, D). Biased variance (PyTorch).
    mu = jnp.mean(z, axis=-1, keepdims=True)
    var = jnp.mean((z - mu) ** 2, axis=-1, keepdims=True)
    return (z - mu) * lax.rsqrt(var + LN_EPS) * g + b


def _mha_core(q, kv, w_o, b_o, mask_add):
    """Multi-head attention core on flattened (batch*len) activations.

    q:  (Mq, D)  projected queries (1/sqrt(d_k) pre-folded into the projection).
    kv: (Mk, 2D) projected [K | V].
    w_o:(D, D) concat/output weight, b_o:(1, D).
    mask_add: (Mq, Mk) additive mask (0 keep / -1e9 drop) already containing the
    cross-batch block-diagonal structure plus padding/causal masks.
    """
    out = None
    for h in range(HEADS):
        qh = q[:, h * D_K:(h + 1) * D_K]                             # (Mq, dk)
        kh = kv[:, h * D_K:(h + 1) * D_K]                            # (Mk, dk)
        vh = kv[:, D_MODEL + h * D_K:D_MODEL + (h + 1) * D_K]        # (Mk, dk)
        s = jnp.einsum('qd,kd->qk', qh, kh,
                       preferred_element_type=jnp.float32)           # (Mq, Mk)
        s = s + mask_add
        s = s - jnp.max(s, axis=-1, keepdims=True)
        e = jnp.exp(s)
        p = e * pl.reciprocal(jnp.sum(e, axis=-1, keepdims=True), approx=True)
        ctx = jnp.dot(p, vh, preferred_element_type=jnp.float32)     # (Mq, dk)
        contrib = jnp.dot(ctx, w_o[h * D_K:(h + 1) * D_K, :],
                          preferred_element_type=jnp.float32)        # (Mq, D)
        out = contrib if out is None else out + contrib
    return out + b_o


def _ffn(x, w1, b1, w2, b2):
    h = jnp.maximum(jnp.dot(x, w1, preferred_element_type=jnp.float32) + b1, 0.0)
    return jnp.dot(h, w2, preferred_element_type=jnp.float32) + b2


# ----------------------------- fused full-model kernel -----------------------------
def _transformer_kernel(
        src_tok_ref, tgt_tok_ref, embed_ref, pe_src_ref, pe_tgt_ref,
        enc_mask_ref, dec_self_mask_ref, dec_cross_mask_ref,
        enc_wqkv_ref, enc_wo_ref, enc_w1_ref, enc_w2_ref, enc_vec_ref,
        dec_swqkv_ref, dec_swo_ref, dec_cwq_ref, dec_cwkv_ref, dec_cwo_ref,
        dec_w1_ref, dec_w2_ref, dec_vec_ref,
        wout_ref, bout_ref,
        logits_ref):

    embed_tbl = embed_ref[...]                                       # (V, D)

    def embed_tokens(tok_ref, pe_ref, n_rows):
        ids = tok_ref[...]                                           # (M, 1) int32
        onehot = (lax.broadcasted_iota(jnp.int32, (n_rows, VOCAB), 1) == ids
                  ).astype(jnp.float32)                              # (M, V)
        e = jnp.dot(onehot, embed_tbl, preferred_element_type=jnp.float32)
        return e * SQRT_D + pe_ref[...]

    # ---------------- encoder stack ----------------
    x = embed_tokens(src_tok_ref, pe_src_ref, BATCH * SRC_LEN)       # (B*S, D)
    enc_mask = enc_mask_ref[...]                                     # (B*S, B*S)

    for l in range(NUM_LAYERS):
        wqkv = enc_wqkv_ref[l]                                       # (D, 3D)
        wo   = enc_wo_ref[l]                                         # (D, D)
        w1   = enc_w1_ref[l]                                         # (D, MID)
        w2   = enc_w2_ref[l]                                         # (MID, D)
        vec  = enc_vec_ref[l]                                        # (8, 128)
        bqkv = vec[0:1, 0:QKV_W]
        bo   = vec[1:2, 0:D_MODEL]
        b1   = vec[2:3, 0:MIDDLE]
        b2   = vec[3:4, 0:D_MODEL]
        g1, be1 = vec[4:5, 0:D_MODEL], vec[5:6, 0:D_MODEL]
        g2, be2 = vec[6:7, 0:D_MODEL], vec[7:8, 0:D_MODEL]

        qkv = jnp.dot(x, wqkv, preferred_element_type=jnp.float32) + bqkv
        attn = _mha_core(qkv[:, :D_MODEL], qkv[:, D_MODEL:], wo, bo, enc_mask)
        x1 = _layernorm(x + attn, g1, be1)
        x = _layernorm(x1 + _ffn(x1, w1, b1, w2, b2), g2, be2)

    enc_out = x                                                      # (B*S, D)

    # ---------------- decoder stack ----------------
    y = embed_tokens(tgt_tok_ref, pe_tgt_ref, BATCH * TGT_LEN)       # (B*T, D)
    self_mask = dec_self_mask_ref[...]                               # (B*T, B*T)
    cross_mask = dec_cross_mask_ref[...]                             # (B*T, B*S)

    for l in range(NUM_LAYERS):
        swqkv = dec_swqkv_ref[l]                                     # (D, 3D)
        swo   = dec_swo_ref[l]                                       # (D, D)
        cwq   = dec_cwq_ref[l]                                       # (D, D)
        cwkv  = dec_cwkv_ref[l]                                      # (D, 2D)
        cwo   = dec_cwo_ref[l]                                       # (D, D)
        w1    = dec_w1_ref[l]                                        # (D, MID)
        w2    = dec_w2_ref[l]                                        # (MID, D)
        vec   = dec_vec_ref[l]                                       # (16, 128)
        sbqkv = vec[0:1, 0:QKV_W]
        sbo   = vec[1:2, 0:D_MODEL]
        cbq   = vec[2:3, 0:D_MODEL]
        cbkv  = vec[3:4, 0:KV_W]
        cbo   = vec[4:5, 0:D_MODEL]
        b1    = vec[5:6, 0:MIDDLE]
        b2    = vec[6:7, 0:D_MODEL]
        g1, be1 = vec[7:8, 0:D_MODEL],  vec[8:9, 0:D_MODEL]
        g2, be2 = vec[9:10, 0:D_MODEL], vec[10:11, 0:D_MODEL]
        g3, be3 = vec[11:12, 0:D_MODEL], vec[12:13, 0:D_MODEL]

        # masked self-attention + add&norm
        qkv = jnp.dot(y, swqkv, preferred_element_type=jnp.float32) + sbqkv
        attn = _mha_core(qkv[:, :D_MODEL], qkv[:, D_MODEL:], swo, sbo, self_mask)
        y1 = _layernorm(y + attn, g1, be1)

        # cross-attention + add&norm
        qx = jnp.dot(y1, cwq, preferred_element_type=jnp.float32) + cbq
        kvx = jnp.dot(enc_out, cwkv, preferred_element_type=jnp.float32) + cbkv
        xattn = _mha_core(qx, kvx, cwo, cbo, cross_mask)
        y2 = _layernorm(y1 + xattn, g2, be2)

        # feed-forward + add&norm
        y = _layernorm(y2 + _ffn(y2, w1, b1, w2, b2), g3, be3)

    # ---------------- output linear (lane-dense 128-wide) ----------------
    logits_ref[...] = (
        jnp.dot(y, wout_ref[...], preferred_element_type=jnp.float32) + bout_ref[...]
    )


# ----------------------------- host-side helpers -----------------------------
def _block_diag_additive(per_batch_add):
    """(B, Lq, Lk) additive mask -> (B*Lq, B*Lk) with -1e9 on cross-batch blocks."""
    B, Lq, Lk = per_batch_add.shape
    same = jnp.eye(B, dtype=jnp.float32)[:, None, :, None]           # (B,1,B,1)
    full = same * per_batch_add[:, :, None, :] + (1.0 - same) * NEG_INF
    return full.reshape(B * Lq, B * Lk)


@jax.jit
def transformer_forward(params, src, src_mask, tgt, tgt_mask):
    B, S = src.shape
    T = tgt.shape[1]

    # Additive per-batch masks (0 keep / -1e9 drop), then fold batch separation
    # into block-diagonal (B*Lq, B*Lk) masks so the kernel needs no batch loop.
    src_keep = src_mask[:, 0, 0]                                     # (B, S)
    tgt_keep = tgt_mask[:, 0]                                        # (B, T, T)
    enc_add = jnp.broadcast_to(((1.0 - src_keep) * NEG_INF)[:, None, :], (B, S, S))
    cross_add = jnp.broadcast_to(((1.0 - src_keep) * NEG_INF)[:, None, :], (B, T, S))
    self_add = (1.0 - tgt_keep) * NEG_INF                            # (B, T, T)

    enc_mask = _block_diag_additive(enc_add)                         # (B*S, B*S)
    dec_self_mask = _block_diag_additive(self_add)                   # (B*T, B*T)
    dec_cross_mask = _block_diag_additive(cross_add)                 # (B*T, B*S)

    pe = params["pe"][0]                                             # (MAX_LEN, D)
    pe_src = jnp.tile(pe[:S], (B, 1))                                # (B*S, D)
    pe_tgt = jnp.tile(pe[:T], (B, 1))                                # (B*T, D)

    src_tok = src.reshape(B * S, 1).astype(jnp.int32)
    tgt_tok = tgt.reshape(B * T, 1).astype(jnp.int32)

    args = (src_tok, tgt_tok, params["embed"], pe_src, pe_tgt,
            enc_mask, dec_self_mask, dec_cross_mask,
            params["enc_wqkv"], params["enc_wo"], params["enc_w1"],
            params["enc_w2"], params["enc_vec"],
            params["dec_swqkv"], params["dec_swo"], params["dec_cwq"],
            params["dec_cwkv"], params["dec_cwo"],
            params["dec_w1"], params["dec_w2"], params["dec_vec"],
            params["w_out"], params["b_out"])

    logits_padded = pl.pallas_call(
        _transformer_kernel,
        out_shape=jax.ShapeDtypeStruct((B * T, LOGIT_PAD), jnp.float32),
        in_specs=[pl.BlockSpec(memory_space=pltpu.MemorySpace.VMEM)] * len(args),
        out_specs=pl.BlockSpec(memory_space=pltpu.MemorySpace.VMEM),
    )(*args)

    return logits_padded[:, :VOCAB].reshape(B, T, VOCAB)


# ----------------------------- parameter init & packing -----------------------------
def _init_linear(key, din, dout):
    w = jax.random.normal(key, (din, dout), jnp.float32) * 0.02
    b = jnp.zeros((dout,), jnp.float32)
    return w, b


def _pad_row(v, width=128):
    return jnp.zeros((width,), jnp.float32).at[:v.shape[0]].set(v)


def _ln_pair():
    return jnp.ones((D_MODEL,), jnp.float32), jnp.zeros((D_MODEL,), jnp.float32)


def _init_enc_layer(key):
    ks = jax.random.split(key, 6)
    wq, bq = _init_linear(ks[0], D_MODEL, D_MODEL)
    wk, bk = _init_linear(ks[1], D_MODEL, D_MODEL)
    wv, bv = _init_linear(ks[2], D_MODEL, D_MODEL)
    wo, bo = _init_linear(ks[3], D_MODEL, D_MODEL)
    w1, b1 = _init_linear(ks[4], D_MODEL, MIDDLE)
    w2, b2 = _init_linear(ks[5], MIDDLE, D_MODEL)
    scale = 1.0 / math.sqrt(D_K)                   # fold softmax scale into Q proj
    wqkv = jnp.concatenate([wq * scale, wk, wv], axis=1)             # (D, 3D)
    bqkv = jnp.concatenate([bq * scale, bk, bv])                     # (3D,)
    g1, be1 = _ln_pair()
    g2, be2 = _ln_pair()
    vec = jnp.stack([_pad_row(bqkv), _pad_row(bo), _pad_row(b1), _pad_row(b2),
                     _pad_row(g1), _pad_row(be1), _pad_row(g2), _pad_row(be2)])
    return dict(wqkv=wqkv, wo=wo, w1=w1, w2=w2, vec=vec)


def _init_dec_layer(key):
    ks = jax.random.split(key, 10)
    swq, sbq = _init_linear(ks[0], D_MODEL, D_MODEL)
    swk, sbk = _init_linear(ks[1], D_MODEL, D_MODEL)
    swv, sbv = _init_linear(ks[2], D_MODEL, D_MODEL)
    swo, sbo = _init_linear(ks[3], D_MODEL, D_MODEL)
    cwq, cbq = _init_linear(ks[4], D_MODEL, D_MODEL)
    cwk, cbk = _init_linear(ks[5], D_MODEL, D_MODEL)
    cwv, cbv = _init_linear(ks[6], D_MODEL, D_MODEL)
    cwo, cbo = _init_linear(ks[7], D_MODEL, D_MODEL)
    w1, b1 = _init_linear(ks[8], D_MODEL, MIDDLE)
    w2, b2 = _init_linear(ks[9], MIDDLE, D_MODEL)
    scale = 1.0 / math.sqrt(D_K)
    swqkv = jnp.concatenate([swq * scale, swk, swv], axis=1)         # (D, 3D)
    sbqkv = jnp.concatenate([sbq * scale, sbk, sbv])                 # (3D,)
    cwkv = jnp.concatenate([cwk, cwv], axis=1)                       # (D, 2D)
    cbkv = jnp.concatenate([cbk, cbv])                               # (2D,)
    g1, be1 = _ln_pair()
    g2, be2 = _ln_pair()
    g3, be3 = _ln_pair()
    rows = [sbqkv, sbo, cbq * scale, cbkv, cbo, b1, b2,
            g1, be1, g2, be2, g3, be3]
    vec = jnp.zeros((16, 128), jnp.float32)
    for i, r in enumerate(rows):
        vec = vec.at[i, :r.shape[0]].set(r)
    return dict(swqkv=swqkv, swo=swo, cwq=cwq * scale, cwkv=cwkv, cwo=cwo,
                w1=w1, w2=w2, vec=vec)


def _positional_encoding(max_len, d_model):
    # Reproduces the (non-standard) loop in Embeddings.create_positional_encoding.
    pe = np.zeros((max_len, d_model), np.float32)
    for pos in range(max_len):
        for i in range(0, d_model, 2):
            pe[pos, i] = math.sin(pos / 10000 ** (i / d_model))
            pe[pos, i + 1] = math.cos(pos / 10000 ** ((i + 1) / d_model))
    return jnp.asarray(pe)[None]  # (1, max_len, d_model)


def init_params(key):
    keys = jax.random.split(key, 2 + 2 * NUM_LAYERS)
    params = {}
    params["embed"] = jax.random.normal(keys[0], (VOCAB, D_MODEL), jnp.float32)
    params["pe"] = _positional_encoding(MAX_LEN, D_MODEL)

    enc = [_init_enc_layer(keys[2 + i]) for i in range(NUM_LAYERS)]
    dec = [_init_dec_layer(keys[2 + NUM_LAYERS + i]) for i in range(NUM_LAYERS)]

    params["enc_wqkv"] = jnp.stack([l["wqkv"] for l in enc])
    params["enc_wo"]   = jnp.stack([l["wo"] for l in enc])
    params["enc_w1"]   = jnp.stack([l["w1"] for l in enc])
    params["enc_w2"]   = jnp.stack([l["w2"] for l in enc])
    params["enc_vec"]  = jnp.stack([l["vec"] for l in enc])

    params["dec_swqkv"] = jnp.stack([l["swqkv"] for l in dec])
    params["dec_swo"]   = jnp.stack([l["swo"] for l in dec])
    params["dec_cwq"]   = jnp.stack([l["cwq"] for l in dec])
    params["dec_cwkv"]  = jnp.stack([l["cwkv"] for l in dec])
    params["dec_cwo"]   = jnp.stack([l["cwo"] for l in dec])
    params["dec_w1"]    = jnp.stack([l["w1"] for l in dec])
    params["dec_w2"]    = jnp.stack([l["w2"] for l in dec])
    params["dec_vec"]   = jnp.stack([l["vec"] for l in dec])

    w_out, b_out = _init_linear(keys[1], D_MODEL, VOCAB)
    params["w_out"] = jnp.zeros((D_MODEL, LOGIT_PAD), jnp.float32).at[:, :VOCAB].set(w_out)
    params["b_out"] = jnp.zeros((1, LOGIT_PAD), jnp.float32).at[:, :VOCAB].set(b_out)
    return params


# ----------------------------- main -----------------------------
if __name__ == "__main__":
    root = jax.random.PRNGKey(0)
    kp, ks, kt = jax.random.split(root, 3)

    params = init_params(kp)

    src = jax.random.randint(ks, (BATCH, SRC_LEN), 0, VOCAB, dtype=jnp.int32)
    tgt = jax.random.randint(kt, (BATCH, TGT_LEN), 0, VOCAB, dtype=jnp.int32)

    # src_mask: all-valid (B, 1, 1, S); tgt_mask: causal (B, 1, T, T)
    src_mask = jnp.ones((BATCH, 1, 1, SRC_LEN), jnp.float32)
    causal = jnp.tril(jnp.ones((TGT_LEN, TGT_LEN), jnp.float32))
    tgt_mask = jnp.broadcast_to(causal, (BATCH, 1, TGT_LEN, TGT_LEN))

    logits = transformer_forward(params, src, src_mask, tgt, tgt_mask)
    logits = jax.block_until_ready(logits)

    assert logits.shape == (BATCH, TGT_LEN, VOCAB)
    assert bool(jnp.all(jnp.isfinite(logits)))
    print("KERNEL_OK")
</pallas_src>

<mosaic_0001>
module attributes {stable_mosaic.version = 11 : i64} {
  func.func @_transformer_kernel(%arg0: memref<16x1xi32, #tpu.memory_space<vmem>>, %arg1: memref<16x1xi32, #tpu.memory_space<vmem>>, %arg2: memref<64x32xf32, #tpu.memory_space<vmem>>, %arg3: memref<16x32xf32, #tpu.memory_space<vmem>>, %arg4: memref<16x32xf32, #tpu.memory_space<vmem>>, %arg5: memref<16x16xf32, #tpu.memory_space<vmem>>, %arg6: memref<16x16xf32, #tpu.memory_space<vmem>>, %arg7: memref<16x16xf32, #tpu.memory_space<vmem>>, %arg8: memref<2x32x96xf32, #tpu.memory_space<vmem>>, %arg9: memref<2x32x32xf32, #tpu.memory_space<vmem>>, %arg10: memref<2x32x64xf32, #tpu.memory_space<vmem>>, %arg11: memref<2x64x32xf32, #tpu.memory_space<vmem>>, %arg12: memref<2x8x128xf32, #tpu.memory_space<vmem>>, %arg13: memref<2x32x96xf32, #tpu.memory_space<vmem>>, %arg14: memref<2x32x32xf32, #tpu.memory_space<vmem>>, %arg15: memref<2x32x32xf32, #tpu.memory_space<vmem>>, %arg16: memref<2x32x64xf32, #tpu.memory_space<vmem>>, %arg17: memref<2x32x32xf32, #tpu.memory_space<vmem>>, %arg18: memref<2x32x64xf32, #tpu.memory_space<vmem>>, %arg19: memref<2x64x32xf32, #tpu.memory_space<vmem>>, %arg20: memref<2x16x128xf32, #tpu.memory_space<vmem>>, %arg21: memref<32x128xf32, #tpu.memory_space<vmem>>, %arg22: memref<1x128xf32, #tpu.memory_space<vmem>>, %arg23: memref<16x128xf32, #tpu.memory_space<vmem>>) attributes {dimension_semantics = [], scalar_prefetch = 0 : i64, scratch_operands = 0 : i64, tpu.core_type = #tpu.core_type<tc>} {
    %c0 = arith.constant 0 : index
    %c0_0 = arith.constant 0 : index
    %0 = vector.load %arg2[%c0, %c0_0] : memref<64x32xf32, #tpu.memory_space<vmem>>, vector<64x32xf32>
    %c0_1 = arith.constant 0 : index
    %c0_2 = arith.constant 0 : index
    %1 = vector.load %arg0[%c0_1, %c0_2] : memref<16x1xi32, #tpu.memory_space<vmem>>, vector<16x1xi32>
    %2 = tpu.iota {dimensions = array<i32: 1>} : vector<16x64xi32>
    %3 = vector.broadcast %1 : vector<16x1xi32> to vector<16x64xi32>
    %4 = arith.cmpi eq, %2, %3 : vector<16x64xi32>
    %5 = arith.extui %4 : vector<16x64xi1> to vector<16x64xi32>
    %6 = arith.sitofp %5 : vector<16x64xi32> to vector<16x64xf32>
    %cst = arith.constant dense<0.000000e+00> : vector<16x32xf32>
    %7 = tpu.matmul %6, %0, %cst {dimension_numbers = #tpu.dot_dimension_numbers<[1], [0], [0], [1], [0, 0, 1, 1], [], []>} : vector<16x64xf32>, vector<64x32xf32>, vector<16x32xf32> -> vector<16x32xf32>
    %cst_3 = arith.constant 5.65685415 : f32
    %8 = vector.broadcast %cst_3 : f32 to vector<16x32xf32>
    %9 = arith.mulf %7, %8 : vector<16x32xf32>
    %c0_4 = arith.constant 0 : index
    %c0_5 = arith.constant 0 : index
    %10 = vector.load %arg3[%c0_4, %c0_5] : memref<16x32xf32, #tpu.memory_space<vmem>>, vector<16x32xf32>
    %11 = arith.addf %9, %10 : vector<16x32xf32>
    %c0_6 = arith.constant 0 : index
    %c0_7 = arith.constant 0 : index
    %12 = vector.load %arg5[%c0_6, %c0_7] : memref<16x16xf32, #tpu.memory_space<vmem>>, vector<16x16xf32>
    %c0_8 = arith.constant 0 : index
    %c0_9 = arith.constant 0 : index
    %c0_10 = arith.constant 0 : index
    %13 = vector.load %arg8[%c0_8, %c0_9, %c0_10] : memref<2x32x96xf32, #tpu.memory_space<vmem>>, vector<1x32x96xf32>
    %14 = vector.shape_cast %13 : vector<1x32x96xf32> to vector<32x96xf32>
    %c0_11 = arith.constant 0 : index
    %c0_12 = arith.constant 0 : index
    %c0_13 = arith.constant 0 : index
    %15 = vector.load %arg9[%c0_11, %c0_12, %c0_13] : memref<2x32x32xf32, #tpu.memory_space<vmem>>, vector<1x32x32xf32>
    %16 = vector.shape_cast %15 : vector<1x32x32xf32> to vector<32x32xf32>
    %c0_14 = arith.constant 0 : index
    %c0_15 = arith.constant 0 : index
    %c0_16 = arith.constant 0 : index
    %17 = vector.load %arg10[%c0_14, %c0_15, %c0_16] : memref<2x32x64xf32, #tpu.memory_space<vmem>>, vector<1x32x64xf32>
    %18 = vector.shape_cast %17 : vector<1x32x64xf32> to vector<32x64xf32>
    %c0_17 = arith.constant 0 : index
    %c0_18 = arith.constant 0 : index
    %c0_19 = arith.constant 0 : index
    %19 = vector.load %arg11[%c0_17, %c0_18, %c0_19] : memref<2x64x32xf32, #tpu.memory_space<vmem>>, vector<1x64x32xf32>
    %20 = vector.shape_cast %19 : vector<1x64x32xf32> to vector<64x32xf32>
    %c0_20 = arith.constant 0 : index
    %c0_21 = arith.constant 0 : index
    %c0_22 = arith.constant 0 : index
    %21 = vector.load %arg12[%c0_20, %c0_21, %c0_22] : memref<2x8x128xf32, #tpu.memory_space<vmem>>, vector<1x8x128xf32>
    %22 = vector.shape_cast %21 : vector<1x8x128xf32> to vector<8x128xf32>
    %23 = vector.extract_strided_slice %22 {offsets = [0, 0], sizes = [1, 96], strides = [1, 1]} : vector<8x128xf32> to vector<1x96xf32>
    %24 = vector.extract_strided_slice %22 {offsets = [1, 0], sizes = [1, 32], strides = [1, 1]} : vector<8x128xf32> to vector<1x32xf32>
    %25 = vector.extract_strided_slice %22 {offsets = [2, 0], sizes = [1, 64], strides = [1, 1]} : vector<8x128xf32> to vector<1x64xf32>
    %26 = vector.extract_strided_slice %22 {offsets = [3, 0], sizes = [1, 32], strides = [1, 1]} : vector<8x128xf32> to vector<1x32xf32>
    %27 = vector.extract_strided_slice %22 {offsets = [4, 0], sizes = [1, 32], strides = [1, 1]} : vector<8x128xf32> to vector<1x32xf32>
    %28 = vector.extract_strided_slice %22 {offsets = [5, 0], sizes = [1, 32], strides = [1, 1]} : vector<8x128xf32> to vector<1x32xf32>
    %29 = vector.extract_strided_slice %22 {offsets = [6, 0], sizes = [1, 32], strides = [1, 1]} : vector<8x128xf32> to vector<1x32xf32>
    %30 = vector.extract_strided_slice %22 {offsets = [7, 0], sizes = [1, 32], strides = [1, 1]} : vector<8x128xf32> to vector<1x32xf32>
    %cst_23 = arith.constant dense<0.000000e+00> : vector<16x96xf32>
    %31 = tpu.matmul %11, %14, %cst_23 {dimension_numbers = #tpu.dot_dimension_numbers<[1], [0], [0], [1], [0, 0, 1, 1], [], []>} : vector<16x32xf32>, vector<32x96xf32>, vector<16x96xf32> -> vector<16x96xf32>
    %32 = vector.broadcast %23 : vector<1x96xf32> to vector<16x96xf32>
    %33 = arith.addf %31, %32 : vector<16x96xf32>
    %34 = vector.extract_strided_slice %33 {offsets = [0, 0], sizes = [16, 32], strides = [1, 1]} : vector<16x96xf32> to vector<16x32xf32>
    %35 = vector.extract_strided_slice %33 {offsets = [0, 32], sizes = [16, 64], strides = [1, 1]} : vector<16x96xf32> to vector<16x64xf32>
    %36 = vector.extract_strided_slice %34 {offsets = [0, 0], sizes = [16, 8], strides = [1, 1]} : vector<16x32xf32> to vector<16x8xf32>
    %37 = vector.extract_strided_slice %35 {offsets = [0, 0], sizes = [16, 8], strides = [1, 1]} : vector<16x64xf32> to vector<16x8xf32>
    %38 = vector.extract_strided_slice %35 {offsets = [0, 32], sizes = [16, 8], strides = [1, 1]} : vector<16x64xf32> to vector<16x8xf32>
    "tpu.trace_start"() <{level = 10 : i32, message = "qd,kd->qk"}> : () -> ()
    %cst_24 = arith.constant dense<0.000000e+00> : vector<16x16xf32>
    %39 = tpu.matmul %36, %37, %cst_24 {dimension_numbers = #tpu.dot_dimension_numbers<[1], [1], [0], [0], [0, 0, 1, 0], [], []>} : vector<16x8xf32>, vector<16x8xf32>, vector<16x16xf32> -> vector<16x16xf32>
    "tpu.trace_stop"() : () -> ()
    %40 = arith.addf %39, %12 : vector<16x16xf32>
    %cst_25 = arith.constant dense<0xFF800000> : vector<16xf32>
    %41 = vector.multi_reduction <maximumf>, %40, %cst_25 [1] : vector<16x16xf32> to vector<16xf32>
    %42 = vector.shape_cast %41 : vector<16xf32> to vector<16x1xf32>
    %43 = vector.broadcast %42 : vector<16x1xf32> to vector<16x16xf32>
    %44 = arith.subf %40, %43 : vector<16x16xf32>
    %45 = math.exp %44 : vector<16x16xf32>
    %cst_26 = arith.constant dense<0.000000e+00> : vector<16xf32>
    %46 = vector.multi_reduction <add>, %45, %cst_26 [1] : vector<16x16xf32> to vector<16xf32>
    %47 = vector.shape_cast %46 : vector<16xf32> to vector<16x1xf32>
    %48 = tpu.reciprocal %47 {approx = true} : vector<16x1xf32> -> vector<16x1xf32>
    %49 = vector.broadcast %48 : vector<16x1xf32> to vector<16x16xf32>
    %50 = arith.mulf %45, %49 : vector<16x16xf32>
    %cst_27 = arith.constant dense<0.000000e+00> : vector<16x8xf32>
    %51 = tpu.matmul %50, %38, %cst_27 {dimension_numbers = #tpu.dot_dimension_numbers<[1], [0], [0], [1], [0, 0, 1, 1], [], []>} : vector<16x16xf32>, vector<16x8xf32>, vector<16x8xf32> -> vector<16x8xf32>
    %52 = vector.extract_strided_slice %16 {offsets = [0, 0], sizes = [8, 32], strides = [1, 1]} : vector<32x32xf32> to vector<8x32xf32>
    %cst_28 = arith.constant dense<0.000000e+00> : vector<16x32xf32>
    %53 = tpu.matmul %51, %52, %cst_28 {dimension_numbers = #tpu.dot_dimension_numbers<[1], [0], [0], [1], [0, 0, 1, 1], [], []>} : vector<16x8xf32>, vector<8x32xf32>, vector<16x32xf32> -> vector<16x32xf32>
    %54 = vector.extract_strided_slice %34 {offsets = [0, 8], sizes = [16, 8], strides = [1, 1]} : vector<16x32xf32> to vector<16x8xf32>
    %55 = vector.extract_strided_slice %35 {offsets = [0, 8], sizes = [16, 8], strides = [1, 1]} : vector<16x64xf32> to vector<16x8xf32>
    %56 = vector.extract_strided_slice %35 {offsets = [0, 40], sizes = [16, 8], strides = [1, 1]} : vector<16x64xf32> to vector<16x8xf32>
    "tpu.trace_start"() <{level = 10 : i32, message = "qd,kd->qk"}> : () -> ()
    %cst_29 = arith.constant dense<0.000000e+00> : vector<16x16xf32>
    %57 = tpu.matmul %54, %55, %cst_29 {dimension_numbers = #tpu.dot_dimension_numbers<[1], [1], [0], [0], [0, 0, 1, 0], [], []>} : vector<16x8xf32>, vector<16x8xf32>, vector<16x16xf32> -> vector<16x16xf32>
    "tpu.trace_stop"() : () -> ()
    %58 = arith.addf %57, %12 : vector<16x16xf32>
    %cst_30 = arith.constant dense<0xFF800000> : vector<16xf32>
    %59 = vector.multi_reduction <maximumf>, %58, %cst_30 [1] : vector<16x16xf32> to vector<16xf32>
    %60 = vector.shape_cast %59 : vector<16xf32> to vector<16x1xf32>
    %61 = vector.broadcast %60 : vector<16x1xf32> to vector<16x16xf32>
    %62 = arith.subf %58, %61 : vector<16x16xf32>
    %63 = math.exp %62 : vector<16x16xf32>
    %cst_31 = arith.constant dense<0.000000e+00> : vector<16xf32>
    %64 = vector.multi_reduction <add>, %63, %cst_31 [1] : vector<16x16xf32> to vector<16xf32>
    %65 = vector.shape_cast %64 : vector<16xf32> to vector<16x1xf32>
    %66 = tpu.reciprocal %65 {approx = true} : vector<16x1xf32> -> vector<16x1xf32>
    %67 = vector.broadcast %66 : vector<16x1xf32> to vector<16x16xf32>
    %68 = arith.mulf %63, %67 : vector<16x16xf32>
    %cst_32 = arith.constant dense<0.000000e+00> : vector<16x8xf32>
    %69 = tpu.matmul %68, %56, %cst_32 {dimension_numbers = #tpu.dot_dimension_numbers<[1], [0], [0], [1], [0, 0, 1, 1], [], []>} : vector<16x16xf32>, vector<16x8xf32>, vector<16x8xf32> -> vector<16x8xf32>
    %70 = vector.extract_strided_slice %16 {offsets = [8, 0], sizes = [8, 32], strides = [1, 1]} : vector<32x32xf32> to vector<8x32xf32>
    %cst_33 = arith.constant dense<0.000000e+00> : vector<16x32xf32>
    %71 = tpu.matmul %69, %70, %cst_33 {dimension_numbers = #tpu.dot_dimension_numbers<[1], [0], [0], [1], [0, 0, 1, 1], [], []>} : vector<16x8xf32>, vector<8x32xf32>, vector<16x32xf32> -> vector<16x32xf32>
    %72 = arith.addf %53, %71 : vector<16x32xf32>
    %73 = vector.extract_strided_slice %34 {offsets = [0, 16], sizes = [16, 8], strides = [1, 1]} : vector<16x32xf32> to vector<16x8xf32>
    %74 = vector.extract_strided_slice %35 {offsets = [0, 16], sizes = [16, 8], strides = [1, 1]} : vector<16x64xf32> to vector<16x8xf32>
    %75 = vector.extract_strided_slice %35 {offsets = [0, 48], sizes = [16, 8], strides = [1, 1]} : vector<16x64xf32> to vector<16x8xf32>
    "tpu.trace_start"() <{level = 10 : i32, message = "qd,kd->qk"}> : () -> ()
    %cst_34 = arith.constant dense<0.000000e+00> : vector<16x16xf32>
    %76 = tpu.matmul %73, %74, %cst_34 {dimension_numbers = #tpu.dot_dimension_numbers<[1], [1], [0], [0], [0, 0, 1, 0], [], []>} : vector<16x8xf32>, vector<16x8xf32>, vector<16x16xf32> -> vector<16x16xf32>
    "tpu.trace_stop"() : () -> ()
    %77 = arith.addf %76, %12 : vector<16x16xf32>
    %cst_35 = arith.constant dense<0xFF800000> : vector<16xf32>
    %78 = vector.multi_reduction <maximumf>, %77, %cst_35 [1] : vector<16x16xf32> to vector<16xf32>
    %79 = vector.shape_cast %78 : vector<16xf32> to vector<16x1xf32>
    %80 = vector.broadcast %79 : vector<16x1xf32> to vector<16x16xf32>
    %81 = arith.subf %77, %80 : vector<16x16xf32>
    %82 = math.exp %81 : vector<16x16xf32>
    %cst_36 = arith.constant dense<0.000000e+00> : vector<16xf32>
    %83 = vector.multi_reduction <add>, %82, %cst_36 [1] : vector<16x16xf32> to vector<16xf32>
    %84 = vector.shape_cast %83 : vector<16xf32> to vector<16x1xf32>
    %85 = tpu.reciprocal %84 {approx = true} : vector<16x1xf32> -> vector<16x1xf32>
    %86 = vector.broadcast %85 : vector<16x1xf32> to vector<16x16xf32>
    %87 = arith.mulf %82, %86 : vector<16x16xf32>
    %cst_37 = arith.constant dense<0.000000e+00> : vector<16x8xf32>
    %88 = tpu.matmul %87, %75, %cst_37 {dimension_numbers = #tpu.dot_dimension_numbers<[1], [0], [0], [1], [0, 0, 1, 1], [], []>} : vector<16x16xf32>, vector<16x8xf32>, vector<16x8xf32> -> vector<16x8xf32>
    %89 = vector.extract_strided_slice %16 {offsets = [16, 0], sizes = [8, 32], strides = [1, 1]} : vector<32x32xf32> to vector<8x32xf32>
    %cst_38 = arith.constant dense<0.000000e+00> : vector<16x32xf32>
    %90 = tpu.matmul %88, %89, %cst_38 {dimension_numbers = #tpu.dot_dimension_numbers<[1], [0], [0], [1], [0, 0, 1, 1], [], []>} : vector<16x8xf32>, vector<8x32xf32>, vector<16x32xf32> -> vector<16x32xf32>
    %91 = arith.addf %72, %90 : vector<16x32xf32>
    %92 = vector.extract_strided_slice %34 {offsets = [0, 24], sizes = [16, 8], strides = [1, 1]} : vector<16x32xf32> to vector<16x8xf32>
    %93 = vector.extract_strided_slice %35 {offsets = [0, 24], sizes = [16, 8], strides = [1, 1]} : vector<16x64xf32> to vector<16x8xf32>
    %94 = vector.extract_strided_slice %35 {offsets = [0, 56], sizes = [16, 8], strides = [1, 1]} : vector<16x64xf32> to vector<16x8xf32>
    "tpu.trace_start"() <{level = 10 : i32, message = "qd,kd->qk"}> : () -> ()
    %cst_39 = arith.constant dense<0.000000e+00> : vector<16x16xf32>
    %95 = tpu.matmul %92, %93, %cst_39 {dimension_numbers = #tpu.dot_dimension_numbers<[1], [1], [0], [0], [0, 0, 1, 0], [], []>} : vector<16x8xf32>, vector<16x8xf32>, vector<16x16xf32> -> vector<16x16xf32>
    "tpu.trace_stop"() : () -> ()
    %96 = arith.addf %95, %12 : vector<16x16xf32>
    %cst_40 = arith.constant dense<0xFF800000> : vector<16xf32>
    %97 = vector.multi_reduction <maximumf>, %96, %cst_40 [1] : vector<16x16xf32> to vector<16xf32>
    %98 = vector.shape_cast %97 : vector<16xf32> to vector<16x1xf32>
    %99 = vector.broadcast %98 : vector<16x1xf32> to vector<16x16xf32>
    %100 = arith.subf %96, %99 : vector<16x16xf32>
    %101 = math.exp %100 : vector<16x16xf32>
    %cst_41 = arith.constant dense<0.000000e+00> : vector<16xf32>
    %102 = vector.multi_reduction <add>, %101, %cst_41 [1] : vector<16x16xf32> to vector<16xf32>
    %103 = vector.shape_cast %102 : vector<16xf32> to vector<16x1xf32>
    %104 = tpu.reciprocal %103 {approx = true} : vector<16x1xf32> -> vector<16x1xf32>
    %105 = vector.broadcast %104 : vector<16x1xf32> to vector<16x16xf32>
    %106 = arith.mulf %101, %105 : vector<16x16xf32>
    %cst_42 = arith.constant dense<0.000000e+00> : vector<16x8xf32>
    %107 = tpu.matmul %106, %94, %cst_42 {dimension_numbers = #tpu.dot_dimension_numbers<[1], [0], [0], [1], [0, 0, 1, 1], [], []>} : vector<16x16xf32>, vector<16x8xf32>, vector<16x8xf32> -> vector<16x8xf32>
    %108 = vector.extract_strided_slice %16 {offsets = [24, 0], sizes = [8, 32], strides = [1, 1]} : vector<32x32xf32> to vector<8x32xf32>
    %cst_43 = arith.constant dense<0.000000e+00> : vector<16x32xf32>
    %109 = tpu.matmul %107, %108, %cst_43 {dimension_numbers = #tpu.dot_dimension_numbers<[1], [0], [0], [1], [0, 0, 1, 1], [], []>} : vector<16x8xf32>, vector<8x32xf32>, vector<16x32xf32> -> vector<16x32xf32>
    %110 = arith.addf %91, %109 : vector<16x32xf32>
    %111 = vector.broadcast %24 : vector<1x32xf32> to vector<16x32xf32>
    %112 = arith.addf %110, %111 : vector<16x32xf32>
    %113 = arith.addf %11, %112 : vector<16x32xf32>
    %cst_44 = arith.constant dense<0.000000e+00> : vector<16xf32>
    %114 = vector.multi_reduction <add>, %113, %cst_44 [1] : vector<16x32xf32> to vector<16xf32>
    %115 = vector.shape_cast %114 : vector<16xf32> to vector<16x1xf32>
    %cst_45 = arith.constant 3.200000e+01 : f32
    %116 = vector.broadcast %cst_45 : f32 to vector<16x1xf32>
    %117 = arith.divf %115, %116 : vector<16x1xf32>
    %118 = vector.broadcast %117 : vector<16x1xf32> to vector<16x32xf32>
    %119 = arith.subf %113, %118 : vector<16x32xf32>
    %120 = arith.mulf %119, %119 : vector<16x32xf32>
    %cst_46 = arith.constant dense<0.000000e+00> : vector<16xf32>
    %121 = vector.multi_reduction <add>, %120, %cst_46 [1] : vector<16x32xf32> to vector<16xf32>
    %122 = vector.shape_cast %121 : vector<16xf32> to vector<16x1xf32>
    %cst_47 = arith.constant 3.200000e+01 : f32
    %123 = vector.broadcast %cst_47 : f32 to vector<16x1xf32>
    %124 = arith.divf %122, %123 : vector<16x1xf32>
    %125 = vector.broadcast %117 : vector<16x1xf32> to vector<16x32xf32>
    %126 = arith.subf %113, %125 : vector<16x32xf32>
    %cst_48 = arith.constant 9.99999974E-6 : f32
    %127 = vector.broadcast %cst_48 : f32 to vector<16x1xf32>
    %128 = arith.addf %124, %127 : vector<16x1xf32>
    %129 = math.rsqrt %128 : vector<16x1xf32>
    %130 = vector.broadcast %129 : vector<16x1xf32> to vector<16x32xf32>
    %131 = arith.mulf %126, %130 : vector<16x32xf32>
    %132 = vector.broadcast %27 : vector<1x32xf32> to vector<16x32xf32>
    %133 = arith.mulf %131, %132 : vector<16x32xf32>
    %134 = vector.broadcast %28 : vector<1x32xf32> to vector<16x32xf32>
    %135 = arith.addf %133, %134 : vector<16x32xf32>
    %cst_49 = arith.constant dense<0.000000e+00> : vector<16x64xf32>
    %136 = tpu.matmul %135, %18, %cst_49 {dimension_numbers = #tpu.dot_dimension_numbers<[1], [0], [0], [1], [0, 0, 1, 1], [], []>} : vector<16x32xf32>, vector<32x64xf32>, vector<16x64xf32> -> vector<16x64xf32>
    %137 = vector.broadcast %25 : vector<1x64xf32> to vector<16x64xf32>
    %138 = arith.addf %136, %137 : vector<16x64xf32>
    %cst_50 = arith.constant 0.000000e+00 : f32
    %139 = vector.broadcast %cst_50 : f32 to vector<16x64xf32>
    %140 = arith.maximumf %138, %139 : vector<16x64xf32>
    %cst_51 = arith.constant dense<0.000000e+00> : vector<16x32xf32>
    %141 = tpu.matmul %140, %20, %cst_51 {dimension_numbers = #tpu.dot_dimension_numbers<[1], [0], [0], [1], [0, 0, 1, 1], [], []>} : vector<16x64xf32>, vector<64x32xf32>, vector<16x32xf32> -> vector<16x32xf32>
    %142 = vector.broadcast %26 : vector<1x32xf32> to vector<16x32xf32>
    %143 = arith.addf %141, %142 : vector<16x32xf32>
    %144 = arith.addf %135, %143 : vector<16x32xf32>
    %cst_52 = arith.constant dense<0.000000e+00> : vector<16xf32>
    %145 = vector.multi_reduction <add>, %144, %cst_52 [1] : vector<16x32xf32> to vector<16xf32>
    %146 = vector.shape_cast %145 : vector<16xf32> to vector<16x1xf32>
    %cst_53 = arith.constant 3.200000e+01 : f32
    %147 = vector.broadcast %cst_53 : f32 to vector<16x1xf32>
    %148 = arith.divf %146, %147 : vector<16x1xf32>
    %149 = vector.broadcast %148 : vector<16x1xf32> to vector<16x32xf32>
    %150 = arith.subf %144, %149 : vector<16x32xf32>
    %151 = arith.mulf %150, %150 : vector<16x32xf32>
    %cst_54 = arith.constant dense<0.000000e+00> : vector<16xf32>
    %152 = vector.multi_reduction <add>, %151, %cst_54 [1] : vector<16x32xf32> to vector<16xf32>
    %153 = vector.shape_cast %152 : vector<16xf32> to vector<16x1xf32>
    %cst_55 = arith.constant 3.200000e+01 : f32
    %154 = vector.broadcast %cst_55 : f32 to vector<16x1xf32>
    %155 = arith.divf %153, %154 : vector<16x1xf32>
    %156 = vector.broadcast %148 : vector<16x1xf32> to vector<16x32xf32>
    %157 = arith.subf %144, %156 : vector<16x32xf32>
    %cst_56 = arith.constant 9.99999974E-6 : f32
    %158 = vector.broadcast %cst_56 : f32 to vector<16x1xf32>
    %159 = arith.addf %155, %158 : vector<16x1xf32>
    %160 = math.rsqrt %159 : vector<16x1xf32>
    %161 = vector.broadcast %160 : vector<16x1xf32> to vector<16x32xf32>
    %162 = arith.mulf %157, %161 : vector<16x32xf32>
    %163 = vector.broadcast %29 : vector<1x32xf32> to vector<16x32xf32>
    %164 = arith.mulf %162, %163 : vector<16x32xf32>
    %165 = vector.broadcast %30 : vector<1x32xf32> to vector<16x32xf32>
    %166 = arith.addf %164, %165 : vector<16x32xf32>
    %c1 = arith.constant 1 : index
    %c0_57 = arith.constant 0 : index
    %c0_58 = arith.constant 0 : index
    %167 = vector.load %arg8[%c1, %c0_57, %c0_58] : memref<2x32x96xf32, #tpu.memory_space<vmem>>, vector<1x32x96xf32>
    %168 = vector.shape_cast %167 : vector<1x32x96xf32> to vector<32x96xf32>
    %c1_59 = arith.constant 1 : index
    %c0_60 = arith.constant 0 : index
    %c0_61 = arith.constant 0 : index
    %169 = vector.load %arg9[%c1_59, %c0_60, %c0_61] : memref<2x32x32xf32, #tpu.memory_space<vmem>>, vector<1x32x32xf32>
    %170 = vector.shape_cast %169 : vector<1x32x32xf32> to vector<32x32xf32>
    %c1_62 = arith.constant 1 : index
    %c0_63 = arith.constant 0 : index
    %c0_64 = arith.constant 0 : index
    %171 = vector.load %arg10[%c1_62, %c0_63, %c0_64] : memref<2x32x64xf32, #tpu.memory_space<vmem>>, vector<1x32x64xf32>
    %172 = vector.shape_cast %171 : vector<1x32x64xf32> to vector<32x64xf32>
    %c1_65 = arith.constant 1 : index
    %c0_66 = arith.constant 0 : index
    %c0_67 = arith.constant 0 : index
    %173 = vector.load %arg11[%c1_65, %c0_66, %c0_67] : memref<2x64x32xf32, #tpu.memory_space<vmem>>, vector<1x64x32xf32>
    %174 = vector.shape_cast %173 : vector<1x64x32xf32> to vector<64x32xf32>
    %c1_68 = arith.constant 1 : index
    %c0_69 = arith.constant 0 : index
    %c0_70 = arith.constant 0 : index
    %175 = vector.load %arg12[%c1_68, %c0_69, %c0_70] : memref<2x8x128xf32, #tpu.memory_space<vmem>>, vector<1x8x128xf32>
    %176 = vector.shape_cast %175 : vector<1x8x128xf32> to vector<8x128xf32>
    %177 = vector.extract_strided_slice %176 {offsets = [0, 0], sizes = [1, 96], strides = [1, 1]} : vector<8x128xf32> to vector<1x96xf32>
    %178 = vector.extract_strided_slice %176 {offsets = [1, 0], sizes = [1, 32], strides = [1, 1]} : vector<8x128xf32> to vector<1x32xf32>
    %179 = vector.extract_strided_slice %176 {offsets = [2, 0], sizes = [1, 64], strides = [1, 1]} : vector<8x128xf32> to vector<1x64xf32>
    %180 = vector.extract_strided_slice %176 {offsets = [3, 0], sizes = [1, 32], strides = [1, 1]} : vector<8x128xf32> to vector<1x32xf32>
    %181 = vector.extract_strided_slice %176 {offsets = [4, 0], sizes = [1, 32], strides = [1, 1]} : vector<8x128xf32> to vector<1x32xf32>
    %182 = vector.extract_strided_slice %176 {offsets = [5, 0], sizes = [1, 32], strides = [1, 1]} : vector<8x128xf32> to vector<1x32xf32>
    %183 = vector.extract_strided_slice %176 {offsets = [6, 0], sizes = [1, 32], strides = [1, 1]} : vector<8x128xf32> to vector<1x32xf32>
    %184 = vector.extract_strided_slice %176 {offsets = [7, 0], sizes = [1, 32], strides = [1, 1]} : vector<8x128xf32> to vector<1x32xf32>
    %cst_71 = arith.constant dense<0.000000e+00> : vector<16x96xf32>
    %185 = tpu.matmul %166, %168, %cst_71 {dimension_numbers = #tpu.dot_dimension_numbers<[1], [0], [0], [1], [0, 0, 1, 1], [], []>} : vector<16x32xf32>, vector<32x96xf32>, vector<16x96xf32> -> vector<16x96xf32>
    %186 = vector.broadcast %177 : vector<1x96xf32> to vector<16x96xf32>
    %187 = arith.addf %185, %186 : vector<16x96xf32>
    %188 = vector.extract_strided_slice %187 {offsets = [0, 0], sizes = [16, 32], strides = [1, 1]} : vector<16x96xf32> to vector<16x32xf32>
    %189 = vector.extract_strided_slice %187 {offsets = [0, 32], sizes = [16, 64], strides = [1, 1]} : vector<16x96xf32> to vector<16x64xf32>
    %190 = vector.extract_strided_slice %188 {offsets = [0, 0], sizes = [16, 8], strides = [1, 1]} : vector<16x32xf32> to vector<16x8xf32>
    %191 = vector.extract_strided_slice %189 {offsets = [0, 0], sizes = [16, 8], strides = [1, 1]} : vector<16x64xf32> to vector<16x8xf32>
    %192 = vector.extract_strided_slice %189 {offsets = [0, 32], sizes = [16, 8], strides = [1, 1]} : vector<16x64xf32> to vector<16x8xf32>
    "tpu.trace_start"() <{level = 10 : i32, message = "qd,kd->qk"}> : () -> ()
    %cst_72 = arith.constant dense<0.000000e+00> : vector<16x16xf32>
    %193 = tpu.matmul %190, %191, %cst_72 {dimension_numbers = #tpu.dot_dimension_numbers<[1], [1], [0], [0], [0, 0, 1, 0], [], []>} : vector<16x8xf32>, vector<16x8xf32>, vector<16x16xf32> -> vector<16x16xf32>
    "tpu.trace_stop"() : () -> ()
    %194 = arith.addf %193, %12 : vector<16x16xf32>
    %cst_73 = arith.constant dense<0xFF800000> : vector<16xf32>
    %195 = vector.multi_reduction <maximumf>, %194, %cst_73 [1] : vector<16x16xf32> to vector<16xf32>
    %196 = vector.shape_cast %195 : vector<16xf32> to vector<16x1xf32>
    %197 = vector.broadcast %196 : vector<16x1xf32> to vector<16x16xf32>
    %198 = arith.subf %194, %197 : vector<16x16xf32>
    %199 = math.exp %198 : vector<16x16xf32>
    %cst_74 = arith.constant dense<0.000000e+00> : vector<16xf32>
    %200 = vector.multi_reduction <add>, %199, %cst_74 [1] : vector<16x16xf32> to vector<16xf32>
    %201 = vector.shape_cast %200 : vector<16xf32> to vector<16x1xf32>
    %202 = tpu.reciprocal %201 {approx = true} : vector<16x1xf32> -> vector<16x1xf32>
    %203 = vector.broadcast %202 : vector<16x1xf32> to vector<16x16xf32>
    %204 = arith.mulf %199, %203 : vector<16x16xf32>
    %cst_75 = arith.constant dense<0.000000e+00> : vector<16x8xf32>
    %205 = tpu.matmul %204, %192, %cst_75 {dimension_numbers = #tpu.dot_dimension_numbers<[1], [0], [0], [1], [0, 0, 1, 1], [], []>} : vector<16x16xf32>, vector<16x8xf32>, vector<16x8xf32> -> vector<16x8xf32>
    %206 = vector.extract_strided_slice %170 {offsets = [0, 0], sizes = [8, 32], strides = [1, 1]} : vector<32x32xf32> to vector<8x32xf32>
    %cst_76 = arith.constant dense<0.000000e+00> : vector<16x32xf32>
    %207 = tpu.matmul %205, %206, %cst_76 {dimension_numbers = #tpu.dot_dimension_numbers<[1], [0], [0], [1], [0, 0, 1, 1], [], []>} : vector<16x8xf32>, vector<8x32xf32>, vector<16x32xf32> -> vector<16x32xf32>
    %208 = vector.extract_strided_slice %188 {offsets = [0, 8], sizes = [16, 8], strides = [1, 1]} : vector<16x32xf32> to vector<16x8xf32>
    %209 = vector.extract_strided_slice %189 {offsets = [0, 8], sizes = [16, 8], strides = [1, 1]} : vector<16x64xf32> to vector<16x8xf32>
    %210 = vector.extract_strided_slice %189 {offsets = [0, 40], sizes = [16, 8], strides = [1, 1]} : vector<16x64xf32> to vector<16x8xf32>
    "tpu.trace_start"() <{level = 10 : i32, message = "qd,kd->qk"}> : () -> ()
    %cst_77 = arith.constant dense<0.000000e+00> : vector<16x16xf32>
    %211 = tpu.matmul %208, %209, %cst_77 {dimension_numbers = #tpu.dot_dimension_numbers<[1], [1], [0], [0], [0, 0, 1, 0], [], []>} : vector<16x8xf32>, vector<16x8xf32>, vector<16x16xf32> -> vector<16x16xf32>
    "tpu.trace_stop"() : () -> ()
    %212 = arith.addf %211, %12 : vector<16x16xf32>
    %cst_78 = arith.constant dense<0xFF800000> : vector<16xf32>
    %213 = vector.multi_reduction <maximumf>, %212, %cst_78 [1] : vector<16x16xf32> to vector<16xf32>
    %214 = vector.shape_cast %213 : vector<16xf32> to vector<16x1xf32>
    %215 = vector.broadcast %214 : vector<16x1xf32> to vector<16x16xf32>
    %216 = arith.subf %212, %215 : vector<16x16xf32>
    %217 = math.exp %216 : vector<16x16xf32>
    %cst_79 = arith.constant dense<0.000000e+00> : vector<16xf32>
    %218 = vector.multi_reduction <add>, %217, %cst_79 [1] : vector<16x16xf32> to vector<16xf32>
    %219 = vector.shape_cast %218 : vector<16xf32> to vector<16x1xf32>
    %220 = tpu.reciprocal %219 {approx = true} : vector<16x1xf32> -> vector<16x1xf32>
    %221 = vector.broadcast %220 : vector<16x1xf32> to vector<16x16xf32>
    %222 = arith.mulf %217, %221 : vector<16x16xf32>
    %cst_80 = arith.constant dense<0.000000e+00> : vector<16x8xf32>
    %223 = tpu.matmul %222, %210, %cst_80 {dimension_numbers = #tpu.dot_dimension_numbers<[1], [0], [0], [1], [0, 0, 1, 1], [], []>} : vector<16x16xf32>, vector<16x8xf32>, vector<16x8xf32> -> vector<16x8xf32>
    %224 = vector.extract_strided_slice %170 {offsets = [8, 0], sizes = [8, 32], strides = [1, 1]} : vector<32x32xf32> to vector<8x32xf32>
    %cst_81 = arith.constant dense<0.000000e+00> : vector<16x32xf32>
    %225 = tpu.matmul %223, %224, %cst_81 {dimension_numbers = #tpu.dot_dimension_numbers<[1], [0], [0], [1], [0, 0, 1, 1], [], []>} : vector<16x8xf32>, vector<8x32xf32>, vector<16x32xf32> -> vector<16x32xf32>
    %226 = arith.addf %207, %225 : vector<16x32xf32>
    %227 = vector.extract_strided_slice %188 {offsets = [0, 16], sizes = [16, 8], strides = [1, 1]} : vector<16x32xf32> to vector<16x8xf32>
    %228 = vector.extract_strided_slice %189 {offsets = [0, 16], sizes = [16, 8], strides = [1, 1]} : vector<16x64xf32> to vector<16x8xf32>
    %229 = vector.extract_strided_slice %189 {offsets = [0, 48], sizes = [16, 8], strides = [1, 1]} : vector<16x64xf32> to vector<16x8xf32>
    "tpu.trace_start"() <{level = 10 : i32, message = "qd,kd->qk"}> : () -> ()
    %cst_82 = arith.constant dense<0.000000e+00> : vector<16x16xf32>
    %230 = tpu.matmul %227, %228, %cst_82 {dimension_numbers = #tpu.dot_dimension_numbers<[1], [1], [0], [0], [0, 0, 1, 0], [], []>} : vector<16x8xf32>, vector<16x8xf32>, vector<16x16xf32> -> vector<16x16xf32>
    "tpu.trace_stop"() : () -> ()
    %231 = arith.addf %230, %12 : vector<16x16xf32>
    %cst_83 = arith.constant dense<0xFF800000> : vector<16xf32>
    %232 = vector.multi_reduction <maximumf>, %231, %cst_83 [1] : vector<16x16xf32> to vector<16xf32>
    %233 = vector.shape_cast %232 : vector<16xf32> to vector<16x1xf32>
    %234 = vector.broadcast %233 : vector<16x1xf32> to vector<16x16xf32>
    %235 = arith.subf %231, %234 : vector<16x16xf32>
    %236 = math.exp %235 : vector<16x16xf32>
    %cst_84 = arith.constant dense<0.000000e+00> : vector<16xf32>
    %237 = vector.multi_reduction <add>, %236, %cst_84 [1] : vector<16x16xf32> to vector<16xf32>
    %238 = vector.shape_cast %237 : vector<16xf32> to vector<16x1xf32>
    %239 = tpu.reciprocal %238 {approx = true} : vector<16x1xf32> -> vector<16x1xf32>
    %240 = vector.broadcast %239 : vector<16x1xf32> to vector<16x16xf32>
    %241 = arith.mulf %236, %240 : vector<16x16xf32>
    %cst_85 = arith.constant dense<0.000000e+00> : vector<16x8xf32>
    %242 = tpu.matmul %241, %229, %cst_85 {dimension_numbers = #tpu.dot_dimension_numbers<[1], [0], [0], [1], [0, 0, 1, 1], [], []>} : vector<16x16xf32>, vector<16x8xf32>, vector<16x8xf32> -> vector<16x8xf32>
    %243 = vector.extract_strided_slice %170 {offsets = [16, 0], sizes = [8, 32], strides = [1, 1]} : vector<32x32xf32> to vector<8x32xf32>
    %cst_86 = arith.constant dense<0.000000e+00> : vector<16x32xf32>
    %244 = tpu.matmul %242, %243, %cst_86 {dimension_numbers = #tpu.dot_dimension_numbers<[1], [0], [0], [1], [0, 0, 1, 1], [], []>} : vector<16x8xf32>, vector<8x32xf32>, vector<16x32xf32> -> vector<16x32xf32>
    %245 = arith.addf %226, %244 : vector<16x32xf32>
    %246 = vector.extract_strided_slice %188 {offsets = [0, 24], sizes = [16, 8], strides = [1, 1]} : vector<16x32xf32> to vector<16x8xf32>
    %247 = vector.extract_strided_slice %189 {offsets = [0, 24], sizes = [16, 8], strides = [1, 1]} : vector<16x64xf32> to vector<16x8xf32>
    %248 = vector.extract_strided_slice %189 {offsets = [0, 56], sizes = [16, 8], strides = [1, 1]} : vector<16x64xf32> to vector<16x8xf32>
    "tpu.trace_start"() <{level = 10 : i32, message = "qd,kd->qk"}> : () -> ()
    %cst_87 = arith.constant dense<0.000000e+00> : vector<16x16xf32>
    %249 = tpu.matmul %246, %247, %cst_87 {dimension_numbers = #tpu.dot_dimension_numbers<[1], [1], [0], [0], [0, 0, 1, 0], [], []>} : vector<16x8xf32>, vector<16x8xf32>, vector<16x16xf32> -> vector<16x16xf32>
    "tpu.trace_stop"() : () -> ()
    %250 = arith.addf %249, %12 : vector<16x16xf32>
    %cst_88 = arith.constant dense<0xFF800000> : vector<16xf32>
    %251 = vector.multi_reduction <maximumf>, %250, %cst_88 [1] : vector<16x16xf32> to vector<16xf32>
    %252 = vector.shape_cast %251 : vector<16xf32> to vector<16x1xf32>
    %253 = vector.broadcast %252 : vector<16x1xf32> to vector<16x16xf32>
    %254 = arith.subf %250, %253 : vector<16x16xf32>
    %255 = math.exp %254 : vector<16x16xf32>
    %cst_89 = arith.constant dense<0.000000e+00> : vector<16xf32>
    %256 = vector.multi_reduction <add>, %255, %cst_89 [1] : vector<16x16xf32> to vector<16xf32>
    %257 = vector.shape_cast %256 : vector<16xf32> to vector<16x1xf32>
    %258 = tpu.reciprocal %257 {approx = true} : vector<16x1xf32> -> vector<16x1xf32>
    %259 = vector.broadcast %258 : vector<16x1xf32> to vector<16x16xf32>
    %260 = arith.mulf %255, %259 : vector<16x16xf32>
    %cst_90 = arith.constant dense<0.000000e+00> : vector<16x8xf32>
    %261 = tpu.matmul %260, %248, %cst_90 {dimension_numbers = #tpu.dot_dimension_numbers<[1], [0], [0], [1], [0, 0, 1, 1], [], []>} : vector<16x16xf32>, vector<16x8xf32>, vector<16x8xf32> -> vector<16x8xf32>
    %262 = vector.extract_strided_slice %170 {offsets = [24, 0], sizes = [8, 32], strides = [1, 1]} : vector<32x32xf32> to vector<8x32xf32>
    %cst_91 = arith.constant dense<0.000000e+00> : vector<16x32xf32>
    %263 = tpu.matmul %261, %262, %cst_91 {dimension_numbers = #tpu.dot_dimension_numbers<[1], [0], [0], [1], [0, 0, 1, 1], [], []>} : vector<16x8xf32>, vector<8x32xf32>, vector<16x32xf32> -> vector<16x32xf32>
    %264 = arith.addf %245, %263 : vector<16x32xf32>
    %265 = vector.broadcast %178 : vector<1x32xf32> to vector<16x32xf32>
    %266 = arith.addf %264, %265 : vector<16x32xf32>
    %267 = arith.addf %166, %266 : vector<16x32xf32>
    %cst_92 = arith.constant dense<0.000000e+00> : vector<16xf32>
    %268 = vector.multi_reduction <add>, %267, %cst_92 [1] : vector<16x32xf32> to vector<16xf32>
    %269 = vector.shape_cast %268 : vector<16xf32> to vector<16x1xf32>
    %cst_93 = arith.constant 3.200000e+01 : f32
    %270 = vector.broadcast %cst_93 : f32 to vector<16x1xf32>
    %271 = arith.divf %269, %270 : vector<16x1xf32>
    %272 = vector.broadcast %271 : vector<16x1xf32> to vector<16x32xf32>
    %273 = arith.subf %267, %272 : vector<16x32xf32>
    %274 = arith.mulf %273, %273 : vector<16x32xf32>
    %cst_94 = arith.constant dense<0.000000e+00> : vector<16xf32>
    %275 = vector.multi_reduction <add>, %274, %cst_94 [1] : vector<16x32xf32> to vector<16xf32>
    %276 = vector.shape_cast %275 : vector<16xf32> to vector<16x1xf32>
    %cst_95 = arith.constant 3.200000e+01 : f32
    %277 = vector.broadcast %cst_95 : f32 to vector<16x1xf32>
    %278 = arith.divf %276, %277 : vector<16x1xf32>
    %279 = vector.broadcast %271 : vector<16x1xf32> to vector<16x32xf32>
    %280 = arith.subf %267, %279 : vector<16x32xf32>
    %cst_96 = arith.constant 9.99999974E-6 : f32
    %281 = vector.broadcast %cst_96 : f32 to vector<16x1xf32>
    %282 = arith.addf %278, %281 : vector<16x1xf32>
    %283 = math.rsqrt %282 : vector<16x1xf32>
    %284 = vector.broadcast %283 : vector<16x1xf32> to vector<16x32xf32>
    %285 = arith.mulf %280, %284 : vector<16x32xf32>
    %286 = vector.broadcast %181 : vector<1x32xf32> to vector<16x32xf32>
    %287 = arith.mulf %285, %286 : vector<16x32xf32>
    %288 = vector.broadcast %182 : vector<1x32xf32> to vector<16x32xf32>
    %289 = arith.addf %287, %288 : vector<16x32xf32>
    %cst_97 = arith.constant dense<0.000000e+00> : vector<16x64xf32>
    %290 = tpu.matmul %289, %172, %cst_97 {dimension_numbers = #tpu.dot_dimension_numbers<[1], [0], [0], [1], [0, 0, 1, 1], [], []>} : vector<16x32xf32>, vector<32x64xf32>, vector<16x64xf32> -> vector<16x64xf32>
    %291 = vector.broadcast %179 : vector<1x64xf32> to vector<16x64xf32>
    %292 = arith.addf %290, %291 : vector<16x64xf32>
    %cst_98 = arith.constant 0.000000e+00 : f32
    %293 = vector.broadcast %cst_98 : f32 to vector<16x64xf32>
    %294 = arith.maximumf %292, %293 : vector<16x64xf32>
    %cst_99 = arith.constant dense<0.000000e+00> : vector<16x32xf32>
    %295 = tpu.matmul %294, %174, %cst_99 {dimension_numbers = #tpu.dot_dimension_numbers<[1], [0], [0], [1], [0, 0, 1, 1], [], []>} : vector<16x64xf32>, vector<64x32xf32>, vector<16x32xf32> -> vector<16x32xf32>
    %296 = vector.broadcast %180 : vector<1x32xf32> to vector<16x32xf32>
    %297 = arith.addf %295, %296 : vector<16x32xf32>
    %298 = arith.addf %289, %297 : vector<16x32xf32>
    %cst_100 = arith.constant dense<0.000000e+00> : vector<16xf32>
    %299 = vector.multi_reduction <add>, %298, %cst_100 [1] : vector<16x32xf32> to vector<16xf32>
    %300 = vector.shape_cast %299 : vector<16xf32> to vector<16x1xf32>
    %cst_101 = arith.constant 3.200000e+01 : f32
    %301 = vector.broadcast %cst_101 : f32 to vector<16x1xf32>
    %302 = arith.divf %300, %301 : vector<16x1xf32>
    %303 = vector.broadcast %302 : vector<16x1xf32> to vector<16x32xf32>
    %304 = arith.subf %298, %303 : vector<16x32xf32>
    %305 = arith.mulf %304, %304 : vector<16x32xf32>
    %cst_102 = arith.constant dense<0.000000e+00> : vector<16xf32>
    %306 = vector.multi_reduction <add>, %305, %cst_102 [1] : vector<16x32xf32> to vector<16xf32>
    %307 = vector.shape_cast %306 : vector<16xf32> to vector<16x1xf32>
    %cst_103 = arith.constant 3.200000e+01 : f32
    %308 = vector.broadcast %cst_103 : f32 to vector<16x1xf32>
    %309 = arith.divf %307, %308 : vector<16x1xf32>
    %310 = vector.broadcast %302 : vector<16x1xf32> to vector<16x32xf32>
    %311 = arith.subf %298, %310 : vector<16x32xf32>
    %cst_104 = arith.constant 9.99999974E-6 : f32
    %312 = vector.broadcast %cst_104 : f32 to vector<16x1xf32>
    %313 = arith.addf %309, %312 : vector<16x1xf32>
    %314 = math.rsqrt %313 : vector<16x1xf32>
    %315 = vector.broadcast %314 : vector<16x1xf32> to vector<16x32xf32>
    %316 = arith.mulf %311, %315 : vector<16x32xf32>
    %317 = vector.broadcast %183 : vector<1x32xf32> to vector<16x32xf32>
    %318 = arith.mulf %316, %317 : vector<16x32xf32>
    %319 = vector.broadcast %184 : vector<1x32xf32> to vector<16x32xf32>
    %320 = arith.addf %318, %319 : vector<16x32xf32>
    %c0_105 = arith.constant 0 : index
    %c0_106 = arith.constant 0 : index
    %321 = vector.load %arg1[%c0_105, %c0_106] : memref<16x1xi32, #tpu.memory_space<vmem>>, vector<16x1xi32>
    %322 = tpu.iota {dimensions = array<i32: 1>} : vector<16x64xi32>
    %323 = vector.broadcast %321 : vector<16x1xi32> to vector<16x64xi32>
    %324 = arith.cmpi eq, %322, %323 : vector<16x64xi32>
    %325 = arith.extui %324 : vector<16x64xi1> to vector<16x64xi32>
    %326 = arith.sitofp %325 : vector<16x64xi32> to vector<16x64xf32>
    %cst_107 = arith.constant dense<0.000000e+00> : vector<16x32xf32>
    %327 = tpu.matmul %326, %0, %cst_107 {dimension_numbers = #tpu.dot_dimension_numbers<[1], [0], [0], [1], [0, 0, 1, 1], [], []>} : vector<16x64xf32>, vector<64x32xf32>, vector<16x32xf32> -> vector<16x32xf32>
    %cst_108 = arith.constant 5.65685415 : f32
    %328 = vector.broadcast %cst_108 : f32 to vector<16x32xf32>
    %329 = arith.mulf %327, %328 : vector<16x32xf32>
    %c0_109 = arith.constant 0 : index
    %c0_110 = arith.constant 0 : index
    %330 = vector.load %arg4[%c0_109, %c0_110] : memref<16x32xf32, #tpu.memory_space<vmem>>, vector<16x32xf32>
    %331 = arith.addf %329, %330 : vector<16x32xf32>
    %c0_111 = arith.constant 0 : index
    %c0_112 = arith.constant 0 : index
    %332 = vector.load %arg6[%c0_111, %c0_112] : memref<16x16xf32, #tpu.memory_space<vmem>>, vector<16x16xf32>
    %c0_113 = arith.constant 0 : index
    %c0_114 = arith.constant 0 : index
    %333 = vector.load %arg7[%c0_113, %c0_114] : memref<16x16xf32, #tpu.memory_space<vmem>>, vector<16x16xf32>
    %c0_115 = arith.constant 0 : index
    %c0_116 = arith.constant 0 : index
    %c0_117 = arith.constant 0 : index
    %334 = vector.load %arg13[%c0_115, %c0_116, %c0_117] : memref<2x32x96xf32, #tpu.memory_space<vmem>>, vector<1x32x96xf32>
    %335 = vector.shape_cast %334 : vector<1x32x96xf32> to vector<32x96xf32>
    %c0_118 = arith.constant 0 : index
    %c0_119 = arith.constant 0 : index
    %c0_120 = arith.constant 0 : index
    %336 = vector.load %arg14[%c0_118, %c0_119, %c0_120] : memref<2x32x32xf32, #tpu.memory_space<vmem>>, vector<1x32x32xf32>
    %337 = vector.shape_cast %336 : vector<1x32x32xf32> to vector<32x32xf32>
    %c0_121 = arith.constant 0 : index
    %c0_122 = arith.constant 0 : index
    %c0_123 = arith.constant 0 : index
    %338 = vector.load %arg15[%c0_121, %c0_122, %c0_123] : memref<2x32x32xf32, #tpu.memory_space<vmem>>, vector<1x32x32xf32>
    %339 = vector.shape_cast %338 : vector<1x32x32xf32> to vector<32x32xf32>
    %c0_124 = arith.constant 0 : index
    %c0_125 = arith.constant 0 : index
    %c0_126 = arith.constant 0 : index
    %340 = vector.load %arg16[%c0_124, %c0_125, %c0_126] : memref<2x32x64xf32, #tpu.memory_space<vmem>>, vector<1x32x64xf32>
    %341 = vector.shape_cast %340 : vector<1x32x64xf32> to vector<32x64xf32>
    %c0_127 = arith.constant 0 : index
    %c0_128 = arith.constant 0 : index
    %c0_129 = arith.constant 0 : index
    %342 = vector.load %arg17[%c0_127, %c0_128, %c0_129] : memref<2x32x32xf32, #tpu.memory_space<vmem>>, vector<1x32x32xf32>
    %343 = vector.shape_cast %342 : vector<1x32x32xf32> to vector<32x32xf32>
    %c0_130 = arith.constant 0 : index
    %c0_131 = arith.constant 0 : index
    %c0_132 = arith.constant 0 : index
    %344 = vector.load %arg18[%c0_130, %c0_131, %c0_132] : memref<2x32x64xf32, #tpu.memory_space<vmem>>, vector<1x32x64xf32>
    %345 = vector.shape_cast %344 : vector<1x32x64xf32> to vector<32x64xf32>
    %c0_133 = arith.constant 0 : index
    %c0_134 = arith.constant 0 : index
    %c0_135 = arith.constant 0 : index
    %346 = vector.load %arg19[%c0_133, %c0_134, %c0_135] : memref<2x64x32xf32, #tpu.memory_space<vmem>>, vector<1x64x32xf32>
    %347 = vector.shape_cast %346 : vector<1x64x32xf32> to vector<64x32xf32>
    %c0_136 = arith.constant 0 : index
    %c0_137 = arith.constant 0 : index
    %c0_138 = arith.constant 0 : index
    %348 = vector.load %arg20[%c0_136, %c0_137, %c0_138] : memref<2x16x128xf32, #tpu.memory_space<vmem>>, vector<1x16x128xf32>
    %349 = vector.shape_cast %348 : vector<1x16x128xf32> to vector<16x128xf32>
    %350 = vector.extract_strided_slice %349 {offsets = [0, 0], sizes = [1, 96], strides = [1, 1]} : vector<16x128xf32> to vector<1x96xf32>
    %351 = vector.extract_strided_slice %349 {offsets = [1, 0], sizes = [1, 32], strides = [1, 1]} : vector<16x128xf32> to vector<1x32xf32>
    %352 = vector.extract_strided_slice %349 {offsets = [2, 0], sizes = [1, 32], strides = [1, 1]} : vector<16x128xf32> to vector<1x32xf32>
    %353 = vector.extract_strided_slice %349 {offsets = [3, 0], sizes = [1, 64], strides = [1, 1]} : vector<16x128xf32> to vector<1x64xf32>
    %354 = vector.extract_strided_slice %349 {offsets = [4, 0], sizes = [1, 32], strides = [1, 1]} : vector<16x128xf32> to vector<1x32xf32>
    %355 = vector.extract_strided_slice %349 {offsets = [5, 0], sizes = [1, 64], strides = [1, 1]} : vector<16x128xf32> to vector<1x64xf32>
    %356 = vector.extract_strided_slice %349 {offsets = [6, 0], sizes = [1, 32], strides = [1, 1]} : vector<16x128xf32> to vector<1x32xf32>
    %357 = vector.extract_strided_slice %349 {offsets = [7, 0], sizes = [1, 32], strides = [1, 1]} : vector<16x128xf32> to vector<1x32xf32>
    %358 = vector.extract_strided_slice %349 {offsets = [8, 0], sizes = [1, 32], strides = [1, 1]} : vector<16x128xf32> to vector<1x32xf32>
    %359 = vector.extract_strided_slice %349 {offsets = [9, 0], sizes = [1, 32], strides = [1, 1]} : vector<16x128xf32> to vector<1x32xf32>
    %360 = vector.extract_strided_slice %349 {offsets = [10, 0], sizes = [1, 32], strides = [1, 1]} : vector<16x128xf32> to vector<1x32xf32>
    %361 = vector.extract_strided_slice %349 {offsets = [11, 0], sizes = [1, 32], strides = [1, 1]} : vector<16x128xf32> to vector<1x32xf32>
    %362 = vector.extract_strided_slice %349 {offsets = [12, 0], sizes = [1, 32], strides = [1, 1]} : vector<16x128xf32> to vector<1x32xf32>
    %cst_139 = arith.constant dense<0.000000e+00> : vector<16x96xf32>
    %363 = tpu.matmul %331, %335, %cst_139 {dimension_numbers = #tpu.dot_dimension_numbers<[1], [0], [0], [1], [0, 0, 1, 1], [], []>} : vector<16x32xf32>, vector<32x96xf32>, vector<16x96xf32> -> vector<16x96xf32>
    %364 = vector.broadcast %350 : vector<1x96xf32> to vector<16x96xf32>
    %365 = arith.addf %363, %364 : vector<16x96xf32>
    %366 = vector.extract_strided_slice %365 {offsets = [0, 0], sizes = [16, 32], strides = [1, 1]} : vector<16x96xf32> to vector<16x32xf32>
    %367 = vector.extract_strided_slice %365 {offsets = [0, 32], sizes = [16, 64], strides = [1, 1]} : vector<16x96xf32> to vector<16x64xf32>
    %368 = vector.extract_strided_slice %366 {offsets = [0, 0], sizes = [16, 8], strides = [1, 1]} : vector<16x32xf32> to vector<16x8xf32>
    %369 = vector.extract_strided_slice %367 {offsets = [0, 0], sizes = [16, 8], strides = [1, 1]} : vector<16x64xf32> to vector<16x8xf32>
    %370 = vector.extract_strided_slice %367 {offsets = [0, 32], sizes = [16, 8], strides = [1, 1]} : vector<16x64xf32> to vector<16x8xf32>
    "tpu.trace_start"() <{level = 10 : i32, message = "qd,kd->qk"}> : () -> ()
    %cst_140 = arith.constant dense<0.000000e+00> : vector<16x16xf32>
    %371 = tpu.matmul %368, %369, %cst_140 {dimension_numbers = #tpu.dot_dimension_numbers<[1], [1], [0], [0], [0, 0, 1, 0], [], []>} : vector<16x8xf32>, vector<16x8xf32>, vector<16x16xf32> -> vector<16x16xf32>
    "tpu.trace_stop"() : () -> ()
    %372 = arith.addf %371, %332 : vector<16x16xf32>
    %cst_141 = arith.constant dense<0xFF800000> : vector<16xf32>
    %373 = vector.multi_reduction <maximumf>, %372, %cst_141 [1] : vector<16x16xf32> to vector<16xf32>
    %374 = vector.shape_cast %373 : vector<16xf32> to vector<16x1xf32>
    %375 = vector.broadcast %374 : vector<16x1xf32> to vector<16x16xf32>
    %376 = arith.subf %372, %375 : vector<16x16xf32>
    %377 = math.exp %376 : vector<16x16xf32>
    %cst_142 = arith.constant dense<0.000000e+00> : vector<16xf32>
    %378 = vector.multi_reduction <add>, %377, %cst_142 [1] : vector<16x16xf32> to vector<16xf32>
    %379 = vector.shape_cast %378 : vector<16xf32> to vector<16x1xf32>
    %380 = tpu.reciprocal %379 {approx = true} : vector<16x1xf32> -> vector<16x1xf32>
    %381 = vector.broadcast %380 : vector<16x1xf32> to vector<16x16xf32>
    %382 = arith.mulf %377, %381 : vector<16x16xf32>
    %cst_143 = arith.constant dense<0.000000e+00> : vector<16x8xf32>
    %383 = tpu.matmul %382, %370, %cst_143 {dimension_numbers = #tpu.dot_dimension_numbers<[1], [0], [0], [1], [0, 0, 1, 1], [], []>} : vector<16x16xf32>, vector<16x8xf32>, vector<16x8xf32> -> vector<16x8xf32>
    %384 = vector.extract_strided_slice %337 {offsets = [0, 0], sizes = [8, 32], strides = [1, 1]} : vector<32x32xf32> to vector<8x32xf32>
    %cst_144 = arith.constant dense<0.000000e+00> : vector<16x32xf32>
    %385 = tpu.matmul %383, %384, %cst_144 {dimension_numbers = #tpu.dot_dimension_numbers<[1], [0], [0], [1], [0, 0, 1, 1], [], []>} : vector<16x8xf32>, vector<8x32xf32>, vector<16x32xf32> -> vector<16x32xf32>
    %386 = vector.extract_strided_slice %366 {offsets = [0, 8], sizes = [16, 8], strides = [1, 1]} : vector<16x32xf32> to vector<16x8xf32>
    %387 = vector.extract_strided_slice %367 {offsets = [0, 8], sizes = [16, 8], strides = [1, 1]} : vector<16x64xf32> to vector<16x8xf32>
    %388 = vector.extract_strided_slice %367 {offsets = [0, 40], sizes = [16, 8], strides = [1, 1]} : vector<16x64xf32> to vector<16x8xf32>
    "tpu.trace_start"() <{level = 10 : i32, message = "qd,kd->qk"}> : () -> ()
    %cst_145 = arith.constant dense<0.000000e+00> : vector<16x16xf32>
    %389 = tpu.matmul %386, %387, %cst_145 {dimension_numbers = #tpu.dot_dimension_numbers<[1], [1], [0], [0], [0, 0, 1, 0], [], []>} : vector<16x8xf32>, vector<16x8xf32>, vector<16x16xf32> -> vector<16x16xf32>
    "tpu.trace_stop"() : () -> ()
    %390 = arith.addf %389, %332 : vector<16x16xf32>
    %cst_146 = arith.constant dense<0xFF800000> : vector<16xf32>
    %391 = vector.multi_reduction <maximumf>, %390, %cst_146 [1] : vector<16x16xf32> to vector<16xf32>
    %392 = vector.shape_cast %391 : vector<16xf32> to vector<16x1xf32>
    %393 = vector.broadcast %392 : vector<16x1xf32> to vector<16x16xf32>
    %394 = arith.subf %390, %393 : vector<16x16xf32>
    %395 = math.exp %394 : vector<16x16xf32>
    %cst_147 = arith.constant dense<0.000000e+00> : vector<16xf32>
    %396 = vector.multi_reduction <add>, %395, %cst_147 [1] : vector<16x16xf32> to vector<16xf32>
    %397 = vector.shape_cast %396 : vector<16xf32> to vector<16x1xf32>
    %398 = tpu.reciprocal %397 {approx = true} : vector<16x1xf32> -> vector<16x1xf32>
    %399 = vector.broadcast %398 : vector<16x1xf32> to vector<16x16xf32>
    %400 = arith.mulf %395, %399 : vector<16x16xf32>
    %cst_148 = arith.constant dense<0.000000e+00> : vector<16x8xf32>
    %401 = tpu.matmul %400, %388, %cst_148 {dimension_numbers = #tpu.dot_dimension_numbers<[1], [0], [0], [1], [0, 0, 1, 1], [], []>} : vector<16x16xf32>, vector<16x8xf32>, vector<16x8xf32> -> vector<16x8xf32>
    %402 = vector.extract_strided_slice %337 {offsets = [8, 0], sizes = [8, 32], strides = [1, 1]} : vector<32x32xf32> to vector<8x32xf32>
    %cst_149 = arith.constant dense<0.000000e+00> : vector<16x32xf32>
    %403 = tpu.matmul %401, %402, %cst_149 {dimension_numbers = #tpu.dot_dimension_numbers<[1], [0], [0], [1], [0, 0, 1, 1], [], []>} : vector<16x8xf32>, vector<8x32xf32>, vector<16x32xf32> -> vector<16x32xf32>
    %404 = arith.addf %385, %403 : vector<16x32xf32>
    %405 = vector.extract_strided_slice %366 {offsets = [0, 16], sizes = [16, 8], strides = [1, 1]} : vector<16x32xf32> to vector<16x8xf32>
    %406 = vector.extract_strided_slice %367 {offsets = [0, 16], sizes = [16, 8], strides = [1, 1]} : vector<16x64xf32> to vector<16x8xf32>
    %407 = vector.extract_strided_slice %367 {offsets = [0, 48], sizes = [16, 8], strides = [1, 1]} : vector<16x64xf32> to vector<16x8xf32>
    "tpu.trace_start"() <{level = 10 : i32, message = "qd,kd->qk"}> : () -> ()
    %cst_150 = arith.constant dense<0.000000e+00> : vector<16x16xf32>
    %408 = tpu.matmul %405, %406, %cst_150 {dimension_numbers = #tpu.dot_dimension_numbers<[1], [1], [0], [0], [0, 0, 1, 0], [], []>} : vector<16x8xf32>, vector<16x8xf32>, vector<16x16xf32> -> vector<16x16xf32>
    "tpu.trace_stop"() : () -> ()
    %409 = arith.addf %408, %332 : vector<16x16xf32>
    %cst_151 = arith.constant dense<0xFF800000> : vector<16xf32>
    %410 = vector.multi_reduction <maximumf>, %409, %cst_151 [1] : vector<16x16xf32> to vector<16xf32>
    %411 = vector.shape_cast %410 : vector<16xf32> to vector<16x1xf32>
    %412 = vector.broadcast %411 : vector<16x1xf32> to vector<16x16xf32>
    %413 = arith.subf %409, %412 : vector<16x16xf32>
    %414 = math.exp %413 : vector<16x16xf32>
    %cst_152 = arith.constant dense<0.000000e+00> : vector<16xf32>
    %415 = vector.multi_reduction <add>, %414, %cst_152 [1] : vector<16x16xf32> to vector<16xf32>
    %416 = vector.shape_cast %415 : vector<16xf32> to vector<16x1xf32>
    %417 = tpu.reciprocal %416 {approx = true} : vector<16x1xf32> -> vector<16x1xf32>
    %418 = vector.broadcast %417 : vector<16x1xf32> to vector<16x16xf32>
    %419 = arith.mulf %414, %418 : vector<16x16xf32>
    %cst_153 = arith.constant dense<0.000000e+00> : vector<16x8xf32>
    %420 = tpu.matmul %419, %407, %cst_153 {dimension_numbers = #tpu.dot_dimension_numbers<[1], [0], [0], [1], [0, 0, 1, 1], [], []>} : vector<16x16xf32>, vector<16x8xf32>, vector<16x8xf32> -> vector<16x8xf32>
    %421 = vector.extract_strided_slice %337 {offsets = [16, 0], sizes = [8, 32], strides = [1, 1]} : vector<32x32xf32> to vector<8x32xf32>
    %cst_154 = arith.constant dense<0.000000e+00> : vector<16x32xf32>
    %422 = tpu.matmul %420, %421, %cst_154 {dimension_numbers = #tpu.dot_dimension_numbers<[1], [0], [0], [1], [0, 0, 1, 1], [], []>} : vector<16x8xf32>, vector<8x32xf32>, vector<16x32xf32> -> vector<16x32xf32>
    %423 = arith.addf %404, %422 : vector<16x32xf32>
    %424 = vector.extract_strided_slice %366 {offsets = [0, 24], sizes = [16, 8], strides = [1, 1]} : vector<16x32xf32> to vector<16x8xf32>
    %425 = vector.extract_strided_slice %367 {offsets = [0, 24], sizes = [16, 8], strides = [1, 1]} : vector<16x64xf32> to vector<16x8xf32>
    %426 = vector.extract_strided_slice %367 {offsets = [0, 56], sizes = [16, 8], strides = [1, 1]} : vector<16x64xf32> to vector<16x8xf32>
    "tpu.trace_start"() <{level = 10 : i32, message = "qd,kd->qk"}> : () -> ()
    %cst_155 = arith.constant dense<0.000000e+00> : vector<16x16xf32>
    %427 = tpu.matmul %424, %425, %cst_155 {dimension_numbers = #tpu.dot_dimension_numbers<[1], [1], [0], [0], [0, 0, 1, 0], [], []>} : vector<16x8xf32>, vector<16x8xf32>, vector<16x16xf32> -> vector<16x16xf32>
    "tpu.trace_stop"() : () -> ()
    %428 = arith.addf %427, %332 : vector<16x16xf32>
    %cst_156 = arith.constant dense<0xFF800000> : vector<16xf32>
    %429 = vector.multi_reduction <maximumf>, %428, %cst_156 [1] : vector<16x16xf32> to vector<16xf32>
    %430 = vector.shape_cast %429 : vector<16xf32> to vector<16x1xf32>
    %431 = vector.broadcast %430 : vector<16x1xf32> to vector<16x16xf32>
    %432 = arith.subf %428, %431 : vector<16x16xf32>
    %433 = math.exp %432 : vector<16x16xf32>
    %cst_157 = arith.constant dense<0.000000e+00> : vector<16xf32>
    %434 = vector.multi_reduction <add>, %433, %cst_157 [1] : vector<16x16xf32> to vector<16xf32>
    %435 = vector.shape_cast %434 : vector<16xf32> to vector<16x1xf32>
    %436 = tpu.reciprocal %435 {approx = true} : vector<16x1xf32> -> vector<16x1xf32>
    %437 = vector.broadcast %436 : vector<16x1xf32> to vector<16x16xf32>
    %438 = arith.mulf %433, %437 : vector<16x16xf32>
    %cst_158 = arith.constant dense<0.000000e+00> : vector<16x8xf32>
    %439 = tpu.matmul %438, %426, %cst_158 {dimension_numbers = #tpu.dot_dimension_numbers<[1], [0], [0], [1], [0, 0, 1, 1], [], []>} : vector<16x16xf32>, vector<16x8xf32>, vector<16x8xf32> -> vector<16x8xf32>
    %440 = vector.extract_strided_slice %337 {offsets = [24, 0], sizes = [8, 32], strides = [1, 1]} : vector<32x32xf32> to vector<8x32xf32>
    %cst_159 = arith.constant dense<0.000000e+00> : vector<16x32xf32>
    %441 = tpu.matmul %439, %440, %cst_159 {dimension_numbers = #tpu.dot_dimension_numbers<[1], [0], [0], [1], [0, 0, 1, 1], [], []>} : vector<16x8xf32>, vector<8x32xf32>, vector<16x32xf32> -> vector<16x32xf32>
    %442 = arith.addf %423, %441 : vector<16x32xf32>
    %443 = vector.broadcast %351 : vector<1x32xf32> to vector<16x32xf32>
    %444 = arith.addf %442, %443 : vector<16x32xf32>
    %445 = arith.addf %331, %444 : vector<16x32xf32>
    %cst_160 = arith.constant dense<0.000000e+00> : vector<16xf32>
    %446 = vector.multi_reduction <add>, %445, %cst_160 [1] : vector<16x32xf32> to vector<16xf32>
    %447 = vector.shape_cast %446 : vector<16xf32> to vector<16x1xf32>
    %cst_161 = arith.constant 3.200000e+01 : f32
    %448 = vector.broadcast %cst_161 : f32 to vector<16x1xf32>
    %449 = arith.divf %447, %448 : vector<16x1xf32>
    %450 = vector.broadcast %449 : vector<16x1xf32> to vector<16x32xf32>
    %451 = arith.subf %445, %450 : vector<16x32xf32>
    %452 = arith.mulf %451, %451 : vector<16x32xf32>
    %cst_162 = arith.constant dense<0.000000e+00> : vector<16xf32>
    %453 = vector.multi_reduction <add>, %452, %cst_162 [1] : vector<16x32xf32> to vector<16xf32>
    %454 = vector.shape_cast %453 : vector<16xf32> to vector<16x1xf32>
    %cst_163 = arith.constant 3.200000e+01 : f32
    %455 = vector.broadcast %cst_163 : f32 to vector<16x1xf32>
    %456 = arith.divf %454, %455 : vector<16x1xf32>
    %457 = vector.broadcast %449 : vector<16x1xf32> to vector<16x32xf32>
    %458 = arith.subf %445, %457 : vector<16x32xf32>
    %cst_164 = arith.constant 9.99999974E-6 : f32
    %459 = vector.broadcast %cst_164 : f32 to vector<16x1xf32>
    %460 = arith.addf %456, %459 : vector<16x1xf32>
    %461 = math.rsqrt %460 : vector<16x1xf32>
    %462 = vector.broadcast %461 : vector<16x1xf32> to vector<16x32xf32>
    %463 = arith.mulf %458, %462 : vector<16x32xf32>
    %464 = vector.broadcast %357 : vector<1x32xf32> to vector<16x32xf32>
    %465 = arith.mulf %463, %464 : vector<16x32xf32>
    %466 = vector.broadcast %358 : vector<1x32xf32> to vector<16x32xf32>
    %467 = arith.addf %465, %466 : vector<16x32xf32>
    %cst_165 = arith.constant dense<0.000000e+00> : vector<16x32xf32>
    %468 = tpu.matmul %467, %339, %cst_165 {dimension_numbers = #tpu.dot_dimension_numbers<[1], [0], [0], [1], [0, 0, 1, 1], [], []>} : vector<16x32xf32>, vector<32x32xf32>, vector<16x32xf32> -> vector<16x32xf32>
    %469 = vector.broadcast %352 : vector<1x32xf32> to vector<16x32xf32>
    %470 = arith.addf %468, %469 : vector<16x32xf32>
    %cst_166 = arith.constant dense<0.000000e+00> : vector<16x64xf32>
    %471 = tpu.matmul %320, %341, %cst_166 {dimension_numbers = #tpu.dot_dimension_numbers<[1], [0], [0], [1], [0, 0, 1, 1], [], []>} : vector<16x32xf32>, vector<32x64xf32>, vector<16x64xf32> -> vector<16x64xf32>
    %472 = vector.broadcast %353 : vector<1x64xf32> to vector<16x64xf32>
    %473 = arith.addf %471, %472 : vector<16x64xf32>
    %474 = vector.extract_strided_slice %470 {offsets = [0, 0], sizes = [16, 8], strides = [1, 1]} : vector<16x32xf32> to vector<16x8xf32>
    %475 = vector.extract_strided_slice %473 {offsets = [0, 0], sizes = [16, 8], strides = [1, 1]} : vector<16x64xf32> to vector<16x8xf32>
    %476 = vector.extract_strided_slice %473 {offsets = [0, 32], sizes = [16, 8], strides = [1, 1]} : vector<16x64xf32> to vector<16x8xf32>
    "tpu.trace_start"() <{level = 10 : i32, message = "qd,kd->qk"}> : () -> ()
    %cst_167 = arith.constant dense<0.000000e+00> : vector<16x16xf32>
    %477 = tpu.matmul %474, %475, %cst_167 {dimension_numbers = #tpu.dot_dimension_numbers<[1], [1], [0], [0], [0, 0, 1, 0], [], []>} : vector<16x8xf32>, vector<16x8xf32>, vector<16x16xf32> -> vector<16x16xf32>
    "tpu.trace_stop"() : () -> ()
    %478 = arith.addf %477, %333 : vector<16x16xf32>
    %cst_168 = arith.constant dense<0xFF800000> : vector<16xf32>
    %479 = vector.multi_reduction <maximumf>, %478, %cst_168 [1] : vector<16x16xf32> to vector<16xf32>
    %480 = vector.shape_cast %479 : vector<16xf32> to vector<16x1xf32>
    %481 = vector.broadcast %480 : vector<16x1xf32> to vector<16x16xf32>
    %482 = arith.subf %478, %481 : vector<16x16xf32>
    %483 = math.exp %482 : vector<16x16xf32>
    %cst_169 = arith.constant dense<0.000000e+00> : vector<16xf32>
    %484 = vector.multi_reduction <add>, %483, %cst_169 [1] : vector<16x16xf32> to vector<16xf32>
    %485 = vector.shape_cast %484 : vector<16xf32> to vector<16x1xf32>
    %486 = tpu.reciprocal %485 {approx = true} : vector<16x1xf32> -> vector<16x1xf32>
    %487 = vector.broadcast %486 : vector<16x1xf32> to vector<16x16xf32>
    %488 = arith.mulf %483, %487 : vector<16x16xf32>
    %cst_170 = arith.constant dense<0.000000e+00> : vector<16x8xf32>
    %489 = tpu.matmul %488, %476, %cst_170 {dimension_numbers = #tpu.dot_dimension_numbers<[1], [0], [0], [1], [0, 0, 1, 1], [], []>} : vector<16x16xf32>, vector<16x8xf32>, vector<16x8xf32> -> vector<16x8xf32>
    %490 = vector.extract_strided_slice %343 {offsets = [0, 0], sizes = [8, 32], strides = [1, 1]} : vector<32x32xf32> to vector<8x32xf32>
    %cst_171 = arith.constant dense<0.000000e+00> : vector<16x32xf32>
    %491 = tpu.matmul %489, %490, %cst_171 {dimension_numbers = #tpu.dot_dimension_numbers<[1], [0], [0], [1], [0, 0, 1, 1], [], []>} : vector<16x8xf32>, vector<8x32xf32>, vector<16x32xf32> -> vector<16x32xf32>
    %492 = vector.extract_strided_slice %470 {offsets = [0, 8], sizes = [16, 8], strides = [1, 1]} : vector<16x32xf32> to vector<16x8xf32>
    %493 = vector.extract_strided_slice %473 {offsets = [0, 8], sizes = [16, 8], strides = [1, 1]} : vector<16x64xf32> to vector<16x8xf32>
    %494 = vector.extract_strided_slice %473 {offsets = [0, 40], sizes = [16, 8], strides = [1, 1]} : vector<16x64xf32> to vector<16x8xf32>
    "tpu.trace_start"() <{level = 10 : i32, message = "qd,kd->qk"}> : () -> ()
    %cst_172 = arith.constant dense<0.000000e+00> : vector<16x16xf32>
    %495 = tpu.matmul %492, %493, %cst_172 {dimension_numbers = #tpu.dot_dimension_numbers<[1], [1], [0], [0], [0, 0, 1, 0], [], []>} : vector<16x8xf32>, vector<16x8xf32>, vector<16x16xf32> -> vector<16x16xf32>
    "tpu.trace_stop"() : () -> ()
    %496 = arith.addf %495, %333 : vector<16x16xf32>
    %cst_173 = arith.constant dense<0xFF800000> : vector<16xf32>
    %497 = vector.multi_reduction <maximumf>, %496, %cst_173 [1] : vector<16x16xf32> to vector<16xf32>
    %498 = vector.shape_cast %497 : vector<16xf32> to vector<16x1xf32>
    %499 = vector.broadcast %498 : vector<16x1xf32> to vector<16x16xf32>
    %500 = arith.subf %496, %499 : vector<16x16xf32>
    %501 = math.exp %500 : vector<16x16xf32>
    %cst_174 = arith.constant dense<0.000000e+00> : vector<16xf32>
    %502 = vector.multi_reduction <add>, %501, %cst_174 [1] : vector<16x16xf32> to vector<16xf32>
    %503 = vector.shape_cast %502 : vector<16xf32> to vector<16x1xf32>
    %504 = tpu.reciprocal %503 {approx = true} : vector<16x1xf32> -> vector<16x1xf32>
    %505 = vector.broadcast %504 : vector<16x1xf32> to vector<16x16xf32>
    %506 = arith.mulf %501, %505 : vector<16x16xf32>
    %cst_175 = arith.constant dense<0.000000e+00> : vector<16x8xf32>
    %507 = tpu.matmul %506, %494, %cst_175 {dimension_numbers = #tpu.dot_dimension_numbers<[1], [0], [0], [1], [0, 0, 1, 1], [], []>} : vector<16x16xf32>, vector<16x8xf32>, vector<16x8xf32> -> vector<16x8xf32>
    %508 = vector.extract_strided_slice %343 {offsets = [8, 0], sizes = [8, 32], strides = [1, 1]} : vector<32x32xf32> to vector<8x32xf32>
    %cst_176 = arith.constant dense<0.000000e+00> : vector<16x32xf32>
    %509 = tpu.matmul %507, %508, %cst_176 {dimension_numbers = #tpu.dot_dimension_numbers<[1], [0], [0], [1], [0, 0, 1, 1], [], []>} : vector<16x8xf32>, vector<8x32xf32>, vector<16x32xf32> -> vector<16x32xf32>
    %510 = arith.addf %491, %509 : vector<16x32xf32>
    %511 = vector.extract_strided_slice %470 {offsets = [0, 16], sizes = [16, 8], strides = [1, 1]} : vector<16x32xf32> to vector<16x8xf32>
    %512 = vector.extract_strided_slice %473 {offsets = [0, 16], sizes = [16, 8], strides = [1, 1]} : vector<16x64xf32> to vector<16x8xf32>
    %513 = vector.extract_strided_slice %473 {offsets = [0, 48], sizes = [16, 8], strides = [1, 1]} : vector<16x64xf32> to vector<16x8xf32>
    "tpu.trace_start"() <{level = 10 : i32, message = "qd,kd->qk"}> : () -> ()
    %cst_177 = arith.constant dense<0.000000e+00> : vector<16x16xf32>
    %514 = tpu.matmul %511, %512, %cst_177 {dimension_numbers = #tpu.dot_dimension_numbers<[1], [1], [0], [0], [0, 0, 1, 0], [], []>} : vector<16x8xf32>, vector<16x8xf32>, vector<16x16xf32> -> vector<16x16xf32>
    "tpu.trace_stop"() : () -> ()
    %515 = arith.addf %514, %333 : vector<16x16xf32>
    %cst_178 = arith.constant dense<0xFF800000> : vector<16xf32>
    %516 = vector.multi_reduction <maximumf>, %515, %cst_178 [1] : vector<16x16xf32> to vector<16xf32>
    %517 = vector.shape_cast %516 : vector<16xf32> to vector<16x1xf32>
    %518 = vector.broadcast %517 : vector<16x1xf32> to vector<16x16xf32>
    %519 = arith.subf %515, %518 : vector<16x16xf32>
    %520 = math.exp %519 : vector<16x16xf32>
    %cst_179 = arith.constant dense<0.000000e+00> : vector<16xf32>
    %521 = vector.multi_reduction <add>, %520, %cst_179 [1] : vector<16x16xf32> to vector<16xf32>
    %522 = vector.shape_cast %521 : vector<16xf32> to vector<16x1xf32>
    %523 = tpu.reciprocal %522 {approx = true} : vector<16x1xf32> -> vector<16x1xf32>
    %524 = vector.broadcast %523 : vector<16x1xf32> to vector<16x16xf32>
    %525 = arith.mulf %520, %524 : vector<16x16xf32>
    %cst_180 = arith.constant dense<0.000000e+00> : vector<16x8xf32>
    %526 = tpu.matmul %525, %513, %cst_180 {dimension_numbers = #tpu.dot_dimension_numbers<[1], [0], [0], [1], [0, 0, 1, 1], [], []>} : vector<16x16xf32>, vector<16x8xf32>, vector<16x8xf32> -> vector<16x8xf32>
    %527 = vector.extract_strided_slice %343 {offsets = [16, 0], sizes = [8, 32], strides = [1, 1]} : vector<32x32xf32> to vector<8x32xf32>
    %cst_181 = arith.constant dense<0.000000e+00> : vector<16x32xf32>
    %528 = tpu.matmul %526, %527, %cst_181 {dimension_numbers = #tpu.dot_dimension_numbers<[1], [0], [0], [1], [0, 0, 1, 1], [], []>} : vector<16x8xf32>, vector<8x32xf32>, vector<16x32xf32> -> vector<16x32xf32>
    %529 = arith.addf %510, %528 : vector<16x32xf32>
    %530 = vector.extract_strided_slice %470 {offsets = [0, 24], sizes = [16, 8], strides = [1, 1]} : vector<16x32xf32> to vector<16x8xf32>
    %531 = vector.extract_strided_slice %473 {offsets = [0, 24], sizes = [16, 8], strides = [1, 1]} : vector<16x64xf32> to vector<16x8xf32>
    %532 = vector.extract_strided_slice %473 {offsets = [0, 56], sizes = [16, 8], strides = [1, 1]} : vector<16x64xf32> to vector<16x8xf32>
    "tpu.trace_start"() <{level = 10 : i32, message = "qd,kd->qk"}> : () -> ()
    %cst_182 = arith.constant dense<0.000000e+00> : vector<16x16xf32>
    %533 = tpu.matmul %530, %531, %cst_182 {dimension_numbers = #tpu.dot_dimension_numbers<[1], [1], [0], [0], [0, 0, 1, 0], [], []>} : vector<16x8xf32>, vector<16x8xf32>, vector<16x16xf32> -> vector<16x16xf32>
    "tpu.trace_stop"() : () -> ()
    %534 = arith.addf %533, %333 : vector<16x16xf32>
    %cst_183 = arith.constant dense<0xFF800000> : vector<16xf32>
    %535 = vector.multi_reduction <maximumf>, %534, %cst_183 [1] : vector<16x16xf32> to vector<16xf32>
    %536 = vector.shape_cast %535 : vector<16xf32> to vector<16x1xf32>
    %537 = vector.broadcast %536 : vector<16x1xf32> to vector<16x16xf32>
    %538 = arith.subf %534, %537 : vector<16x16xf32>
    %539 = math.exp %538 : vector<16x16xf32>
    %cst_184 = arith.constant dense<0.000000e+00> : vector<16xf32>
    %540 = vector.multi_reduction <add>, %539, %cst_184 [1] : vector<16x16xf32> to vector<16xf32>
    %541 = vector.shape_cast %540 : vector<16xf32> to vector<16x1xf32>
    %542 = tpu.reciprocal %541 {approx = true} : vector<16x1xf32> -> vector<16x1xf32>
    %543 = vector.broadcast %542 : vector<16x1xf32> to vector<16x16xf32>
    %544 = arith.mulf %539, %543 : vector<16x16xf32>
    %cst_185 = arith.constant dense<0.000000e+00> : vector<16x8xf32>
    %545 = tpu.matmul %544, %532, %cst_185 {dimension_numbers = #tpu.dot_dimension_numbers<[1], [0], [0], [1], [0, 0, 1, 1], [], []>} : vector<16x16xf32>, vector<16x8xf32>, vector<16x8xf32> -> vector<16x8xf32>
    %546 = vector.extract_strided_slice %343 {offsets = [24, 0], sizes = [8, 32], strides = [1, 1]} : vector<32x32xf32> to vector<8x32xf32>
    %cst_186 = arith.constant dense<0.000000e+00> : vector<16x32xf32>
    %547 = tpu.matmul %545, %546, %cst_186 {dimension_numbers = #tpu.dot_dimension_numbers<[1], [0], [0], [1], [0, 0, 1, 1], [], []>} : vector<16x8xf32>, vector<8x32xf32>, vector<16x32xf32> -> vector<16x32xf32>
    %548 = arith.addf %529, %547 : vector<16x32xf32>
    %549 = vector.broadcast %354 : vector<1x32xf32> to vector<16x32xf32>
    %550 = arith.addf %548, %549 : vector<16x32xf32>
    %551 = arith.addf %467, %550 : vector<16x32xf32>
    %cst_187 = arith.constant dense<0.000000e+00> : vector<16xf32>
    %552 = vector.multi_reduction <add>, %551, %cst_187 [1] : vector<16x32xf32> to vector<16xf32>
    %553 = vector.shape_cast %552 : vector<16xf32> to vector<16x1xf32>
    %cst_188 = arith.constant 3.200000e+01 : f32
    %554 = vector.broadcast %cst_188 : f32 to vector<16x1xf32>
    %555 = arith.divf %553, %554 : vector<16x1xf32>
    %556 = vector.broadcast %555 : vector<16x1xf32> to vector<16x32xf32>
    %557 = arith.subf %551, %556 : vector<16x32xf32>
    %558 = arith.mulf %557, %557 : vector<16x32xf32>
    %cst_189 = arith.constant dense<0.000000e+00> : vector<16xf32>
    %559 = vector.multi_reduction <add>, %558, %cst_189 [1] : vector<16x32xf32> to vector<16xf32>
    %560 = vector.shape_cast %559 : vector<16xf32> to vector<16x1xf32>
    %cst_190 = arith.constant 3.200000e+01 : f32
    %561 = vector.broadcast %cst_190 : f32 to vector<16x1xf32>
    %562 = arith.divf %560, %561 : vector<16x1xf32>
    %563 = vector.broadcast %555 : vector<16x1xf32> to vector<16x32xf32>
    %564 = arith.subf %551, %563 : vector<16x32xf32>
    %cst_191 = arith.constant 9.99999974E-6 : f32
    %565 = vector.broadcast %cst_191 : f32 to vector<16x1xf32>
    %566 = arith.addf %562, %565 : vector<16x1xf32>
    %567 = math.rsqrt %566 : vector<16x1xf32>
    %568 = vector.broadcast %567 : vector<16x1xf32> to vector<16x32xf32>
    %569 = arith.mulf %564, %568 : vector<16x32xf32>
    %570 = vector.broadcast %359 : vector<1x32xf32> to vector<16x32xf32>
    %571 = arith.mulf %569, %570 : vector<16x32xf32>
    %572 = vector.broadcast %360 : vector<1x32xf32> to vector<16x32xf32>
    %573 = arith.addf %571, %572 : vector<16x32xf32>
    %cst_192 = arith.constant dense<0.000000e+00> : vector<16x64xf32>
    %574 = tpu.matmul %573, %345, %cst_192 {dimension_numbers = #tpu.dot_dimension_numbers<[1], [0], [0], [1], [0, 0, 1, 1], [], []>} : vector<16x32xf32>, vector<32x64xf32>, vector<16x64xf32> -> vector<16x64xf32>
    %575 = vector.broadcast %355 : vector<1x64xf32> to vector<16x64xf32>
    %576 = arith.addf %574, %575 : vector<16x64xf32>
    %cst_193 = arith.constant 0.000000e+00 : f32
    %577 = vector.broadcast %cst_193 : f32 to vector<16x64xf32>
    %578 = arith.maximumf %576, %577 : vector<16x64xf32>
    %cst_194 = arith.constant dense<0.000000e+00> : vector<16x32xf32>
    %579 = tpu.matmul %578, %347, %cst_194 {dimension_numbers = #tpu.dot_dimension_numbers<[1], [0], [0], [1], [0, 0, 1, 1], [], []>} : vector<16x64xf32>, vector<64x32xf32>, vector<16x32xf32> -> vector<16x32xf32>
    %580 = vector.broadcast %356 : vector<1x32xf32> to vector<16x32xf32>
    %581 = arith.addf %579, %580 : vector<16x32xf32>
    %582 = arith.addf %573, %581 : vector<16x32xf32>
    %cst_195 = arith.constant dense<0.000000e+00> : vector<16xf32>
    %583 = vector.multi_reduction <add>, %582, %cst_195 [1] : vector<16x32xf32> to vector<16xf32>
    %584 = vector.shape_cast %583 : vector<16xf32> to vector<16x1xf32>
    %cst_196 = arith.constant 3.200000e+01 : f32
    %585 = vector.broadcast %cst_196 : f32 to vector<16x1xf32>
    %586 = arith.divf %584, %585 : vector<16x1xf32>
    %587 = vector.broadcast %586 : vector<16x1xf32> to vector<16x32xf32>
    %588 = arith.subf %582, %587 : vector<16x32xf32>
    %589 = arith.mulf %588, %588 : vector<16x32xf32>
    %cst_197 = arith.constant dense<0.000000e+00> : vector<16xf32>
    %590 = vector.multi_reduction <add>, %589, %cst_197 [1] : vector<16x32xf32> to vector<16xf32>
    %591 = vector.shape_cast %590 : vector<16xf32> to vector<16x1xf32>
    %cst_198 = arith.constant 3.200000e+01 : f32
    %592 = vector.broadcast %cst_198 : f32 to vector<16x1xf32>
    %593 = arith.divf %591, %592 : vector<16x1xf32>
    %594 = vector.broadcast %586 : vector<16x1xf32> to vector<16x32xf32>
    %595 = arith.subf %582, %594 : vector<16x32xf32>
    %cst_199 = arith.constant 9.99999974E-6 : f32
    %596 = vector.broadcast %cst_199 : f32 to vector<16x1xf32>
    %597 = arith.addf %593, %596 : vector<16x1xf32>
    %598 = math.rsqrt %597 : vector<16x1xf32>
    %599 = vector.broadcast %598 : vector<16x1xf32> to vector<16x32xf32>
    %600 = arith.mulf %595, %599 : vector<16x32xf32>
    %601 = vector.broadcast %361 : vector<1x32xf32> to vector<16x32xf32>
    %602 = arith.mulf %600, %601 : vector<16x32xf32>
    %603 = vector.broadcast %362 : vector<1x32xf32> to vector<16x32xf32>
    %604 = arith.addf %602, %603 : vector<16x32xf32>
    %c1_200 = arith.constant 1 : index
    %c0_201 = arith.constant 0 : index
    %c0_202 = arith.constant 0 : index
    %605 = vector.load %arg13[%c1_200, %c0_201, %c0_202] : memref<2x32x96xf32, #tpu.memory_space<vmem>>, vector<1x32x96xf32>
    %606 = vector.shape_cast %605 : vector<1x32x96xf32> to vector<32x96xf32>
    %c1_203 = arith.constant 1 : index
    %c0_204 = arith.constant 0 : index
    %c0_205 = arith.constant 0 : index
    %607 = vector.load %arg14[%c1_203, %c0_204, %c0_205] : memref<2x32x32xf32, #tpu.memory_space<vmem>>, vector<1x32x32xf32>
    %608 = vector.shape_cast %607 : vector<1x32x32xf32> to vector<32x32xf32>
    %c1_206 = arith.constant 1 : index
    %c0_207 = arith.constant 0 : index
    %c0_208 = arith.constant 0 : index
    %609 = vector.load %arg15[%c1_206, %c0_207, %c0_208] : memref<2x32x32xf32, #tpu.memory_space<vmem>>, vector<1x32x32xf32>
    %610 = vector.shape_cast %609 : vector<1x32x32xf32> to vector<32x32xf32>
    %c1_209 = arith.constant 1 : index
    %c0_210 = arith.constant 0 : index
    %c0_211 = arith.constant 0 : index
    %611 = vector.load %arg16[%c1_209, %c0_210, %c0_211] : memref<2x32x64xf32, #tpu.memory_space<vmem>>, vector<1x32x64xf32>
    %612 = vector.shape_cast %611 : vector<1x32x64xf32> to vector<32x64xf32>
    %c1_212 = arith.constant 1 : index
    %c0_213 = arith.constant 0 : index
    %c0_214 = arith.constant 0 : index
    %613 = vector.load %arg17[%c1_212, %c0_213, %c0_214] : memref<2x32x32xf32, #tpu.memory_space<vmem>>, vector<1x32x32xf32>
    %614 = vector.shape_cast %613 : vector<1x32x32xf32> to vector<32x32xf32>
    %c1_215 = arith.constant 1 : index
    %c0_216 = arith.constant 0 : index
    %c0_217 = arith.constant 0 : index
    %615 = vector.load %arg18[%c1_215, %c0_216, %c0_217] : memref<2x32x64xf32, #tpu.memory_space<vmem>>, vector<1x32x64xf32>
    %616 = vector.shape_cast %615 : vector<1x32x64xf32> to vector<32x64xf32>
    %c1_218 = arith.constant 1 : index
    %c0_219 = arith.constant 0 : index
    %c0_220 = arith.constant 0 : index
    %617 = vector.load %arg19[%c1_218, %c0_219, %c0_220] : memref<2x64x32xf32, #tpu.memory_space<vmem>>, vector<1x64x32xf32>
    %618 = vector.shape_cast %617 : vector<1x64x32xf32> to vector<64x32xf32>
    %c1_221 = arith.constant 1 : index
    %c0_222 = arith.constant 0 : index
    %c0_223 = arith.constant 0 : index
    %619 = vector.load %arg20[%c1_221, %c0_222, %c0_223] : memref<2x16x128xf32, #tpu.memory_space<vmem>>, vector<1x16x128xf32>
    %620 = vector.shape_cast %619 : vector<1x16x128xf32> to vector<16x128xf32>
    %621 = vector.extract_strided_slice %620 {offsets = [0, 0], sizes = [1, 96], strides = [1, 1]} : vector<16x128xf32> to vector<1x96xf32>
    %622 = vector.extract_strided_slice %620 {offsets = [1, 0], sizes = [1, 32], strides = [1, 1]} : vector<16x128xf32> to vector<1x32xf32>
    %623 = vector.extract_strided_slice %620 {offsets = [2, 0], sizes = [1, 32], strides = [1, 1]} : vector<16x128xf32> to vector<1x32xf32>
    %624 = vector.extract_strided_slice %620 {offsets = [3, 0], sizes = [1, 64], strides = [1, 1]} : vector<16x128xf32> to vector<1x64xf32>
    %625 = vector.extract_strided_slice %620 {offsets = [4, 0], sizes = [1, 32], strides = [1, 1]} : vector<16x128xf32> to vector<1x32xf32>
    %626 = vector.extract_strided_slice %620 {offsets = [5, 0], sizes = [1, 64], strides = [1, 1]} : vector<16x128xf32> to vector<1x64xf32>
    %627 = vector.extract_strided_slice %620 {offsets = [6, 0], sizes = [1, 32], strides = [1, 1]} : vector<16x128xf32> to vector<1x32xf32>
    %628 = vector.extract_strided_slice %620 {offsets = [7, 0], sizes = [1, 32], strides = [1, 1]} : vector<16x128xf32> to vector<1x32xf32>
    %629 = vector.extract_strided_slice %620 {offsets = [8, 0], sizes = [1, 32], strides = [1, 1]} : vector<16x128xf32> to vector<1x32xf32>
    %630 = vector.extract_strided_slice %620 {offsets = [9, 0], sizes = [1, 32], strides = [1, 1]} : vector<16x128xf32> to vector<1x32xf32>
    %631 = vector.extract_strided_slice %620 {offsets = [10, 0], sizes = [1, 32], strides = [1, 1]} : vector<16x128xf32> to vector<1x32xf32>
    %632 = vector.extract_strided_slice %620 {offsets = [11, 0], sizes = [1, 32], strides = [1, 1]} : vector<16x128xf32> to vector<1x32xf32>
    %633 = vector.extract_strided_slice %620 {offsets = [12, 0], sizes = [1, 32], strides = [1, 1]} : vector<16x128xf32> to vector<1x32xf32>
    %cst_224 = arith.constant dense<0.000000e+00> : vector<16x96xf32>
    %634 = tpu.matmul %604, %606, %cst_224 {dimension_numbers = #tpu.dot_dimension_numbers<[1], [0], [0], [1], [0, 0, 1, 1], [], []>} : vector<16x32xf32>, vector<32x96xf32>, vector<16x96xf32> -> vector<16x96xf32>
    %635 = vector.broadcast %621 : vector<1x96xf32> to vector<16x96xf32>
    %636 = arith.addf %634, %635 : vector<16x96xf32>
    %637 = vector.extract_strided_slice %636 {offsets = [0, 0], sizes = [16, 32], strides = [1, 1]} : vector<16x96xf32> to vector<16x32xf32>
    %638 = vector.extract_strided_slice %636 {offsets = [0, 32], sizes = [16, 64], strides = [1, 1]} : vector<16x96xf32> to vector<16x64xf32>
    %639 = vector.extract_strided_slice %637 {offsets = [0, 0], sizes = [16, 8], strides = [1, 1]} : vector<16x32xf32> to vector<16x8xf32>
    %640 = vector.extract_strided_slice %638 {offsets = [0, 0], sizes = [16, 8], strides = [1, 1]} : vector<16x64xf32> to vector<16x8xf32>
    %641 = vector.extract_strided_slice %638 {offsets = [0, 32], sizes = [16, 8], strides = [1, 1]} : vector<16x64xf32> to vector<16x8xf32>
    "tpu.trace_start"() <{level = 10 : i32, message = "qd,kd->qk"}> : () -> ()
    %cst_225 = arith.constant dense<0.000000e+00> : vector<16x16xf32>
    %642 = tpu.matmul %639, %640, %cst_225 {dimension_numbers = #tpu.dot_dimension_numbers<[1], [1], [0], [0], [0, 0, 1, 0], [], []>} : vector<16x8xf32>, vector<16x8xf32>, vector<16x16xf32> -> vector<16x16xf32>
    "tpu.trace_stop"() : () -> ()
    %643 = arith.addf %642, %332 : vector<16x16xf32>
    %cst_226 = arith.constant dense<0xFF800000> : vector<16xf32>
    %644 = vector.multi_reduction <maximumf>, %643, %cst_226 [1] : vector<16x16xf32> to vector<16xf32>
    %645 = vector.shape_cast %644 : vector<16xf32> to vector<16x1xf32>
    %646 = vector.broadcast %645 : vector<16x1xf32> to vector<16x16xf32>
    %647 = arith.subf %643, %646 : vector<16x16xf32>
    %648 = math.exp %647 : vector<16x16xf32>
    %cst_227 = arith.constant dense<0.000000e+00> : vector<16xf32>
    %649 = vector.multi_reduction <add>, %648, %cst_227 [1] : vector<16x16xf32> to vector<16xf32>
    %650 = vector.shape_cast %649 : vector<16xf32> to vector<16x1xf32>
    %651 = tpu.reciprocal %650 {approx = true} : vector<16x1xf32> -> vector<16x1xf32>
    %652 = vector.broadcast %651 : vector<16x1xf32> to vector<16x16xf32>
    %653 = arith.mulf %648, %652 : vector<16x16xf32>
    %cst_228 = arith.constant dense<0.000000e+00> : vector<16x8xf32>
    %654 = tpu.matmul %653, %641, %cst_228 {dimension_numbers = #tpu.dot_dimension_numbers<[1], [0], [0], [1], [0, 0, 1, 1], [], []>} : vector<16x16xf32>, vector<16x8xf32>, vector<16x8xf32> -> vector<16x8xf32>
    %655 = vector.extract_strided_slice %608 {offsets = [0, 0], sizes = [8, 32], strides = [1, 1]} : vector<32x32xf32> to vector<8x32xf32>
    %cst_229 = arith.constant dense<0.000000e+00> : vector<16x32xf32>
    %656 = tpu.matmul %654, %655, %cst_229 {dimension_numbers = #tpu.dot_dimension_numbers<[1], [0], [0], [1], [0, 0, 1, 1], [], []>} : vector<16x8xf32>, vector<8x32xf32>, vector<16x32xf32> -> vector<16x32xf32>
    %657 = vector.extract_strided_slice %637 {offsets = [0, 8], sizes = [16, 8], strides = [1, 1]} : vector<16x32xf32> to vector<16x8xf32>
    %658 = vector.extract_strided_slice %638 {offsets = [0, 8], sizes = [16, 8], strides = [1, 1]} : vector<16x64xf32> to vector<16x8xf32>
    %659 = vector.extract_strided_slice %638 {offsets = [0, 40], sizes = [16, 8], strides = [1, 1]} : vector<16x64xf32> to vector<16x8xf32>
    "tpu.trace_start"() <{level = 10 : i32, message = "qd,kd->qk"}> : () -> ()
    %cst_230 = arith.constant dense<0.000000e+00> : vector<16x16xf32>
    %660 = tpu.matmul %657, %658, %cst_230 {dimension_numbers = #tpu.dot_dimension_numbers<[1], [1], [0], [0], [0, 0, 1, 0], [], []>} : vector<16x8xf32>, vector<16x8xf32>, vector<16x16xf32> -> vector<16x16xf32>
    "tpu.trace_stop"() : () -> ()
    %661 = arith.addf %660, %332 : vector<16x16xf32>
    %cst_231 = arith.constant dense<0xFF800000> : vector<16xf32>
    %662 = vector.multi_reduction <maximumf>, %661, %cst_231 [1] : vector<16x16xf32> to vector<16xf32>
    %663 = vector.shape_cast %662 : vector<16xf32> to vector<16x1xf32>
    %664 = vector.broadcast %663 : vector<16x1xf32> to vector<16x16xf32>
    %665 = arith.subf %661, %664 : vector<16x16xf32>
    %666 = math.exp %665 : vector<16x16xf32>
    %cst_232 = arith.constant dense<0.000000e+00> : vector<16xf32>
    %667 = vector.multi_reduction <add>, %666, %cst_232 [1] : vector<16x16xf32> to vector<16xf32>
    %668 = vector.shape_cast %667 : vector<16xf32> to vector<16x1xf32>
    %669 = tpu.reciprocal %668 {approx = true} : vector<16x1xf32> -> vector<16x1xf32>
    %670 = vector.broadcast %669 : vector<16x1xf32> to vector<16x16xf32>
    %671 = arith.mulf %666, %670 : vector<16x16xf32>
    %cst_233 = arith.constant dense<0.000000e+00> : vector<16x8xf32>
    %672 = tpu.matmul %671, %659, %cst_233 {dimension_numbers = #tpu.dot_dimension_numbers<[1], [0], [0], [1], [0, 0, 1, 1], [], []>} : vector<16x16xf32>, vector<16x8xf32>, vector<16x8xf32> -> vector<16x8xf32>
    %673 = vector.extract_strided_slice %608 {offsets = [8, 0], sizes = [8, 32], strides = [1, 1]} : vector<32x32xf32> to vector<8x32xf32>
    %cst_234 = arith.constant dense<0.000000e+00> : vector<16x32xf32>
    %674 = tpu.matmul %672, %673, %cst_234 {dimension_numbers = #tpu.dot_dimension_numbers<[1], [0], [0], [1], [0, 0, 1, 1], [], []>} : vector<16x8xf32>, vector<8x32xf32>, vector<16x32xf32> -> vector<16x32xf32>
    %675 = arith.addf %656, %674 : vector<16x32xf32>
    %676 = vector.extract_strided_slice %637 {offsets = [0, 16], sizes = [16, 8], strides = [1, 1]} : vector<16x32xf32> to vector<16x8xf32>
    %677 = vector.extract_strided_slice %638 {offsets = [0, 16], sizes = [16, 8], strides = [1, 1]} : vector<16x64xf32> to vector<16x8xf32>
    %678 = vector.extract_strided_slice %638 {offsets = [0, 48], sizes = [16, 8], strides = [1, 1]} : vector<16x64xf32> to vector<16x8xf32>
    "tpu.trace_start"() <{level = 10 : i32, message = "qd,kd->qk"}> : () -> ()
    %cst_235 = arith.constant dense<0.000000e+00> : vector<16x16xf32>
    %679 = tpu.matmul %676, %677, %cst_235 {dimension_numbers = #tpu.dot_dimension_numbers<[1], [1], [0], [0], [0, 0, 1, 0], [], []>} : vector<16x8xf32>, vector<16x8xf32>, vector<16x16xf32> -> vector<16x16xf32>
    "tpu.trace_stop"() : () -> ()
    %680 = arith.addf %679, %332 : vector<16x16xf32>
    %cst_236 = arith.constant dense<0xFF800000> : vector<16xf32>
    %681 = vector.multi_reduction <maximumf>, %680, %cst_236 [1] : vector<16x16xf32> to vector<16xf32>
    %682 = vector.shape_cast %681 : vector<16xf32> to vector<16x1xf32>
    %683 = vector.broadcast %682 : vector<16x1xf32> to vector<16x16xf32>
    %684 = arith.subf %680, %683 : vector<16x16xf32>
    %685 = math.exp %684 : vector<16x16xf32>
    %cst_237 = arith.constant dense<0.000000e+00> : vector<16xf32>
    %686 = vector.multi_reduction <add>, %685, %cst_237 [1] : vector<16x16xf32> to vector<16xf32>
    %687 = vector.shape_cast %686 : vector<16xf32> to vector<16x1xf32>
    %688 = tpu.reciprocal %687 {approx = true} : vector<16x1xf32> -> vector<16x1xf32>
    %689 = vector.broadcast %688 : vector<16x1xf32> to vector<16x16xf32>
    %690 = arith.mulf %685, %689 : vector<16x16xf32>
    %cst_238 = arith.constant dense<0.000000e+00> : vector<16x8xf32>
    %691 = tpu.matmul %690, %678, %cst_238 {dimension_numbers = #tpu.dot_dimension_numbers<[1], [0], [0], [1], [0, 0, 1, 1], [], []>} : vector<16x16xf32>, vector<16x8xf32>, vector<16x8xf32> -> vector<16x8xf32>
    %692 = vector.extract_strided_slice %608 {offsets = [16, 0], sizes = [8, 32], strides = [1, 1]} : vector<32x32xf32> to vector<8x32xf32>
    %cst_239 = arith.constant dense<0.000000e+00> : vector<16x32xf32>
    %693 = tpu.matmul %691, %692, %cst_239 {dimension_numbers = #tpu.dot_dimension_numbers<[1], [0], [0], [1], [0, 0, 1, 1], [], []>} : vector<16x8xf32>, vector<8x32xf32>, vector<16x32xf32> -> vector<16x32xf32>
    %694 = arith.addf %675, %693 : vector<16x32xf32>
    %695 = vector.extract_strided_slice %637 {offsets = [0, 24], sizes = [16, 8], strides = [1, 1]} : vector<16x32xf32> to vector<16x8xf32>
    %696 = vector.extract_strided_slice %638 {offsets = [0, 24], sizes = [16, 8], strides = [1, 1]} : vector<16x64xf32> to vector<16x8xf32>
    %697 = vector.extract_strided_slice %638 {offsets = [0, 56], sizes = [16, 8], strides = [1, 1]} : vector<16x64xf32> to vector<16x8xf32>
    "tpu.trace_start"() <{level = 10 : i32, message = "qd,kd->qk"}> : () -> ()
    %cst_240 = arith.constant dense<0.000000e+00> : vector<16x16xf32>
    %698 = tpu.matmul %695, %696, %cst_240 {dimension_numbers = #tpu.dot_dimension_numbers<[1], [1], [0], [0], [0, 0, 1, 0], [], []>} : vector<16x8xf32>, vector<16x8xf32>, vector<16x16xf32> -> vector<16x16xf32>
    "tpu.trace_stop"() : () -> ()
    %699 = arith.addf %698, %332 : vector<16x16xf32>
    %cst_241 = arith.constant dense<0xFF800000> : vector<16xf32>
    %700 = vector.multi_reduction <maximumf>, %699, %cst_241 [1] : vector<16x16xf32> to vector<16xf32>
    %701 = vector.shape_cast %700 : vector<16xf32> to vector<16x1xf32>
    %702 = vector.broadcast %701 : vector<16x1xf32> to vector<16x16xf32>
    %703 = arith.subf %699, %702 : vector<16x16xf32>
    %704 = math.exp %703 : vector<16x16xf32>
    %cst_242 = arith.constant dense<0.000000e+00> : vector<16xf32>
    %705 = vector.multi_reduction <add>, %704, %cst_242 [1] : vector<16x16xf32> to vector<16xf32>
    %706 = vector.shape_cast %705 : vector<16xf32> to vector<16x1xf32>
    %707 = tpu.reciprocal %706 {approx = true} : vector<16x1xf32> -> vector<16x1xf32>
    %708 = vector.broadcast %707 : vector<16x1xf32> to vector<16x16xf32>
    %709 = arith.mulf %704, %708 : vector<16x16xf32>
    %cst_243 = arith.constant dense<0.000000e+00> : vector<16x8xf32>
    %710 = tpu.matmul %709, %697, %cst_243 {dimension_numbers = #tpu.dot_dimension_numbers<[1], [0], [0], [1], [0, 0, 1, 1], [], []>} : vector<16x16xf32>, vector<16x8xf32>, vector<16x8xf32> -> vector<16x8xf32>
    %711 = vector.extract_strided_slice %608 {offsets = [24, 0], sizes = [8, 32], strides = [1, 1]} : vector<32x32xf32> to vector<8x32xf32>
    %cst_244 = arith.constant dense<0.000000e+00> : vector<16x32xf32>
    %712 = tpu.matmul %710, %711, %cst_244 {dimension_numbers = #tpu.dot_dimension_numbers<[1], [0], [0], [1], [0, 0, 1, 1], [], []>} : vector<16x8xf32>, vector<8x32xf32>, vector<16x32xf32> -> vector<16x32xf32>
    %713 = arith.addf %694, %712 : vector<16x32xf32>
    %714 = vector.broadcast %622 : vector<1x32xf32> to vector<16x32xf32>
    %715 = arith.addf %713, %714 : vector<16x32xf32>
    %716 = arith.addf %604, %715 : vector<16x32xf32>
    %cst_245 = arith.constant dense<0.000000e+00> : vector<16xf32>
    %717 = vector.multi_reduction <add>, %716, %cst_245 [1] : vector<16x32xf32> to vector<16xf32>
    %718 = vector.shape_cast %717 : vector<16xf32> to vector<16x1xf32>
    %cst_246 = arith.constant 3.200000e+01 : f32
    %719 = vector.broadcast %cst_246 : f32 to vector<16x1xf32>
    %720 = arith.divf %718, %719 : vector<16x1xf32>
    %721 = vector.broadcast %720 : vector<16x1xf32> to vector<16x32xf32>
    %722 = arith.subf %716, %721 : vector<16x32xf32>
    %723 = arith.mulf %722, %722 : vector<16x32xf32>
    %cst_247 = arith.constant dense<0.000000e+00> : vector<16xf32>
    %724 = vector.multi_reduction <add>, %723, %cst_247 [1] : vector<16x32xf32> to vector<16xf32>
    %725 = vector.shape_cast %724 : vector<16xf32> to vector<16x1xf32>
    %cst_248 = arith.constant 3.200000e+01 : f32
    %726 = vector.broadcast %cst_248 : f32 to vector<16x1xf32>
    %727 = arith.divf %725, %726 : vector<16x1xf32>
    %728 = vector.broadcast %720 : vector<16x1xf32> to vector<16x32xf32>
    %729 = arith.subf %716, %728 : vector<16x32xf32>
    %cst_249 = arith.constant 9.99999974E-6 : f32
    %730 = vector.broadcast %cst_249 : f32 to vector<16x1xf32>
    %731 = arith.addf %727, %730 : vector<16x1xf32>
    %732 = math.rsqrt %731 : vector<16x1xf32>
    %733 = vector.broadcast %732 : vector<16x1xf32> to vector<16x32xf32>
    %734 = arith.mulf %729, %733 : vector<16x32xf32>
    %735 = vector.broadcast %628 : vector<1x32xf32> to vector<16x32xf32>
    %736 = arith.mulf %734, %735 : vector<16x32xf32>
    %737 = vector.broadcast %629 : vector<1x32xf32> to vector<16x32xf32>
    %738 = arith.addf %736, %737 : vector<16x32xf32>
    %cst_250 = arith.constant dense<0.000000e+00> : vector<16x32xf32>
    %739 = tpu.matmul %738, %610, %cst_250 {dimension_numbers = #tpu.dot_dimension_numbers<[1], [0], [0], [1], [0, 0, 1, 1], [], []>} : vector<16x32xf32>, vector<32x32xf32>, vector<16x32xf32> -> vector<16x32xf32>
    %740 = vector.broadcast %623 : vector<1x32xf32> to vector<16x32xf32>
    %741 = arith.addf %739, %740 : vector<16x32xf32>
    %cst_251 = arith.constant dense<0.000000e+00> : vector<16x64xf32>
    %742 = tpu.matmul %320, %612, %cst_251 {dimension_numbers = #tpu.dot_dimension_numbers<[1], [0], [0], [1], [0, 0, 1, 1], [], []>} : vector<16x32xf32>, vector<32x64xf32>, vector<16x64xf32> -> vector<16x64xf32>
    %743 = vector.broadcast %624 : vector<1x64xf32> to vector<16x64xf32>
    %744 = arith.addf %742, %743 : vector<16x64xf32>
    %745 = vector.extract_strided_slice %741 {offsets = [0, 0], sizes = [16, 8], strides = [1, 1]} : vector<16x32xf32> to vector<16x8xf32>
    %746 = vector.extract_strided_slice %744 {offsets = [0, 0], sizes = [16, 8], strides = [1, 1]} : vector<16x64xf32> to vector<16x8xf32>
    %747 = vector.extract_strided_slice %744 {offsets = [0, 32], sizes = [16, 8], strides = [1, 1]} : vector<16x64xf32> to vector<16x8xf32>
    "tpu.trace_start"() <{level = 10 : i32, message = "qd,kd->qk"}> : () -> ()
    %cst_252 = arith.constant dense<0.000000e+00> : vector<16x16xf32>
    %748 = tpu.matmul %745, %746, %cst_252 {dimension_numbers = #tpu.dot_dimension_numbers<[1], [1], [0], [0], [0, 0, 1, 0], [], []>} : vector<16x8xf32>, vector<16x8xf32>, vector<16x16xf32> -> vector<16x16xf32>
    "tpu.trace_stop"() : () -> ()
    %749 = arith.addf %748, %333 : vector<16x16xf32>
    %cst_253 = arith.constant dense<0xFF800000> : vector<16xf32>
    %750 = vector.multi_reduction <maximumf>, %749, %cst_253 [1] : vector<16x16xf32> to vector<16xf32>
    %751 = vector.shape_cast %750 : vector<16xf32> to vector<16x1xf32>
    %752 = vector.broadcast %751 : vector<16x1xf32> to vector<16x16xf32>
    %753 = arith.subf %749, %752 : vector<16x16xf32>
    %754 = math.exp %753 : vector<16x16xf32>
    %cst_254 = arith.constant dense<0.000000e+00> : vector<16xf32>
    %755 = vector.multi_reduction <add>, %754, %cst_254 [1] : vector<16x16xf32> to vector<16xf32>
    %756 = vector.shape_cast %755 : vector<16xf32> to vector<16x1xf32>
    %757 = tpu.reciprocal %756 {approx = true} : vector<16x1xf32> -> vector<16x1xf32>
    %758 = vector.broadcast %757 : vector<16x1xf32> to vector<16x16xf32>
    %759 = arith.mulf %754, %758 : vector<16x16xf32>
    %cst_255 = arith.constant dense<0.000000e+00> : vector<16x8xf32>
    %760 = tpu.matmul %759, %747, %cst_255 {dimension_numbers = #tpu.dot_dimension_numbers<[1], [0], [0], [1], [0, 0, 1, 1], [], []>} : vector<16x16xf32>, vector<16x8xf32>, vector<16x8xf32> -> vector<16x8xf32>
    %761 = vector.extract_strided_slice %614 {offsets = [0, 0], sizes = [8, 32], strides = [1, 1]} : vector<32x32xf32> to vector<8x32xf32>
    %cst_256 = arith.constant dense<0.000000e+00> : vector<16x32xf32>
    %762 = tpu.matmul %760, %761, %cst_256 {dimension_numbers = #tpu.dot_dimension_numbers<[1], [0], [0], [1], [0, 0, 1, 1], [], []>} : vector<16x8xf32>, vector<8x32xf32>, vector<16x32xf32> -> vector<16x32xf32>
    %763 = vector.extract_strided_slice %741 {offsets = [0, 8], sizes = [16, 8], strides = [1, 1]} : vector<16x32xf32> to vector<16x8xf32>
    %764 = vector.extract_strided_slice %744 {offsets = [0, 8], sizes = [16, 8], strides = [1, 1]} : vector<16x64xf32> to vector<16x8xf32>
    %765 = vector.extract_strided_slice %744 {offsets = [0, 40], sizes = [16, 8], strides = [1, 1]} : vector<16x64xf32> to vector<16x8xf32>
    "tpu.trace_start"() <{level = 10 : i32, message = "qd,kd->qk"}> : () -> ()
    %cst_257 = arith.constant dense<0.000000e+00> : vector<16x16xf32>
    %766 = tpu.matmul %763, %764, %cst_257 {dimension_numbers = #tpu.dot_dimension_numbers<[1], [1], [0], [0], [0, 0, 1, 0], [], []>} : vector<16x8xf32>, vector<16x8xf32>, vector<16x16xf32> -> vector<16x16xf32>
    "tpu.trace_stop"() : () -> ()
    %767 = arith.addf %766, %333 : vector<16x16xf32>
    %cst_258 = arith.constant dense<0xFF800000> : vector<16xf32>
    %768 = vector.multi_reduction <maximumf>, %767, %cst_258 [1] : vector<16x16xf32> to vector<16xf32>
    %769 = vector.shape_cast %768 : vector<16xf32> to vector<16x1xf32>
    %770 = vector.broadcast %769 : vector<16x1xf32> to vector<16x16xf32>
    %771 = arith.subf %767, %770 : vector<16x16xf32>
    %772 = math.exp %771 : vector<16x16xf32>
    %cst_259 = arith.constant dense<0.000000e+00> : vector<16xf32>
    %773 = vector.multi_reduction <add>, %772, %cst_259 [1] : vector<16x16xf32> to vector<16xf32>
    %774 = vector.shape_cast %773 : vector<16xf32> to vector<16x1xf32>
    %775 = tpu.reciprocal %774 {approx = true} : vector<16x1xf32> -> vector<16x1xf32>
    %776 = vector.broadcast %775 : vector<16x1xf32> to vector<16x16xf32>
    %777 = arith.mulf %772, %776 : vector<16x16xf32>
    %cst_260 = arith.constant dense<0.000000e+00> : vector<16x8xf32>
    %778 = tpu.matmul %777, %765, %cst_260 {dimension_numbers = #tpu.dot_dimension_numbers<[1], [0], [0], [1], [0, 0, 1, 1], [], []>} : vector<16x16xf32>, vector<16x8xf32>, vector<16x8xf32> -> vector<16x8xf32>
    %779 = vector.extract_strided_slice %614 {offsets = [8, 0], sizes = [8, 32], strides = [1, 1]} : vector<32x32xf32> to vector<8x32xf32>
    %cst_261 = arith.constant dense<0.000000e+00> : vector<16x32xf32>
    %780 = tpu.matmul %778, %779, %cst_261 {dimension_numbers = #tpu.dot_dimension_numbers<[1], [0], [0], [1], [0, 0, 1, 1], [], []>} : vector<16x8xf32>, vector<8x32xf32>, vector<16x32xf32> -> vector<16x32xf32>
    %781 = arith.addf %762, %780 : vector<16x32xf32>
    %782 = vector.extract_strided_slice %741 {offsets = [0, 16], sizes = [16, 8], strides = [1, 1]} : vector<16x32xf32> to vector<16x8xf32>
    %783 = vector.extract_strided_slice %744 {offsets = [0, 16], sizes = [16, 8], strides = [1, 1]} : vector<16x64xf32> to vector<16x8xf32>
    %784 = vector.extract_strided_slice %744 {offsets = [0, 48], sizes = [16, 8], strides = [1, 1]} : vector<16x64xf32> to vector<16x8xf32>
    "tpu.trace_start"() <{level = 10 : i32, message = "qd,kd->qk"}> : () -> ()
    %cst_262 = arith.constant dense<0.000000e+00> : vector<16x16xf32>
    %785 = tpu.matmul %782, %783, %cst_262 {dimension_numbers = #tpu.dot_dimension_numbers<[1], [1], [0], [0], [0, 0, 1, 0], [], []>} : vector<16x8xf32>, vector<16x8xf32>, vector<16x16xf32> -> vector<16x16xf32>
    "tpu.trace_stop"() : () -> ()
    %786 = arith.addf %785, %333 : vector<16x16xf32>
    %cst_263 = arith.constant dense<0xFF800000> : vector<16xf32>
    %787 = vector.multi_reduction <maximumf>, %786, %cst_263 [1] : vector<16x16xf32> to vector<16xf32>
    %788 = vector.shape_cast %787 : vector<16xf32> to vector<16x1xf32>
    %789 = vector.broadcast %788 : vector<16x1xf32> to vector<16x16xf32>
    %790 = arith.subf %786, %789 : vector<16x16xf32>
    %791 = math.exp %790 : vector<16x16xf32>
    %cst_264 = arith.constant dense<0.000000e+00> : vector<16xf32>
    %792 = vector.multi_reduction <add>, %791, %cst_264 [1] : vector<16x16xf32> to vector<16xf32>
    %793 = vector.shape_cast %792 : vector<16xf32> to vector<16x1xf32>
    %794 = tpu.reciprocal %793 {approx = true} : vector<16x1xf32> -> vector<16x1xf32>
    %795 = vector.broadcast %794 : vector<16x1xf32> to vector<16x16xf32>
    %796 = arith.mulf %791, %795 : vector<16x16xf32>
    %cst_265 = arith.constant dense<0.000000e+00> : vector<16x8xf32>
    %797 = tpu.matmul %796, %784, %cst_265 {dimension_numbers = #tpu.dot_dimension_numbers<[1], [0], [0], [1], [0, 0, 1, 1], [], []>} : vector<16x16xf32>, vector<16x8xf32>, vector<16x8xf32> -> vector<16x8xf32>
    %798 = vector.extract_strided_slice %614 {offsets = [16, 0], sizes = [8, 32], strides = [1, 1]} : vector<32x32xf32> to vector<8x32xf32>
    %cst_266 = arith.constant dense<0.000000e+00> : vector<16x32xf32>
    %799 = tpu.matmul %797, %798, %cst_266 {dimension_numbers = #tpu.dot_dimension_numbers<[1], [0], [0], [1], [0, 0, 1, 1], [], []>} : vector<16x8xf32>, vector<8x32xf32>, vector<16x32xf32> -> vector<16x32xf32>
    %800 = arith.addf %781, %799 : vector<16x32xf32>
    %801 = vector.extract_strided_slice %741 {offsets = [0, 24], sizes = [16, 8], strides = [1, 1]} : vector<16x32xf32> to vector<16x8xf32>
    %802 = vector.extract_strided_slice %744 {offsets = [0, 24], sizes = [16, 8], strides = [1, 1]} : vector<16x64xf32> to vector<16x8xf32>
    %803 = vector.extract_strided_slice %744 {offsets = [0, 56], sizes = [16, 8], strides = [1, 1]} : vector<16x64xf32> to vector<16x8xf32>
    "tpu.trace_start"() <{level = 10 : i32, message = "qd,kd->qk"}> : () -> ()
    %cst_267 = arith.constant dense<0.000000e+00> : vector<16x16xf32>
    %804 = tpu.matmul %801, %802, %cst_267 {dimension_numbers = #tpu.dot_dimension_numbers<[1], [1], [0], [0], [0, 0, 1, 0], [], []>} : vector<16x8xf32>, vector<16x8xf32>, vector<16x16xf32> -> vector<16x16xf32>
    "tpu.trace_stop"() : () -> ()
    %805 = arith.addf %804, %333 : vector<16x16xf32>
    %cst_268 = arith.constant dense<0xFF800000> : vector<16xf32>
    %806 = vector.multi_reduction <maximumf>, %805, %cst_268 [1] : vector<16x16xf32> to vector<16xf32>
    %807 = vector.shape_cast %806 : vector<16xf32> to vector<16x1xf32>
    %808 = vector.broadcast %807 : vector<16x1xf32> to vector<16x16xf32>
    %809 = arith.subf %805, %808 : vector<16x16xf32>
    %810 = math.exp %809 : vector<16x16xf32>
    %cst_269 = arith.constant dense<0.000000e+00> : vector<16xf32>
    %811 = vector.multi_reduction <add>, %810, %cst_269 [1] : vector<16x16xf32> to vector<16xf32>
    %812 = vector.shape_cast %811 : vector<16xf32> to vector<16x1xf32>
    %813 = tpu.reciprocal %812 {approx = true} : vector<16x1xf32> -> vector<16x1xf32>
    %814 = vector.broadcast %813 : vector<16x1xf32> to vector<16x16xf32>
    %815 = arith.mulf %810, %814 : vector<16x16xf32>
    %cst_270 = arith.constant dense<0.000000e+00> : vector<16x8xf32>
    %816 = tpu.matmul %815, %803, %cst_270 {dimension_numbers = #tpu.dot_dimension_numbers<[1], [0], [0], [1], [0, 0, 1, 1], [], []>} : vector<16x16xf32>, vector<16x8xf32>, vector<16x8xf32> -> vector<16x8xf32>
    %817 = vector.extract_strided_slice %614 {offsets = [24, 0], sizes = [8, 32], strides = [1, 1]} : vector<32x32xf32> to vector<8x32xf32>
    %cst_271 = arith.constant dense<0.000000e+00> : vector<16x32xf32>
    %818 = tpu.matmul %816, %817, %cst_271 {dimension_numbers = #tpu.dot_dimension_numbers<[1], [0], [0], [1], [0, 0, 1, 1], [], []>} : vector<16x8xf32>, vector<8x32xf32>, vector<16x32xf32> -> vector<16x32xf32>
    %819 = arith.addf %800, %818 : vector<16x32xf32>
    %820 = vector.broadcast %625 : vector<1x32xf32> to vector<16x32xf32>
    %821 = arith.addf %819, %820 : vector<16x32xf32>
    %822 = arith.addf %738, %821 : vector<16x32xf32>
    %cst_272 = arith.constant dense<0.000000e+00> : vector<16xf32>
    %823 = vector.multi_reduction <add>, %822, %cst_272 [1] : vector<16x32xf32> to vector<16xf32>
    %824 = vector.shape_cast %823 : vector<16xf32> to vector<16x1xf32>
    %cst_273 = arith.constant 3.200000e+01 : f32
    %825 = vector.broadcast %cst_273 : f32 to vector<16x1xf32>
    %826 = arith.divf %824, %825 : vector<16x1xf32>
    %827 = vector.broadcast %826 : vector<16x1xf32> to vector<16x32xf32>
    %828 = arith.subf %822, %827 : vector<16x32xf32>
    %829 = arith.mulf %828, %828 : vector<16x32xf32>
    %cst_274 = arith.constant dense<0.000000e+00> : vector<16xf32>
    %830 = vector.multi_reduction <add>, %829, %cst_274 [1] : vector<16x32xf32> to vector<16xf32>
    %831 = vector.shape_cast %830 : vector<16xf32> to vector<16x1xf32>
    %cst_275 = arith.constant 3.200000e+01 : f32
    %832 = vector.broadcast %cst_275 : f32 to vector<16x1xf32>
    %833 = arith.divf %831, %832 : vector<16x1xf32>
    %834 = vector.broadcast %826 : vector<16x1xf32> to vector<16x32xf32>
    %835 = arith.subf %822, %834 : vector<16x32xf32>
    %cst_276 = arith.constant 9.99999974E-6 : f32
    %836 = vector.broadcast %cst_276 : f32 to vector<16x1xf32>
    %837 = arith.addf %833, %836 : vector<16x1xf32>
    %838 = math.rsqrt %837 : vector<16x1xf32>
    %839 = vector.broadcast %838 : vector<16x1xf32> to vector<16x32xf32>
    %840 = arith.mulf %835, %839 : vector<16x32xf32>
    %841 = vector.broadcast %630 : vector<1x32xf32> to vector<16x32xf32>
    %842 = arith.mulf %840, %841 : vector<16x32xf32>
    %843 = vector.broadcast %631 : vector<1x32xf32> to vector<16x32xf32>
    %844 = arith.addf %842, %843 : vector<16x32xf32>
    %cst_277 = arith.constant dense<0.000000e+00> : vector<16x64xf32>
    %845 = tpu.matmul %844, %616, %cst_277 {dimension_numbers = #tpu.dot_dimension_numbers<[1], [0], [0], [1], [0, 0, 1, 1], [], []>} : vector<16x32xf32>, vector<32x64xf32>, vector<16x64xf32> -> vector<16x64xf32>
    %846 = vector.broadcast %626 : vector<1x64xf32> to vector<16x64xf32>
    %847 = arith.addf %845, %846 : vector<16x64xf32>
    %cst_278 = arith.constant 0.000000e+00 : f32
    %848 = vector.broadcast %cst_278 : f32 to vector<16x64xf32>
    %849 = arith.maximumf %847, %848 : vector<16x64xf32>
    %cst_279 = arith.constant dense<0.000000e+00> : vector<16x32xf32>
    %850 = tpu.matmul %849, %618, %cst_279 {dimension_numbers = #tpu.dot_dimension_numbers<[1], [0], [0], [1], [0, 0, 1, 1], [], []>} : vector<16x64xf32>, vector<64x32xf32>, vector<16x32xf32> -> vector<16x32xf32>
    %851 = vector.broadcast %627 : vector<1x32xf32> to vector<16x32xf32>
    %852 = arith.addf %850, %851 : vector<16x32xf32>
    %853 = arith.addf %844, %852 : vector<16x32xf32>
    %cst_280 = arith.constant dense<0.000000e+00> : vector<16xf32>
    %854 = vector.multi_reduction <add>, %853, %cst_280 [1] : vector<16x32xf32> to vector<16xf32>
    %855 = vector.shape_cast %854 : vector<16xf32> to vector<16x1xf32>
    %cst_281 = arith.constant 3.200000e+01 : f32
    %856 = vector.broadcast %cst_281 : f32 to vector<16x1xf32>
    %857 = arith.divf %855, %856 : vector<16x1xf32>
    %858 = vector.broadcast %857 : vector<16x1xf32> to vector<16x32xf32>
    %859 = arith.subf %853, %858 : vector<16x32xf32>
    %860 = arith.mulf %859, %859 : vector<16x32xf32>
    %cst_282 = arith.constant dense<0.000000e+00> : vector<16xf32>
    %861 = vector.multi_reduction <add>, %860, %cst_282 [1] : vector<16x32xf32> to vector<16xf32>
    %862 = vector.shape_cast %861 : vector<16xf32> to vector<16x1xf32>
    %cst_283 = arith.constant 3.200000e+01 : f32
    %863 = vector.broadcast %cst_283 : f32 to vector<16x1xf32>
    %864 = arith.divf %862, %863 : vector<16x1xf32>
    %865 = vector.broadcast %857 : vector<16x1xf32> to vector<16x32xf32>
    %866 = arith.subf %853, %865 : vector<16x32xf32>
    %cst_284 = arith.constant 9.99999974E-6 : f32
    %867 = vector.broadcast %cst_284 : f32 to vector<16x1xf32>
    %868 = arith.addf %864, %867 : vector<16x1xf32>
    %869 = math.rsqrt %868 : vector<16x1xf32>
    %870 = vector.broadcast %869 : vector<16x1xf32> to vector<16x32xf32>
    %871 = arith.mulf %866, %870 : vector<16x32xf32>
    %872 = vector.broadcast %632 : vector<1x32xf32> to vector<16x32xf32>
    %873 = arith.mulf %871, %872 : vector<16x32xf32>
    %874 = vector.broadcast %633 : vector<1x32xf32> to vector<16x32xf32>
    %875 = arith.addf %873, %874 : vector<16x32xf32>
    %c0_285 = arith.constant 0 : index
    %c0_286 = arith.constant 0 : index
    %876 = vector.load %arg21[%c0_285, %c0_286] : memref<32x128xf32, #tpu.memory_space<vmem>>, vector<32x128xf32>
    %cst_287 = arith.constant dense<0.000000e+00> : vector<16x128xf32>
    %877 = tpu.matmul %875, %876, %cst_287 {dimension_numbers = #tpu.dot_dimension_numbers<[1], [0], [0], [1], [0, 0, 1, 1], [], []>} : vector<16x32xf32>, vector<32x128xf32>, vector<16x128xf32> -> vector<16x128xf32>
    %c0_288 = arith.constant 0 : index
    %c0_289 = arith.constant 0 : index
    %878 = vector.load %arg22[%c0_288, %c0_289] : memref<1x128xf32, #tpu.memory_space<vmem>>, vector<1x128xf32>
    %879 = vector.broadcast %878 : vector<1x128xf32> to vector<16x128xf32>
    %880 = arith.addf %877, %879 : vector<16x128xf32>
    %c0_290 = arith.constant 0 : index
    %c0_291 = arith.constant 0 : index
    %881 = vector.load %arg23[%c0_290, %c0_291] : memref<16x128xf32, #tpu.memory_space<vmem>>, vector<16x128xf32>
    tpu.vector_store %arg23[%c0_290, %c0_291], %880 {strides = array<i32>} : memref<16x128xf32, #tpu.memory_space<vmem>>, vector<16x128xf32>,
    return
  }
}

</mosaic_0001>

<llo_original>
// kernel: transformer_forward.1
$region0: #{transformer_forward.1}
  #allocation0 [shape = 'u32[]', space=smem, size = 0x4, offset = 0x4, fixed_abs, tag = 'smem constant byte address 0x4 - core index']
  #allocation1 [shape = 'u32[144,128]{1,0:T(1,128)}', space=vmem, size = 0x12000, scoped, tag = 'internal scratch']
  %s0 = inlined_call_operand.vmem [shape: s32[16,1], index: 0, kind: input, shape index: {}]
  %s1 = inlined_call_operand.vmem [shape: s32[16,1], index: 1, kind: input, shape index: {}]
  %s2 = inlined_call_operand.vmem [shape: f32[64,32], index: 2, kind: input, shape index: {}]
  %s3 = inlined_call_operand.vmem [shape: f32[16,32], index: 3, kind: input, shape index: {}, may-alias: {3,4}]
  %s4 = inlined_call_operand.vmem [shape: f32[16,32], index: 4, kind: input, shape index: {}, may-alias: {3,4}]
  %s5 = inlined_call_operand.vmem [shape: f32[16,16], index: 5, kind: input, shape index: {}, may-alias: {5,7}]
  %s6 = inlined_call_operand.vmem [shape: f32[16,16], index: 6, kind: input, shape index: {}]
  %s7 = inlined_call_operand.vmem [shape: f32[16,16], index: 7, kind: input, shape index: {}, may-alias: {5,7}]
  %s8 = inlined_call_operand.vmem [shape: f32[2,32,96], index: 8, kind: input, shape index: {}]
  %s9 = inlined_call_operand.vmem [shape: f32[2,32,32], index: 9, kind: input, shape index: {}]
  %s10 = inlined_call_operand.vmem [shape: f32[2,32,64], index: 10, kind: input, shape index: {}]
  %s11 = inlined_call_operand.vmem [shape: f32[2,64,32], index: 11, kind: input, shape index: {}]
  %s12 = inlined_call_operand.vmem [shape: f32[2,8,128], index: 12, kind: input, shape index: {}]
  %s13 = inlined_call_operand.vmem [shape: f32[2,32,96], index: 13, kind: input, shape index: {}]
  %s14 = inlined_call_operand.vmem [shape: f32[2,32,32], index: 14, kind: input, shape index: {}]
  %s15 = inlined_call_operand.vmem [shape: f32[2,32,32], index: 15, kind: input, shape index: {}]
  %s16 = inlined_call_operand.vmem [shape: f32[2,32,64], index: 16, kind: input, shape index: {}]
  %s17 = inlined_call_operand.vmem [shape: f32[2,32,32], index: 17, kind: input, shape index: {}]
  %s18 = inlined_call_operand.vmem [shape: f32[2,32,64], index: 18, kind: input, shape index: {}]
  %s19 = inlined_call_operand.vmem [shape: f32[2,64,32], index: 19, kind: input, shape index: {}]
  %s20 = inlined_call_operand.vmem [shape: f32[2,16,128], index: 20, kind: input, shape index: {}]
  %s21 = inlined_call_operand.vmem [shape: f32[32,128], index: 21, kind: input, shape index: {}]
  %s22 = inlined_call_operand.hbm [shape: f32[1,128], index: 22, kind: input, shape index: {}]
  %s23 = inlined_call_operand.vmem [shape: f32[16,128], index: 23, kind: output, shape index: {}]
  %s24 = sld [smem:[#allocation0]]
  $region106: #{transformer_forward.1} parent=0
    _
  %s26 = ssub.s32 1, %s24
  %s27 = scalar_select 0, %s26, %s24
  $region1: #{transformer_forward.1} parent=0
    #allocation2 [shape = 'u8[512]{0}', space=vmem, size = 0x400, scoped, tag = 'input window, operand 22, single buffered']
    #allocation3 [shape = 's32[1]{0}', space=sflag, size = 0x4, scoped, tag = 'scoped memory for transformer_forward.1']
    %28 = vsyncpa [#allocation3], 0
    // Predicated region
    $region2: #{transformer_forward.1} parent=1 // pred_check
      _
    $region3: #{transformer_forward.1} parent=1 // pred_check_branch
      %30 = sbr.rel (0) target = $region5
    $region4: #{transformer_forward.1} parent=1 // pred_region
      _
    $region5: #{transformer_forward.1} parent=1 // pred_fallthru
      _
    // Predicated region
    $region6: #{transformer_forward.1} parent=1 // pred_check
      _
    $region7: #{transformer_forward.1} parent=1 // pred_check_branch
      %32 = sbr.rel (0) target = $region9
    $region8: #{transformer_forward.1} parent=1 // pred_region
      _
    $region9: #{transformer_forward.1} parent=1 // pred_fallthru
      _
    // Predicated region
    $region10: #{transformer_forward.1} parent=1 // pred_check
      _
    $region11: #{transformer_forward.1} parent=1 // pred_check_branch
      %34 = sbr.rel (0) target = $region13
    $region12: #{transformer_forward.1} parent=1 // pred_region
      _
    $region13: #{transformer_forward.1} parent=1 // pred_fallthru
      _
    // Predicated region
    $region14: #{transformer_forward.1} parent=1 // pred_check
      _
    $region15: #{transformer_forward.1} parent=1 // pred_check_branch
      %36 = sbr.rel (0) target = $region17
    $region16: #{transformer_forward.1} parent=1 // pred_region
      _
    $region17: #{transformer_forward.1} parent=1 // pred_fallthru
      _
    // Predicated region
    $region18: #{transformer_forward.1} parent=1 // pred_check
      _
    $region19: #{transformer_forward.1} parent=1 // pred_check_branch
      %38 = sbr.rel (0) target = $region21
    $region20: #{transformer_forward.1} parent=1 // pred_region
      _
    $region21: #{transformer_forward.1} parent=1 // pred_fallthru
      _
    // Predicated region
    $region22: #{transformer_forward.1} parent=1 // pred_check
      _
    $region23: #{transformer_forward.1} parent=1 // pred_check_branch
      %40 = sbr.rel (0) target = $region25
    $region24: #{transformer_forward.1} parent=1 // pred_region
      _
    $region25: #{transformer_forward.1} parent=1 // pred_fallthru
      _
    // Predicated region
    $region26: #{transformer_forward.1} parent=1 // pred_check
      _
    $region27: #{transformer_forward.1} parent=1 // pred_check_branch
      %42 = sbr.rel (0) target = $region29
    $region28: #{transformer_forward.1} parent=1 // pred_region
      _
    $region29: #{transformer_forward.1} parent=1 // pred_fallthru
      _
    // Predicated region
    $region30: #{transformer_forward.1} parent=1 // pred_check
      _
    $region31: #{transformer_forward.1} parent=1 // pred_check_branch
      %44 = sbr.rel (0) target = $region33
    $region32: #{transformer_forward.1} parent=1 // pred_region
      _
    $region33: #{transformer_forward.1} parent=1 // pred_fallthru
      _
    // Predicated region
    $region34: #{transformer_forward.1} parent=1 // pred_check
      _
    $region35: #{transformer_forward.1} parent=1 // pred_check_branch
      %46 = sbr.rel (0) target = $region37
    $region36: #{transformer_forward.1} parent=1 // pred_region
      _
    $region37: #{transformer_forward.1} parent=1 // pred_fallthru
      _
    // Predicated region
    $region38: #{transformer_forward.1} parent=1 // pred_check
      _
    $region39: #{transformer_forward.1} parent=1 // pred_check_branch
      %48 = sbr.rel (0) target = $region41
    $region40: #{transformer_forward.1} parent=1 // pred_region
      _
    $region41: #{transformer_forward.1} parent=1 // pred_fallthru
      _
    // Predicated region
    $region42: #{transformer_forward.1} parent=1 // pred_check
      _
    $region43: #{transformer_forward.1} parent=1 // pred_check_branch
      %50 = sbr.rel (0) target = $region45
    $region44: #{transformer_forward.1} parent=1 // pred_region
      _
    $region45: #{transformer_forward.1} parent=1 // pred_fallthru
      _
    // Predicated region
    $region46: #{transformer_forward.1} parent=1 // pred_check
      _
    $region47: #{transformer_forward.1} parent=1 // pred_check_branch
      %52 = sbr.rel (0) target = $region49
    $region48: #{transformer_forward.1} parent=1 // pred_region
      _
    $region49: #{transformer_forward.1} parent=1 // pred_fallthru
      _
    // Predicated region
    $region50: #{transformer_forward.1} parent=1 // pred_check
      _
    $region51: #{transformer_forward.1} parent=1 // pred_check_branch
      %54 = sbr.rel (0) target = $region53
    $region52: #{transformer_forward.1} parent=1 // pred_region
      _
    $region53: #{transformer_forward.1} parent=1 // pred_fallthru
      _
    // Predicated region
    $region54: #{transformer_forward.1} parent=1 // pred_check
      _
    $region55: #{transformer_forward.1} parent=1 // pred_check_branch
      %56 = sbr.rel (0) target = $region57
    $region56: #{transformer_forward.1} parent=1 // pred_region
      _
    $region57: #{transformer_forward.1} parent=1 // pred_fallthru
      _
    // Predicated region
    $region58: #{transformer_forward.1} parent=1 // pred_check
      _
    $region59: #{transformer_forward.1} parent=1 // pred_check_branch
      %58 = sbr.rel (0) target = $region61
    $region60: #{transformer_forward.1} parent=1 // pred_region
      _
    $region61: #{transformer_forward.1} parent=1 // pred_fallthru
      _
    // Predicated region
    $region62: #{transformer_forward.1} parent=1 // pred_check
      _
    $region63: #{transformer_forward.1} parent=1 // pred_check_branch
      %60 = sbr.rel (0) target = $region65
    $region64: #{transformer_forward.1} parent=1 // pred_region
      _
    $region65: #{transformer_forward.1} parent=1 // pred_fallthru
      _
    // Predicated region
    $region66: #{transformer_forward.1} parent=1 // pred_check
      _
    $region67: #{transformer_forward.1} parent=1 // pred_check_branch
      %62 = sbr.rel (0) target = $region69
    $region68: #{transformer_forward.1} parent=1 // pred_region
      _
    $region69: #{transformer_forward.1} parent=1 // pred_fallthru
      _
    // Predicated region
    $region70: #{transformer_forward.1} parent=1 // pred_check
      _
    $region71: #{transformer_forward.1} parent=1 // pred_check_branch
      %64 = sbr.rel (0) target = $region73
    $region72: #{transformer_forward.1} parent=1 // pred_region
      _
    $region73: #{transformer_forward.1} parent=1 // pred_fallthru
      _
    // Predicated region
    $region74: #{transformer_forward.1} parent=1 // pred_check
      _
    $region75: #{transformer_forward.1} parent=1 // pred_check_branch
      %66 = sbr.rel (0) target = $region77
    $region76: #{transformer_forward.1} parent=1 // pred_region
      _
    $region77: #{transformer_forward.1} parent=1 // pred_fallthru
      _
    // Predicated region
    $region78: #{transformer_forward.1} parent=1 // pred_check
      _
    $region79: #{transformer_forward.1} parent=1 // pred_check_branch
      %68 = sbr.rel (0) target = $region81
    $region80: #{transformer_forward.1} parent=1 // pred_region
      _
    $region81: #{transformer_forward.1} parent=1 // pred_fallthru
      _
    // Predicated region
    $region82: #{transformer_forward.1} parent=1 // pred_check
      _
    $region83: #{transformer_forward.1} parent=1 // pred_check_branch
      %70 = sbr.rel (0) target = $region85
    $region84: #{transformer_forward.1} parent=1 // pred_region
      _
    $region85: #{transformer_forward.1} parent=1 // pred_fallthru
      _
    // Predicated region
    $region86: #{transformer_forward.1} parent=1 // pred_check
      _
    $region87: #{transformer_forward.1} parent=1 // pred_check_branch
      %72 = sbr.rel (0) target = $region89
    $region88: #{transformer_forward.1} parent=1 // pred_region
      _
    $region89: #{transformer_forward.1} parent=1 // pred_fallthru
      _
    // Predicated region
    $region90: #{transformer_forward.1} parent=1 // pred_check
      _
    $region91: #{transformer_forward.1} parent=1 // pred_check_branch
      %74 = sbr.rel (0) target = $region93
    $region92: #{transformer_forward.1} parent=1 // pred_region
      %s76 = ssub.s32 16, 16
      %77 = vsyncadd [#allocation3], %s76
      %s79 = sshll.u32 [#allocation2], 4
      %s80 = int_to_ptr.vmem [resolvable:$true] %s79
      %82 = dma.hbm_to_vmem [thread:$0]  %s22, 16, %s80, [#allocation3]
    $region93: #{transformer_forward.1} parent=1 // pred_fallthru
      _
    // Predicated region
    $region94: #{transformer_forward.1} parent=1 // pred_check
      _
    $region95: #{transformer_forward.1} parent=1 // pred_check_branch
      %84 = sbr.rel (0) target = $region97
    $region96: #{transformer_forward.1} parent=1 // pred_region
      %85 = dma.done [#allocation3], 16
    $region97: #{transformer_forward.1} parent=1 // pred_fallthru
      _
    %v86 = vld [vmem:[%s2] sm:$0xff]
    %v87 = vld [vmem:[%s2 + $0x8] sm:$0xff]
    %v88 = vld [vmem:[%s2 + $0x10] sm:$0xff]
    %v89 = vld [vmem:[%s2 + $0x18] sm:$0xff]
    %v90 = vld [vmem:[%s2 + $0x20] sm:$0xff]
    %v91 = vld [vmem:[%s2 + $0x28] sm:$0xff]
    %v92 = vld [vmem:[%s2 + $0x30] sm:$0xff]
    %v93 = vld [vmem:[%s2 + $0x38] sm:$0xff]
    %v94 = vld [vmem:[%s0] sm:$0xff]
    %v95 = vld [vmem:[%s0 + $0x8] sm:$0xff]
    %v96 = vlaneseq
    %v97 = vand.u32 %v96, 127
    %98 = vset.pattern.permute.xlu0 0
    %99 = vperm.xlu0 %98, %v94
    %v100 = vpop.permute.xlu0 %99
    %101 = vset.pattern.permute.xlu0 0
    %102 = vperm.xlu0 %101, %v95
    %v103 = vpop.permute.xlu0 %102
    %vm104 = vcmp.eq.s32.totalorder %v97, %v100
    %vm105 = vcmp.eq.s32.totalorder %v97, %v103
    %v106 = vsel %vm104, 1, 0
    %v107 = vsel %vm105, 1, 0
    %v108 = vcvt.s32.f32 %v106
    %v109 = vcvt.s32.f32 %v107
    %vm110 = vcmask 523264
    %v112 = vsel %vm110, %v108, 0
    %v115 = vsel %vm110, %v109, 0
    %117 = vmatprep.subr.mxu0 0.0
    %118 = vmatpush1.msra.mxu0 %v86
    %119 = vmatprep.subr.mxu0 0.0
    %120 = vmatpush1.msra.mxu0 %v87
    %121 = vmatprep.subr.mxu0 0.0
    %122 = vmatpush1.msra.mxu0 %v88
    %123 = vmatprep.subr.mxu0 0.0
    %124 = vmatpush1.msra.mxu0 %v89
    %125 = vmatprep.subr.mxu0 0.0
    %126 = vmatpush1.msra.mxu0 %v90
    %127 = vmatprep.subr.mxu0 0.0
    %128 = vmatpush1.msra.mxu0 %v91
    %129 = vmatprep.subr.mxu0 0.0
    %130 = vmatpush1.msra.mxu0 %v92
    %131 = vmatprep.subr.mxu0 0.0
    %132 = vmatpush1.msra.mxu0 %v93
    %133 = vmatprep.subr.mxu0 0.0
    %134 = vmatpush1.msra.mxu0 0.0
    %135 = vmatprep.subr.mxu0 0.0
    %136 = vmatpush1.msra.mxu0 0.0
    %137 = vmatprep.subr.mxu0 0.0
    %138 = vmatpush1.msra.mxu0 0.0
    %139 = vmatprep.subr.mxu0 0.0
    %140 = vmatpush1.msra.mxu0 0.0
    %141 = vmatprep.subr.mxu0 0.0
    %142 = vmatpush1.msra.mxu0 0.0
    %143 = vmatprep.subr.mxu0 0.0
    %144 = vmatpush1.msra.mxu0 0.0
    %145 = vmatprep.subr.mxu0 0.0
    %146 = vmatpush1.msra.mxu0 0.0
    %147 = vmatprep.subr.mxu0 0.0
    %148 = vmatpush1.msra.mxu0 0.0
    %149 = vmatprep.subr.mxu0 0.0
    %150 = vmatpush1.msra.mxu0 0.0
    %151 = vmatprep.subr.mxu0 0.0
    %152 = vmatpush1.msra.mxu0 0.0
    %153 = vmatprep.subr.mxu0 0.0
    %154 = vmatpush1.msra.mxu0 0.0
    %155 = vmatprep.subr.mxu0 0.0
    %156 = vmatpush1.msra.mxu0 0.0
    %157 = vmatprep.subr.mxu0 0.0
    %158 = vmatpush1.msra.mxu0 0.0
    %159 = vmatprep.subr.mxu0 0.0
    %160 = vmatpush1.msra.mxu0 0.0
    %161 = vmatprep.subr.mxu0 0.0
    %162 = vmatpush1.msra.mxu0 0.0
    %163 = vmatprep.subr.mxu0 0.0
    %164 = vmatpush1.msra.mxu0 0.0
    %165 = vmatprep.subr.mxu0 0.0
    %166 = vmatpush1.msra.mxu0 0.0
    %167 = vmatprep.subr.mxu0 0.0
    %168 = vmatpush1.msra.mxu0 0.0
    %169 = vmatprep.subr.mxu0 0.0
    %170 = vmatpush1.msra.mxu0 0.0
    %171 = vmatprep.subr.mxu0 0.0
    %172 = vmatpush1.msra.mxu0 0.0
    %173 = vmatprep.subr.mxu0 0.0
    %174 = vmatpush1.msra.mxu0 0.0
    %175 = vmatprep.subr.mxu0 0.0
    %176 = vmatpush1.msra.mxu0 0.0
    %177 = vmatprep.subr.mxu0 0.0
    %178 = vmatpush1.msra.mxu0 0.0
    %179 = vmatprep.subr.mxu0 0.0
    %180 = vmatpush1.msra.mxu0 0.0
    %181 = vmatprep.mubr.f32.mxu0 0.0
    %182 = vmatmul.mubr.f32.gmra.mrb[0].mxu0 %v112
    %v183 = vpop.f32.mrb[0].mxu0
    %v184 = vadd.f32 0.0, %v183
    %v185 = vpop.f32.mrb[0].mxu0
    %186 = vmatprep.mubr.f32.mxu0 0.0
    %187 = vmatmul.mubr.f32.gmra.mrb[0].mxu0 %v115
    %v188 = vpop.f32.mrb[0].mxu0
    %v189 = vadd.f32 0.0, %v188
    %v190 = vpop.f32.mrb[0].mxu0
    %191 = vdwg.mxu0
    %v192 = vmul.f32 %v184, 5.656854
    %v193 = vmul.f32 %v189, 5.656854
    %v194 = vld [vmem:[%s3] sm:$0xff]
    %v195 = vld [vmem:[%s3 + $0x8] sm:$0xff]
    %v196 = vadd.f32 %v192, %v194
    %v197 = vadd.f32 %v193, %v195
    %v198 = vld [vmem:[%s5] sm:$0xff]
    %v199 = vld [vmem:[%s5 + $0x8] sm:$0xff]
    %v200 = vld [vmem:[%s8] sm:$0xff]
    %v201 = vld [vmem:[%s8 + $0x8] sm:$0xff]
    %v202 = vld [vmem:[%s8 + $0x10] sm:$0xff]
    %v203 = vld [vmem:[%s8 + $0x18] sm:$0xff]
    %v204 = vld [vmem:[%s9] sm:$0xff]
    %v205 = vld [vmem:[%s9 + $0x8] sm:$0xff]
    %v206 = vld [vmem:[%s9 + $0x10] sm:$0xff]
    %v207 = vld [vmem:[%s9 + $0x18] sm:$0xff]
    %v208 = vld [vmem:[%s10] sm:$0xff]
    %v209 = vld [vmem:[%s10 + $0x8] sm:$0xff]
    %v210 = vld [vmem:[%s10 + $0x10] sm:$0xff]
    %v211 = vld [vmem:[%s10 + $0x18] sm:$0xff]
    %v212 = vld [vmem:[%s11] sm:$0xff]
    %v213 = vld [vmem:[%s11 + $0x8] sm:$0xff]
    %v214 = vld [vmem:[%s11 + $0x10] sm:$0xff]
    %v215 = vld [vmem:[%s11 + $0x18] sm:$0xff]
    %v216 = vld [vmem:[%s11 + $0x20] sm:$0xff]
    %v217 = vld [vmem:[%s11 + $0x28] sm:$0xff]
    %v218 = vld [vmem:[%s11 + $0x30] sm:$0xff]
    %v219 = vld [vmem:[%s11 + $0x38] sm:$0xff]
    %v220 = vld [vmem:[%s12] sm:$0xff]
    %v221 = vlaneseq
    %v222 = vshrl.u32 %v221, 7
    %v223 = vsub.s32 0, %v222
    %v224 = vrot.slane %v220, %v223
    %vm225 = vcmask 261120
    %v227 = vsel %vm225, %v196, 0
    %v230 = vsel %vm225, %v197, 0
    %232 = vmatprep.subr.mxu0 0.0
    %233 = vmatpush1.msra.mxu0 %v200
    %234 = vmatprep.subr.mxu0 0.0
    %235 = vmatpush1.msra.mxu0 %v201
    %236 = vmatprep.subr.mxu0 0.0
    %237 = vmatpush1.msra.mxu0 %v202
    %238 = vmatprep.subr.mxu0 0.0
    %239 = vmatpush1.msra.mxu0 %v203
    %240 = vmatprep.subr.mxu0 0.0
    %241 = vmatpush1.msra.mxu0 0.0
    %242 = vmatprep.subr.mxu0 0.0
    %243 = vmatpush1.msra.mxu0 0.0
    %244 = vmatprep.subr.mxu0 0.0
    %245 = vmatpush1.msra.mxu0 0.0
    %246 = vmatprep.subr.mxu0 0.0
    %247 = vmatpush1.msra.mxu0 0.0
    %248 = vmatprep.subr.mxu0 0.0
    %249 = vmatpush1.msra.mxu0 0.0
    %250 = vmatprep.subr.mxu0 0.0
    %251 = vmatpush1.msra.mxu0 0.0
    %252 = vmatprep.subr.mxu0 0.0
    %253 = vmatpush1.msra.mxu0 0.0
    %254 = vmatprep.subr.mxu0 0.0
    %255 = vmatpush1.msra.mxu0 0.0
    %256 = vmatprep.subr.mxu0 0.0
    %257 = vmatpush1.msra.mxu0 0.0
    %258 = vmatprep.subr.mxu0 0.0
    %259 = vmatpush1.msra.mxu0 0.0
    %260 = vmatprep.subr.mxu0 0.0
    %261 = vmatpush1.msra.mxu0 0.0
    %262 = vmatprep.subr.mxu0 0.0
    %263 = vmatpush1.msra.mxu0 0.0
    %264 = vmatprep.subr.mxu0 0.0
    %265 = vmatpush1.msra.mxu0 0.0
    %266 = vmatprep.subr.mxu0 0.0
    %267 = vmatpush1.msra.mxu0 0.0
    %268 = vmatprep.subr.mxu0 0.0
    %269 = vmatpush1.msra.mxu0 0.0
    %270 = vmatprep.subr.mxu0 0.0
    %271 = vmatpush1.msra.mxu0 0.0
    %272 = vmatprep.subr.mxu0 0.0
    %273 = vmatpush1.msra.mxu0 0.0
    %274 = vmatprep.subr.mxu0 0.0
    %275 = vmatpush1.msra.mxu0 0.0
    %276 = vmatprep.subr.mxu0 0.0
    %277 = vmatpush1.msra.mxu0 0.0
    %278 = vmatprep.subr.mxu0 0.0
    %279 = vmatpush1.msra.mxu0 0.0
    %280 = vmatprep.subr.mxu0 0.0
    %281 = vmatpush1.msra.mxu0 0.0
    %282 = vmatprep.subr.mxu0 0.0
    %283 = vmatpush1.msra.mxu0 0.0
    %284 = vmatprep.subr.mxu0 0.0
    %285 = vmatpush1.msra.mxu0 0.0
    %286 = vmatprep.subr.mxu0 0.0
    %287 = vmatpush1.msra.mxu0 0.0
    %288 = vmatprep.subr.mxu0 0.0
    %289 = vmatpush1.msra.mxu0 0.0
    %290 = vmatprep.subr.mxu0 0.0
    %291 = vmatpush1.msra.mxu0 0.0
    %292 = vmatprep.subr.mxu0 0.0
    %293 = vmatpush1.msra.mxu0 0.0
    %294 = vmatprep.subr.mxu0 0.0
    %295 = vmatpush1.msra.mxu0 0.0
    %296 = vmatprep.mubr.f32.mxu0 0.0
    %297 = vmatmul.mubr.f32.gmra.mrb[0].mxu0 %v227
    %v298 = vpop.f32.mrb[0].mxu0
    %v299 = vadd.f32 %v224, %v298
    %v300 = vpop.f32.mrb[0].mxu0
    %301 = vmatprep.mubr.f32.mxu0 0.0
    %302 = vmatmul.mubr.f32.gmra.mrb[0].mxu0 %v230
    %v303 = vpop.f32.mrb[0].mxu0
    %v304 = vadd.f32 %v224, %v303
    %v305 = vpop.f32.mrb[0].mxu0
    %306 = vdwg.mxu0
    %309 = vrot.lane.b32.xlu0 %v299, 96
    %v310 = vpop.permute.xlu0 %309
    %311 = vrot.lane.b32.xlu0 %v304, 96
    %v312 = vpop.permute.xlu0 %311
    %vm313 = vcmask 64512
    %v314 = vsel %vm313, %v299, 0
    %v316 = vsel %vm313, %v304, 0
    %v318 = vsel %vm313, %v310, 0
    %v320 = vsel %vm313, %v312, 0
    %322 = vmatprep.subr.mxu0 0.0
    %323 = vmatpush1.xpose.msra.mxu0 %v318
    %324 = vmatprep.subr.mxu0 0.0
    %325 = vmatpush1.xpose.msra.mxu0 %v320
    %326 = vmatprep.subr.mxu0 0.0
    %327 = vmatpush1.xpose.msra.mxu0 0.0
    %328 = vmatprep.subr.mxu0 0.0
    %329 = vmatpush1.xpose.msra.mxu0 0.0
    %330 = vmatprep.subr.mxu0 0.0
    %331 = vmatpush1.xpose.msra.mxu0 0.0
    %332 = vmatprep.subr.mxu0 0.0
    %333 = vmatpush1.xpose.msra.mxu0 0.0
    %334 = vmatprep.subr.mxu0 0.0
    %335 = vmatpush1.xpose.msra.mxu0 0.0
    %336 = vmatprep.subr.mxu0 0.0
    %337 = vmatpush1.xpose.msra.mxu0 0.0
    %338 = vmatprep.subr.mxu0 0.0
    %339 = vmatpush1.xpose.msra.mxu0 0.0
    %340 = vmatprep.subr.mxu0 0.0
    %341 = vmatpush1.xpose.msra.mxu0 0.0
    %342 = vmatprep.subr.mxu0 0.0
    %343 = vmatpush1.xpose.msra.mxu0 0.0
    %344 = vmatprep.subr.mxu0 0.0
    %345 = vmatpush1.xpose.msra.mxu0 0.0
    %346 = vmatprep.subr.mxu0 0.0
    %347 = vmatpush1.xpose.msra.mxu0 0.0
    %348 = vmatprep.subr.mxu0 0.0
    %349 = vmatpush1.xpose.msra.mxu0 0.0
    %350 = vmatprep.subr.mxu0 0.0
    %351 = vmatpush1.xpose.msra.mxu0 0.0
    %352 = vmatprep.subr.mxu0 0.0
    %353 = vmatpush1.xpose.msra.mxu0 0.0
    %354 = vmatprep.subr.mxu0 0.0
    %355 = vmatpush1.xpose.msra.mxu0 0.0
    %356 = vmatprep.subr.mxu0 0.0
    %357 = vmatpush1.xpose.msra.mxu0 0.0
    %358 = vmatprep.subr.mxu0 0.0
    %359 = vmatpush1.xpose.msra.mxu0 0.0
    %360 = vmatprep.subr.mxu0 0.0
    %361 = vmatpush1.xpose.msra.mxu0 0.0
    %362 = vmatprep.subr.mxu0 0.0
    %363 = vmatpush1.xpose.msra.mxu0 0.0
    %364 = vmatprep.subr.mxu0 0.0
    %365 = vmatpush1.xpose.msra.mxu0 0.0
    %366 = vmatprep.subr.mxu0 0.0
    %367 = vmatpush1.xpose.msra.mxu0 0.0
    %368 = vmatprep.subr.mxu0 0.0
    %369 = vmatpush1.xpose.msra.mxu0 0.0
    %370 = vmatprep.subr.mxu0 0.0
    %371 = vmatpush1.xpose.msra.mxu0 0.0
    %372 = vmatprep.subr.mxu0 0.0
    %373 = vmatpush1.xpose.msra.mxu0 0.0
    %374 = vmatprep.subr.mxu0 0.0
    %375 = vmatpush1.xpose.msra.mxu0 0.0
    %376 = vmatprep.subr.mxu0 0.0
    %377 = vmatpush1.xpose.msra.mxu0 0.0
    %378 = vmatprep.subr.mxu0 0.0
    %379 = vmatpush1.xpose.msra.mxu0 0.0
    %380 = vmatprep.subr.mxu0 0.0
    %381 = vmatpush1.xpose.msra.mxu0 0.0
    %382 = vmatprep.subr.mxu0 0.0
    %383 = vmatpush1.xpose.msra.mxu0 0.0
    %384 = vmatprep.subr.mxu0 0.0
    %385 = vmatpush1.xpose.msra.mxu0 0.0
    %386 = vmatprep.mubr.f32.mxu0 0.0
    %387 = vmatmul.mubr.f32.gmra.mrb[0].mxu0 %v314
    %v388 = vpop.f32.mrb[0].mxu0
    %v389 = vadd.f32 %v198, %v388
    %v390 = vpop.f32.mrb[0].mxu0
    %391 = vmatprep.mubr.f32.mxu0 0.0
    %392 = vmatmul.mubr.f32.gmra.mrb[0].mxu0 %v316
    %v393 = vpop.f32.mrb[0].mxu0
    %v394 = vadd.f32 %v199, %v393
    %v395 = vpop.f32.mrb[0].mxu0
    %396 = vdwg.mxu0
    %vm397 = vcmask 130048
    %v398 = vsel %vm397, %v389, -inf
    %399 = vmax.xlane.f32.xlu0 %v398
    %v400 = vpop.xlane.xlu0 %399
    %v401 = vsel %vm397, %v394, -inf
    %402 = vmax.xlane.f32.xlu0 %v401
    %v403 = vpop.xlane.xlu0 %402
    %v404 = vsub.f32 %v389, %v400
    %v405 = vsub.f32 %v394, %v403
    %v406 = vmul.f32 %v404, 1.442695
    %v407 = vpow.pop %v406
    %v408 = vmul.f32 %v405, 1.442695
    %v409 = vpow.pop %v408
    %v410 = vsel %vm397, %v407, 0.0
    %411 = vadd.xlane.f32.xlu0 %v410
    %v412 = vpop.xlane.xlu0 %411
    %v413 = vsel %vm397, %v409, 0.0
    %414 = vadd.xlane.f32.xlu0 %v413
    %v415 = vpop.xlane.xlu0 %414
    %v416 = vrcp.pop %v412
    %v417 = vrcp.pop %v415
    %v418 = vmul.f32 %v407, %v416
    %v419 = vmul.f32 %v409, %v417
    %420 = vrot.lane.b32.xlu0 %v299, 64
    %v421 = vpop.permute.xlu0 %420
    %422 = vrot.lane.b32.xlu0 %v304, 64
    %v423 = vpop.permute.xlu0 %422
    %v427 = vsel %vm397, %v418, 0
    %v430 = vsel %vm397, %v419, 0
    %432 = vmatprep.subr.mxu0 0.0
    %433 = vmatpush1.msra.mxu0 %v421
    %434 = vmatprep.subr.mxu0 0.0
    %435 = vmatpush1.msra.mxu0 %v423
    %436 = vmatprep.subr.mxu0 0.0
    %437 = vmatpush1.msra.mxu0 0.0
    %438 = vmatprep.subr.mxu0 0.0
    %439 = vmatpush1.msra.mxu0 0.0
    %440 = vmatprep.subr.mxu0 0.0
    %441 = vmatpush1.msra.mxu0 0.0
    %442 = vmatprep.subr.mxu0 0.0
    %443 = vmatpush1.msra.mxu0 0.0
    %444 = vmatprep.subr.mxu0 0.0
    %445 = vmatpush1.msra.mxu0 0.0
    %446 = vmatprep.subr.mxu0 0.0
    %447 = vmatpush1.msra.mxu0 0.0
    %448 = vmatprep.subr.mxu0 0.0
    %449 = vmatpush1.msra.mxu0 0.0
    %450 = vmatprep.subr.mxu0 0.0
    %451 = vmatpush1.msra.mxu0 0.0
    %452 = vmatprep.subr.mxu0 0.0
    %453 = vmatpush1.msra.mxu0 0.0
    %454 = vmatprep.subr.mxu0 0.0
    %455 = vmatpush1.msra.mxu0 0.0
    %456 = vmatprep.subr.mxu0 0.0
    %457 = vmatpush1.msra.mxu0 0.0
    %458 = vmatprep.subr.mxu0 0.0
    %459 = vmatpush1.msra.mxu0 0.0
    %460 = vmatprep.subr.mxu0 0.0
    %461 = vmatpush1.msra.mxu0 0.0
    %462 = vmatprep.subr.mxu0 0.0
    %463 = vmatpush1.msra.mxu0 0.0
    %464 = vmatprep.subr.mxu0 0.0
    %465 = vmatpush1.msra.mxu0 0.0
    %466 = vmatprep.subr.mxu0 0.0
    %467 = vmatpush1.msra.mxu0 0.0
    %468 = vmatprep.subr.mxu0 0.0
    %469 = vmatpush1.msra.mxu0 0.0
    %470 = vmatprep.subr.mxu0 0.0
    %471 = vmatpush1.msra.mxu0 0.0
    %472 = vmatprep.subr.mxu0 0.0
    %473 = vmatpush1.msra.mxu0 0.0
    %474 = vmatprep.subr.mxu0 0.0
    %475 = vmatpush1.msra.mxu0 0.0
    %476 = vmatprep.subr.mxu0 0.0
    %477 = vmatpush1.msra.mxu0 0.0
    %478 = vmatprep.subr.mxu0 0.0
    %479 = vmatpush1.msra.mxu0 0.0
    %480 = vmatprep.subr.mxu0 0.0
    %481 = vmatpush1.msra.mxu0 0.0
    %482 = vmatprep.subr.mxu0 0.0
    %483 = vmatpush1.msra.mxu0 0.0
    %484 = vmatprep.subr.mxu0 0.0
    %485 = vmatpush1.msra.mxu0 0.0
    %486 = vmatprep.subr.mxu0 0.0
    %487 = vmatpush1.msra.mxu0 0.0
    %488 = vmatprep.subr.mxu0 0.0
    %489 = vmatpush1.msra.mxu0 0.0
    %490 = vmatprep.subr.mxu0 0.0
    %491 = vmatpush1.msra.mxu0 0.0
    %492 = vmatprep.subr.mxu0 0.0
    %493 = vmatpush1.msra.mxu0 0.0
    %494 = vmatprep.subr.mxu0 0.0
    %495 = vmatpush1.msra.mxu0 0.0
    %496 = vmatprep.mubr.f32.mxu0 0.0
    %497 = vmatmul.mubr.f32.gmra.mrb[0].mxu0 %v427
    %v498 = vpop.f32.mrb[0].mxu0
    %v499 = vadd.f32 0.0, %v498
    %v500 = vpop.f32.mrb[0].mxu0
    %501 = vmatprep.mubr.f32.mxu0 0.0
    %502 = vmatmul.mubr.f32.gmra.mrb[0].mxu0 %v430
    %v503 = vpop.f32.mrb[0].mxu0
    %v504 = vadd.f32 0.0, %v503
    %v505 = vpop.f32.mrb[0].mxu0
    %506 = vdwg.mxu0
    %507 = vrot.lane.b32.xlu0 %v299, 120
    %v508 = vpop.permute.xlu0 %507
    %509 = vrot.lane.b32.xlu0 %v304, 120
    %v510 = vpop.permute.xlu0 %509
    %511 = vrot.lane.b32.xlu0 %v299, 88
    %v512 = vpop.permute.xlu0 %511
    %513 = vrot.lane.b32.xlu0 %v304, 88
    %v514 = vpop.permute.xlu0 %513
    %v515 = vsel %vm313, %v508, 0
    %v517 = vsel %vm313, %v510, 0
    %v519 = vsel %vm313, %v512, 0
    %v521 = vsel %vm313, %v514, 0
    %523 = vmatprep.subr.mxu0 0.0
    %524 = vmatpush1.xpose.msra.mxu0 %v519
    %525 = vmatprep.subr.mxu0 0.0
    %526 = vmatpush1.xpose.msra.mxu0 %v521
    %527 = vmatprep.subr.mxu0 0.0
    %528 = vmatpush1.xpose.msra.mxu0 0.0
    %529 = vmatprep.subr.mxu0 0.0
    %530 = vmatpush1.xpose.msra.mxu0 0.0
    %531 = vmatprep.subr.mxu0 0.0
    %532 = vmatpush1.xpose.msra.mxu0 0.0
    %533 = vmatprep.subr.mxu0 0.0
    %534 = vmatpush1.xpose.msra.mxu0 0.0
    %535 = vmatprep.subr.mxu0 0.0
    %536 = vmatpush1.xpose.msra.mxu0 0.0
    %537 = vmatprep.subr.mxu0 0.0
    %538 = vmatpush1.xpose.msra.mxu0 0.0
    %539 = vmatprep.subr.mxu0 0.0
    %540 = vmatpush1.xpose.msra.mxu0 0.0
    %541 = vmatprep.subr.mxu0 0.0
    %542 = vmatpush1.xpose.msra.mxu0 0.0
    %543 = vmatprep.subr.mxu0 0.0
    %544 = vmatpush1.xpose.msra.mxu0 0.0
    %545 = vmatprep.subr.mxu0 0.0
    %546 = vmatpush1.xpose.msra.mxu0 0.0
    %547 = vmatprep.subr.mxu0 0.0
    %548 = vmatpush1.xpose.msra.mxu0 0.0
    %549 = vmatprep.subr.mxu0 0.0
    %550 = vmatpush1.xpose.msra.mxu0 0.0
    %551 = vmatprep.subr.mxu0 0.0
    %552 = vmatpush1.xpose.msra.mxu0 0.0
    %553 = vmatprep.subr.mxu0 0.0
    %554 = vmatpush1.xpose.msra.mxu0 0.0
    %555 = vmatprep.subr.mxu0 0.0
    %556 = vmatpush1.xpose.msra.mxu0 0.0
    %557 = vmatprep.subr.mxu0 0.0
    %558 = vmatpush1.xpose.msra.mxu0 0.0
    %559 = vmatprep.subr.mxu0 0.0
    %560 = vmatpush1.xpose.msra.mxu0 0.0
    %561 = vmatprep.subr.mxu0 0.0
    %562 = vmatpush1.xpose.msra.mxu0 0.0
    %563 = vmatprep.subr.mxu0 0.0
    %564 = vmatpush1.xpose.msra.mxu0 0.0
    %565 = vmatprep.subr.mxu0 0.0
    %566 = vmatpush1.xpose.msra.mxu0 0.0
    %567 = vmatprep.subr.mxu0 0.0
    %568 = vmatpush1.xpose.msra.mxu0 0.0
    %569 = vmatprep.subr.mxu0 0.0
    %570 = vmatpush1.xpose.msra.mxu0 0.0
    %571 = vmatprep.subr.mxu0 0.0
    %572 = vmatpush1.xpose.msra.mxu0 0.0
    %573 = vmatprep.subr.mxu0 0.0
    %574 = vmatpush1.xpose.msra.mxu0 0.0
    %575 = vmatprep.subr.mxu0 0.0
    %576 = vmatpush1.xpose.msra.mxu0 0.0
    %577 = vmatprep.subr.mxu0 0.0
    %578 = vmatpush1.xpose.msra.mxu0 0.0
    %579 = vmatprep.subr.mxu0 0.0
    %580 = vmatpush1.xpose.msra.mxu0 0.0
    %581 = vmatprep.subr.mxu0 0.0
    %582 = vmatpush1.xpose.msra.mxu0 0.0
    %583 = vmatprep.subr.mxu0 0.0
    %584 = vmatpush1.xpose.msra.mxu0 0.0
    %585 = vmatprep.subr.mxu0 0.0
    %586 = vmatpush1.xpose.msra.mxu0 0.0
    %587 = vmatprep.mubr.f32.mxu0 0.0
    %588 = vmatmul.mubr.f32.gmra.mrb[0].mxu0 %v515
    %v589 = vpop.f32.mrb[0].mxu0
    %v590 = vadd.f32 %v198, %v589
    %v591 = vpop.f32.mrb[0].mxu0
    %592 = vmatprep.mubr.f32.mxu0 0.0
    %593 = vmatmul.mubr.f32.gmra.mrb[0].mxu0 %v517
    %v594 = vpop.f32.mrb[0].mxu0
    %v595 = vadd.f32 %v199, %v594
    %v596 = vpop.f32.mrb[0].mxu0
    %597 = vdwg.mxu0
    %v598 = vsel %vm397, %v590, -inf
    %599 = vmax.xlane.f32.xlu0 %v598
    %v600 = vpop.xlane.xlu0 %599
    %v601 = vsel %vm397, %v595, -inf
    %602 = vmax.xlane.f32.xlu0 %v601
    %v603 = vpop.xlane.xlu0 %602
    %v604 = vsub.f32 %v590, %v600
    %v605 = vsub.f32 %v595, %v603
    %v606 = vmul.f32 %v604, 1.442695
    %v607 = vpow.pop %v606
    %v608 = vmul.f32 %v605, 1.442695
    %v609 = vpow.pop %v608
    %v610 = vsel %vm397, %v607, 0.0
    %611 = vadd.xlane.f32.xlu0 %v610
    %v612 = vpop.xlane.xlu0 %611
    %v613 = vsel %vm397, %v609, 0.0
    %614 = vadd.xlane.f32.xlu0 %v613
    %v615 = vpop.xlane.xlu0 %614
    %v616 = vrcp.pop %v612
    %v617 = vrcp.pop %v615
    %v618 = vmul.f32 %v607, %v616
    %v619 = vmul.f32 %v609, %v617
    %620 = vrot.lane.b32.xlu0 %v299, 56
    %v621 = vpop.permute.xlu0 %620
    %622 = vrot.lane.b32.xlu0 %v304, 56
    %v623 = vpop.permute.xlu0 %622
    %v627 = vsel %vm397, %v618, 0
    %v630 = vsel %vm397, %v619, 0
    %632 = vmatprep.subr.mxu0 0.0
    %633 = vmatpush1.msra.mxu0 %v621
    %634 = vmatprep.subr.mxu0 0.0
    %635 = vmatpush1.msra.mxu0 %v623
    %636 = vmatprep.subr.mxu0 0.0
    %637 = vmatpush1.msra.mxu0 0.0
    %638 = vmatprep.subr.mxu0 0.0
    %639 = vmatpush1.msra.mxu0 0.0
    %640 = vmatprep.subr.mxu0 0.0
    %641 = vmatpush1.msra.mxu0 0.0
    %642 = vmatprep.subr.mxu0 0.0
    %643 = vmatpush1.msra.mxu0 0.0
    %644 = vmatprep.subr.mxu0 0.0
    %645 = vmatpush1.msra.mxu0 0.0
    %646 = vmatprep.subr.mxu0 0.0
    %647 = vmatpush1.msra.mxu0 0.0
    %648 = vmatprep.subr.mxu0 0.0
    %649 = vmatpush1.msra.mxu0 0.0
    %650 = vmatprep.subr.mxu0 0.0
    %651 = vmatpush1.msra.mxu0 0.0
    %652 = vmatprep.subr.mxu0 0.0
    %653 = vmatpush1.msra.mxu0 0.0
    %654 = vmatprep.subr.mxu0 0.0
    %655 = vmatpush1.msra.mxu0 0.0
    %656 = vmatprep.subr.mxu0 0.0
    %657 = vmatpush1.msra.mxu0 0.0
    %658 = vmatprep.subr.mxu0 0.0
    %659 = vmatpush1.msra.mxu0 0.0
    %660 = vmatprep.subr.mxu0 0.0
    %661 = vmatpush1.msra.mxu0 0.0
    %662 = vmatprep.subr.mxu0 0.0
    %663 = vmatpush1.msra.mxu0 0.0
    %664 = vmatprep.subr.mxu0 0.0
    %665 = vmatpush1.msra.mxu0 0.0
    %666 = vmatprep.subr.mxu0 0.0
    %667 = vmatpush1.msra.mxu0 0.0
    %668 = vmatprep.subr.mxu0 0.0
    %669 = vmatpush1.msra.mxu0 0.0
    %670 = vmatprep.subr.mxu0 0.0
    %671 = vmatpush1.msra.mxu0 0.0
    %672 = vmatprep.subr.mxu0 0.0
    %673 = vmatpush1.msra.mxu0 0.0
    %674 = vmatprep.subr.mxu0 0.0
    %675 = vmatpush1.msra.mxu0 0.0
    %676 = vmatprep.subr.mxu0 0.0
    %677 = vmatpush1.msra.mxu0 0.0
    %678 = vmatprep.subr.mxu0 0.0
    %679 = vmatpush1.msra.mxu0 0.0
    %680 = vmatprep.subr.mxu0 0.0
    %681 = vmatpush1.msra.mxu0 0.0
    %682 = vmatprep.subr.mxu0 0.0
    %683 = vmatpush1.msra.mxu0 0.0
    %684 = vmatprep.subr.mxu0 0.0
    %685 = vmatpush1.msra.mxu0 0.0
    %686 = vmatprep.subr.mxu0 0.0
    %687 = vmatpush1.msra.mxu0 0.0
    %688 = vmatprep.subr.mxu0 0.0
    %689 = vmatpush1.msra.mxu0 0.0
    %690 = vmatprep.subr.mxu0 0.0
    %691 = vmatpush1.msra.mxu0 0.0
    %692 = vmatprep.subr.mxu0 0.0
    %693 = vmatpush1.msra.mxu0 0.0
    %694 = vmatprep.subr.mxu0 0.0
    %695 = vmatpush1.msra.mxu0 0.0
    %696 = vmatprep.mubr.f32.mxu0 0.0
    %697 = vmatmul.mubr.f32.gmra.mrb[0].mxu0 %v627
    %v698 = vpop.f32.mrb[0].mxu0
    %v699 = vadd.f32 0.0, %v698
    %v700 = vpop.f32.mrb[0].mxu0
    %701 = vmatprep.mubr.f32.mxu0 0.0
    %702 = vmatmul.mubr.f32.gmra.mrb[0].mxu0 %v630
    %v703 = vpop.f32.mrb[0].mxu0
    %v704 = vadd.f32 0.0, %v703
    %v705 = vpop.f32.mrb[0].mxu0
    %706 = vdwg.mxu0
    %v708 = vsel %vm313, %v699, 0
    %v711 = vsel %vm313, %v704, 0
    %713 = vmatprep.subr.mxu0 0.0
    %714 = vmatpush1.msra.mxu0 %v205
    %715 = vmatprep.subr.mxu0 0.0
    %716 = vmatpush1.msra.mxu0 0.0
    %717 = vmatprep.subr.mxu0 0.0
    %718 = vmatpush1.msra.mxu0 0.0
    %719 = vmatprep.subr.mxu0 0.0
    %720 = vmatpush1.msra.mxu0 0.0
    %721 = vmatprep.subr.mxu0 0.0
    %722 = vmatpush1.msra.mxu0 0.0
    %723 = vmatprep.subr.mxu0 0.0
    %724 = vmatpush1.msra.mxu0 0.0
    %725 = vmatprep.subr.mxu0 0.0
    %726 = vmatpush1.msra.mxu0 0.0
    %727 = vmatprep.subr.mxu0 0.0
    %728 = vmatpush1.msra.mxu0 0.0
    %729 = vmatprep.subr.mxu0 0.0
    %730 = vmatpush1.msra.mxu0 0.0
    %731 = vmatprep.subr.mxu0 0.0
    %732 = vmatpush1.msra.mxu0 0.0
    %733 = vmatprep.subr.mxu0 0.0
    %734 = vmatpush1.msra.mxu0 0.0
    %735 = vmatprep.subr.mxu0 0.0
    %736 = vmatpush1.msra.mxu0 0.0
    %737 = vmatprep.subr.mxu0 0.0
    %738 = vmatpush1.msra.mxu0 0.0
    %739 = vmatprep.subr.mxu0 0.0
    %740 = vmatpush1.msra.mxu0 0.0
    %741 = vmatprep.subr.mxu0 0.0
    %742 = vmatpush1.msra.mxu0 0.0
    %743 = vmatprep.subr.mxu0 0.0
    %744 = vmatpush1.msra.mxu0 0.0
    %745 = vmatprep.subr.mxu0 0.0
    %746 = vmatpush1.msra.mxu0 0.0
    %747 = vmatprep.subr.mxu0 0.0
    %748 = vmatpush1.msra.mxu0 0.0
    %749 = vmatprep.subr.mxu0 0.0
    %750 = vmatpush1.msra.mxu0 0.0
    %751 = vmatprep.subr.mxu0 0.0
    %752 = vmatpush1.msra.mxu0 0.0
    %753 = vmatprep.subr.mxu0 0.0
    %754 = vmatpush1.msra.mxu0 0.0
    %755 = vmatprep.subr.mxu0 0.0
    %756 = vmatpush1.msra.mxu0 0.0
    %757 = vmatprep.subr.mxu0 0.0
    %758 = vmatpush1.msra.mxu0 0.0
    %759 = vmatprep.subr.mxu0 0.0
    %760 = vmatpush1.msra.mxu0 0.0
    %761 = vmatprep.subr.mxu0 0.0
    %762 = vmatpush1.msra.mxu0 0.0
    %763 = vmatprep.subr.mxu0 0.0
    %764 = vmatpush1.msra.mxu0 0.0
    %765 = vmatprep.subr.mxu0 0.0
    %766 = vmatpush1.msra.mxu0 0.0
    %767 = vmatprep.subr.mxu0 0.0
    %768 = vmatpush1.msra.mxu0 0.0
    %769 = vmatprep.subr.mxu0 0.0
    %770 = vmatpush1.msra.mxu0 0.0
    %771 = vmatprep.subr.mxu0 0.0
    %772 = vmatpush1.msra.mxu0 0.0
    %773 = vmatprep.subr.mxu0 0.0
    %774 = vmatpush1.msra.mxu0 0.0
    %775 = vmatprep.subr.mxu0 0.0
    %776 = vmatpush1.msra.mxu0 0.0
    %777 = vmatprep.mubr.f32.mxu0 0.0
    %778 = vmatmul.mubr.f32.gmra.mrb[0].mxu0 %v708
    %v779 = vpop.f32.mrb[0].mxu0
    %v780 = vadd.f32 0.0, %v779
    %v781 = vpop.f32.mrb[0].mxu0
    %782 = vmatprep.mubr.f32.mxu0 0.0
    %783 = vmatmul.mubr.f32.gmra.mrb[0].mxu0 %v711
    %v784 = vpop.f32.mrb[0].mxu0
    %v785 = vadd.f32 0.0, %v784
    %v786 = vpop.f32.mrb[0].mxu0
    %787 = vdwg.mxu0
    %v789 = vsel %vm313, %v499, 0
    %v792 = vsel %vm313, %v504, 0
    %794 = vmatprep.subr.mxu0 0.0
    %795 = vmatpush1.msra.mxu0 %v204
    %796 = vmatprep.subr.mxu0 0.0
    %797 = vmatpush1.msra.mxu0 0.0
    %798 = vmatprep.subr.mxu0 0.0
    %799 = vmatpush1.msra.mxu0 0.0
    %800 = vmatprep.subr.mxu0 0.0
    %801 = vmatpush1.msra.mxu0 0.0
    %802 = vmatprep.subr.mxu0 0.0
    %803 = vmatpush1.msra.mxu0 0.0
    %804 = vmatprep.subr.mxu0 0.0
    %805 = vmatpush1.msra.mxu0 0.0
    %806 = vmatprep.subr.mxu0 0.0
    %807 = vmatpush1.msra.mxu0 0.0
    %808 = vmatprep.subr.mxu0 0.0
    %809 = vmatpush1.msra.mxu0 0.0
    %810 = vmatprep.subr.mxu0 0.0
    %811 = vmatpush1.msra.mxu0 0.0
    %812 = vmatprep.subr.mxu0 0.0
    %813 = vmatpush1.msra.mxu0 0.0
    %814 = vmatprep.subr.mxu0 0.0
    %815 = vmatpush1.msra.mxu0 0.0
    %816 = vmatprep.subr.mxu0 0.0
    %817 = vmatpush1.msra.mxu0 0.0
    %818 = vmatprep.subr.mxu0 0.0
    %819 = vmatpush1.msra.mxu0 0.0
    %820 = vmatprep.subr.mxu0 0.0
    %821 = vmatpush1.msra.mxu0 0.0
    %822 = vmatprep.subr.mxu0 0.0
    %823 = vmatpush1.msra.mxu0 0.0
    %824 = vmatprep.subr.mxu0 0.0
    %825 = vmatpush1.msra.mxu0 0.0
    %826 = vmatprep.subr.mxu0 0.0
    %827 = vmatpush1.msra.mxu0 0.0
    %828 = vmatprep.subr.mxu0 0.0
    %829 = vmatpush1.msra.mxu0 0.0
    %830 = vmatprep.subr.mxu0 0.0
    %831 = vmatpush1.msra.mxu0 0.0
    %832 = vmatprep.subr.mxu0 0.0
    %833 = vmatpush1.msra.mxu0 0.0
    %834 = vmatprep.subr.mxu0 0.0
    %835 = vmatpush1.msra.mxu0 0.0
    %836 = vmatprep.subr.mxu0 0.0
    %837 = vmatpush1.msra.mxu0 0.0
    %838 = vmatprep.subr.mxu0 0.0
    %839 = vmatpush1.msra.mxu0 0.0
    %840 = vmatprep.subr.mxu0 0.0
    %841 = vmatpush1.msra.mxu0 0.0
    %842 = vmatprep.subr.mxu0 0.0
    %843 = vmatpush1.msra.mxu0 0.0
    %844 = vmatprep.subr.mxu0 0.0
    %845 = vmatpush1.msra.mxu0 0.0
    %846 = vmatprep.subr.mxu0 0.0
    %847 = vmatpush1.msra.mxu0 0.0
    %848 = vmatprep.subr.mxu0 0.0
    %849 = vmatpush1.msra.mxu0 0.0
    %850 = vmatprep.subr.mxu0 0.0
    %851 = vmatpush1.msra.mxu0 0.0
    %852 = vmatprep.subr.mxu0 0.0
    %853 = vmatpush1.msra.mxu0 0.0
    %854 = vmatprep.subr.mxu0 0.0
    %855 = vmatpush1.msra.mxu0 0.0
    %856 = vmatprep.subr.mxu0 0.0
    %857 = vmatpush1.msra.mxu0 0.0
    %858 = vmatprep.mubr.f32.mxu0 0.0
    %859 = vmatmul.mubr.f32.gmra.mrb[0].mxu0 %v789
    %v860 = vpop.f32.mrb[0].mxu0
    %v861 = vadd.f32 %v780, %v860
    %v862 = vpop.f32.mrb[0].mxu0
    %863 = vmatprep.mubr.f32.mxu0 0.0
    %864 = vmatmul.mubr.f32.gmra.mrb[0].mxu0 %v792
    %v865 = vpop.f32.mrb[0].mxu0
    %v866 = vadd.f32 %v785, %v865
    %v867 = vpop.f32.mrb[0].mxu0
    %868 = vdwg.mxu0
    %869 = vrot.lane.b32.xlu0 %v299, 112
    %v870 = vpop.permute.xlu0 %869
    %871 = vrot.lane.b32.xlu0 %v304, 112
    %v872 = vpop.permute.xlu0 %871
    %873 = vrot.lane.b32.xlu0 %v299, 80
    %v874 = vpop.permute.xlu0 %873
    %875 = vrot.lane.b32.xlu0 %v304, 80
    %v876 = vpop.permute.xlu0 %875
    %v877 = vsel %vm313, %v870, 0
    %v879 = vsel %vm313, %v872, 0
    %v881 = vsel %vm313, %v874, 0
    %v883 = vsel %vm313, %v876, 0
    %885 = vmatprep.subr.mxu0 0.0
    %886 = vmatpush1.xpose.msra.mxu0 %v881
    %887 = vmatprep.subr.mxu0 0.0
    %888 = vmatpush1.xpose.msra.mxu0 %v883
    %889 = vmatprep.subr.mxu0 0.0
    %890 = vmatpush1.xpose.msra.mxu0 0.0
    %891 = vmatprep.subr.mxu0 0.0
    %892 = vmatpush1.xpose.msra.mxu0 0.0
    %893 = vmatprep.subr.mxu0 0.0
    %894 = vmatpush1.xpose.msra.mxu0 0.0
    %895 = vmatprep.subr.mxu0 0.0
    %896 = vmatpush1.xpose.msra.mxu0 0.0
    %897 = vmatprep.subr.mxu0 0.0
    %898 = vmatpush1.xpose.msra.mxu0 0.0
    %899 = vmatprep.subr.mxu0 0.0
    %900 = vmatpush1.xpose.msra.mxu0 0.0
    %901 = vmatprep.subr.mxu0 0.0
    %902 = vmatpush1.xpose.msra.mxu0 0.0
    %903 = vmatprep.subr.mxu0 0.0
    %904 = vmatpush1.xpose.msra.mxu0 0.0
    %905 = vmatprep.subr.mxu0 0.0
    %906 = vmatpush1.xpose.msra.mxu0 0.0
    %907 = vmatprep.subr.mxu0 0.0
    %908 = vmatpush1.xpose.msra.mxu0 0.0
    %909 = vmatprep.subr.mxu0 0.0
    %910 = vmatpush1.xpose.msra.mxu0 0.0
    %911 = vmatprep.subr.mxu0 0.0
    %912 = vmatpush1.xpose.msra.mxu0 0.0
    %913 = vmatprep.subr.mxu0 0.0
    %914 = vmatpush1.xpose.msra.mxu0 0.0
    %915 = vmatprep.subr.mxu0 0.0
    %916 = vmatpush1.xpose.msra.mxu0 0.0
    %917 = vmatprep.subr.mxu0 0.0
    %918 = vmatpush1.xpose.msra.mxu0 0.0
    %919 = vmatprep.subr.mxu0 0.0
    %920 = vmatpush1.xpose.msra.mxu0 0.0
    %921 = vmatprep.subr.mxu0 0.0
    %922 = vmatpush1.xpose.msra.mxu0 0.0
    %923 = vmatprep.subr.mxu0 0.0
    %924 = vmatpush1.xpose.msra.mxu0 0.0
    %925 = vmatprep.subr.mxu0 0.0
    %926 = vmatpush1.xpose.msra.mxu0 0.0
    %927 = vmatprep.subr.mxu0 0.0
    %928 = vmatpush1.xpose.msra.mxu0 0.0
    %929 = vmatprep.subr.mxu0 0.0
    %930 = vmatpush1.xpose.msra.mxu0 0.0
    %931 = vmatprep.subr.mxu0 0.0
    %932 = vmatpush1.xpose.msra.mxu0 0.0
    %933 = vmatprep.subr.mxu0 0.0
    %934 = vmatpush1.xpose.msra.mxu0 0.0
    %935 = vmatprep.subr.mxu0 0.0
    %936 = vmatpush1.xpose.msra.mxu0 0.0
    %937 = vmatprep.subr.mxu0 0.0
    %938 = vmatpush1.xpose.msra.mxu0 0.0
    %939 = vmatprep.subr.mxu0 0.0
    %940 = vmatpush1.xpose.msra.mxu0 0.0
    %941 = vmatprep.subr.mxu0 0.0
    %942 = vmatpush1.xpose.msra.mxu0 0.0
    %943 = vmatprep.subr.mxu0 0.0
    %944 = vmatpush1.xpose.msra.mxu0 0.0
    %945 = vmatprep.subr.mxu0 0.0
    %946 = vmatpush1.xpose.msra.mxu0 0.0
    %947 = vmatprep.subr.mxu0 0.0
    %948 = vmatpush1.xpose.msra.mxu0 0.0
    %949 = vmatprep.mubr.f32.mxu0 0.0
    %950 = vmatmul.mubr.f32.gmra.mrb[0].mxu0 %v877
    %v951 = vpop.f32.mrb[0].mxu0
    %v952 = vadd.f32 %v198, %v951
    %v953 = vpop.f32.mrb[0].mxu0
    %954 = vmatprep.mubr.f32.mxu0 0.0
    %955 = vmatmul.mubr.f32.gmra.mrb[0].mxu0 %v879
    %v956 = vpop.f32.mrb[0].mxu0
    %v957 = vadd.f32 %v199, %v956
    %v958 = vpop.f32.mrb[0].mxu0
    %959 = vdwg.mxu0
    %v960 = vsel %vm397, %v952, -inf
    %961 = vmax.xlane.f32.xlu0 %v960
    %v962 = vpop.xlane.xlu0 %961
    %v963 = vsel %vm397, %v957, -inf
    %964 = vmax.xlane.f32.xlu0 %v963
    %v965 = vpop.xlane.xlu0 %964
    %v966 = vsub.f32 %v952, %v962
    %v967 = vsub.f32 %v957, %v965
    %v968 = vmul.f32 %v966, 1.442695
    %v969 = vpow.pop %v968
    %v970 = vmul.f32 %v967, 1.442695
    %v971 = vpow.pop %v970
    %v972 = vsel %vm397, %v969, 0.0
    %973 = vadd.xlane.f32.xlu0 %v972
    %v974 = vpop.xlane.xlu0 %973
    %v975 = vsel %vm397, %v971, 0.0
    %976 = vadd.xlane.f32.xlu0 %v975
    %v977 = vpop.xlane.xlu0 %976
    %v978 = vrcp.pop %v974
    %v979 = vrcp.pop %v977
    %v980 = vmul.f32 %v969, %v978
    %v981 = vmul.f32 %v971, %v979
    %982 = vrot.lane.b32.xlu0 %v299, 48
    %v983 = vpop.permute.xlu0 %982
    %984 = vrot.lane.b32.xlu0 %v304, 48
    %v985 = vpop.permute.xlu0 %984
    %v989 = vsel %vm397, %v980, 0
    %v992 = vsel %vm397, %v981, 0
    %994 = vmatprep.subr.mxu0 0.0
    %995 = vmatpush1.msra.mxu0 %v983
    %996 = vmatprep.subr.mxu0 0.0
    %997 = vmatpush1.msra.mxu0 %v985
    %998 = vmatprep.subr.mxu0 0.0
    %999 = vmatpush1.msra.mxu0 0.0
    %1000 = vmatprep.subr.mxu0 0.0
    %1001 = vmatpush1.msra.mxu0 0.0
    %1002 = vmatprep.subr.mxu0 0.0
    %1003 = vmatpush1.msra.mxu0 0.0
    %1004 = vmatprep.subr.mxu0 0.0
    %1005 = vmatpush1.msra.mxu0 0.0
    %1006 = vmatprep.subr.mxu0 0.0
    %1007 = vmatpush1.msra.mxu0 0.0
    %1008 = vmatprep.subr.mxu0 0.0
    %1009 = vmatpush1.msra.mxu0 0.0
    %1010 = vmatprep.subr.mxu0 0.0
    %1011 = vmatpush1.msra.mxu0 0.0
    %1012 = vmatprep.subr.mxu0 0.0
    %1013 = vmatpush1.msra.mxu0 0.0
    %1014 = vmatprep.subr.mxu0 0.0
    %1015 = vmatpush1.msra.mxu0 0.0
    %1016 = vmatprep.subr.mxu0 0.0
    %1017 = vmatpush1.msra.mxu0 0.0
    %1018 = vmatprep.subr.mxu0 0.0
    %1019 = vmatpush1.msra.mxu0 0.0
    %1020 = vmatprep.subr.mxu0 0.0
    %1021 = vmatpush1.msra.mxu0 0.0
    %1022 = vmatprep.subr.mxu0 0.0
    %1023 = vmatpush1.msra.mxu0 0.0
    %1024 = vmatprep.subr.mxu0 0.0
    %1025 = vmatpush1.msra.mxu0 0.0
    %1026 = vmatprep.subr.mxu0 0.0
    %1027 = vmatpush1.msra.mxu0 0.0
    %1028 = vmatprep.subr.mxu0 0.0
    %1029 = vmatpush1.msra.mxu0 0.0
    %1030 = vmatprep.subr.mxu0 0.0
    %1031 = vmatpush1.msra.mxu0 0.0
    %1032 = vmatprep.subr.mxu0 0.0
    %1033 = vmatpush1.msra.mxu0 0.0
    %1034 = vmatprep.subr.mxu0 0.0
    %1035 = vmatpush1.msra.mxu0 0.0
    %1036 = vmatprep.subr.mxu0 0.0
    %1037 = vmatpush1.msra.mxu0 0.0
    %1038 = vmatprep.subr.mxu0 0.0
    %1039 = vmatpush1.msra.mxu0 0.0
    %1040 = vmatprep.subr.mxu0 0.0
    %1041 = vmatpush1.msra.mxu0 0.0
    %1042 = vmatprep.subr.mxu0 0.0
    %1043 = vmatpush1.msra.mxu0 0.0
    %1044 = vmatprep.subr.mxu0 0.0
    %1045 = vmatpush1.msra.mxu0 0.0
    %1046 = vmatprep.subr.mxu0 0.0
    %1047 = vmatpush1.msra.mxu0 0.0
    %1048 = vmatprep.subr.mxu0 0.0
    %1049 = vmatpush1.msra.mxu0 0.0
    %1050 = vmatprep.subr.mxu0 0.0
    %1051 = vmatpush1.msra.mxu0 0.0
    %1052 = vmatprep.subr.mxu0 0.0
    %1053 = vmatpush1.msra.mxu0 0.0
    %1054 = vmatprep.subr.mxu0 0.0
    %1055 = vmatpush1.msra.mxu0 0.0
    %1056 = vmatprep.subr.mxu0 0.0
    %1057 = vmatpush1.msra.mxu0 0.0
    %1058 = vmatprep.mubr.f32.mxu0 0.0
    %1059 = vmatmul.mubr.f32.gmra.mrb[0].mxu0 %v989
    %v1060 = vpop.f32.mrb[0].mxu0
    %v1061 = vadd.f32 0.0, %v1060
    %v1062 = vpop.f32.mrb[0].mxu0
    %1063 = vmatprep.mubr.f32.mxu0 0.0
    %1064 = vmatmul.mubr.f32.gmra.mrb[0].mxu0 %v992
    %v1065 = vpop.f32.mrb[0].mxu0
    %v1066 = vadd.f32 0.0, %v1065
    %v1067 = vpop.f32.mrb[0].mxu0
    %1068 = vdwg.mxu0
    %v1070 = vsel %vm313, %v1061, 0
    %v1073 = vsel %vm313, %v1066, 0
    %1075 = vmatprep.subr.mxu0 0.0
    %1076 = vmatpush1.msra.mxu0 %v206
    %1077 = vmatprep.subr.mxu0 0.0
    %1078 = vmatpush1.msra.mxu0 0.0
    %1079 = vmatprep.subr.mxu0 0.0
    %1080 = vmatpush1.msra.mxu0 0.0
    %1081 = vmatprep.subr.mxu0 0.0
    %1082 = vmatpush1.msra.mxu0 0.0
    %1083 = vmatprep.subr.mxu0 0.0
    %1084 = vmatpush1.msra.mxu0 0.0
    %1085 = vmatprep.subr.mxu0 0.0
    %1086 = vmatpush1.msra.mxu0 0.0
    %1087 = vmatprep.subr.mxu0 0.0
    %1088 = vmatpush1.msra.mxu0 0.0
    %1089 = vmatprep.subr.mxu0 0.0
    %1090 = vmatpush1.msra.mxu0 0.0
    %1091 = vmatprep.subr.mxu0 0.0
    %1092 = vmatpush1.msra.mxu0 0.0
    %1093 = vmatprep.subr.mxu0 0.0
    %1094 = vmatpush1.msra.mxu0 0.0
    %1095 = vmatprep.subr.mxu0 0.0
    %1096 = vmatpush1.msra.mxu0 0.0
    %1097 = vmatprep.subr.mxu0 0.0
    %1098 = vmatpush1.msra.mxu0 0.0
    %1099 = vmatprep.subr.mxu0 0.0
    %1100 = vmatpush1.msra.mxu0 0.0
    %1101 = vmatprep.subr.mxu0 0.0
    %1102 = vmatpush1.msra.mxu0 0.0
    %1103 = vmatprep.subr.mxu0 0.0
    %1104 = vmatpush1.msra.mxu0 0.0
    %1105 = vmatprep.subr.mxu0 0.0
    %1106 = vmatpush1.msra.mxu0 0.0
    %1107 = vmatprep.subr.mxu0 0.0
    %1108 = vmatpush1.msra.mxu0 0.0
    %1109 = vmatprep.subr.mxu0 0.0
    %1110 = vmatpush1.msra.mxu0 0.0
    %1111 = vmatprep.subr.mxu0 0.0
    %1112 = vmatpush1.msra.mxu0 0.0
    %1113 = vmatprep.subr.mxu0 0.0
    %1114 = vmatpush1.msra.mxu0 0.0
    %1115 = vmatprep.subr.mxu0 0.0
    %1116 = vmatpush1.msra.mxu0 0.0
    %1117 = vmatprep.subr.mxu0 0.0
    %1118 = vmatpush1.msra.mxu0 0.0
    %1119 = vmatprep.subr.mxu0 0.0
    %1120 = vmatpush1.msra.mxu0 0.0
    %1121 = vmatprep.subr.mxu0 0.0
    %1122 = vmatpush1.msra.mxu0 0.0
    %1123 = vmatprep.subr.mxu0 0.0
    %1124 = vmatpush1.msra.mxu0 0.0
    %1125 = vmatprep.subr.mxu0 0.0
    %1126 = vmatpush1.msra.mxu0 0.0
    %1127 = vmatprep.subr.mxu0 0.0
    %1128 = vmatpush1.msra.mxu0 0.0
    %1129 = vmatprep.subr.mxu0 0.0
    %1130 = vmatpush1.msra.mxu0 0.0
    %1131 = vmatprep.subr.mxu0 0.0
    %1132 = vmatpush1.msra.mxu0 0.0
    %1133 = vmatprep.subr.mxu0 0.0
    %1134 = vmatpush1.msra.mxu0 0.0
    %1135 = vmatprep.subr.mxu0 0.0
    %1136 = vmatpush1.msra.mxu0 0.0
    %1137 = vmatprep.subr.mxu0 0.0
    %1138 = vmatpush1.msra.mxu0 0.0
    %1139 = vmatprep.mubr.f32.mxu0 0.0
    %1140 = vmatmul.mubr.f32.gmra.mrb[0].mxu0 %v1070
    %v1141 = vpop.f32.mrb[0].mxu0
    %v1142 = vadd.f32 0.0, %v1141
    %v1143 = vpop.f32.mrb[0].mxu0
    %1144 = vmatprep.mubr.f32.mxu0 0.0
    %1145 = vmatmul.mubr.f32.gmra.mrb[0].mxu0 %v1073
    %v1146 = vpop.f32.mrb[0].mxu0
    %v1147 = vadd.f32 0.0, %v1146
    %v1148 = vpop.f32.mrb[0].mxu0
    %1149 = vdwg.mxu0
    %v1150 = vadd.f32 %v861, %v1142
    %v1151 = vadd.f32 %v866, %v1147
    %1152 = vrot.lane.b32.xlu0 %v299, 104
    %v1153 = vpop.permute.xlu0 %1152
    %1154 = vrot.lane.b32.xlu0 %v304, 104
    %v1155 = vpop.permute.xlu0 %1154
    %1156 = vrot.lane.b32.xlu0 %v299, 72
    %v1157 = vpop.permute.xlu0 %1156
    %1158 = vrot.lane.b32.xlu0 %v304, 72
    %v1159 = vpop.permute.xlu0 %1158
    %v1160 = vsel %vm313, %v1153, 0
    %v1162 = vsel %vm313, %v1155, 0
    %v1164 = vsel %vm313, %v1157, 0
    %v1166 = vsel %vm313, %v1159, 0
    %1168 = vmatprep.subr.mxu0 0.0
    %1169 = vmatpush1.xpose.msra.mxu0 %v1164
    %1170 = vmatprep.subr.mxu0 0.0
    %1171 = vmatpush1.xpose.msra.mxu0 %v1166
    %1172 = vmatprep.subr.mxu0 0.0
    %1173 = vmatpush1.xpose.msra.mxu0 0.0
    %1174 = vmatprep.subr.mxu0 0.0
    %1175 = vmatpush1.xpose.msra.mxu0 0.0
    %1176 = vmatprep.subr.mxu0 0.0
    %1177 = vmatpush1.xpose.msra.mxu0 0.0
    %1178 = vmatprep.subr.mxu0 0.0
    %1179 = vmatpush1.xpose.msra.mxu0 0.0
    %1180 = vmatprep.subr.mxu0 0.0
    %1181 = vmatpush1.xpose.msra.mxu0 0.0
    %1182 = vmatprep.subr.mxu0 0.0
    %1183 = vmatpush1.xpose.msra.mxu0 0.0
    %1184 = vmatprep.subr.mxu0 0.0
    %1185 = vmatpush1.xpose.msra.mxu0 0.0
    %1186 = vmatprep.subr.mxu0 0.0
    %1187 = vmatpush1.xpose.msra.mxu0 0.0
    %1188 = vmatprep.subr.mxu0 0.0
    %1189 = vmatpush1.xpose.msra.mxu0 0.0
    %1190 = vmatprep.subr.mxu0 0.0
    %1191 = vmatpush1.xpose.msra.mxu0 0.0
    %1192 = vmatprep.subr.mxu0 0.0
    %1193 = vmatpush1.xpose.msra.mxu0 0.0
    %1194 = vmatprep.subr.mxu0 0.0
    %1195 = vmatpush1.xpose.msra.mxu0 0.0
    %1196 = vmatprep.subr.mxu0 0.0
    %1197 = vmatpush1.xpose.msra.mxu0 0.0
    %1198 = vmatprep.subr.mxu0 0.0
    %1199 = vmatpush1.xpose.msra.mxu0 0.0
    %1200 = vmatprep.subr.mxu0 0.0
    %1201 = vmatpush1.xpose.msra.mxu0 0.0
    %1202 = vmatprep.subr.mxu0 0.0
    %1203 = vmatpush1.xpose.msra.mxu0 0.0
    %1204 = vmatprep.subr.mxu0 0.0
    %1205 = vmatpush1.xpose.msra.mxu0 0.0
    %1206 = vmatprep.subr.mxu0 0.0
    %1207 = vmatpush1.xpose.msra.mxu0 0.0
    %1208 = vmatprep.subr.mxu0 0.0
    %1209 = vmatpush1.xpose.msra.mxu0 0.0
    %1210 = vmatprep.subr.mxu0 0.0
    %1211 = vmatpush1.xpose.msra.mxu0 0.0
    %1212 = vmatprep.subr.mxu0 0.0
    %1213 = vmatpush1.xpose.msra.mxu0 0.0
    %1214 = vmatprep.subr.mxu0 0.0
    %1215 = vmatpush1.xpose.msra.mxu0 0.0
    %1216 = vmatprep.subr.mxu0 0.0
    %1217 = vmatpush1.xpose.msra.mxu0 0.0
    %1218 = vmatprep.subr.mxu0 0.0
    %1219 = vmatpush1.xpose.msra.mxu0 0.0
    %1220 = vmatprep.subr.mxu0 0.0
    %1221 = vmatpush1.xpose.msra.mxu0 0.0
    %1222 = vmatprep.subr.mxu0 0.0
    %1223 = vmatpush1.xpose.msra.mxu0 0.0
    %1224 = vmatprep.subr.mxu0 0.0
    %1225 = vmatpush1.xpose.msra.mxu0 0.0
    %1226 = vmatprep.subr.mxu0 0.0
    %1227 = vmatpush1.xpose.msra.mxu0 0.0
    %1228 = vmatprep.subr.mxu0 0.0
    %1229 = vmatpush1.xpose.msra.mxu0 0.0
    %1230 = vmatprep.subr.mxu0 0.0
    %1231 = vmatpush1.xpose.msra.mxu0 0.0
    %1232 = vmatprep.mubr.f32.mxu0 0.0
    %1233 = vmatmul.mubr.f32.gmra.mrb[0].mxu0 %v1160
    %v1234 = vpop.f32.mrb[0].mxu0
    %v1235 = vadd.f32 %v198, %v1234
    %v1236 = vpop.f32.mrb[0].mxu0
    %1237 = vmatprep.mubr.f32.mxu0 0.0
    %1238 = vmatmul.mubr.f32.gmra.mrb[0].mxu0 %v1162
    %v1239 = vpop.f32.mrb[0].mxu0
    %v1240 = vadd.f32 %v199, %v1239
    %v1241 = vpop.f32.mrb[0].mxu0
    %1242 = vdwg.mxu0
    %v1243 = vsel %vm397, %v1235, -inf
    %1244 = vmax.xlane.f32.xlu0 %v1243
    %v1245 = vpop.xlane.xlu0 %1244
    %v1246 = vsel %vm397, %v1240, -inf
    %1247 = vmax.xlane.f32.xlu0 %v1246
    %v1248 = vpop.xlane.xlu0 %1247
    %v1249 = vsub.f32 %v1235, %v1245
    %v1250 = vsub.f32 %v1240, %v1248
    %v1251 = vmul.f32 %v1249, 1.442695
    %v1252 = vpow.pop %v1251
    %v1253 = vmul.f32 %v1250, 1.442695
    %v1254 = vpow.pop %v1253
    %v1255 = vsel %vm397, %v1252, 0.0
    %1256 = vadd.xlane.f32.xlu0 %v1255
    %v1257 = vpop.xlane.xlu0 %1256
    %v1258 = vsel %vm397, %v1254, 0.0
    %1259 = vadd.xlane.f32.xlu0 %v1258
    %v1260 = vpop.xlane.xlu0 %1259
    %v1261 = vrcp.pop %v1257
    %v1262 = vrcp.pop %v1260
    %v1263 = vmul.f32 %v1252, %v1261
    %v1264 = vmul.f32 %v1254, %v1262
    %1265 = vrot.lane.b32.xlu0 %v299, 40
    %v1266 = vpop.permute.xlu0 %1265
    %1267 = vrot.lane.b32.xlu0 %v304, 40
    %v1268 = vpop.permute.xlu0 %1267
    %v1272 = vsel %vm397, %v1263, 0
    %v1275 = vsel %vm397, %v1264, 0
    %1277 = vmatprep.subr.mxu0 0.0
    %1278 = vmatpush1.msra.mxu0 %v1266
    %1279 = vmatprep.subr.mxu0 0.0
    %1280 = vmatpush1.msra.mxu0 %v1268
    %1281 = vmatprep.subr.mxu0 0.0
    %1282 = vmatpush1.msra.mxu0 0.0
    %1283 = vmatprep.subr.mxu0 0.0
    %1284 = vmatpush1.msra.mxu0 0.0
    %1285 = vmatprep.subr.mxu0 0.0
    %1286 = vmatpush1.msra.mxu0 0.0
    %1287 = vmatprep.subr.mxu0 0.0
    %1288 = vmatpush1.msra.mxu0 0.0
    %1289 = vmatprep.subr.mxu0 0.0
    %1290 = vmatpush1.msra.mxu0 0.0
    %1291 = vmatprep.subr.mxu0 0.0
    %1292 = vmatpush1.msra.mxu0 0.0
    %1293 = vmatprep.subr.mxu0 0.0
    %1294 = vmatpush1.msra.mxu0 0.0
    %1295 = vmatprep.subr.mxu0 0.0
    %1296 = vmatpush1.msra.mxu0 0.0
    %1297 = vmatprep.subr.mxu0 0.0
    %1298 = vmatpush1.msra.mxu0 0.0
    %1299 = vmatprep.subr.mxu0 0.0
    %1300 = vmatpush1.msra.mxu0 0.0
    %1301 = vmatprep.subr.mxu0 0.0
    %1302 = vmatpush1.msra.mxu0 0.0
    %1303 = vmatprep.subr.mxu0 0.0
    %1304 = vmatpush1.msra.mxu0 0.0
    %1305 = vmatprep.subr.mxu0 0.0
    %1306 = vmatpush1.msra.mxu0 0.0
    %1307 = vmatprep.subr.mxu0 0.0
    %1308 = vmatpush1.msra.mxu0 0.0
    %1309 = vmatprep.subr.mxu0 0.0
    %1310 = vmatpush1.msra.mxu0 0.0
    %1311 = vmatprep.subr.mxu0 0.0
    %1312 = vmatpush1.msra.mxu0 0.0
    %1313 = vmatprep.subr.mxu0 0.0
    %1314 = vmatpush1.msra.mxu0 0.0
    %1315 = vmatprep.subr.mxu0 0.0
    %1316 = vmatpush1.msra.mxu0 0.0
    %1317 = vmatprep.subr.mxu0 0.0
    %1318 = vmatpush1.msra.mxu0 0.0
    %1319 = vmatprep.subr.mxu0 0.0
    %1320 = vmatpush1.msra.mxu0 0.0
    %1321 = vmatprep.subr.mxu0 0.0
    %1322 = vmatpush1.msra.mxu0 0.0
    %1323 = vmatprep.subr.mxu0 0.0
    %1324 = vmatpush1.msra.mxu0 0.0
    %1325 = vmatprep.subr.mxu0 0.0
    %1326 = vmatpush1.msra.mxu0 0.0
    %1327 = vmatprep.subr.mxu0 0.0
    %1328 = vmatpush1.msra.mxu0 0.0
    %1329 = vmatprep.subr.mxu0 0.0
    %1330 = vmatpush1.msra.mxu0 0.0
    %1331 = vmatprep.subr.mxu0 0.0
    %1332 = vmatpush1.msra.mxu0 0.0
    %1333 = vmatprep.subr.mxu0 0.0
    %1334 = vmatpush1.msra.mxu0 0.0
    %1335 = vmatprep.subr.mxu0 0.0
    %1336 = vmatpush1.msra.mxu0 0.0
    %1337 = vmatprep.subr.mxu0 0.0
    %1338 = vmatpush1.msra.mxu0 0.0
    %1339 = vmatprep.subr.mxu0 0.0
    %1340 = vmatpush1.msra.mxu0 0.0
    %1341 = vmatprep.mubr.f32.mxu0 0.0
    %1342 = vmatmul.mubr.f32.gmra.mrb[0].mxu0 %v1272
    %v1343 = vpop.f32.mrb[0].mxu0
    %v1344 = vadd.f32 0.0, %v1343
    %v1345 = vpop.f32.mrb[0].mxu0
    %1346 = vmatprep.mubr.f32.mxu0 0.0
    %1347 = vmatmul.mubr.f32.gmra.mrb[0].mxu0 %v1275
    %v1348 = vpop.f32.mrb[0].mxu0
    %v1349 = vadd.f32 0.0, %v1348
    %v1350 = vpop.f32.mrb[0].mxu0
    %1351 = vdwg.mxu0
    %v1353 = vsel %vm313, %v1344, 0
    %v1356 = vsel %vm313, %v1349, 0
    %1358 = vmatprep.subr.mxu0 0.0
    %1359 = vmatpush1.msra.mxu0 %v207
    %1360 = vmatprep.subr.mxu0 0.0
    %1361 = vmatpush1.msra.mxu0 0.0
    %1362 = vmatprep.subr.mxu0 0.0
    %1363 = vmatpush1.msra.mxu0 0.0
    %1364 = vmatprep.subr.mxu0 0.0
    %1365 = vmatpush1.msra.mxu0 0.0
    %1366 = vmatprep.subr.mxu0 0.0
    %1367 = vmatpush1.msra.mxu0 0.0
    %1368 = vmatprep.subr.mxu0 0.0
    %1369 = vmatpush1.msra.mxu0 0.0
    %1370 = vmatprep.subr.mxu0 0.0
    %1371 = vmatpush1.msra.mxu0 0.0
    %1372 = vmatprep.subr.mxu0 0.0
    %1373 = vmatpush1.msra.mxu0 0.0
    %1374 = vmatprep.subr.mxu0 0.0
    %1375 = vmatpush1.msra.mxu0 0.0
    %1376 = vmatprep.subr.mxu0 0.0
    %1377 = vmatpush1.msra.mxu0 0.0
    %1378 = vmatprep.subr.mxu0 0.0
    %1379 = vmatpush1.msra.mxu0 0.0
    %1380 = vmatprep.subr.mxu0 0.0
    %1381 = vmatpush1.msra.mxu0 0.0
    %1382 = vmatprep.subr.mxu0 0.0
    %1383 = vmatpush1.msra.mxu0 0.0
    %1384 = vmatprep.subr.mxu0 0.0
    %1385 = vmatpush1.msra.mxu0 0.0
    %1386 = vmatprep.subr.mxu0 0.0
    %1387 = vmatpush1.msra.mxu0 0.0
    %1388 = vmatprep.subr.mxu0 0.0
    %1389 = vmatpush1.msra.mxu0 0.0
    %1390 = vmatprep.subr.mxu0 0.0
    %1391 = vmatpush1.msra.mxu0 0.0
    %1392 = vmatprep.subr.mxu0 0.0
    %1393 = vmatpush1.msra.mxu0 0.0
    %1394 = vmatprep.subr.mxu0 0.0
    %1395 = vmatpush1.msra.mxu0 0.0
    %1396 = vmatprep.subr.mxu0 0.0
    %1397 = vmatpush1.msra.mxu0 0.0
    %1398 = vmatprep.subr.mxu0 0.0
    %1399 = vmatpush1.msra.mxu0 0.0
    %1400 = vmatprep.subr.mxu0 0.0
    %1401 = vmatpush1.msra.mxu0 0.0
    %1402 = vmatprep.subr.mxu0 0.0
    %1403 = vmatpush1.msra.mxu0 0.0
    %1404 = vmatprep.subr.mxu0 0.0
    %1405 = vmatpush1.msra.mxu0 0.0
    %1406 = vmatprep.subr.mxu0 0.0
    %1407 = vmatpush1.msra.mxu0 0.0
    %1408 = vmatprep.subr.mxu0 0.0
    %1409 = vmatpush1.msra.mxu0 0.0
    %1410 = vmatprep.subr.mxu0 0.0
    %1411 = vmatpush1.msra.mxu0 0.0
    %1412 = vmatprep.subr.mxu0 0.0
    %1413 = vmatpush1.msra.mxu0 0.0
    %1414 = vmatprep.subr.mxu0 0.0
    %1415 = vmatpush1.msra.mxu0 0.0
    %1416 = vmatprep.subr.mxu0 0.0
    %1417 = vmatpush1.msra.mxu0 0.0
    %1418 = vmatprep.subr.mxu0 0.0
    %1419 = vmatpush1.msra.mxu0 0.0
    %1420 = vmatprep.subr.mxu0 0.0
    %1421 = vmatpush1.msra.mxu0 0.0
    %1422 = vmatprep.mubr.f32.mxu0 0.0
    %1423 = vmatmul.mubr.f32.gmra.mrb[0].mxu0 %v1353
    %v1424 = vpop.f32.mrb[0].mxu0
    %v1425 = vadd.f32 0.0, %v1424
    %v1426 = vpop.f32.mrb[0].mxu0
    %1427 = vmatprep.mubr.f32.mxu0 0.0
    %1428 = vmatmul.mubr.f32.gmra.mrb[0].mxu0 %v1356
    %v1429 = vpop.f32.mrb[0].mxu0
    %v1430 = vadd.f32 0.0, %v1429
    %v1431 = vpop.f32.mrb[0].mxu0
    %1432 = vdwg.mxu0
    %v1433 = vadd.f32 %v1150, %v1425
    %v1434 = vadd.f32 %v1151, %v1430
    %v1435 = vlaneseq
    %v1436 = vshrl.u32 %v1435, 7
    %v1437 = vsub.s32 1, %v1436
    %v1438 = vrot.slane %v220, %v1437
    %v1439 = vadd.f32 %v1433, %v1438
    %v1440 = vadd.f32 %v1434, %v1438
    %v1441 = vadd.f32 %v196, %v1439
    %v1442 = vadd.f32 %v197, %v1440
    %v1443 = vsel %vm225, %v1441, 0.0
    %1444 = vadd.xlane.f32.xlu0 %v1443
    %v1445 = vpop.xlane.xlu0 %1444
    %v1446 = vsel %vm225, %v1442, 0.0
    %1447 = vadd.xlane.f32.xlu0 %v1446
    %v1448 = vpop.xlane.xlu0 %1447
    %v1449 = vrcp.pop 32.0
    %v1450 = vmul.f32 %v1445, %v1449
    %v1451 = vmul.f32 %v1448, %v1449
    %v1452 = vsub.f32 %v1441, %v1450
    %v1453 = vsub.f32 %v1442, %v1451
    %v1454 = vmul.f32 %v1452, %v1452
    %v1455 = vmul.f32 %v1453, %v1453
    %v1456 = vsel %vm225, %v1454, 0.0
    %1457 = vadd.xlane.f32.xlu0 %v1456
    %v1458 = vpop.xlane.xlu0 %1457
    %v1459 = vsel %vm225, %v1455, 0.0
    %1460 = vadd.xlane.f32.xlu0 %v1459
    %v1461 = vpop.xlane.xlu0 %1460
    %v1462 = vmul.f32 %v1458, %v1449
    %v1463 = vmul.f32 %v1461, %v1449
    %v1464 = vadd.f32 %v1462, 1e-05
    %v1465 = vadd.f32 %v1463, 1e-05
    %v1466 = vrsqrt.pop %v1464
    %v1467 = vrsqrt.pop %v1465
    %v1468 = vmul.f32 %v1452, %v1466
    %v1469 = vmul.f32 %v1453, %v1467
    %v1470 = vlaneseq
    %v1471 = vshrl.u32 %v1470, 7
    %v1472 = vsub.s32 4, %v1471
    %v1473 = vrot.slane %v220, %v1472
    %v1474 = vmul.f32 %v1468, %v1473
    %v1475 = vmul.f32 %v1469, %v1473
    %v1476 = vlaneseq
    %v1477 = vshrl.u32 %v1476, 7
    %v1478 = vsub.s32 5, %v1477
    %v1479 = vrot.slane %v220, %v1478
    %v1480 = vadd.f32 %v1474, %v1479
    %v1481 = vadd.f32 %v1475, %v1479
    %v1482 = vlaneseq
    %v1483 = vshrl.u32 %v1482, 7
    %v1484 = vsub.s32 2, %v1483
    %v1485 = vrot.slane %v220, %v1484
    %v1487 = vsel %vm225, %v1480, 0
    %v1490 = vsel %vm225, %v1481, 0
    %1492 = vmatprep.subr.mxu0 0.0
    %1493 = vmatpush1.msra.mxu0 %v208
    %1494 = vmatprep.subr.mxu0 0.0
    %1495 = vmatpush1.msra.mxu0 %v209
    %1496 = vmatprep.subr.mxu0 0.0
    %1497 = vmatpush1.msra.mxu0 %v210
    %1498 = vmatprep.subr.mxu0 0.0
    %1499 = vmatpush1.msra.mxu0 %v211
    %1500 = vmatprep.subr.mxu0 0.0
    %1501 = vmatpush1.msra.mxu0 0.0
    %1502 = vmatprep.subr.mxu0 0.0
    %1503 = vmatpush1.msra.mxu0 0.0
    %1504 = vmatprep.subr.mxu0 0.0
    %1505 = vmatpush1.msra.mxu0 0.0
    %1506 = vmatprep.subr.mxu0 0.0
    %1507 = vmatpush1.msra.mxu0 0.0
    %1508 = vmatprep.subr.mxu0 0.0
    %1509 = vmatpush1.msra.mxu0 0.0
    %1510 = vmatprep.subr.mxu0 0.0
    %1511 = vmatpush1.msra.mxu0 0.0
    %1512 = vmatprep.subr.mxu0 0.0
    %1513 = vmatpush1.msra.mxu0 0.0
    %1514 = vmatprep.subr.mxu0 0.0
    %1515 = vmatpush1.msra.mxu0 0.0
    %1516 = vmatprep.subr.mxu0 0.0
    %1517 = vmatpush1.msra.mxu0 0.0
    %1518 = vmatprep.subr.mxu0 0.0
    %1519 = vmatpush1.msra.mxu0 0.0
    %1520 = vmatprep.subr.mxu0 0.0
    %1521 = vmatpush1.msra.mxu0 0.0
    %1522 = vmatprep.subr.mxu0 0.0
    %1523 = vmatpush1.msra.mxu0 0.0
    %1524 = vmatprep.subr.mxu0 0.0
    %1525 = vmatpush1.msra.mxu0 0.0
    %1526 = vmatprep.subr.mxu0 0.0
    %1527 = vmatpush1.msra.mxu0 0.0
    %1528 = vmatprep.subr.mxu0 0.0
    %1529 = vmatpush1.msra.mxu0 0.0
    %1530 = vmatprep.subr.mxu0 0.0
    %1531 = vmatpush1.msra.mxu0 0.0
    %1532 = vmatprep.subr.mxu0 0.0
    %1533 = vmatpush1.msra.mxu0 0.0
    %1534 = vmatprep.subr.mxu0 0.0
    %1535 = vmatpush1.msra.mxu0 0.0
    %1536 = vmatprep.subr.mxu0 0.0
    %1537 = vmatpush1.msra.mxu0 0.0
    %1538 = vmatprep.subr.mxu0 0.0
    %1539 = vmatpush1.msra.mxu0 0.0
    %1540 = vmatprep.subr.mxu0 0.0
    %1541 = vmatpush1.msra.mxu0 0.0
    %1542 = vmatprep.subr.mxu0 0.0
    %1543 = vmatpush1.msra.mxu0 0.0
    %1544 = vmatprep.subr.mxu0 0.0
    %1545 = vmatpush1.msra.mxu0 0.0
    %1546 = vmatprep.subr.mxu0 0.0
    %1547 = vmatpush1.msra.mxu0 0.0
    %1548 = vmatprep.subr.mxu0 0.0
    %1549 = vmatpush1.msra.mxu0 0.0
    %1550 = vmatprep.subr.mxu0 0.0
    %1551 = vmatpush1.msra.mxu0 0.0
    %1552 = vmatprep.subr.mxu0 0.0
    %1553 = vmatpush1.msra.mxu0 0.0
    %1554 = vmatprep.subr.mxu0 0.0
    %1555 = vmatpush1.msra.mxu0 0.0
    %1556 = vmatprep.mubr.f32.mxu0 0.0
    %1557 = vmatmul.mubr.f32.gmra.mrb[0].mxu0 %v1487
    %v1558 = vpop.f32.mrb[0].mxu0
    %v1559 = vadd.f32 %v1485, %v1558
    %v1560 = vpop.f32.mrb[0].mxu0
    %1561 = vmatprep.mubr.f32.mxu0 0.0
    %1562 = vmatmul.mubr.f32.gmra.mrb[0].mxu0 %v1490
    %v1563 = vpop.f32.mrb[0].mxu0
    %v1564 = vadd.f32 %v1485, %v1563
    %v1565 = vpop.f32.mrb[0].mxu0
    %1566 = vdwg.mxu0
    %v1567 = vmax.f32 %v1559, 0.0
    %v1568 = vmax.f32 %v1564, 0.0
    %v1569 = vlaneseq
    %v1570 = vshrl.u32 %v1569, 7
    %v1571 = vsub.s32 3, %v1570
    %v1572 = vrot.slane %v220, %v1571
    %v1574 = vsel %vm110, %v1567, 0
    %v1577 = vsel %vm110, %v1568, 0
    %1579 = vmatprep.subr.mxu0 0.0
    %1580 = vmatpush1.msra.mxu0 %v212
    %1581 = vmatprep.subr.mxu0 0.0
    %1582 = vmatpush1.msra.mxu0 %v213
    %1583 = vmatprep.subr.mxu0 0.0
    %1584 = vmatpush1.msra.mxu0 %v214
    %1585 = vmatprep.subr.mxu0 0.0
    %1586 = vmatpush1.msra.mxu0 %v215
    %1587 = vmatprep.subr.mxu0 0.0
    %1588 = vmatpush1.msra.mxu0 %v216
    %1589 = vmatprep.subr.mxu0 0.0
    %1590 = vmatpush1.msra.mxu0 %v217
    %1591 = vmatprep.subr.mxu0 0.0
    %1592 = vmatpush1.msra.mxu0 %v218
    %1593 = vmatprep.subr.mxu0 0.0
    %1594 = vmatpush1.msra.mxu0 %v219
    %1595 = vmatprep.subr.mxu0 0.0
    %1596 = vmatpush1.msra.mxu0 0.0
    %1597 = vmatprep.subr.mxu0 0.0
    %1598 = vmatpush1.msra.mxu0 0.0
    %1599 = vmatprep.subr.mxu0 0.0
    %1600 = vmatpush1.msra.mxu0 0.0
    %1601 = vmatprep.subr.mxu0 0.0
    %1602 = vmatpush1.msra.mxu0 0.0
    %1603 = vmatprep.subr.mxu0 0.0
    %1604 = vmatpush1.msra.mxu0 0.0
    %1605 = vmatprep.subr.mxu0 0.0
    %1606 = vmatpush1.msra.mxu0 0.0
    %1607 = vmatprep.subr.mxu0 0.0
    %1608 = vmatpush1.msra.mxu0 0.0
    %1609 = vmatprep.subr.mxu0 0.0
    %1610 = vmatpush1.msra.mxu0 0.0
    %1611 = vmatprep.subr.mxu0 0.0
    %1612 = vmatpush1.msra.mxu0 0.0
    %1613 = vmatprep.subr.mxu0 0.0
    %1614 = vmatpush1.msra.mxu0 0.0
    %1615 = vmatprep.subr.mxu0 0.0
    %1616 = vmatpush1.msra.mxu0 0.0
    %1617 = vmatprep.subr.mxu0 0.0
    %1618 = vmatpush1.msra.mxu0 0.0
    %1619 = vmatprep.subr.mxu0 0.0
    %1620 = vmatpush1.msra.mxu0 0.0
    %1621 = vmatprep.subr.mxu0 0.0
    %1622 = vmatpush1.msra.mxu0 0.0
    %1623 = vmatprep.subr.mxu0 0.0
    %1624 = vmatpush1.msra.mxu0 0.0
    %1625 = vmatprep.subr.mxu0 0.0
    %1626 = vmatpush1.msra.mxu0 0.0
    %1627 = vmatprep.subr.mxu0 0.0
    %1628 = vmatpush1.msra.mxu0 0.0
    %1629 = vmatprep.subr.mxu0 0.0
    %1630 = vmatpush1.msra.mxu0 0.0
    %1631 = vmatprep.subr.mxu0 0.0
    %1632 = vmatpush1.msra.mxu0 0.0
    %1633 = vmatprep.subr.mxu0 0.0
    %1634 = vmatpush1.msra.mxu0 0.0
    %1635 = vmatprep.subr.mxu0 0.0
    %1636 = vmatpush1.msra.mxu0 0.0
    %1637 = vmatprep.subr.mxu0 0.0
    %1638 = vmatpush1.msra.mxu0 0.0
    %1639 = vmatprep.subr.mxu0 0.0
    %1640 = vmatpush1.msra.mxu0 0.0
    %1641 = vmatprep.subr.mxu0 0.0
    %1642 = vmatpush1.msra.mxu0 0.0
    %1643 = vmatprep.mubr.f32.mxu0 0.0
    %1644 = vmatmul.mubr.f32.gmra.mrb[0].mxu0 %v1574
    %v1645 = vpop.f32.mrb[0].mxu0
    %v1646 = vadd.f32 %v1572, %v1645
    %v1647 = vpop.f32.mrb[0].mxu0
    %1648 = vmatprep.mubr.f32.mxu0 0.0
    %1649 = vmatmul.mubr.f32.gmra.mrb[0].mxu0 %v1577
    %v1650 = vpop.f32.mrb[0].mxu0
    %v1651 = vadd.f32 %v1572, %v1650
    %v1652 = vpop.f32.mrb[0].mxu0
    %1653 = vdwg.mxu0
    %v1654 = vadd.f32 %v1480, %v1646
    %v1655 = vadd.f32 %v1481, %v1651
    %v1656 = vsel %vm225, %v1654, 0.0
    %1657 = vadd.xlane.f32.xlu0 %v1656
    %v1658 = vpop.xlane.xlu0 %1657
    %v1659 = vsel %vm225, %v1655, 0.0
    %1660 = vadd.xlane.f32.xlu0 %v1659
    %v1661 = vpop.xlane.xlu0 %1660
    %v1662 = vmul.f32 %v1658, %v1449
    %v1663 = vmul.f32 %v1661, %v1449
    %v1664 = vsub.f32 %v1654, %v1662
    %v1665 = vsub.f32 %v1655, %v1663
    %v1666 = vmul.f32 %v1664, %v1664
    %v1667 = vmul.f32 %v1665, %v1665
    %v1668 = vsel %vm225, %v1666, 0.0
    %1669 = vadd.xlane.f32.xlu0 %v1668
    %v1670 = vpop.xlane.xlu0 %1669
    %v1671 = vsel %vm225, %v1667, 0.0
    %1672 = vadd.xlane.f32.xlu0 %v1671
    %v1673 = vpop.xlane.xlu0 %1672
    %v1674 = vmul.f32 %v1670, %v1449
    %v1675 = vmul.f32 %v1673, %v1449
    %v1676 = vadd.f32 %v1674, 1e-05
    %v1677 = vadd.f32 %v1675, 1e-05
    %v1678 = vrsqrt.pop %v1676
    %v1679 = vrsqrt.pop %v1677
    %v1680 = vmul.f32 %v1664, %v1678
    %v1681 = vmul.f32 %v1665, %v1679
    %v1682 = vlaneseq
    %v1683 = vshrl.u32 %v1682, 7
    %v1684 = vsub.s32 6, %v1683
    %v1685 = vrot.slane %v220, %v1684
    %v1686 = vmul.f32 %v1680, %v1685
    %v1687 = vmul.f32 %v1681, %v1685
    %v1688 = vlaneseq
    %v1689 = vshrl.u32 %v1688, 7
    %v1690 = vsub.s32 7, %v1689
    %v1691 = vrot.slane %v220, %v1690
    %v1692 = vadd.f32 %v1686, %v1691
    %v1693 = vadd.f32 %v1687, %v1691
    %s1694 = scalar_lea.vmem %s8, 32
    %v1695 = vld [vmem:[%s1694] sm:$0xff]
    %v1696 = vld [vmem:[%s1694 + $0x8] sm:$0xff]
    %v1697 = vld [vmem:[%s1694 + $0x10] sm:$0xff]
    %v1698 = vld [vmem:[%s1694 + $0x18] sm:$0xff]
    %s1699 = scalar_lea.vmem %s9, 32
    %v1700 = vld [vmem:[%s1699] sm:$0xff]
    %v1701 = vld [vmem:[%s1699 + $0x8] sm:$0xff]
    %v1702 = vld [vmem:[%s1699 + $0x10] sm:$0xff]
    %v1703 = vld [vmem:[%s1699 + $0x18] sm:$0xff]
    %s1704 = scalar_lea.vmem %s10, 32
    %v1705 = vld [vmem:[%s1704] sm:$0xff]
    %v1706 = vld [vmem:[%s1704 + $0x8] sm:$0xff]
    %v1707 = vld [vmem:[%s1704 + $0x10] sm:$0xff]
    %v1708 = vld [vmem:[%s1704 + $0x18] sm:$0xff]
    %s1709 = scalar_lea.vmem %s11, 64
    %v1710 = vld [vmem:[%s1709] sm:$0xff]
    %v1711 = vld [vmem:[%s1709 + $0x8] sm:$0xff]
    %v1712 = vld [vmem:[%s1709 + $0x10] sm:$0xff]
    %v1713 = vld [vmem:[%s1709 + $0x18] sm:$0xff]
    %v1714 = vld [vmem:[%s1709 + $0x20] sm:$0xff]
    %v1715 = vld [vmem:[%s1709 + $0x28] sm:$0xff]
    %v1716 = vld [vmem:[%s1709 + $0x30] sm:$0xff]
    %v1717 = vld [vmem:[%s1709 + $0x38] sm:$0xff]
    %s1718 = scalar_lea.vmem %s12, 8
    %v1719 = vld [vmem:[%s1718] sm:$0xff]
    %v1720 = vlaneseq
    %v1721 = vshrl.u32 %v1720, 7
    %v1722 = vsub.s32 0, %v1721
    %v1723 = vrot.slane %v1719, %v1722
    %v1725 = vsel %vm225, %v1692, 0
    %v1728 = vsel %vm225, %v1693, 0
    %1730 = vmatprep.subr.mxu0 0.0
    %1731 = vmatpush1.msra.mxu0 %v1695
    %1732 = vmatprep.subr.mxu0 0.0
    %1733 = vmatpush1.msra.mxu0 %v1696
    %1734 = vmatprep.subr.mxu0 0.0
    %1735 = vmatpush1.msra.mxu0 %v1697
    %1736 = vmatprep.subr.mxu0 0.0
    %1737 = vmatpush1.msra.mxu0 %v1698
    %1738 = vmatprep.subr.mxu0 0.0
    %1739 = vmatpush1.msra.mxu0 0.0
    %1740 = vmatprep.subr.mxu0 0.0
    %1741 = vmatpush1.msra.mxu0 0.0
    %1742 = vmatprep.subr.mxu0 0.0
    %1743 = vmatpush1.msra.mxu0 0.0
    %1744 = vmatprep.subr.mxu0 0.0
    %1745 = vmatpush1.msra.mxu0 0.0
    %1746 = vmatprep.subr.mxu0 0.0
    %1747 = vmatpush1.msra.mxu0 0.0
    %1748 = vmatprep.subr.mxu0 0.0
    %1749 = vmatpush1.msra.mxu0 0.0
    %1750 = vmatprep.subr.mxu0 0.0
    %1751 = vmatpush1.msra.mxu0 0.0
    %1752 = vmatprep.subr.mxu0 0.0
    %1753 = vmatpush1.msra.mxu0 0.0
    %1754 = vmatprep.subr.mxu0 0.0
    %1755 = vmatpush1.msra.mxu0 0.0
    %1756 = vmatprep.subr.mxu0 0.0
    %1757 = vmatpush1.msra.mxu0 0.0
    %1758 = vmatprep.subr.mxu0 0.0
    %1759 = vmatpush1.msra.mxu0 0.0
    %1760 = vmatprep.subr.mxu0 0.0
    %1761 = vmatpush1.msra.mxu0 0.0
    %1762 = vmatprep.subr.mxu0 0.0
    %1763 = vmatpush1.msra.mxu0 0.0
    %1764 = vmatprep.subr.mxu0 0.0
    %1765 = vmatpush1.msra.mxu0 0.0
    %1766 = vmatprep.subr.mxu0 0.0
    %1767 = vmatpush1.msra.mxu0 0.0
    %1768 = vmatprep.subr.mxu0 0.0
    %1769 = vmatpush1.msra.mxu0 0.0
    %1770 = vmatprep.subr.mxu0 0.0
    %1771 = vmatpush1.msra.mxu0 0.0
    %1772 = vmatprep.subr.mxu0 0.0
    %1773 = vmatpush1.msra.mxu0 0.0
    %1774 = vmatprep.subr.mxu0 0.0
    %1775 = vmatpush1.msra.mxu0 0.0
    %1776 = vmatprep.subr.mxu0 0.0
    %1777 = vmatpush1.msra.mxu0 0.0
    %1778 = vmatprep.subr.mxu0 0.0
    %1779 = vmatpush1.msra.mxu0 0.0
    %1780 = vmatprep.subr.mxu0 0.0
    %1781 = vmatpush1.msra.mxu0 0.0
    %1782 = vmatprep.subr.mxu0 0.0
    %1783 = vmatpush1.msra.mxu0 0.0
    %1784 = vmatprep.subr.mxu0 0.0
    %1785 = vmatpush1.msra.mxu0 0.0
    %1786 = vmatprep.subr.mxu0 0.0
    %1787 = vmatpush1.msra.mxu0 0.0
    %1788 = vmatprep.subr.mxu0 0.0
    %1789 = vmatpush1.msra.mxu0 0.0
    %1790 = vmatprep.subr.mxu0 0.0
    %1791 = vmatpush1.msra.mxu0 0.0
    %1792 = vmatprep.subr.mxu0 0.0
    %1793 = vmatpush1.msra.mxu0 0.0
    %1794 = vmatprep.mubr.f32.mxu0 0.0
    %1795 = vmatmul.mubr.f32.gmra.mrb[0].mxu0 %v1725
    %v1796 = vpop.f32.mrb[0].mxu0
    %v1797 = vadd.f32 %v1723, %v1796
    %v1798 = vpop.f32.mrb[0].mxu0
    %1799 = vmatprep.mubr.f32.mxu0 0.0
    %1800 = vmatmul.mubr.f32.gmra.mrb[0].mxu0 %v1728
    %v1801 = vpop.f32.mrb[0].mxu0
    %v1802 = vadd.f32 %v1723, %v1801
    %v1803 = vpop.f32.mrb[0].mxu0
    %1804 = vdwg.mxu0
    %1807 = vrot.lane.b32.xlu0 %v1797, 96
    %v1808 = vpop.permute.xlu0 %1807
    %1809 = vrot.lane.b32.xlu0 %v1802, 96
    %v1810 = vpop.permute.xlu0 %1809
    %v1811 = vsel %vm313, %v1797, 0
    %v1813 = vsel %vm313, %v1802, 0
    %v1815 = vsel %vm313, %v1808, 0
    %v1817 = vsel %vm313, %v1810, 0
    %1819 = vmatprep.subr.mxu0 0.0
    %1820 = vmatpush1.xpose.msra.mxu0 %v1815
    %1821 = vmatprep.subr.mxu0 0.0
    %1822 = vmatpush1.xpose.msra.mxu0 %v1817
    %1823 = vmatprep.subr.mxu0 0.0
    %1824 = vmatpush1.xpose.msra.mxu0 0.0
    %1825 = vmatprep.subr.mxu0 0.0
    %1826 = vmatpush1.xpose.msra.mxu0 0.0
    %1827 = vmatprep.subr.mxu0 0.0
    %1828 = vmatpush1.xpose.msra.mxu0 0.0
    %1829 = vmatprep.subr.mxu0 0.0
    %1830 = vmatpush1.xpose.msra.mxu0 0.0
    %1831 = vmatprep.subr.mxu0 0.0
    %1832 = vmatpush1.xpose.msra.mxu0 0.0
    %1833 = vmatprep.subr.mxu0 0.0
    %1834 = vmatpush1.xpose.msra.mxu0 0.0
    %1835 = vmatprep.subr.mxu0 0.0
    %1836 = vmatpush1.xpose.msra.mxu0 0.0
    %1837 = vmatprep.subr.mxu0 0.0
    %1838 = vmatpush1.xpose.msra.mxu0 0.0
    %1839 = vmatprep.subr.mxu0 0.0
    %1840 = vmatpush1.xpose.msra.mxu0 0.0
    %1841 = vmatprep.subr.mxu0 0.0
    %1842 = vmatpush1.xpose.msra.mxu0 0.0
    %1843 = vmatprep.subr.mxu0 0.0
    %1844 = vmatpush1.xpose.msra.mxu0 0.0
    %1845 = vmatprep.subr.mxu0 0.0
    %1846 = vmatpush1.xpose.msra.mxu0 0.0
    %1847 = vmatprep.subr.mxu0 0.0
    %1848 = vmatpush1.xpose.msra.mxu0 0.0
    %1849 = vmatprep.subr.mxu0 0.0
    %1850 = vmatpush1.xpose.msra.mxu0 0.0
    %1851 = vmatprep.subr.mxu0 0.0
    %1852 = vmatpush1.xpose.msra.mxu0 0.0
    %1853 = vmatprep.subr.mxu0 0.0
    %1854 = vmatpush1.xpose.msra.mxu0 0.0
    %1855 = vmatprep.subr.mxu0 0.0
    %1856 = vmatpush1.xpose.msra.mxu0 0.0
    %1857 = vmatprep.subr.mxu0 0.0
    %1858 = vmatpush1.xpose.msra.mxu0 0.0
    %1859 = vmatprep.subr.mxu0 0.0
    %1860 = vmatpush1.xpose.msra.mxu0 0.0
    %1861 = vmatprep.subr.mxu0 0.0
    %1862 = vmatpush1.xpose.msra.mxu0 0.0
    %1863 = vmatprep.subr.mxu0 0.0
    %1864 = vmatpush1.xpose.msra.mxu0 0.0
    %1865 = vmatprep.subr.mxu0 0.0
    %1866 = vmatpush1.xpose.msra.mxu0 0.0
    %1867 = vmatprep.subr.mxu0 0.0
    %1868 = vmatpush1.xpose.msra.mxu0 0.0
    %1869 = vmatprep.subr.mxu0 0.0
    %1870 = vmatpush1.xpose.msra.mxu0 0.0
    %1871 = vmatprep.subr.mxu0 0.0
    %1872 = vmatpush1.xpose.msra.mxu0 0.0
    %1873 = vmatprep.subr.mxu0 0.0
    %1874 = vmatpush1.xpose.msra.mxu0 0.0
    %1875 = vmatprep.subr.mxu0 0.0
    %1876 = vmatpush1.xpose.msra.mxu0 0.0
    %1877 = vmatprep.subr.mxu0 0.0
    %1878 = vmatpush1.xpose.msra.mxu0 0.0
    %1879 = vmatprep.subr.mxu0 0.0
    %1880 = vmatpush1.xpose.msra.mxu0 0.0
    %1881 = vmatprep.subr.mxu0 0.0
    %1882 = vmatpush1.xpose.msra.mxu0 0.0
    %1883 = vmatprep.mubr.f32.mxu0 0.0
    %1884 = vmatmul.mubr.f32.gmra.mrb[0].mxu0 %v1811
    %v1885 = vpop.f32.mrb[0].mxu0
    %v1886 = vadd.f32 %v198, %v1885
    %v1887 = vpop.f32.mrb[0].mxu0
    %1888 = vmatprep.mubr.f32.mxu0 0.0
    %1889 = vmatmul.mubr.f32.gmra.mrb[0].mxu0 %v1813
    %v1890 = vpop.f32.mrb[0].mxu0
    %v1891 = vadd.f32 %v199, %v1890
    %v1892 = vpop.f32.mrb[0].mxu0
    %1893 = vdwg.mxu0
    %v1894 = vsel %vm397, %v1886, -inf
    %1895 = vmax.xlane.f32.xlu0 %v1894
    %v1896 = vpop.xlane.xlu0 %1895
    %v1897 = vsel %vm397, %v1891, -inf
    %1898 = vmax.xlane.f32.xlu0 %v1897
    %v1899 = vpop.xlane.xlu0 %1898
    %v1900 = vsub.f32 %v1886, %v1896
    %v1901 = vsub.f32 %v1891, %v1899
    %v1902 = vmul.f32 %v1900, 1.442695
    %v1903 = vpow.pop %v1902
    %v1904 = vmul.f32 %v1901, 1.442695
    %v1905 = vpow.pop %v1904
    %v1906 = vsel %vm397, %v1903, 0.0
    %1907 = vadd.xlane.f32.xlu0 %v1906
    %v1908 = vpop.xlane.xlu0 %1907
    %v1909 = vsel %vm397, %v1905, 0.0
    %1910 = vadd.xlane.f32.xlu0 %v1909
    %v1911 = vpop.xlane.xlu0 %1910
    %v1912 = vrcp.pop %v1908
    %v1913 = vrcp.pop %v1911
    %v1914 = vmul.f32 %v1903, %v1912
    %v1915 = vmul.f32 %v1905, %v1913
    %1916 = vrot.lane.b32.xlu0 %v1797, 64
    %v1917 = vpop.permute.xlu0 %1916
    %1918 = vrot.lane.b32.xlu0 %v1802, 64
    %v1919 = vpop.permute.xlu0 %1918
    %v1923 = vsel %vm397, %v1914, 0
    %v1926 = vsel %vm397, %v1915, 0
    %1928 = vmatprep.subr.mxu0 0.0
    %1929 = vmatpush1.msra.mxu0 %v1917
    %1930 = vmatprep.subr.mxu0 0.0
    %1931 = vmatpush1.msra.mxu0 %v1919
    %1932 = vmatprep.subr.mxu0 0.0
    %1933 = vmatpush1.msra.mxu0 0.0
    %1934 = vmatprep.subr.mxu0 0.0
    %1935 = vmatpush1.msra.mxu0 0.0
    %1936 = vmatprep.subr.mxu0 0.0
    %1937 = vmatpush1.msra.mxu0 0.0
    %1938 = vmatprep.subr.mxu0 0.0
    %1939 = vmatpush1.msra.mxu0 0.0
    %1940 = vmatprep.subr.mxu0 0.0
    %1941 = vmatpush1.msra.mxu0 0.0
    %1942 = vmatprep.subr.mxu0 0.0
    %1943 = vmatpush1.msra.mxu0 0.0
    %1944 = vmatprep.subr.mxu0 0.0
    %1945 = vmatpush1.msra.mxu0 0.0
    %1946 = vmatprep.subr.mxu0 0.0
    %1947 = vmatpush1.msra.mxu0 0.0
    %1948 = vmatprep.subr.mxu0 0.0
    %1949 = vmatpush1.msra.mxu0 0.0
    %1950 = vmatprep.subr.mxu0 0.0
    %1951 = vmatpush1.msra.mxu0 0.0
    %1952 = vmatprep.subr.mxu0 0.0
    %1953 = vmatpush1.msra.mxu0 0.0
    %1954 = vmatprep.subr.mxu0 0.0
    %1955 = vmatpush1.msra.mxu0 0.0
    %1956 = vmatprep.subr.mxu0 0.0
    %1957 = vmatpush1.msra.mxu0 0.0
    %1958 = vmatprep.subr.mxu0 0.0
    %1959 = vmatpush1.msra.mxu0 0.0
    %1960 = vmatprep.subr.mxu0 0.0
    %1961 = vmatpush1.msra.mxu0 0.0
    %1962 = vmatprep.subr.mxu0 0.0
    %1963 = vmatpush1.msra.mxu0 0.0
    %1964 = vmatprep.subr.mxu0 0.0
    %1965 = vmatpush1.msra.mxu0 0.0
    %1966 = vmatprep.subr.mxu0 0.0
    %1967 = vmatpush1.msra.mxu0 0.0
    %1968 = vmatprep.subr.mxu0 0.0
    %1969 = vmatpush1.msra.mxu0 0.0
    %1970 = vmatprep.subr.mxu0 0.0
    %1971 = vmatpush1.msra.mxu0 0.0
    %1972 = vmatprep.subr.mxu0 0.0
    %1973 = vmatpush1.msra.mxu0 0.0
    %1974 = vmatprep.subr.mxu0 0.0
    %1975 = vmatpush1.msra.mxu0 0.0
    %1976 = vmatprep.subr.mxu0 0.0
    %1977 = vmatpush1.msra.mxu0 0.0
    %1978 = vmatprep.subr.mxu0 0.0
    %1979 = vmatpush1.msra.mxu0 0.0
    %1980 = vmatprep.subr.mxu0 0.0
    %1981 = vmatpush1.msra.mxu0 0.0
    %1982 = vmatprep.subr.mxu0 0.0
    %1983 = vmatpush1.msra.mxu0 0.0
    %1984 = vmatprep.subr.mxu0 0.0
    %1985 = vmatpush1.msra.mxu0 0.0
    %1986 = vmatprep.subr.mxu0 0.0
    %1987 = vmatpush1.msra.mxu0 0.0
    %1988 = vmatprep.subr.mxu0 0.0
    %1989 = vmatpush1.msra.mxu0 0.0
    %1990 = vmatprep.subr.mxu0 0.0
    %1991 = vmatpush1.msra.mxu0 0.0
    %1992 = vmatprep.mubr.f32.mxu0 0.0
    %1993 = vmatmul.mubr.f32.gmra.mrb[0].mxu0 %v1923
    %v1994 = vpop.f32.mrb[0].mxu0
    %v1995 = vadd.f32 0.0, %v1994
    %v1996 = vpop.f32.mrb[0].mxu0
    %1997 = vmatprep.mubr.f32.mxu0 0.0
    %1998 = vmatmul.mubr.f32.gmra.mrb[0].mxu0 %v1926
    %v1999 = vpop.f32.mrb[0].mxu0
    %v2000 = vadd.f32 0.0, %v1999
    %v2001 = vpop.f32.mrb[0].mxu0
    %2002 = vdwg.mxu0
    %2003 = vrot.lane.b32.xlu0 %v1797, 120
    %v2004 = vpop.permute.xlu0 %2003
    %2005 = vrot.lane.b32.xlu0 %v1802, 120
    %v2006 = vpop.permute.xlu0 %2005
    %2007 = vrot.lane.b32.xlu0 %v1797, 88
    %v2008 = vpop.permute.xlu0 %2007
    %2009 = vrot.lane.b32.xlu0 %v1802, 88
    %v2010 = vpop.permute.xlu0 %2009
    %v2011 = vsel %vm313, %v2004, 0
    %v2013 = vsel %vm313, %v2006, 0
    %v2015 = vsel %vm313, %v2008, 0
    %v2017 = vsel %vm313, %v2010, 0
    %2019 = vmatprep.subr.mxu0 0.0
    %2020 = vmatpush1.xpose.msra.mxu0 %v2015
    %2021 = vmatprep.subr.mxu0 0.0
    %2022 = vmatpush1.xpose.msra.mxu0 %v2017
    %2023 = vmatprep.subr.mxu0 0.0
    %2024 = vmatpush1.xpose.msra.mxu0 0.0
    %2025 = vmatprep.subr.mxu0 0.0
    %2026 = vmatpush1.xpose.msra.mxu0 0.0
    %2027 = vmatprep.subr.mxu0 0.0
    %2028 = vmatpush1.xpose.msra.mxu0 0.0
    %2029 = vmatprep.subr.mxu0 0.0
    %2030 = vmatpush1.xpose.msra.mxu0 0.0
    %2031 = vmatprep.subr.mxu0 0.0
    %2032 = vmatpush1.xpose.msra.mxu0 0.0
    %2033 = vmatprep.subr.mxu0 0.0
    %2034 = vmatpush1.xpose.msra.mxu0 0.0
    %2035 = vmatprep.subr.mxu0 0.0
    %2036 = vmatpush1.xpose.msra.mxu0 0.0
    %2037 = vmatprep.subr.mxu0 0.0
    %2038 = vmatpush1.xpose.msra.mxu0 0.0
    %2039 = vmatprep.subr.mxu0 0.0
    %2040 = vmatpush1.xpose.msra.mxu0 0.0
    %2041 = vmatprep.subr.mxu0 0.0
    %2042 = vmatpush1.xpose.msra.mxu0 0.0
    %2043 = vmatprep.subr.mxu0 0.0
    %2044 = vmatpush1.xpose.msra.mxu0 0.0
    %2045 = vmatprep.subr.mxu0 0.0
    %2046 = vmatpush1.xpose.msra.mxu0 0.0
    %2047 = vmatprep.subr.mxu0 0.0
    %2048 = vmatpush1.xpose.msra.mxu0 0.0
    %2049 = vmatprep.subr.mxu0 0.0
    %2050 = vmatpush1.xpose.msra.mxu0 0.0
    %2051 = vmatprep.subr.mxu0 0.0
    %2052 = vmatpush1.xpose.msra.mxu0 0.0
    %2053 = vmatprep.subr.mxu0 0.0
    %2054 = vmatpush1.xpose.msra.mxu0 0.0
    %2055 = vmatprep.subr.mxu0 0.0
    %2056 = vmatpush1.xpose.msra.mxu0 0.0
    %2057 = vmatprep.subr.mxu0 0.0
    %2058 = vmatpush1.xpose.msra.mxu0 0.0
    %2059 = vmatprep.subr.mxu0 0.0
    %2060 = vmatpush1.xpose.msra.mxu0 0.0
    %2061 = vmatprep.subr.mxu0 0.0
    %2062 = vmatpush1.xpose.msra.mxu0 0.0
    %2063 = vmatprep.subr.mxu0 0.0
    %2064 = vmatpush1.xpose.msra.mxu0 0.0
    %2065 = vmatprep.subr.mxu0 0.0
    %2066 = vmatpush1.xpose.msra.mxu0 0.0
    %2067 = vmatprep.subr.mxu0 0.0
    %2068 = vmatpush1.xpose.msra.mxu0 0.0
    %2069 = vmatprep.subr.mxu0 0.0
    %2070 = vmatpush1.xpose.msra.mxu0 0.0
    %2071 = vmatprep.subr.mxu0 0.0
    %2072 = vmatpush1.xpose.msra.mxu0 0.0
    %2073 = vmatprep.subr.mxu0 0.0
    %2074 = vmatpush1.xpose.msra.mxu0 0.0
    %2075 = vmatprep.subr.mxu0 0.0
    %2076 = vmatpush1.xpose.msra.mxu0 0.0
    %2077 = vmatprep.subr.mxu0 0.0
    %2078 = vmatpush1.xpose.msra.mxu0 0.0
    %2079 = vmatprep.subr.mxu0 0.0
    %2080 = vmatpush1.xpose.msra.mxu0 0.0
    %2081 = vmatprep.subr.mxu0 0.0
    %2082 = vmatpush1.xpose.msra.mxu0 0.0
    %2083 = vmatprep.mubr.f32.mxu0 0.0
    %2084 = vmatmul.mubr.f32.gmra.mrb[0].mxu0 %v2011
    %v2085 = vpop.f32.mrb[0].mxu0
    %v2086 = vadd.f32 %v198, %v2085
    %v2087 = vpop.f32.mrb[0].mxu0
    %2088 = vmatprep.mubr.f32.mxu0 0.0
    %2089 = vmatmul.mubr.f32.gmra.mrb[0].mxu0 %v2013
    %v2090 = vpop.f32.mrb[0].mxu0
    %v2091 = vadd.f32 %v199, %v2090
    %v2092 = vpop.f32.mrb[0].mxu0
    %2093 = vdwg.mxu0
    %v2094 = vsel %vm397, %v2086, -inf
    %2095 = vmax.xlane.f32.xlu0 %v2094
    %v2096 = vpop.xlane.xlu0 %2095
    %v2097 = vsel %vm397, %v2091, -inf
    %2098 = vmax.xlane.f32.xlu0 %v2097
    %v2099 = vpop.xlane.xlu0 %2098
    %v2100 = vsub.f32 %v2086, %v2096
    %v2101 = vsub.f32 %v2091, %v2099
    %v2102 = vmul.f32 %v2100, 1.442695
    %v2103 = vpow.pop %v2102
    %v2104 = vmul.f32 %v2101, 1.442695
    %v2105 = vpow.pop %v2104
    %v2106 = vsel %vm397, %v2103, 0.0
    %2107 = vadd.xlane.f32.xlu0 %v2106
    %v2108 = vpop.xlane.xlu0 %2107
    %v2109 = vsel %vm397, %v2105, 0.0
    %2110 = vadd.xlane.f32.xlu0 %v2109
    %v2111 = vpop.xlane.xlu0 %2110
    %v2112 = vrcp.pop %v2108
    %v2113 = vrcp.pop %v2111
    %v2114 = vmul.f32 %v2103, %v2112
    %v2115 = vmul.f32 %v2105, %v2113
    %2116 = vrot.lane.b32.xlu0 %v1797, 56
    %v2117 = vpop.permute.xlu0 %2116
    %2118 = vrot.lane.b32.xlu0 %v1802, 56
    %v2119 = vpop.permute.xlu0 %2118
    %v2123 = vsel %vm397, %v2114, 0
    %v2126 = vsel %vm397, %v2115, 0
    %2128 = vmatprep.subr.mxu0 0.0
    %2129 = vmatpush1.msra.mxu0 %v2117
    %2130 = vmatprep.subr.mxu0 0.0
    %2131 = vmatpush1.msra.mxu0 %v2119
    %2132 = vmatprep.subr.mxu0 0.0
    %2133 = vmatpush1.msra.mxu0 0.0
    %2134 = vmatprep.subr.mxu0 0.0
    %2135 = vmatpush1.msra.mxu0 0.0
    %2136 = vmatprep.subr.mxu0 0.0
    %2137 = vmatpush1.msra.mxu0 0.0
    %2138 = vmatprep.subr.mxu0 0.0
    %2139 = vmatpush1.msra.mxu0 0.0
    %2140 = vmatprep.subr.mxu0 0.0
    %2141 = vmatpush1.msra.mxu0 0.0
    %2142 = vmatprep.subr.mxu0 0.0
    %2143 = vmatpush1.msra.mxu0 0.0
    %2144 = vmatprep.subr.mxu0 0.0
    %2145 = vmatpush1.msra.mxu0 0.0
    %2146 = vmatprep.subr.mxu0 0.0
    %2147 = vmatpush1.msra.mxu0 0.0
    %2148 = vmatprep.subr.mxu0 0.0
    %2149 = vmatpush1.msra.mxu0 0.0
    %2150 = vmatprep.subr.mxu0 0.0
    %2151 = vmatpush1.msra.mxu0 0.0
    %2152 = vmatprep.subr.mxu0 0.0
    %2153 = vmatpush1.msra.mxu0 0.0
    %2154 = vmatprep.subr.mxu0 0.0
    %2155 = vmatpush1.msra.mxu0 0.0
    %2156 = vmatprep.subr.mxu0 0.0
    %2157 = vmatpush1.msra.mxu0 0.0
    %2158 = vmatprep.subr.mxu0 0.0
    %2159 = vmatpush1.msra.mxu0 0.0
    %2160 = vmatprep.subr.mxu0 0.0
    %2161 = vmatpush1.msra.mxu0 0.0
    %2162 = vmatprep.subr.mxu0 0.0
    %2163 = vmatpush1.msra.mxu0 0.0
    %2164 = vmatprep.subr.mxu0 0.0
    %2165 = vmatpush1.msra.mxu0 0.0
    %2166 = vmatprep.subr.mxu0 0.0
    %2167 = vmatpush1.msra.mxu0 0.0
    %2168 = vmatprep.subr.mxu0 0.0
    %2169 = vmatpush1.msra.mxu0 0.0
    %2170 = vmatprep.subr.mxu0 0.0
    %2171 = vmatpush1.msra.mxu0 0.0
    %2172 = vmatprep.subr.mxu0 0.0
    %2173 = vmatpush1.msra.mxu0 0.0
    %2174 = vmatprep.subr.mxu0 0.0
    %2175 = vmatpush1.msra.mxu0 0.0
    %2176 = vmatprep.subr.mxu0 0.0
    %2177 = vmatpush1.msra.mxu0 0.0
    %2178 = vmatprep.subr.mxu0 0.0
    %2179 = vmatpush1.msra.mxu0 0.0
    %2180 = vmatprep.subr.mxu0 0.0
    %2181 = vmatpush1.msra.mxu0 0.0
    %2182 = vmatprep.subr.mxu0 0.0
    %2183 = vmatpush1.msra.mxu0 0.0
    %2184 = vmatprep.subr.mxu0 0.0
    %2185 = vmatpush1.msra.mxu0 0.0
    %2186 = vmatprep.subr.mxu0 0.0
    %2187 = vmatpush1.msra.mxu0 0.0
    %2188 = vmatprep.subr.mxu0 0.0
    %2189 = vmatpush1.msra.mxu0 0.0
    %2190 = vmatprep.subr.mxu0 0.0
    %2191 = vmatpush1.msra.mxu0 0.0
    %2192 = vmatprep.mubr.f32.mxu0 0.0
    %2193 = vmatmul.mubr.f32.gmra.mrb[0].mxu0 %v2123
    %v2194 = vpop.f32.mrb[0].mxu0
    %v2195 = vadd.f32 0.0, %v2194
    %v2196 = vpop.f32.mrb[0].mxu0
    %2197 = vmatprep.mubr.f32.mxu0 0.0
    %2198 = vmatmul.mubr.f32.gmra.mrb[0].mxu0 %v2126
    %v2199 = vpop.f32.mrb[0].mxu0
    %v2200 = vadd.f32 0.0, %v2199
    %v2201 = vpop.f32.mrb[0].mxu0
    %2202 = vdwg.mxu0
    %v2204 = vsel %vm313, %v2195, 0
    %v2207 = vsel %vm313, %v2200, 0
    %2209 = vmatprep.subr.mxu0 0.0
    %2210 = vmatpush1.msra.mxu0 %v1701
    %2211 = vmatprep.subr.mxu0 0.0
    %2212 = vmatpush1.msra.mxu0 0.0
    %2213 = vmatprep.subr.mxu0 0.0
    %2214 = vmatpush1.msra.mxu0 0.0
    %2215 = vmatprep.subr.mxu0 0.0
    %2216 = vmatpush1.msra.mxu0 0.0
    %2217 = vmatprep.subr.mxu0 0.0
    %2218 = vmatpush1.msra.mxu0 0.0
    %2219 = vmatprep.subr.mxu0 0.0
    %2220 = vmatpush1.msra.mxu0 0.0
    %2221 = vmatprep.subr.mxu0 0.0
    %2222 = vmatpush1.msra.mxu0 0.0
    %2223 = vmatprep.subr.mxu0 0.0
    %2224 = vmatpush1.msra.mxu0 0.0
    %2225 = vmatprep.subr.mxu0 0.0
    %2226 = vmatpush1.msra.mxu0 0.0
    %2227 = vmatprep.subr.mxu0 0.0
    %2228 = vmatpush1.msra.mxu0 0.0
    %2229 = vmatprep.subr.mxu0 0.0
    %2230 = vmatpush1.msra.mxu0 0.0
    %2231 = vmatprep.subr.mxu0 0.0
    %2232 = vmatpush1.msra.mxu0 0.0
    %2233 = vmatprep.subr.mxu0 0.0
    %2234 = vmatpush1.msra.mxu0 0.0
    %2235 = vmatprep.subr.mxu0 0.0
    %2236 = vmatpush1.msra.mxu0 0.0
    %2237 = vmatprep.subr.mxu0 0.0
    %2238 = vmatpush1.msra.mxu0 0.0
    %2239 = vmatprep.subr.mxu0 0.0
    %2240 = vmatpush1.msra.mxu0 0.0
    %2241 = vmatprep.subr.mxu0 0.0
    %2242 = vmatpush1.msra.mxu0 0.0
    %2243 = vmatprep.subr.mxu0 0.0
    %2244 = vmatpush1.msra.mxu0 0.0
    %2245 = vmatprep.subr.mxu0 0.0
    %2246 = vmatpush1.msra.mxu0 0.0
    %2247 = vmatprep.subr.mxu0 0.0
    %2248 = vmatpush1.msra.mxu0 0.0
    %2249 = vmatprep.subr.mxu0 0.0
    %2250 = vmatpush1.msra.mxu0 0.0
    %2251 = vmatprep.subr.mxu0 0.0
    %2252 = vmatpush1.msra.mxu0 0.0
    %2253 = vmatprep.subr.mxu0 0.0
    %2254 = vmatpush1.msra.mxu0 0.0
    %2255 = vmatprep.subr.mxu0 0.0
    %2256 = vmatpush1.msra.mxu0 0.0
    %2257 = vmatprep.subr.mxu0 0.0
    %2258 = vmatpush1.msra.mxu0 0.0
    %2259 = vmatprep.subr.mxu0 0.0
    %2260 = vmatpush1.msra.mxu0 0.0
    %2261 = vmatprep.subr.mxu0 0.0
    %2262 = vmatpush1.msra.mxu0 0.0
    %2263 = vmatprep.subr.mxu0 0.0
    %2264 = vmatpush1.msra.mxu0 0.0
    %2265 = vmatprep.subr.mxu0 0.0
    %2266 = vmatpush1.msra.mxu0 0.0
    %2267 = vmatprep.subr.mxu0 0.0
    %2268 = vmatpush1.msra.mxu0 0.0
    %2269 = vmatprep.subr.mxu0 0.0
    %2270 = vmatpush1.msra.mxu0 0.0
    %2271 = vmatprep.subr.mxu0 0.0
    %2272 = vmatpush1.msra.mxu0 0.0
    %2273 = vmatprep.mubr.f32.mxu0 0.0
    %2274 = vmatmul.mubr.f32.gmra.mrb[0].mxu0 %v2204
    %v2275 = vpop.f32.mrb[0].mxu0
    %v2276 = vadd.f32 0.0, %v2275
    %v2277 = vpop.f32.mrb[0].mxu0
    %2278 = vmatprep.mubr.f32.mxu0 0.0
    %2279 = vmatmul.mubr.f32.gmra.mrb[0].mxu0 %v2207
    %v2280 = vpop.f32.mrb[0].mxu0
    %v2281 = vadd.f32 0.0, %v2280
    %v2282 = vpop.f32.mrb[0].mxu0
    %2283 = vdwg.mxu0
    %v2285 = vsel %vm313, %v1995, 0
    %v2288 = vsel %vm313, %v2000, 0
    %2290 = vmatprep.subr.mxu0 0.0
    %2291 = vmatpush1.msra.mxu0 %v1700
    %2292 = vmatprep.subr.mxu0 0.0
    %2293 = vmatpush1.msra.mxu0 0.0
    %2294 = vmatprep.subr.mxu0 0.0
    %2295 = vmatpush1.msra.mxu0 0.0
    %2296 = vmatprep.subr.mxu0 0.0
    %2297 = vmatpush1.msra.mxu0 0.0
    %2298 = vmatprep.subr.mxu0 0.0
    %2299 = vmatpush1.msra.mxu0 0.0
    %2300 = vmatprep.subr.mxu0 0.0
    %2301 = vmatpush1.msra.mxu0 0.0
    %2302 = vmatprep.subr.mxu0 0.0
    %2303 = vmatpush1.msra.mxu0 0.0
    %2304 = vmatprep.subr.mxu0 0.0
    %2305 = vmatpush1.msra.mxu0 0.0
    %2306 = vmatprep.subr.mxu0 0.0
    %2307 = vmatpush1.msra.mxu0 0.0
    %2308 = vmatprep.subr.mxu0 0.0
    %2309 = vmatpush1.msra.mxu0 0.0
    %2310 = vmatprep.subr.mxu0 0.0
    %2311 = vmatpush1.msra.mxu0 0.0
    %2312 = vmatprep.subr.mxu0 0.0
    %2313 = vmatpush1.msra.mxu0 0.0
    %2314 = vmatprep.subr.mxu0 0.0
    %2315 = vmatpush1.msra.mxu0 0.0
    %2316 = vmatprep.subr.mxu0 0.0
    %2317 = vmatpush1.msra.mxu0 0.0
    %2318 = vmatprep.subr.mxu0 0.0
    %2319 = vmatpush1.msra.mxu0 0.0
    %2320 = vmatprep.subr.mxu0 0.0
    %2321 = vmatpush1.msra.mxu0 0.0
    %2322 = vmatprep.subr.mxu0 0.0
    %2323 = vmatpush1.msra.mxu0 0.0
    %2324 = vmatprep.subr.mxu0 0.0
    %2325 = vmatpush1.msra.mxu0 0.0
    %2326 = vmatprep.subr.mxu0 0.0
    %2327 = vmatpush1.msra.mxu0 0.0
    %2328 = vmatprep.subr.mxu0 0.0
    %2329 = vmatpush1.msra.mxu0 0.0
    %2330 = vmatprep.subr.mxu0 0.0
    %2331 = vmatpush1.msra.mxu0 0.0
    %2332 = vmatprep.subr.mxu0 0.0
    %2333 = vmatpush1.msra.mxu0 0.0
    %2334 = vmatprep.subr.mxu0 0.0
    %2335 = vmatpush1.msra.mxu0 0.0
    %2336 = vmatprep.subr.mxu0 0.0
    %2337 = vmatpush1.msra.mxu0 0.0
    %2338 = vmatprep.subr.mxu0 0.0
    %2339 = vmatpush1.msra.mxu0 0.0
    %2340 = vmatprep.subr.mxu0 0.0
    %2341 = vmatpush1.msra.mxu0 0.0
    %2342 = vmatprep.subr.mxu0 0.0
    %2343 = vmatpush1.msra.mxu0 0.0
    %2344 = vmatprep.subr.mxu0 0.0
    %2345 = vmatpush1.msra.mxu0 0.0
    %2346 = vmatprep.subr.mxu0 0.0
    %2347 = vmatpush1.msra.mxu0 0.0
    %2348 = vmatprep.subr.mxu0 0.0
    %2349 = vmatpush1.msra.mxu0 0.0
    %2350 = vmatprep.subr.mxu0 0.0
    %2351 = vmatpush1.msra.mxu0 0.0
    %2352 = vmatprep.subr.mxu0 0.0
    %2353 = vmatpush1.msra.mxu0 0.0
    %2354 = vmatprep.mubr.f32.mxu0 0.0
    %2355 = vmatmul.mubr.f32.gmra.mrb[0].mxu0 %v2285
    %v2356 = vpop.f32.mrb[0].mxu0
    %v2357 = vadd.f32 %v2276, %v2356
    %v2358 = vpop.f32.mrb[0].mxu0
    %2359 = vmatprep.mubr.f32.mxu0 0.0
    %2360 = vmatmul.mubr.f32.gmra.mrb[0].mxu0 %v2288
    %v2361 = vpop.f32.mrb[0].mxu0
    %v2362 = vadd.f32 %v2281, %v2361
    %v2363 = vpop.f32.mrb[0].mxu0
    %2364 = vdwg.mxu0
    %2365 = vrot.lane.b32.xlu0 %v1797, 112
    %v2366 = vpop.permute.xlu0 %2365
    %2367 = vrot.lane.b32.xlu0 %v1802, 112
    %v2368 = vpop.permute.xlu0 %2367
    %2369 = vrot.lane.b32.xlu0 %v1797, 80
    %v2370 = vpop.permute.xlu0 %2369
    %2371 = vrot.lane.b32.xlu0 %v1802, 80
    %v2372 = vpop.permute.xlu0 %2371
    %v2373 = vsel %vm313, %v2366, 0
    %v2375 = vsel %vm313, %v2368, 0
    %v2377 = vsel %vm313, %v2370, 0
    %v2379 = vsel %vm313, %v2372, 0
    %2381 = vmatprep.subr.mxu0 0.0
    %2382 = vmatpush1.xpose.msra.mxu0 %v2377
    %2383 = vmatprep.subr.mxu0 0.0
    %2384 = vmatpush1.xpose.msra.mxu0 %v2379
    %2385 = vmatprep.subr.mxu0 0.0
    %2386 = vmatpush1.xpose.msra.mxu0 0.0
    %2387 = vmatprep.subr.mxu0 0.0
    %2388 = vmatpush1.xpose.msra.mxu0 0.0
    %2389 = vmatprep.subr.mxu0 0.0
    %2390 = vmatpush1.xpose.msra.mxu0 0.0
    %2391 = vmatprep.subr.mxu0 0.0
    %2392 = vmatpush1.xpose.msra.mxu0 0.0
    %2393 = vmatprep.subr.mxu0 0.0
    %2394 = vmatpush1.xpose.msra.mxu0 0.0
    %2395 = vmatprep.subr.mxu0 0.0
    %2396 = vmatpush1.xpose.msra.mxu0 0.0
    %2397 = vmatprep.subr.mxu0 0.0
    %2398 = vmatpush1.xpose.msra.mxu0 0.0
    %2399 = vmatprep.subr.mxu0 0.0
    %2400 = vmatpush1.xpose.msra.mxu0 0.0
    %2401 = vmatprep.subr.mxu0 0.0
    %2402 = vmatpush1.xpose.msra.mxu0 0.0
    %2403 = vmatprep.subr.mxu0 0.0
    %2404 = vmatpush1.xpose.msra.mxu0 0.0
    %2405 = vmatprep.subr.mxu0 0.0
    %2406 = vmatpush1.xpose.msra.mxu0 0.0
    %2407 = vmatprep.subr.mxu0 0.0
    %2408 = vmatpush1.xpose.msra.mxu0 0.0
    %2409 = vmatprep.subr.mxu0 0.0
    %2410 = vmatpush1.xpose.msra.mxu0 0.0
    %2411 = vmatprep.subr.mxu0 0.0
    %2412 = vmatpush1.xpose.msra.mxu0 0.0
    %2413 = vmatprep.subr.mxu0 0.0
    %2414 = vmatpush1.xpose.msra.mxu0 0.0
    %2415 = vmatprep.subr.mxu0 0.0
    %2416 = vmatpush1.xpose.msra.mxu0 0.0
    %2417 = vmatprep.subr.mxu0 0.0
    %2418 = vmatpush1.xpose.msra.mxu0 0.0
    %2419 = vmatprep.subr.mxu0 0.0
    %2420 = vmatpush1.xpose.msra.mxu0 0.0
    %2421 = vmatprep.subr.mxu0 0.0
    %2422 = vmatpush1.xpose.msra.mxu0 0.0
    %2423 = vmatprep.subr.mxu0 0.0
    %2424 = vmatpush1.xpose.msra.mxu0 0.0
    %2425 = vmatprep.subr.mxu0 0.0
    %2426 = vmatpush1.xpose.msra.mxu0 0.0
    %2427 = vmatprep.subr.mxu0 0.0
    %2428 = vmatpush1.xpose.msra.mxu0 0.0
    %2429 = vmatprep.subr.mxu0 0.0
    %2430 = vmatpush1.xpose.msra.mxu0 0.0
    %2431 = vmatprep.subr.mxu0 0.0
    %2432 = vmatpush1.xpose.msra.mxu0 0.0
    %2433 = vmatprep.subr.mxu0 0.0
    %2434 = vmatpush1.xpose.msra.mxu0 0.0
    %2435 = vmatprep.subr.mxu0 0.0
    %2436 = vmatpush1.xpose.msra.mxu0 0.0
    %2437 = vmatprep.subr.mxu0 0.0
    %2438 = vmatpush1.xpose.msra.mxu0 0.0
    %2439 = vmatprep.subr.mxu0 0.0
    %2440 = vmatpush1.xpose.msra.mxu0 0.0
    %2441 = vmatprep.subr.mxu0 0.0
    %2442 = vmatpush1.xpose.msra.mxu0 0.0
    %2443 = vmatprep.subr.mxu0 0.0
    %2444 = vmatpush1.xpose.msra.mxu0 0.0
    %2445 = vmatprep.mubr.f32.mxu0 0.0
    %2446 = vmatmul.mubr.f32.gmra.mrb[0].mxu0 %v2373
    %v2447 = vpop.f32.mrb[0].mxu0
    %v2448 = vadd.f32 %v198, %v2447
    %v2449 = vpop.f32.mrb[0].mxu0
    %2450 = vmatprep.mubr.f32.mxu0 0.0
    %2451 = vmatmul.mubr.f32.gmra.mrb[0].mxu0 %v2375
    %v2452 = vpop.f32.mrb[0].mxu0
    %v2453 = vadd.f32 %v199, %v2452
    %v2454 = vpop.f32.mrb[0].mxu0
    %2455 = vdwg.mxu0
    %v2456 = vsel %vm397, %v2448, -inf
    %2457 = vmax.xlane.f32.xlu0 %v2456
    %v2458 = vpop.xlane.xlu0 %2457
    %v2459 = vsel %vm397, %v2453, -inf
    %2460 = vmax.xlane.f32.xlu0 %v2459
    %v2461 = vpop.xlane.xlu0 %2460
    %v2462 = vsub.f32 %v2448, %v2458
    %v2463 = vsub.f32 %v2453, %v2461
    %v2464 = vmul.f32 %v2462, 1.442695
    %v2465 = vpow.pop %v2464
    %v2466 = vmul.f32 %v2463, 1.442695
    %v2467 = vpow.pop %v2466
    %v2468 = vsel %vm397, %v2465, 0.0
    %2469 = vadd.xlane.f32.xlu0 %v2468
    %v2470 = vpop.xlane.xlu0 %2469
    %v2471 = vsel %vm397, %v2467, 0.0
    %2472 = vadd.xlane.f32.xlu0 %v2471
    %v2473 = vpop.xlane.xlu0 %2472
    %v2474 = vrcp.pop %v2470
    %v2475 = vrcp.pop %v2473
    %v2476 = vmul.f32 %v2465, %v2474
    %v2477 = vmul.f32 %v2467, %v2475
    %2478 = vrot.lane.b32.xlu0 %v1797, 48
    %v2479 = vpop.permute.xlu0 %2478
    %2480 = vrot.lane.b32.xlu0 %v1802, 48
    %v2481 = vpop.permute.xlu0 %2480
    %v2485 = vsel %vm397, %v2476, 0
    %v2488 = vsel %vm397, %v2477, 0
    %2490 = vmatprep.subr.mxu0 0.0
    %2491 = vmatpush1.msra.mxu0 %v2479
    %2492 = vmatprep.subr.mxu0 0.0
    %2493 = vmatpush1.msra.mxu0 %v2481
    %2494 = vmatprep.subr.mxu0 0.0
    %2495 = vmatpush1.msra.mxu0 0.0
    %2496 = vmatprep.subr.mxu0 0.0
    %2497 = vmatpush1.msra.mxu0 0.0
    %2498 = vmatprep.subr.mxu0 0.0
    %2499 = vmatpush1.msra.mxu0 0.0
    %2500 = vmatprep.subr.mxu0 0.0
    %2501 = vmatpush1.msra.mxu0 0.0
    %2502 = vmatprep.subr.mxu0 0.0
    %2503 = vmatpush1.msra.mxu0 0.0
    %2504 = vmatprep.subr.mxu0 0.0
    %2505 = vmatpush1.msra.mxu0 0.0
    %2506 = vmatprep.subr.mxu0 0.0
    %2507 = vmatpush1.msra.mxu0 0.0
    %2508 = vmatprep.subr.mxu0 0.0
    %2509 = vmatpush1.msra.mxu0 0.0
    %2510 = vmatprep.subr.mxu0 0.0
    %2511 = vmatpush1.msra.mxu0 0.0
    %2512 = vmatprep.subr.mxu0 0.0
    %2513 = vmatpush1.msra.mxu0 0.0
    %2514 = vmatprep.subr.mxu0 0.0
    %2515 = vmatpush1.msra.mxu0 0.0
    %2516 = vmatprep.subr.mxu0 0.0
    %2517 = vmatpush1.msra.mxu0 0.0
    %2518 = vmatprep.subr.mxu0 0.0
    %2519 = vmatpush1.msra.mxu0 0.0
    %2520 = vmatprep.subr.mxu0 0.0
    %2521 = vmatpush1.msra.mxu0 0.0
    %2522 = vmatprep.subr.mxu0 0.0
    %2523 = vmatpush1.msra.mxu0 0.0
    %2524 = vmatprep.subr.mxu0 0.0
    %2525 = vmatpush1.msra.mxu0 0.0
    %2526 = vmatprep.subr.mxu0 0.0
    %2527 = vmatpush1.msra.mxu0 0.0
    %2528 = vmatprep.subr.mxu0 0.0
    %2529 = vmatpush1.msra.mxu0 0.0
    %2530 = vmatprep.subr.mxu0 0.0
    %2531 = vmatpush1.msra.mxu0 0.0
    %2532 = vmatprep.subr.mxu0 0.0
    %2533 = vmatpush1.msra.mxu0 0.0
    %2534 = vmatprep.subr.mxu0 0.0
    %2535 = vmatpush1.msra.mxu0 0.0
    %2536 = vmatprep.subr.mxu0 0.0
    %2537 = vmatpush1.msra.mxu0 0.0
    %2538 = vmatprep.subr.mxu0 0.0
    %2539 = vmatpush1.msra.mxu0 0.0
    %2540 = vmatprep.subr.mxu0 0.0
    %2541 = vmatpush1.msra.mxu0 0.0
    %2542 = vmatprep.subr.mxu0 0.0
    %2543 = vmatpush1.msra.mxu0 0.0
    %2544 = vmatprep.subr.mxu0 0.0
    %2545 = vmatpush1.msra.mxu0 0.0
    %2546 = vmatprep.subr.mxu0 0.0
    %2547 = vmatpush1.msra.mxu0 0.0
    %2548 = vmatprep.subr.mxu0 0.0
    %2549 = vmatpush1.msra.mxu0 0.0
    %2550 = vmatprep.subr.mxu0 0.0
    %2551 = vmatpush1.msra.mxu0 0.0
    %2552 = vmatprep.subr.mxu0 0.0
    %2553 = vmatpush1.msra.mxu0 0.0
    %2554 = vmatprep.mubr.f32.mxu0 0.0
    %2555 = vmatmul.mubr.f32.gmra.mrb[0].mxu0 %v2485
    %v2556 = vpop.f32.mrb[0].mxu0
    %v2557 = vadd.f32 0.0, %v2556
    %v2558 = vpop.f32.mrb[0].mxu0
    %2559 = vmatprep.mubr.f32.mxu0 0.0
    %2560 = vmatmul.mubr.f32.gmra.mrb[0].mxu0 %v2488
    %v2561 = vpop.f32.mrb[0].mxu0
    %v2562 = vadd.f32 0.0, %v2561
    %v2563 = vpop.f32.mrb[0].mxu0
    %2564 = vdwg.mxu0
    %v2566 = vsel %vm313, %v2557, 0
    %v2569 = vsel %vm313, %v2562, 0
    %2571 = vmatprep.subr.mxu0 0.0
    %2572 = vmatpush1.msra.mxu0 %v1702
    %2573 = vmatprep.subr.mxu0 0.0
    %2574 = vmatpush1.msra.mxu0 0.0
    %2575 = vmatprep.subr.mxu0 0.0
    %2576 = vmatpush1.msra.mxu0 0.0
    %2577 = vmatprep.subr.mxu0 0.0
    %2578 = vmatpush1.msra.mxu0 0.0
    %2579 = vmatprep.subr.mxu0 0.0
    %2580 = vmatpush1.msra.mxu0 0.0
    %2581 = vmatprep.subr.mxu0 0.0
    %2582 = vmatpush1.msra.mxu0 0.0
    %2583 = vmatprep.subr.mxu0 0.0
    %2584 = vmatpush1.msra.mxu0 0.0
    %2585 = vmatprep.subr.mxu0 0.0
    %2586 = vmatpush1.msra.mxu0 0.0
    %2587 = vmatprep.subr.mxu0 0.0
    %2588 = vmatpush1.msra.mxu0 0.0
    %2589 = vmatprep.subr.mxu0 0.0
    %2590 = vmatpush1.msra.mxu0 0.0
    %2591 = vmatprep.subr.mxu0 0.0
    %2592 = vmatpush1.msra.mxu0 0.0
    %2593 = vmatprep.subr.mxu0 0.0
    %2594 = vmatpush1.msra.mxu0 0.0
    %2595 = vmatprep.subr.mxu0 0.0
    %2596 = vmatpush1.msra.mxu0 0.0
    %2597 = vmatprep.subr.mxu0 0.0
    %2598 = vmatpush1.msra.mxu0 0.0
    %2599 = vmatprep.subr.mxu0 0.0
    %2600 = vmatpush1.msra.mxu0 0.0
    %2601 = vmatprep.subr.mxu0 0.0
    %2602 = vmatpush1.msra.mxu0 0.0
    %2603 = vmatprep.subr.mxu0 0.0
    %2604 = vmatpush1.msra.mxu0 0.0
    %2605 = vmatprep.subr.mxu0 0.0
    %2606 = vmatpush1.msra.mxu0 0.0
    %2607 = vmatprep.subr.mxu0 0.0
    %2608 = vmatpush1.msra.mxu0 0.0
    %2609 = vmatprep.subr.mxu0 0.0
    %2610 = vmatpush1.msra.mxu0 0.0
    %2611 = vmatprep.subr.mxu0 0.0
    %2612 = vmatpush1.msra.mxu0 0.0
    %2613 = vmatprep.subr.mxu0 0.0
    %2614 = vmatpush1.msra.mxu0 0.0
    %2615 = vmatprep.subr.mxu0 0.0
    %2616 = vmatpush1.msra.mxu0 0.0
    %2617 = vmatprep.subr.mxu0 0.0
    %2618 = vmatpush1.msra.mxu0 0.0
    %2619 = vmatprep.subr.mxu0 0.0
    %2620 = vmatpush1.msra.mxu0 0.0
    %2621 = vmatprep.subr.mxu0 0.0
    %2622 = vmatpush1.msra.mxu0 0.0
    %2623 = vmatprep.subr.mxu0 0.0
    %2624 = vmatpush1.msra.mxu0 0.0
    %2625 = vmatprep.subr.mxu0 0.0
    %2626 = vmatpush1.msra.mxu0 0.0
    %2627 = vmatprep.subr.mxu0 0.0
    %2628 = vmatpush1.msra.mxu0 0.0
    %2629 = vmatprep.subr.mxu0 0.0
    %2630 = vmatpush1.msra.mxu0 0.0
    %2631 = vmatprep.subr.mxu0 0.0
    %2632 = vmatpush1.msra.mxu0 0.0
    %2633 = vmatprep.subr.mxu0 0.0
    %2634 = vmatpush1.msra.mxu0 0.0
    %2635 = vmatprep.mubr.f32.mxu0 0.0
    %2636 = vmatmul.mubr.f32.gmra.mrb[0].mxu0 %v2566
    %v2637 = vpop.f32.mrb[0].mxu0
    %v2638 = vadd.f32 0.0, %v2637
    %v2639 = vpop.f32.mrb[0].mxu0
    %2640 = vmatprep.mubr.f32.mxu0 0.0
    %2641 = vmatmul.mubr.f32.gmra.mrb[0].mxu0 %v2569
    %v2642 = vpop.f32.mrb[0].mxu0
    %v2643 = vadd.f32 0.0, %v2642
    %v2644 = vpop.f32.mrb[0].mxu0
    %2645 = vdwg.mxu0
    %v2646 = vadd.f32 %v2357, %v2638
    %v2647 = vadd.f32 %v2362, %v2643
    %2648 = vrot.lane.b32.xlu0 %v1797, 104
    %v2649 = vpop.permute.xlu0 %2648
    %2650 = vrot.lane.b32.xlu0 %v1802, 104
    %v2651 = vpop.permute.xlu0 %2650
    %2652 = vrot.lane.b32.xlu0 %v1797, 72
    %v2653 = vpop.permute.xlu0 %2652
    %2654 = vrot.lane.b32.xlu0 %v1802, 72
    %v2655 = vpop.permute.xlu0 %2654
    %v2656 = vsel %vm313, %v2649, 0
    %v2658 = vsel %vm313, %v2651, 0
    %v2660 = vsel %vm313, %v2653, 0
    %v2662 = vsel %vm313, %v2655, 0
    %2664 = vmatprep.subr.mxu0 0.0
    %2665 = vmatpush1.xpose.msra.mxu0 %v2660
    %2666 = vmatprep.subr.mxu0 0.0
    %2667 = vmatpush1.xpose.msra.mxu0 %v2662
    %2668 = vmatprep.subr.mxu0 0.0
    %2669 = vmatpush1.xpose.msra.mxu0 0.0
    %2670 = vmatprep.subr.mxu0 0.0
    %2671 = vmatpush1.xpose.msra.mxu0 0.0
    %2672 = vmatprep.subr.mxu0 0.0
    %2673 = vmatpush1.xpose.msra.mxu0 0.0
    %2674 = vmatprep.subr.mxu0 0.0
    %2675 = vmatpush1.xpose.msra.mxu0 0.0
    %2676 = vmatprep.subr.mxu0 0.0
    %2677 = vmatpush1.xpose.msra.mxu0 0.0
    %2678 = vmatprep.subr.mxu0 0.0
    %2679 = vmatpush1.xpose.msra.mxu0 0.0
    %2680 = vmatprep.subr.mxu0 0.0
    %2681 = vmatpush1.xpose.msra.mxu0 0.0
    %2682 = vmatprep.subr.mxu0 0.0
    %2683 = vmatpush1.xpose.msra.mxu0 0.0
    %2684 = vmatprep.subr.mxu0 0.0
    %2685 = vmatpush1.xpose.msra.mxu0 0.0
    %2686 = vmatprep.subr.mxu0 0.0
    %2687 = vmatpush1.xpose.msra.mxu0 0.0
    %2688 = vmatprep.subr.mxu0 0.0
    %2689 = vmatpush1.xpose.msra.mxu0 0.0
    %2690 = vmatprep.subr.mxu0 0.0
    %2691 = vmatpush1.xpose.msra.mxu0 0.0
    %2692 = vmatprep.subr.mxu0 0.0
    %2693 = vmatpush1.xpose.msra.mxu0 0.0
    %2694 = vmatprep.subr.mxu0 0.0
    %2695 = vmatpush1.xpose.msra.mxu0 0.0
    %2696 = vmatprep.subr.mxu0 0.0
    %2697 = vmatpush1.xpose.msra.mxu0 0.0
    %2698 = vmatprep.subr.mxu0 0.0
    %2699 = vmatpush1.xpose.msra.mxu0 0.0
    %2700 = vmatprep.subr.mxu0 0.0
    %2701 = vmatpush1.xpose.msra.mxu0 0.0
    %2702 = vmatprep.subr.mxu0 0.0
    %2703 = vmatpush1.xpose.msra.mxu0 0.0
    %2704 = vmatprep.subr.mxu0 0.0
    %2705 = vmatpush1.xpose.msra.mxu0 0.0
    %2706 = vmatprep.subr.mxu0 0.0
    %2707 = vmatpush1.xpose.msra.mxu0 0.0
    %2708 = vmatprep.subr.mxu0 0.0
    %2709 = vmatpush1.xpose.msra.mxu0 0.0
    %2710 = vmatprep.subr.mxu0 0.0
    %2711 = vmatpush1.xpose.msra.mxu0 0.0
    %2712 = vmatprep.subr.mxu0 0.0
    %2713 = vmatpush1.xpose.msra.mxu0 0.0
    %2714 = vmatprep.subr.mxu0 0.0
    %2715 = vmatpush1.xpose.msra.mxu0 0.0
    %2716 = vmatprep.subr.mxu0 0.0
    %2717 = vmatpush1.xpose.msra.mxu0 0.0
    %2718 = vmatprep.subr.mxu0 0.0
    %2719 = vmatpush1.xpose.msra.mxu0 0.0
    %2720 = vmatprep.subr.mxu0 0.0
    %2721 = vmatpush1.xpose.msra.mxu0 0.0
    %2722 = vmatprep.subr.mxu0 0.0
    %2723 = vmatpush1.xpose.msra.mxu0 0.0
    %2724 = vmatprep.subr.mxu0 0.0
    %2725 = vmatpush1.xpose.msra.mxu0 0.0
    %2726 = vmatprep.subr.mxu0 0.0
    %2727 = vmatpush1.xpose.msra.mxu0 0.0
    %2728 = vmatprep.mubr.f32.mxu0 0.0
    %2729 = vmatmul.mubr.f32.gmra.mrb[0].mxu0 %v2656
    %v2730 = vpop.f32.mrb[0].mxu0
    %v2731 = vadd.f32 %v198, %v2730
    %v2732 = vpop.f32.mrb[0].mxu0
    %2733 = vmatprep.mubr.f32.mxu0 0.0
    %2734 = vmatmul.mubr.f32.gmra.mrb[0].mxu0 %v2658
    %v2735 = vpop.f32.mrb[0].mxu0
    %v2736 = vadd.f32 %v199, %v2735
    %v2737 = vpop.f32.mrb[0].mxu0
    %2738 = vdwg.mxu0
    %v2739 = vsel %vm397, %v2731, -inf
    %2740 = vmax.xlane.f32.xlu0 %v2739
    %v2741 = vpop.xlane.xlu0 %2740
    %v2742 = vsel %vm397, %v2736, -inf
    %2743 = vmax.xlane.f32.xlu0 %v2742
    %v2744 = vpop.xlane.xlu0 %2743
    %v2745 = vsub.f32 %v2731, %v2741
    %v2746 = vsub.f32 %v2736, %v2744
    %v2747 = vmul.f32 %v2745, 1.442695
    %v2748 = vpow.pop %v2747
    %v2749 = vmul.f32 %v2746, 1.442695
    %v2750 = vpow.pop %v2749
    %v2751 = vsel %vm397, %v2748, 0.0
    %2752 = vadd.xlane.f32.xlu0 %v2751
    %v2753 = vpop.xlane.xlu0 %2752
    %v2754 = vsel %vm397, %v2750, 0.0
    %2755 = vadd.xlane.f32.xlu0 %v2754
    %v2756 = vpop.xlane.xlu0 %2755
    %v2757 = vrcp.pop %v2753
    %v2758 = vrcp.pop %v2756
    %v2759 = vmul.f32 %v2748, %v2757
    %v2760 = vmul.f32 %v2750, %v2758
    %2761 = vrot.lane.b32.xlu0 %v1797, 40
    %v2762 = vpop.permute.xlu0 %2761
    %2763 = vrot.lane.b32.xlu0 %v1802, 40
    %v2764 = vpop.permute.xlu0 %2763
    %v2768 = vsel %vm397, %v2759, 0
    %v2771 = vsel %vm397, %v2760, 0
    %2773 = vmatprep.subr.mxu0 0.0
    %2774 = vmatpush1.msra.mxu0 %v2762
    %2775 = vmatprep.subr.mxu0 0.0
    %2776 = vmatpush1.msra.mxu0 %v2764
    %2777 = vmatprep.subr.mxu0 0.0
    %2778 = vmatpush1.msra.mxu0 0.0
    %2779 = vmatprep.subr.mxu0 0.0
    %2780 = vmatpush1.msra.mxu0 0.0
    %2781 = vmatprep.subr.mxu0 0.0
    %2782 = vmatpush1.msra.mxu0 0.0
    %2783 = vmatprep.subr.mxu0 0.0
    %2784 = vmatpush1.msra.mxu0 0.0
    %2785 = vmatprep.subr.mxu0 0.0
    %2786 = vmatpush1.msra.mxu0 0.0
    %2787 = vmatprep.subr.mxu0 0.0
    %2788 = vmatpush1.msra.mxu0 0.0
    %2789 = vmatprep.subr.mxu0 0.0
    %2790 = vmatpush1.msra.mxu0 0.0
    %2791 = vmatprep.subr.mxu0 0.0
    %2792 = vmatpush1.msra.mxu0 0.0
    %2793 = vmatprep.subr.mxu0 0.0
    %2794 = vmatpush1.msra.mxu0 0.0
    %2795 = vmatprep.subr.mxu0 0.0
    %2796 = vmatpush1.msra.mxu0 0.0
    %2797 = vmatprep.subr.mxu0 0.0
    %2798 = vmatpush1.msra.mxu0 0.0
    %2799 = vmatprep.subr.mxu0 0.0
    %2800 = vmatpush1.msra.mxu0 0.0
    %2801 = vmatprep.subr.mxu0 0.0
    %2802 = vmatpush1.msra.mxu0 0.0
    %2803 = vmatprep.subr.mxu0 0.0
    %2804 = vmatpush1.msra.mxu0 0.0
    %2805 = vmatprep.subr.mxu0 0.0
    %2806 = vmatpush1.msra.mxu0 0.0
    %2807 = vmatprep.subr.mxu0 0.0
    %2808 = vmatpush1.msra.mxu0 0.0
    %2809 = vmatprep.subr.mxu0 0.0
    %2810 = vmatpush1.msra.mxu0 0.0
    %2811 = vmatprep.subr.mxu0 0.0
    %2812 = vmatpush1.msra.mxu0 0.0
    %2813 = vmatprep.subr.mxu0 0.0
    %2814 = vmatpush1.msra.mxu0 0.0
    %2815 = vmatprep.subr.mxu0 0.0
    %2816 = vmatpush1.msra.mxu0 0.0
    %2817 = vmatprep.subr.mxu0 0.0
    %2818 = vmatpush1.msra.mxu0 0.0
    %2819 = vmatprep.subr.mxu0 0.0
    %2820 = vmatpush1.msra.mxu0 0.0
    %2821 = vmatprep.subr.mxu0 0.0
    %2822 = vmatpush1.msra.mxu0 0.0
    %2823 = vmatprep.subr.mxu0 0.0
    %2824 = vmatpush1.msra.mxu0 0.0
    %2825 = vmatprep.subr.mxu0 0.0
    %2826 = vmatpush1.msra.mxu0 0.0
    %2827 = vmatprep.subr.mxu0 0.0
    %2828 = vmatpush1.msra.mxu0 0.0
    %2829 = vmatprep.subr.mxu0 0.0
    %2830 = vmatpush1.msra.mxu0 0.0
    %2831 = vmatprep.subr.mxu0 0.0
    %2832 = vmatpush1.msra.mxu0 0.0
    %2833 = vmatprep.subr.mxu0 0.0
    %2834 = vmatpush1.msra.mxu0 0.0
    %2835 = vmatprep.subr.mxu0 0.0
    %2836 = vmatpush1.msra.mxu0 0.0
    %2837 = vmatprep.mubr.f32.mxu0 0.0
    %2838 = vmatmul.mubr.f32.gmra.mrb[0].mxu0 %v2768
    %v2839 = vpop.f32.mrb[0].mxu0
    %v2840 = vadd.f32 0.0, %v2839
    %v2841 = vpop.f32.mrb[0].mxu0
    %2842 = vmatprep.mubr.f32.mxu0 0.0
    %2843 = vmatmul.mubr.f32.gmra.mrb[0].mxu0 %v2771
    %v2844 = vpop.f32.mrb[0].mxu0
    %v2845 = vadd.f32 0.0, %v2844
    %v2846 = vpop.f32.mrb[0].mxu0
    %2847 = vdwg.mxu0
    %v2849 = vsel %vm313, %v2840, 0
    %v2852 = vsel %vm313, %v2845, 0
    %2854 = vmatprep.subr.mxu0 0.0
    %2855 = vmatpush1.msra.mxu0 %v1703
    %2856 = vmatprep.subr.mxu0 0.0
    %2857 = vmatpush1.msra.mxu0 0.0
    %2858 = vmatprep.subr.mxu0 0.0
    %2859 = vmatpush1.msra.mxu0 0.0
    %2860 = vmatprep.subr.mxu0 0.0
    %2861 = vmatpush1.msra.mxu0 0.0
    %2862 = vmatprep.subr.mxu0 0.0
    %2863 = vmatpush1.msra.mxu0 0.0
    %2864 = vmatprep.subr.mxu0 0.0
    %2865 = vmatpush1.msra.mxu0 0.0
    %2866 = vmatprep.subr.mxu0 0.0
    %2867 = vmatpush1.msra.mxu0 0.0
    %2868 = vmatprep.subr.mxu0 0.0
    %2869 = vmatpush1.msra.mxu0 0.0
    %2870 = vmatprep.subr.mxu0 0.0
    %2871 = vmatpush1.msra.mxu0 0.0
    %2872 = vmatprep.subr.mxu0 0.0
    %2873 = vmatpush1.msra.mxu0 0.0
    %2874 = vmatprep.subr.mxu0 0.0
    %2875 = vmatpush1.msra.mxu0 0.0
    %2876 = vmatprep.subr.mxu0 0.0
    %2877 = vmatpush1.msra.mxu0 0.0
    %2878 = vmatprep.subr.mxu0 0.0
    %2879 = vmatpush1.msra.mxu0 0.0
    %2880 = vmatprep.subr.mxu0 0.0
    %2881 = vmatpush1.msra.mxu0 0.0
    %2882 = vmatprep.subr.mxu0 0.0
    %2883 = vmatpush1.msra.mxu0 0.0
    %2884 = vmatprep.subr.mxu0 0.0
    %2885 = vmatpush1.msra.mxu0 0.0
    %2886 = vmatprep.subr.mxu0 0.0
    %2887 = vmatpush1.msra.mxu0 0.0
    %2888 = vmatprep.subr.mxu0 0.0
    %2889 = vmatpush1.msra.mxu0 0.0
    %2890 = vmatprep.subr.mxu0 0.0
    %2891 = vmatpush1.msra.mxu0 0.0
    %2892 = vmatprep.subr.mxu0 0.0
    %2893 = vmatpush1.msra.mxu0 0.0
    %2894 = vmatprep.subr.mxu0 0.0
    %2895 = vmatpush1.msra.mxu0 0.0
    %2896 = vmatprep.subr.mxu0 0.0
    %2897 = vmatpush1.msra.mxu0 0.0
    %2898 = vmatprep.subr.mxu0 0.0
    %2899 = vmatpush1.msra.mxu0 0.0
    %2900 = vmatprep.subr.mxu0 0.0
    %2901 = vmatpush1.msra.mxu0 0.0
    %2902 = vmatprep.subr.mxu0 0.0
    %2903 = vmatpush1.msra.mxu0 0.0
    %2904 = vmatprep.subr.mxu0 0.0
    %2905 = vmatpush1.msra.mxu0 0.0
    %2906 = vmatprep.subr.mxu0 0.0
    %2907 = vmatpush1.msra.mxu0 0.0
    %2908 = vmatprep.subr.mxu0 0.0
    %2909 = vmatpush1.msra.mxu0 0.0
    %2910 = vmatprep.subr.mxu0 0.0
    %2911 = vmatpush1.msra.mxu0 0.0
    %2912 = vmatprep.subr.mxu0 0.0
    %2913 = vmatpush1.msra.mxu0 0.0
    %2914 = vmatprep.subr.mxu0 0.0
    %2915 = vmatpush1.msra.mxu0 0.0
    %2916 = vmatprep.subr.mxu0 0.0
    %2917 = vmatpush1.msra.mxu0 0.0
    %2918 = vmatprep.mubr.f32.mxu0 0.0
    %2919 = vmatmul.mubr.f32.gmra.mrb[0].mxu0 %v2849
    %v2920 = vpop.f32.mrb[0].mxu0
    %v2921 = vadd.f32 0.0, %v2920
    %v2922 = vpop.f32.mrb[0].mxu0
    %2923 = vmatprep.mubr.f32.mxu0 0.0
    %2924 = vmatmul.mubr.f32.gmra.mrb[0].mxu0 %v2852
    %v2925 = vpop.f32.mrb[0].mxu0
    %v2926 = vadd.f32 0.0, %v2925
    %v2927 = vpop.f32.mrb[0].mxu0
    %2928 = vdwg.mxu0
    %v2929 = vadd.f32 %v2646, %v2921
    %v2930 = vadd.f32 %v2647, %v2926
    %v2931 = vlaneseq
    %v2932 = vshrl.u32 %v2931, 7
    %v2933 = vsub.s32 1, %v2932
    %v2934 = vrot.slane %v1719, %v2933
    %v2935 = vadd.f32 %v2929, %v2934
    %v2936 = vadd.f32 %v2930, %v2934
    %v2937 = vadd.f32 %v1692, %v2935
    %v2938 = vadd.f32 %v1693, %v2936
    %v2939 = vsel %vm225, %v2937, 0.0
    %2940 = vadd.xlane.f32.xlu0 %v2939
    %v2941 = vpop.xlane.xlu0 %2940
    %v2942 = vsel %vm225, %v2938, 0.0
    %2943 = vadd.xlane.f32.xlu0 %v2942
    %v2944 = vpop.xlane.xlu0 %2943
    %v2945 = vmul.f32 %v2941, %v1449
    %v2946 = vmul.f32 %v2944, %v1449
    %v2947 = vsub.f32 %v2937, %v2945
    %v2948 = vsub.f32 %v2938, %v2946
    %v2949 = vmul.f32 %v2947, %v2947
    %v2950 = vmul.f32 %v2948, %v2948
    %v2951 = vsel %vm225, %v2949, 0.0
    %2952 = vadd.xlane.f32.xlu0 %v2951
    %v2953 = vpop.xlane.xlu0 %2952
    %v2954 = vsel %vm225, %v2950, 0.0
    %2955 = vadd.xlane.f32.xlu0 %v2954
    %v2956 = vpop.xlane.xlu0 %2955
    %v2957 = vmul.f32 %v2953, %v1449
    %v2958 = vmul.f32 %v2956, %v1449
    %v2959 = vadd.f32 %v2957, 1e-05
    %v2960 = vadd.f32 %v2958, 1e-05
    %v2961 = vrsqrt.pop %v2959
    %v2962 = vrsqrt.pop %v2960
    %v2963 = vmul.f32 %v2947, %v2961
    %v2964 = vmul.f32 %v2948, %v2962
    %v2965 = vlaneseq
    %v2966 = vshrl.u32 %v2965, 7
    %v2967 = vsub.s32 4, %v2966
    %v2968 = vrot.slane %v1719, %v2967
    %v2969 = vmul.f32 %v2963, %v2968
    %v2970 = vmul.f32 %v2964, %v2968
    %v2971 = vlaneseq
    %v2972 = vshrl.u32 %v2971, 7
    %v2973 = vsub.s32 5, %v2972
    %v2974 = vrot.slane %v1719, %v2973
    %v2975 = vadd.f32 %v2969, %v2974
    %v2976 = vadd.f32 %v2970, %v2974
    %v2977 = vlaneseq
    %v2978 = vshrl.u32 %v2977, 7
    %v2979 = vsub.s32 2, %v2978
    %v2980 = vrot.slane %v1719, %v2979
    %v2982 = vsel %vm225, %v2975, 0
    %v2985 = vsel %vm225, %v2976, 0
    %2987 = vmatprep.subr.mxu0 0.0
    %2988 = vmatpush1.msra.mxu0 %v1705
    %2989 = vmatprep.subr.mxu0 0.0
    %2990 = vmatpush1.msra.mxu0 %v1706
    %2991 = vmatprep.subr.mxu0 0.0
    %2992 = vmatpush1.msra.mxu0 %v1707
    %2993 = vmatprep.subr.mxu0 0.0
    %2994 = vmatpush1.msra.mxu0 %v1708
    %2995 = vmatprep.subr.mxu0 0.0
    %2996 = vmatpush1.msra.mxu0 0.0
    %2997 = vmatprep.subr.mxu0 0.0
    %2998 = vmatpush1.msra.mxu0 0.0
    %2999 = vmatprep.subr.mxu0 0.0
    %3000 = vmatpush1.msra.mxu0 0.0
    %3001 = vmatprep.subr.mxu0 0.0
    %3002 = vmatpush1.msra.mxu0 0.0
    %3003 = vmatprep.subr.mxu0 0.0
    %3004 = vmatpush1.msra.mxu0 0.0
    %3005 = vmatprep.subr.mxu0 0.0
    %3006 = vmatpush1.msra.mxu0 0.0
    %3007 = vmatprep.subr.mxu0 0.0
    %3008 = vmatpush1.msra.mxu0 0.0
    %3009 = vmatprep.subr.mxu0 0.0
    %3010 = vmatpush1.msra.mxu0 0.0
    %3011 = vmatprep.subr.mxu0 0.0
    %3012 = vmatpush1.msra.mxu0 0.0
    %3013 = vmatprep.subr.mxu0 0.0
    %3014 = vmatpush1.msra.mxu0 0.0
    %3015 = vmatprep.subr.mxu0 0.0
    %3016 = vmatpush1.msra.mxu0 0.0
    %3017 = vmatprep.subr.mxu0 0.0
    %3018 = vmatpush1.msra.mxu0 0.0
    %3019 = vmatprep.subr.mxu0 0.0
    %3020 = vmatpush1.msra.mxu0 0.0
    %3021 = vmatprep.subr.mxu0 0.0
    %3022 = vmatpush1.msra.mxu0 0.0
    %3023 = vmatprep.subr.mxu0 0.0
    %3024 = vmatpush1.msra.mxu0 0.0
    %3025 = vmatprep.subr.mxu0 0.0
    %3026 = vmatpush1.msra.mxu0 0.0
    %3027 = vmatprep.subr.mxu0 0.0
    %3028 = vmatpush1.msra.mxu0 0.0
    %3029 = vmatprep.subr.mxu0 0.0
    %3030 = vmatpush1.msra.mxu0 0.0
    %3031 = vmatprep.subr.mxu0 0.0
    %3032 = vmatpush1.msra.mxu0 0.0
    %3033 = vmatprep.subr.mxu0 0.0
    %3034 = vmatpush1.msra.mxu0 0.0
    %3035 = vmatprep.subr.mxu0 0.0
    %3036 = vmatpush1.msra.mxu0 0.0
    %3037 = vmatprep.subr.mxu0 0.0
    %3038 = vmatpush1.msra.mxu0 0.0
    %3039 = vmatprep.subr.mxu0 0.0
    %3040 = vmatpush1.msra.mxu0 0.0
    %3041 = vmatprep.subr.mxu0 0.0
    %3042 = vmatpush1.msra.mxu0 0.0
    %3043 = vmatprep.subr.mxu0 0.0
    %3044 = vmatpush1.msra.mxu0 0.0
    %3045 = vmatprep.subr.mxu0 0.0
    %3046 = vmatpush1.msra.mxu0 0.0
    %3047 = vmatprep.subr.mxu0 0.0
    %3048 = vmatpush1.msra.mxu0 0.0
    %3049 = vmatprep.subr.mxu0 0.0
    %3050 = vmatpush1.msra.mxu0 0.0
    %3051 = vmatprep.mubr.f32.mxu0 0.0
    %3052 = vmatmul.mubr.f32.gmra.mrb[0].mxu0 %v2982
    %v3053 = vpop.f32.mrb[0].mxu0
    %v3054 = vadd.f32 %v2980, %v3053
    %v3055 = vpop.f32.mrb[0].mxu0
    %3056 = vmatprep.mubr.f32.mxu0 0.0
    %3057 = vmatmul.mubr.f32.gmra.mrb[0].mxu0 %v2985
    %v3058 = vpop.f32.mrb[0].mxu0
    %v3059 = vadd.f32 %v2980, %v3058
    %v3060 = vpop.f32.mrb[0].mxu0
    %3061 = vdwg.mxu0
    %v3062 = vmax.f32 %v3054, 0.0
    %v3063 = vmax.f32 %v3059, 0.0
    %v3064 = vlaneseq
    %v3065 = vshrl.u32 %v3064, 7
    %v3066 = vsub.s32 3, %v3065
    %v3067 = vrot.slane %v1719, %v3066
    %v3069 = vsel %vm110, %v3062, 0
    %v3072 = vsel %vm110, %v3063, 0
    %3074 = vmatprep.subr.mxu0 0.0
    %3075 = vmatpush1.msra.mxu0 %v1710
    %3076 = vmatprep.subr.mxu0 0.0
    %3077 = vmatpush1.msra.mxu0 %v1711
    %3078 = vmatprep.subr.mxu0 0.0
    %3079 = vmatpush1.msra.mxu0 %v1712
    %3080 = vmatprep.subr.mxu0 0.0
    %3081 = vmatpush1.msra.mxu0 %v1713
    %3082 = vmatprep.subr.mxu0 0.0
    %3083 = vmatpush1.msra.mxu0 %v1714
    %3084 = vmatprep.subr.mxu0 0.0
    %3085 = vmatpush1.msra.mxu0 %v1715
    %3086 = vmatprep.subr.mxu0 0.0
    %3087 = vmatpush1.msra.mxu0 %v1716
    %3088 = vmatprep.subr.mxu0 0.0
    %3089 = vmatpush1.msra.mxu0 %v1717
    %3090 = vmatprep.subr.mxu0 0.0
    %3091 = vmatpush1.msra.mxu0 0.0
    %3092 = vmatprep.subr.mxu0 0.0
    %3093 = vmatpush1.msra.mxu0 0.0
    %3094 = vmatprep.subr.mxu0 0.0
    %3095 = vmatpush1.msra.mxu0 0.0
    %3096 = vmatprep.subr.mxu0 0.0
    %3097 = vmatpush1.msra.mxu0 0.0
    %3098 = vmatprep.subr.mxu0 0.0
    %3099 = vmatpush1.msra.mxu0 0.0
    %3100 = vmatprep.subr.mxu0 0.0
    %3101 = vmatpush1.msra.mxu0 0.0
    %3102 = vmatprep.subr.mxu0 0.0
    %3103 = vmatpush1.msra.mxu0 0.0
    %3104 = vmatprep.subr.mxu0 0.0
    %3105 = vmatpush1.msra.mxu0 0.0
    %3106 = vmatprep.subr.mxu0 0.0
    %3107 = vmatpush1.msra.mxu0 0.0
    %3108 = vmatprep.subr.mxu0 0.0
    %3109 = vmatpush1.msra.mxu0 0.0
    %3110 = vmatprep.subr.mxu0 0.0
    %3111 = vmatpush1.msra.mxu0 0.0
    %3112 = vmatprep.subr.mxu0 0.0
    %3113 = vmatpush1.msra.mxu0 0.0
    %3114 = vmatprep.subr.mxu0 0.0
    %3115 = vmatpush1.msra.mxu0 0.0
    %3116 = vmatprep.subr.mxu0 0.0
    %3117 = vmatpush1.msra.mxu0 0.0
    %3118 = vmatprep.subr.mxu0 0.0
    %3119 = vmatpush1.msra.mxu0 0.0
    %3120 = vmatprep.subr.mxu0 0.0
    %3121 = vmatpush1.msra.mxu0 0.0
    %3122 = vmatprep.subr.mxu0 0.0
    %3123 = vmatpush1.msra.mxu0 0.0
    %3124 = vmatprep.subr.mxu0 0.0
    %3125 = vmatpush1.msra.mxu0 0.0
    %3126 = vmatprep.subr.mxu0 0.0
    %3127 = vmatpush1.msra.mxu0 0.0
    %3128 = vmatprep.subr.mxu0 0.0
    %3129 = vmatpush1.msra.mxu0 0.0
    %3130 = vmatprep.subr.mxu0 0.0
    %3131 = vmatpush1.msra.mxu0 0.0
    %3132 = vmatprep.subr.mxu0 0.0
    %3133 = vmatpush1.msra.mxu0 0.0
    %3134 = vmatprep.subr.mxu0 0.0
    %3135 = vmatpush1.msra.mxu0 0.0
    %3136 = vmatprep.subr.mxu0 0.0
    %3137 = vmatpush1.msra.mxu0 0.0
    %3138 = vmatprep.mubr.f32.mxu0 0.0
    %3139 = vmatmul.mubr.f32.gmra.mrb[0].mxu0 %v3069
    %v3140 = vpop.f32.mrb[0].mxu0
    %v3141 = vadd.f32 %v3067, %v3140
    %v3142 = vpop.f32.mrb[0].mxu0
    %3143 = vmatprep.mubr.f32.mxu0 0.0
    %3144 = vmatmul.mubr.f32.gmra.mrb[0].mxu0 %v3072
    %v3145 = vpop.f32.mrb[0].mxu0
    %v3146 = vadd.f32 %v3067, %v3145
    %v3147 = vpop.f32.mrb[0].mxu0
    %3148 = vdwg.mxu0
    %v3149 = vadd.f32 %v2975, %v3141
    %v3150 = vadd.f32 %v2976, %v3146
    %v3151 = vsel %vm225, %v3149, 0.0
    %3152 = vadd.xlane.f32.xlu0 %v3151
    %v3153 = vpop.xlane.xlu0 %3152
    %v3154 = vsel %vm225, %v3150, 0.0
    %3155 = vadd.xlane.f32.xlu0 %v3154
    %v3156 = vpop.xlane.xlu0 %3155
    %v3157 = vmul.f32 %v3153, %v1449
    %v3158 = vmul.f32 %v3156, %v1449
    %v3159 = vsub.f32 %v3149, %v3157
    %v3160 = vsub.f32 %v3150, %v3158
    %v3161 = vmul.f32 %v3159, %v3159
    %v3162 = vmul.f32 %v3160, %v3160
    %v3163 = vsel %vm225, %v3161, 0.0
    %3164 = vadd.xlane.f32.xlu0 %v3163
    %v3165 = vpop.xlane.xlu0 %3164
    %v3166 = vsel %vm225, %v3162, 0.0
    %3167 = vadd.xlane.f32.xlu0 %v3166
    %v3168 = vpop.xlane.xlu0 %3167
    %v3169 = vmul.f32 %v3165, %v1449
    %v3170 = vmul.f32 %v3168, %v1449
    %v3171 = vadd.f32 %v3169, 1e-05
    %v3172 = vadd.f32 %v3170, 1e-05
    %v3173 = vrsqrt.pop %v3171
    %v3174 = vrsqrt.pop %v3172
    %v3175 = vmul.f32 %v3159, %v3173
    %v3176 = vmul.f32 %v3160, %v3174
    %v3177 = vlaneseq
    %v3178 = vshrl.u32 %v3177, 7
    %v3179 = vsub.s32 6, %v3178
    %v3180 = vrot.slane %v1719, %v3179
    %v3181 = vmul.f32 %v3175, %v3180
    %v3182 = vmul.f32 %v3176, %v3180
    %v3183 = vlaneseq
    %v3184 = vshrl.u32 %v3183, 7
    %v3185 = vsub.s32 7, %v3184
    %v3186 = vrot.slane %v1719, %v3185
    %v3187 = vadd.f32 %v3181, %v3186
    %v3188 = vadd.f32 %v3182, %v3186
    %v3189 = vld [vmem:[%s1] sm:$0xff]
    %v3190 = vld [vmem:[%s1 + $0x8] sm:$0xff]
    %3191 = vset.pattern.permute.xlu0 0
    %3192 = vperm.xlu0 %3191, %v3189
    %v3193 = vpop.permute.xlu0 %3192
    %3194 = vset.pattern.permute.xlu0 0
    %3195 = vperm.xlu0 %3194, %v3190
    %v3196 = vpop.permute.xlu0 %3195
    %vm3197 = vcmp.eq.s32.totalorder %v97, %v3193
    %vm3198 = vcmp.eq.s32.totalorder %v97, %v3196
    %v3199 = vsel %vm3197, 1, 0
    %v3200 = vsel %vm3198, 1, 0
    %v3201 = vcvt.s32.f32 %v3199
    %v3202 = vcvt.s32.f32 %v3200
    %v3204 = vsel %vm110, %v3201, 0
    %v3207 = vsel %vm110, %v3202, 0
    %3209 = vmatprep.subr.mxu0 0.0
    %3210 = vmatpush1.msra.mxu0 %v86
    %3211 = vmatprep.subr.mxu0 0.0
    %3212 = vmatpush1.msra.mxu0 %v87
    %3213 = vmatprep.subr.mxu0 0.0
    %3214 = vmatpush1.msra.mxu0 %v88
    %3215 = vmatprep.subr.mxu0 0.0
    %3216 = vmatpush1.msra.mxu0 %v89
    %3217 = vmatprep.subr.mxu0 0.0
    %3218 = vmatpush1.msra.mxu0 %v90
    %3219 = vmatprep.subr.mxu0 0.0
    %3220 = vmatpush1.msra.mxu0 %v91
    %3221 = vmatprep.subr.mxu0 0.0
    %3222 = vmatpush1.msra.mxu0 %v92
    %3223 = vmatprep.subr.mxu0 0.0
    %3224 = vmatpush1.msra.mxu0 %v93
    %3225 = vmatprep.subr.mxu0 0.0
    %3226 = vmatpush1.msra.mxu0 0.0
    %3227 = vmatprep.subr.mxu0 0.0
    %3228 = vmatpush1.msra.mxu0 0.0
    %3229 = vmatprep.subr.mxu0 0.0
    %3230 = vmatpush1.msra.mxu0 0.0
    %3231 = vmatprep.subr.mxu0 0.0
    %3232 = vmatpush1.msra.mxu0 0.0
    %3233 = vmatprep.subr.mxu0 0.0
    %3234 = vmatpush1.msra.mxu0 0.0
    %3235 = vmatprep.subr.mxu0 0.0
    %3236 = vmatpush1.msra.mxu0 0.0
    %3237 = vmatprep.subr.mxu0 0.0
    %3238 = vmatpush1.msra.mxu0 0.0
    %3239 = vmatprep.subr.mxu0 0.0
    %3240 = vmatpush1.msra.mxu0 0.0
    %3241 = vmatprep.subr.mxu0 0.0
    %3242 = vmatpush1.msra.mxu0 0.0
    %3243 = vmatprep.subr.mxu0 0.0
    %3244 = vmatpush1.msra.mxu0 0.0
    %3245 = vmatprep.subr.mxu0 0.0
    %3246 = vmatpush1.msra.mxu0 0.0
    %3247 = vmatprep.subr.mxu0 0.0
    %3248 = vmatpush1.msra.mxu0 0.0
    %3249 = vmatprep.subr.mxu0 0.0
    %3250 = vmatpush1.msra.mxu0 0.0
    %3251 = vmatprep.subr.mxu0 0.0
    %3252 = vmatpush1.msra.mxu0 0.0
    %3253 = vmatprep.subr.mxu0 0.0
    %3254 = vmatpush1.msra.mxu0 0.0
    %3255 = vmatprep.subr.mxu0 0.0
    %3256 = vmatpush1.msra.mxu0 0.0
    %3257 = vmatprep.subr.mxu0 0.0
    %3258 = vmatpush1.msra.mxu0 0.0
    %3259 = vmatprep.subr.mxu0 0.0
    %3260 = vmatpush1.msra.mxu0 0.0
    %3261 = vmatprep.subr.mxu0 0.0
    %3262 = vmatpush1.msra.mxu0 0.0
    %3263 = vmatprep.subr.mxu0 0.0
    %3264 = vmatpush1.msra.mxu0 0.0
    %3265 = vmatprep.subr.mxu0 0.0
    %3266 = vmatpush1.msra.mxu0 0.0
    %3267 = vmatprep.subr.mxu0 0.0
    %3268 = vmatpush1.msra.mxu0 0.0
    %3269 = vmatprep.subr.mxu0 0.0
    %3270 = vmatpush1.msra.mxu0 0.0
    %3271 = vmatprep.subr.mxu0 0.0
    %3272 = vmatpush1.msra.mxu0 0.0
    %3273 = vmatprep.mubr.f32.mxu0 0.0
    %3274 = vmatmul.mubr.f32.gmra.mrb[0].mxu0 %v3204
    %v3275 = vpop.f32.mrb[0].mxu0
    %v3276 = vadd.f32 0.0, %v3275
    %v3277 = vpop.f32.mrb[0].mxu0
    %3278 = vmatprep.mubr.f32.mxu0 0.0
    %3279 = vmatmul.mubr.f32.gmra.mrb[0].mxu0 %v3207
    %v3280 = vpop.f32.mrb[0].mxu0
    %v3281 = vadd.f32 0.0, %v3280
    %v3282 = vpop.f32.mrb[0].mxu0
    %3283 = vdwg.mxu0
    %v3284 = vmul.f32 %v3276, 5.656854
    %v3285 = vmul.f32 %v3281, 5.656854
    %v3286 = vld [vmem:[%s4] sm:$0xff]
    %v3287 = vld [vmem:[%s4 + $0x8] sm:$0xff]
    %v3288 = vadd.f32 %v3284, %v3286
    %v3289 = vadd.f32 %v3285, %v3287
    %v3290 = vld [vmem:[%s6] sm:$0xff]
    %v3291 = vld [vmem:[%s6 + $0x8] sm:$0xff]
    %v3292 = vld [vmem:[%s7] sm:$0xff]
    %v3293 = vld [vmem:[%s7 + $0x8] sm:$0xff]
    %v3294 = vld [vmem:[%s13] sm:$0xff]
    %v3295 = vld [vmem:[%s13 + $0x8] sm:$0xff]
    %v3296 = vld [vmem:[%s13 + $0x10] sm:$0xff]
    %v3297 = vld [vmem:[%s13 + $0x18] sm:$0xff]
    %v3298 = vld [vmem:[%s14] sm:$0xff]
    %v3299 = vld [vmem:[%s14 + $0x8] sm:$0xff]
    %v3300 = vld [vmem:[%s14 + $0x10] sm:$0xff]
    %v3301 = vld [vmem:[%s14 + $0x18] sm:$0xff]
    %v3302 = vld [vmem:[%s15] sm:$0xff]
    %v3303 = vld [vmem:[%s15 + $0x8] sm:$0xff]
    %v3304 = vld [vmem:[%s15 + $0x10] sm:$0xff]
    %v3305 = vld [vmem:[%s15 + $0x18] sm:$0xff]
    %v3306 = vld [vmem:[%s16] sm:$0xff]
    %v3307 = vld [vmem:[%s16 + $0x8] sm:$0xff]
    %v3308 = vld [vmem:[%s16 + $0x10] sm:$0xff]
    %v3309 = vld [vmem:[%s16 + $0x18] sm:$0xff]
    %v3310 = vld [vmem:[%s17] sm:$0xff]
    %v3311 = vld [vmem:[%s17 + $0x8] sm:$0xff]
    %v3312 = vld [vmem:[%s17 + $0x10] sm:$0xff]
    %v3313 = vld [vmem:[%s17 + $0x18] sm:$0xff]
    %v3314 = vld [vmem:[%s18] sm:$0xff]
    %v3315 = vld [vmem:[%s18 + $0x8] sm:$0xff]
    %v3316 = vld [vmem:[%s18 + $0x10] sm:$0xff]
    %v3317 = vld [vmem:[%s18 + $0x18] sm:$0xff]
    %v3318 = vld [vmem:[%s19] sm:$0xff]
    %v3319 = vld [vmem:[%s19 + $0x8] sm:$0xff]
    %v3320 = vld [vmem:[%s19 + $0x10] sm:$0xff]
    %v3321 = vld [vmem:[%s19 + $0x18] sm:$0xff]
    %v3322 = vld [vmem:[%s19 + $0x20] sm:$0xff]
    %v3323 = vld [vmem:[%s19 + $0x28] sm:$0xff]
    %v3324 = vld [vmem:[%s19 + $0x30] sm:$0xff]
    %v3325 = vld [vmem:[%s19 + $0x38] sm:$0xff]
    %v3326 = vld [vmem:[%s20] sm:$0xff]
    %v3327 = vld [vmem:[%s20 + $0x8] sm:$0xff]
    %v3328 = vlaneseq
    %v3329 = vshrl.u32 %v3328, 7
    %v3330 = vsub.s32 0, %v3329
    %v3331 = vrot.slane %v3326, %v3330
    %v3333 = vsel %vm225, %v3288, 0
    %v3336 = vsel %vm225, %v3289, 0
    %3338 = vmatprep.subr.mxu0 0.0
    %3339 = vmatpush1.msra.mxu0 %v3294
    %3340 = vmatprep.subr.mxu0 0.0
    %3341 = vmatpush1.msra.mxu0 %v3295
    %3342 = vmatprep.subr.mxu0 0.0
    %3343 = vmatpush1.msra.mxu0 %v3296
    %3344 = vmatprep.subr.mxu0 0.0
    %3345 = vmatpush1.msra.mxu0 %v3297
    %3346 = vmatprep.subr.mxu0 0.0
    %3347 = vmatpush1.msra.mxu0 0.0
    %3348 = vmatprep.subr.mxu0 0.0
    %3349 = vmatpush1.msra.mxu0 0.0
    %3350 = vmatprep.subr.mxu0 0.0
    %3351 = vmatpush1.msra.mxu0 0.0
    %3352 = vmatprep.subr.mxu0 0.0
    %3353 = vmatpush1.msra.mxu0 0.0
    %3354 = vmatprep.subr.mxu0 0.0
    %3355 = vmatpush1.msra.mxu0 0.0
    %3356 = vmatprep.subr.mxu0 0.0
    %3357 = vmatpush1.msra.mxu0 0.0
    %3358 = vmatprep.subr.mxu0 0.0
    %3359 = vmatpush1.msra.mxu0 0.0
    %3360 = vmatprep.subr.mxu0 0.0
    %3361 = vmatpush1.msra.mxu0 0.0
    %3362 = vmatprep.subr.mxu0 0.0
    %3363 = vmatpush1.msra.mxu0 0.0
    %3364 = vmatprep.subr.mxu0 0.0
    %3365 = vmatpush1.msra.mxu0 0.0
    %3366 = vmatprep.subr.mxu0 0.0
    %3367 = vmatpush1.msra.mxu0 0.0
    %3368 = vmatprep.subr.mxu0 0.0
    %3369 = vmatpush1.msra.mxu0 0.0
    %3370 = vmatprep.subr.mxu0 0.0
    %3371 = vmatpush1.msra.mxu0 0.0
    %3372 = vmatprep.subr.mxu0 0.0
    %3373 = vmatpush1.msra.mxu0 0.0
    %3374 = vmatprep.subr.mxu0 0.0
    %3375 = vmatpush1.msra.mxu0 0.0
    %3376 = vmatprep.subr.mxu0 0.0
    %3377 = vmatpush1.msra.mxu0 0.0
    %3378 = vmatprep.subr.mxu0 0.0
    %3379 = vmatpush1.msra.mxu0 0.0
    %3380 = vmatprep.subr.mxu0 0.0
    %3381 = vmatpush1.msra.mxu0 0.0
    %3382 = vmatprep.subr.mxu0 0.0
    %3383 = vmatpush1.msra.mxu0 0.0
    %3384 = vmatprep.subr.mxu0 0.0
    %3385 = vmatpush1.msra.mxu0 0.0
    %3386 = vmatprep.subr.mxu0 0.0
    %3387 = vmatpush1.msra.mxu0 0.0
    %3388 = vmatprep.subr.mxu0 0.0
    %3389 = vmatpush1.msra.mxu0 0.0
    %3390 = vmatprep.subr.mxu0 0.0
    %3391 = vmatpush1.msra.mxu0 0.0
    %3392 = vmatprep.subr.mxu0 0.0
    %3393 = vmatpush1.msra.mxu0 0.0
    %3394 = vmatprep.subr.mxu0 0.0
    %3395 = vmatpush1.msra.mxu0 0.0
    %3396 = vmatprep.subr.mxu0 0.0
    %3397 = vmatpush1.msra.mxu0 0.0
    %3398 = vmatprep.subr.mxu0 0.0
    %3399 = vmatpush1.msra.mxu0 0.0
    %3400 = vmatprep.subr.mxu0 0.0
    %3401 = vmatpush1.msra.mxu0 0.0
    %3402 = vmatprep.mubr.f32.mxu0 0.0
    %3403 = vmatmul.mubr.f32.gmra.mrb[0].mxu0 %v3333
    %v3404 = vpop.f32.mrb[0].mxu0
    %v3405 = vadd.f32 %v3331, %v3404
    %v3406 = vpop.f32.mrb[0].mxu0
    %3407 = vmatprep.mubr.f32.mxu0 0.0
    %3408 = vmatmul.mubr.f32.gmra.mrb[0].mxu0 %v3336
    %v3409 = vpop.f32.mrb[0].mxu0
    %v3410 = vadd.f32 %v3331, %v3409
    %v3411 = vpop.f32.mrb[0].mxu0
    %3412 = vdwg.mxu0
    %3415 = vrot.lane.b32.xlu0 %v3405, 96
    %v3416 = vpop.permute.xlu0 %3415
    %3417 = vrot.lane.b32.xlu0 %v3410, 96
    %v3418 = vpop.permute.xlu0 %3417
    %v3419 = vsel %vm313, %v3405, 0
    %v3421 = vsel %vm313, %v3410, 0
    %v3423 = vsel %vm313, %v3416, 0
    %v3425 = vsel %vm313, %v3418, 0
    %3427 = vmatprep.subr.mxu0 0.0
    %3428 = vmatpush1.xpose.msra.mxu0 %v3423
    %3429 = vmatprep.subr.mxu0 0.0
    %3430 = vmatpush1.xpose.msra.mxu0 %v3425
    %3431 = vmatprep.subr.mxu0 0.0
    %3432 = vmatpush1.xpose.msra.mxu0 0.0
    %3433 = vmatprep.subr.mxu0 0.0
    %3434 = vmatpush1.xpose.msra.mxu0 0.0
    %3435 = vmatprep.subr.mxu0 0.0
    %3436 = vmatpush1.xpose.msra.mxu0 0.0
    %3437 = vmatprep.subr.mxu0 0.0
    %3438 = vmatpush1.xpose.msra.mxu0 0.0
    %3439 = vmatprep.subr.mxu0 0.0
    %3440 = vmatpush1.xpose.msra.mxu0 0.0
    %3441 = vmatprep.subr.mxu0 0.0
    %3442 = vmatpush1.xpose.msra.mxu0 0.0
    %3443 = vmatprep.subr.mxu0 0.0
    %3444 = vmatpush1.xpose.msra.mxu0 0.0
    %3445 = vmatprep.subr.mxu0 0.0
    %3446 = vmatpush1.xpose.msra.mxu0 0.0
    %3447 = vmatprep.subr.mxu0 0.0
    %3448 = vmatpush1.xpose.msra.mxu0 0.0
    %3449 = vmatprep.subr.mxu0 0.0
    %3450 = vmatpush1.xpose.msra.mxu0 0.0
    %3451 = vmatprep.subr.mxu0 0.0
    %3452 = vmatpush1.xpose.msra.mxu0 0.0
    %3453 = vmatprep.subr.mxu0 0.0
    %3454 = vmatpush1.xpose.msra.mxu0 0.0
    %3455 = vmatprep.subr.mxu0 0.0
    %3456 = vmatpush1.xpose.msra.mxu0 0.0
    %3457 = vmatprep.subr.mxu0 0.0
    %3458 = vmatpush1.xpose.msra.mxu0 0.0
    %3459 = vmatprep.subr.mxu0 0.0
    %3460 = vmatpush1.xpose.msra.mxu0 0.0
    %3461 = vmatprep.subr.mxu0 0.0
    %3462 = vmatpush1.xpose.msra.mxu0 0.0
    %3463 = vmatprep.subr.mxu0 0.0
    %3464 = vmatpush1.xpose.msra.mxu0 0.0
    %3465 = vmatprep.subr.mxu0 0.0
    %3466 = vmatpush1.xpose.msra.mxu0 0.0
    %3467 = vmatprep.subr.mxu0 0.0
    %3468 = vmatpush1.xpose.msra.mxu0 0.0
    %3469 = vmatprep.subr.mxu0 0.0
    %3470 = vmatpush1.xpose.msra.mxu0 0.0
    %3471 = vmatprep.subr.mxu0 0.0
    %3472 = vmatpush1.xpose.msra.mxu0 0.0
    %3473 = vmatprep.subr.mxu0 0.0
    %3474 = vmatpush1.xpose.msra.mxu0 0.0
    %3475 = vmatprep.subr.mxu0 0.0
    %3476 = vmatpush1.xpose.msra.mxu0 0.0
    %3477 = vmatprep.subr.mxu0 0.0
    %3478 = vmatpush1.xpose.msra.mxu0 0.0
    %3479 = vmatprep.subr.mxu0 0.0
    %3480 = vmatpush1.xpose.msra.mxu0 0.0
    %3481 = vmatprep.subr.mxu0 0.0
    %3482 = vmatpush1.xpose.msra.mxu0 0.0
    %3483 = vmatprep.subr.mxu0 0.0
    %3484 = vmatpush1.xpose.msra.mxu0 0.0
    %3485 = vmatprep.subr.mxu0 0.0
    %3486 = vmatpush1.xpose.msra.mxu0 0.0
    %3487 = vmatprep.subr.mxu0 0.0
    %3488 = vmatpush1.xpose.msra.mxu0 0.0
    %3489 = vmatprep.subr.mxu0 0.0
    %3490 = vmatpush1.xpose.msra.mxu0 0.0
    %3491 = vmatprep.mubr.f32.mxu0 0.0
    %3492 = vmatmul.mubr.f32.gmra.mrb[0].mxu0 %v3419
    %v3493 = vpop.f32.mrb[0].mxu0
    %v3494 = vadd.f32 %v3290, %v3493
    %v3495 = vpop.f32.mrb[0].mxu0
    %3496 = vmatprep.mubr.f32.mxu0 0.0
    %3497 = vmatmul.mubr.f32.gmra.mrb[0].mxu0 %v3421
    %v3498 = vpop.f32.mrb[0].mxu0
    %v3499 = vadd.f32 %v3291, %v3498
    %v3500 = vpop.f32.mrb[0].mxu0
    %3501 = vdwg.mxu0
    %v3502 = vsel %vm397, %v3494, -inf
    %3503 = vmax.xlane.f32.xlu0 %v3502
    %v3504 = vpop.xlane.xlu0 %3503
    %v3505 = vsel %vm397, %v3499, -inf
    %3506 = vmax.xlane.f32.xlu0 %v3505
    %v3507 = vpop.xlane.xlu0 %3506
    %v3508 = vsub.f32 %v3494, %v3504
    %v3509 = vsub.f32 %v3499, %v3507
    %v3510 = vmul.f32 %v3508, 1.442695
    %v3511 = vpow.pop %v3510
    %v3512 = vmul.f32 %v3509, 1.442695
    %v3513 = vpow.pop %v3512
    %v3514 = vsel %vm397, %v3511, 0.0
    %3515 = vadd.xlane.f32.xlu0 %v3514
    %v3516 = vpop.xlane.xlu0 %3515
    %v3517 = vsel %vm397, %v3513, 0.0
    %3518 = vadd.xlane.f32.xlu0 %v3517
    %v3519 = vpop.xlane.xlu0 %3518
    %v3520 = vrcp.pop %v3516
    %v3521 = vrcp.pop %v3519
    %v3522 = vmul.f32 %v3511, %v3520
    %v3523 = vmul.f32 %v3513, %v3521
    %3524 = vrot.lane.b32.xlu0 %v3405, 64
    %v3525 = vpop.permute.xlu0 %3524
    %3526 = vrot.lane.b32.xlu0 %v3410, 64
    %v3527 = vpop.permute.xlu0 %3526
    %v3531 = vsel %vm397, %v3522, 0
    %v3534 = vsel %vm397, %v3523, 0
    %3536 = vmatprep.subr.mxu0 0.0
    %3537 = vmatpush1.msra.mxu0 %v3525
    %3538 = vmatprep.subr.mxu0 0.0
    %3539 = vmatpush1.msra.mxu0 %v3527
    %3540 = vmatprep.subr.mxu0 0.0
    %3541 = vmatpush1.msra.mxu0 0.0
    %3542 = vmatprep.subr.mxu0 0.0
    %3543 = vmatpush1.msra.mxu0 0.0
    %3544 = vmatprep.subr.mxu0 0.0
    %3545 = vmatpush1.msra.mxu0 0.0
    %3546 = vmatprep.subr.mxu0 0.0
    %3547 = vmatpush1.msra.mxu0 0.0
    %3548 = vmatprep.subr.mxu0 0.0
    %3549 = vmatpush1.msra.mxu0 0.0
    %3550 = vmatprep.subr.mxu0 0.0
    %3551 = vmatpush1.msra.mxu0 0.0
    %3552 = vmatprep.subr.mxu0 0.0
    %3553 = vmatpush1.msra.mxu0 0.0
    %3554 = vmatprep.subr.mxu0 0.0
    %3555 = vmatpush1.msra.mxu0 0.0
    %3556 = vmatprep.subr.mxu0 0.0
    %3557 = vmatpush1.msra.mxu0 0.0
    %3558 = vmatprep.subr.mxu0 0.0
    %3559 = vmatpush1.msra.mxu0 0.0
    %3560 = vmatprep.subr.mxu0 0.0
    %3561 = vmatpush1.msra.mxu0 0.0
    %3562 = vmatprep.subr.mxu0 0.0
    %3563 = vmatpush1.msra.mxu0 0.0
    %3564 = vmatprep.subr.mxu0 0.0
    %3565 = vmatpush1.msra.mxu0 0.0
    %3566 = vmatprep.subr.mxu0 0.0
    %3567 = vmatpush1.msra.mxu0 0.0
    %3568 = vmatprep.subr.mxu0 0.0
    %3569 = vmatpush1.msra.mxu0 0.0
    %3570 = vmatprep.subr.mxu0 0.0
    %3571 = vmatpush1.msra.mxu0 0.0
    %3572 = vmatprep.subr.mxu0 0.0
    %3573 = vmatpush1.msra.mxu0 0.0
    %3574 = vmatprep.subr.mxu0 0.0
    %3575 = vmatpush1.msra.mxu0 0.0
    %3576 = vmatprep.subr.mxu0 0.0
    %3577 = vmatpush1.msra.mxu0 0.0
    %3578 = vmatprep.subr.mxu0 0.0
    %3579 = vmatpush1.msra.mxu0 0.0
    %3580 = vmatprep.subr.mxu0 0.0
    %3581 = vmatpush1.msra.mxu0 0.0
    %3582 = vmatprep.subr.mxu0 0.0
    %3583 = vmatpush1.msra.mxu0 0.0
    %3584 = vmatprep.subr.mxu0 0.0
    %3585 = vmatpush1.msra.mxu0 0.0
    %3586 = vmatprep.subr.mxu0 0.0
    %3587 = vmatpush1.msra.mxu0 0.0
    %3588 = vmatprep.subr.mxu0 0.0
    %3589 = vmatpush1.msra.mxu0 0.0
    %3590 = vmatprep.subr.mxu0 0.0
    %3591 = vmatpush1.msra.mxu0 0.0
    %3592 = vmatprep.subr.mxu0 0.0
    %3593 = vmatpush1.msra.mxu0 0.0
    %3594 = vmatprep.subr.mxu0 0.0
    %3595 = vmatpush1.msra.mxu0 0.0
    %3596 = vmatprep.subr.mxu0 0.0
    %3597 = vmatpush1.msra.mxu0 0.0
    %3598 = vmatprep.subr.mxu0 0.0
    %3599 = vmatpush1.msra.mxu0 0.0
    %3600 = vmatprep.mubr.f32.mxu0 0.0
    %3601 = vmatmul.mubr.f32.gmra.mrb[0].mxu0 %v3531
    %v3602 = vpop.f32.mrb[0].mxu0
    %v3603 = vadd.f32 0.0, %v3602
    %v3604 = vpop.f32.mrb[0].mxu0
    %3605 = vmatprep.mubr.f32.mxu0 0.0
    %3606 = vmatmul.mubr.f32.gmra.mrb[0].mxu0 %v3534
    %v3607 = vpop.f32.mrb[0].mxu0
    %v3608 = vadd.f32 0.0, %v3607
    %v3609 = vpop.f32.mrb[0].mxu0
    %3610 = vdwg.mxu0
    %3611 = vrot.lane.b32.xlu0 %v3405, 120
    %v3612 = vpop.permute.xlu0 %3611
    %3613 = vrot.lane.b32.xlu0 %v3410, 120
    %v3614 = vpop.permute.xlu0 %3613
    %3615 = vrot.lane.b32.xlu0 %v3405, 88
    %v3616 = vpop.permute.xlu0 %3615
    %3617 = vrot.lane.b32.xlu0 %v3410, 88
    %v3618 = vpop.permute.xlu0 %3617
    %v3619 = vsel %vm313, %v3612, 0
    %v3621 = vsel %vm313, %v3614, 0
    %v3623 = vsel %vm313, %v3616, 0
    %v3625 = vsel %vm313, %v3618, 0
    %3627 = vmatprep.subr.mxu0 0.0
    %3628 = vmatpush1.xpose.msra.mxu0 %v3623
    %3629 = vmatprep.subr.mxu0 0.0
    %3630 = vmatpush1.xpose.msra.mxu0 %v3625
    %3631 = vmatprep.subr.mxu0 0.0
    %3632 = vmatpush1.xpose.msra.mxu0 0.0
    %3633 = vmatprep.subr.mxu0 0.0
    %3634 = vmatpush1.xpose.msra.mxu0 0.0
    %3635 = vmatprep.subr.mxu0 0.0
    %3636 = vmatpush1.xpose.msra.mxu0 0.0
    %3637 = vmatprep.subr.mxu0 0.0
    %3638 = vmatpush1.xpose.msra.mxu0 0.0
    %3639 = vmatprep.subr.mxu0 0.0
    %3640 = vmatpush1.xpose.msra.mxu0 0.0
    %3641 = vmatprep.subr.mxu0 0.0
    %3642 = vmatpush1.xpose.msra.mxu0 0.0
    %3643 = vmatprep.subr.mxu0 0.0
    %3644 = vmatpush1.xpose.msra.mxu0 0.0
    %3645 = vmatprep.subr.mxu0 0.0
    %3646 = vmatpush1.xpose.msra.mxu0 0.0
    %3647 = vmatprep.subr.mxu0 0.0
    %3648 = vmatpush1.xpose.msra.mxu0 0.0
    %3649 = vmatprep.subr.mxu0 0.0
    %3650 = vmatpush1.xpose.msra.mxu0 0.0
    %3651 = vmatprep.subr.mxu0 0.0
    %3652 = vmatpush1.xpose.msra.mxu0 0.0
    %3653 = vmatprep.subr.mxu0 0.0
    %3654 = vmatpush1.xpose.msra.mxu0 0.0
    %3655 = vmatprep.subr.mxu0 0.0
    %3656 = vmatpush1.xpose.msra.mxu0 0.0
    %3657 = vmatprep.subr.mxu0 0.0
    %3658 = vmatpush1.xpose.msra.mxu0 0.0
    %3659 = vmatprep.subr.mxu0 0.0
    %3660 = vmatpush1.xpose.msra.mxu0 0.0
    %3661 = vmatprep.subr.mxu0 0.0
    %3662 = vmatpush1.xpose.msra.mxu0 0.0
    %3663 = vmatprep.subr.mxu0 0.0
    %3664 = vmatpush1.xpose.msra.mxu0 0.0
    %3665 = vmatprep.subr.mxu0 0.0
    %3666 = vmatpush1.xpose.msra.mxu0 0.0
    %3667 = vmatprep.subr.mxu0 0.0
    %3668 = vmatpush1.xpose.msra.mxu0 0.0
    %3669 = vmatprep.subr.mxu0 0.0
    %3670 = vmatpush1.xpose.msra.mxu0 0.0
    %3671 = vmatprep.subr.mxu0 0.0
    %3672 = vmatpush1.xpose.msra.mxu0 0.0
    %3673 = vmatprep.subr.mxu0 0.0
    %3674 = vmatpush1.xpose.msra.mxu0 0.0
    %3675 = vmatprep.subr.mxu0 0.0
    %3676 = vmatpush1.xpose.msra.mxu0 0.0
    %3677 = vmatprep.subr.mxu0 0.0
    %3678 = vmatpush1.xpose.msra.mxu0 0.0
    %3679 = vmatprep.subr.mxu0 0.0
    %3680 = vmatpush1.xpose.msra.mxu0 0.0
    %3681 = vmatprep.subr.mxu0 0.0
    %3682 = vmatpush1.xpose.msra.mxu0 0.0
    %3683 = vmatprep.subr.mxu0 0.0
    %3684 = vmatpush1.xpose.msra.mxu0 0.0
    %3685 = vmatprep.subr.mxu0 0.0
    %3686 = vmatpush1.xpose.msra.mxu0 0.0
    %3687 = vmatprep.subr.mxu0 0.0
    %3688 = vmatpush1.xpose.msra.mxu0 0.0
    %3689 = vmatprep.subr.mxu0 0.0
    %3690 = vmatpush1.xpose.msra.mxu0 0.0
    %3691 = vmatprep.mubr.f32.mxu0 0.0
    %3692 = vmatmul.mubr.f32.gmra.mrb[0].mxu0 %v3619
    %v3693 = vpop.f32.mrb[0].mxu0
    %v3694 = vadd.f32 %v3290, %v3693
    %v3695 = vpop.f32.mrb[0].mxu0
    %3696 = vmatprep.mubr.f32.mxu0 0.0
    %3697 = vmatmul.mubr.f32.gmra.mrb[0].mxu0 %v3621
    %v3698 = vpop.f32.mrb[0].mxu0
    %v3699 = vadd.f32 %v3291, %v3698
    %v3700 = vpop.f32.mrb[0].mxu0
    %3701 = vdwg.mxu0
    %v3702 = vsel %vm397, %v3694, -inf
    %3703 = vmax.xlane.f32.xlu0 %v3702
    %v3704 = vpop.xlane.xlu0 %3703
    %v3705 = vsel %vm397, %v3699, -inf
    %3706 = vmax.xlane.f32.xlu0 %v3705
    %v3707 = vpop.xlane.xlu0 %3706
    %v3708 = vsub.f32 %v3694, %v3704
    %v3709 = vsub.f32 %v3699, %v3707
    %v3710 = vmul.f32 %v3708, 1.442695
    %v3711 = vpow.pop %v3710
    %v3712 = vmul.f32 %v3709, 1.442695
    %v3713 = vpow.pop %v3712
    %v3714 = vsel %vm397, %v3711, 0.0
    %3715 = vadd.xlane.f32.xlu0 %v3714
    %v3716 = vpop.xlane.xlu0 %3715
    %v3717 = vsel %vm397, %v3713, 0.0
    %3718 = vadd.xlane.f32.xlu0 %v3717
    %v3719 = vpop.xlane.xlu0 %3718
    %v3720 = vrcp.pop %v3716
    %v3721 = vrcp.pop %v3719
    %v3722 = vmul.f32 %v3711, %v3720
    %v3723 = vmul.f32 %v3713, %v3721
    %3724 = vrot.lane.b32.xlu0 %v3405, 56
    %v3725 = vpop.permute.xlu0 %3724
    %3726 = vrot.lane.b32.xlu0 %v3410, 56
    %v3727 = vpop.permute.xlu0 %3726
    %v3731 = vsel %vm397, %v3722, 0
    %v3734 = vsel %vm397, %v3723, 0
    %3736 = vmatprep.subr.mxu0 0.0
    %3737 = vmatpush1.msra.mxu0 %v3725
    %3738 = vmatprep.subr.mxu0 0.0
    %3739 = vmatpush1.msra.mxu0 %v3727
    %3740 = vmatprep.subr.mxu0 0.0
    %3741 = vmatpush1.msra.mxu0 0.0
    %3742 = vmatprep.subr.mxu0 0.0
    %3743 = vmatpush1.msra.mxu0 0.0
    %3744 = vmatprep.subr.mxu0 0.0
    %3745 = vmatpush1.msra.mxu0 0.0
    %3746 = vmatprep.subr.mxu0 0.0
    %3747 = vmatpush1.msra.mxu0 0.0
    %3748 = vmatprep.subr.mxu0 0.0
    %3749 = vmatpush1.msra.mxu0 0.0
    %3750 = vmatprep.subr.mxu0 0.0
    %3751 = vmatpush1.msra.mxu0 0.0
    %3752 = vmatprep.subr.mxu0 0.0
    %3753 = vmatpush1.msra.mxu0 0.0
    %3754 = vmatprep.subr.mxu0 0.0
    %3755 = vmatpush1.msra.mxu0 0.0
    %3756 = vmatprep.subr.mxu0 0.0
    %3757 = vmatpush1.msra.mxu0 0.0
    %3758 = vmatprep.subr.mxu0 0.0
    %3759 = vmatpush1.msra.mxu0 0.0
    %3760 = vmatprep.subr.mxu0 0.0
    %3761 = vmatpush1.msra.mxu0 0.0
    %3762 = vmatprep.subr.mxu0 0.0
    %3763 = vmatpush1.msra.mxu0 0.0
    %3764 = vmatprep.subr.mxu0 0.0
    %3765 = vmatpush1.msra.mxu0 0.0
    %3766 = vmatprep.subr.mxu0 0.0
    %3767 = vmatpush1.msra.mxu0 0.0
    %3768 = vmatprep.subr.mxu0 0.0
    %3769 = vmatpush1.msra.mxu0 0.0
    %3770 = vmatprep.subr.mxu0 0.0
    %3771 = vmatpush1.msra.mxu0 0.0
    %3772 = vmatprep.subr.mxu0 0.0
    %3773 = vmatpush1.msra.mxu0 0.0
    %3774 = vmatprep.subr.mxu0 0.0
    %3775 = vmatpush1.msra.mxu0 0.0
    %3776 = vmatprep.subr.mxu0 0.0
    %3777 = vmatpush1.msra.mxu0 0.0
    %3778 = vmatprep.subr.mxu0 0.0
    %3779 = vmatpush1.msra.mxu0 0.0
    %3780 = vmatprep.subr.mxu0 0.0
    %3781 = vmatpush1.msra.mxu0 0.0
    %3782 = vmatprep.subr.mxu0 0.0
    %3783 = vmatpush1.msra.mxu0 0.0
    %3784 = vmatprep.subr.mxu0 0.0
    %3785 = vmatpush1.msra.mxu0 0.0
    %3786 = vmatprep.subr.mxu0 0.0
    %3787 = vmatpush1.msra.mxu0 0.0
    %3788 = vmatprep.subr.mxu0 0.0
    %3789 = vmatpush1.msra.mxu0 0.0
    %3790 = vmatprep.subr.mxu0 0.0
    %3791 = vmatpush1.msra.mxu0 0.0
    %3792 = vmatprep.subr.mxu0 0.0
    %3793 = vmatpush1.msra.mxu0 0.0
    %3794 = vmatprep.subr.mxu0 0.0
    %3795 = vmatpush1.msra.mxu0 0.0
    %3796 = vmatprep.subr.mxu0 0.0
    %3797 = vmatpush1.msra.mxu0 0.0
    %3798 = vmatprep.subr.mxu0 0.0
    %3799 = vmatpush1.msra.mxu0 0.0
    %3800 = vmatprep.mubr.f32.mxu0 0.0
    %3801 = vmatmul.mubr.f32.gmra.mrb[0].mxu0 %v3731
    %v3802 = vpop.f32.mrb[0].mxu0
    %v3803 = vadd.f32 0.0, %v3802
    %v3804 = vpop.f32.mrb[0].mxu0
    %3805 = vmatprep.mubr.f32.mxu0 0.0
    %3806 = vmatmul.mubr.f32.gmra.mrb[0].mxu0 %v3734
    %v3807 = vpop.f32.mrb[0].mxu0
    %v3808 = vadd.f32 0.0, %v3807
    %v3809 = vpop.f32.mrb[0].mxu0
    %3810 = vdwg.mxu0
    %v3812 = vsel %vm313, %v3803, 0
    %v3815 = vsel %vm313, %v3808, 0
    %3817 = vmatprep.subr.mxu0 0.0
    %3818 = vmatpush1.msra.mxu0 %v3299
    %3819 = vmatprep.subr.mxu0 0.0
    %3820 = vmatpush1.msra.mxu0 0.0
    %3821 = vmatprep.subr.mxu0 0.0
    %3822 = vmatpush1.msra.mxu0 0.0
    %3823 = vmatprep.subr.mxu0 0.0
    %3824 = vmatpush1.msra.mxu0 0.0
    %3825 = vmatprep.subr.mxu0 0.0
    %3826 = vmatpush1.msra.mxu0 0.0
    %3827 = vmatprep.subr.mxu0 0.0
    %3828 = vmatpush1.msra.mxu0 0.0
    %3829 = vmatprep.subr.mxu0 0.0
    %3830 = vmatpush1.msra.mxu0 0.0
    %3831 = vmatprep.subr.mxu0 0.0
    %3832 = vmatpush1.msra.mxu0 0.0
    %3833 = vmatprep.subr.mxu0 0.0
    %3834 = vmatpush1.msra.mxu0 0.0
    %3835 = vmatprep.subr.mxu0 0.0
    %3836 = vmatpush1.msra.mxu0 0.0
    %3837 = vmatprep.subr.mxu0 0.0
    %3838 = vmatpush1.msra.mxu0 0.0
    %3839 = vmatprep.subr.mxu0 0.0
    %3840 = vmatpush1.msra.mxu0 0.0
    %3841 = vmatprep.subr.mxu0 0.0
    %3842 = vmatpush1.msra.mxu0 0.0
    %3843 = vmatprep.subr.mxu0 0.0
    %3844 = vmatpush1.msra.mxu0 0.0
    %3845 = vmatprep.subr.mxu0 0.0
    %3846 = vmatpush1.msra.mxu0 0.0
    %3847 = vmatprep.subr.mxu0 0.0
    %3848 = vmatpush1.msra.mxu0 0.0
    %3849 = vmatprep.subr.mxu0 0.0
    %3850 = vmatpush1.msra.mxu0 0.0
    %3851 = vmatprep.subr.mxu0 0.0
    %3852 = vmatpush1.msra.mxu0 0.0
    %3853 = vmatprep.subr.mxu0 0.0
    %3854 = vmatpush1.msra.mxu0 0.0
    %3855 = vmatprep.subr.mxu0 0.0
    %3856 = vmatpush1.msra.mxu0 0.0
    %3857 = vmatprep.subr.mxu0 0.0
    %3858 = vmatpush1.msra.mxu0 0.0
    %3859 = vmatprep.subr.mxu0 0.0
    %3860 = vmatpush1.msra.mxu0 0.0
    %3861 = vmatprep.subr.mxu0 0.0
    %3862 = vmatpush1.msra.mxu0 0.0
    %3863 = vmatprep.subr.mxu0 0.0
    %3864 = vmatpush1.msra.mxu0 0.0
    %3865 = vmatprep.subr.mxu0 0.0
    %3866 = vmatpush1.msra.mxu0 0.0
    %3867 = vmatprep.subr.mxu0 0.0
    %3868 = vmatpush1.msra.mxu0 0.0
    %3869 = vmatprep.subr.mxu0 0.0
    %3870 = vmatpush1.msra.mxu0 0.0
    %3871 = vmatprep.subr.mxu0 0.0
    %3872 = vmatpush1.msra.mxu0 0.0
    %3873 = vmatprep.subr.mxu0 0.0
    %3874 = vmatpush1.msra.mxu0 0.0
    %3875 = vmatprep.subr.mxu0 0.0
    %3876 = vmatpush1.msra.mxu0 0.0
    %3877 = vmatprep.subr.mxu0 0.0
    %3878 = vmatpush1.msra.mxu0 0.0
    %3879 = vmatprep.subr.mxu0 0.0
    %3880 = vmatpush1.msra.mxu0 0.0
    %3881 = vmatprep.mubr.f32.mxu0 0.0
    %3882 = vmatmul.mubr.f32.gmra.mrb[0].mxu0 %v3812
    %v3883 = vpop.f32.mrb[0].mxu0
    %v3884 = vadd.f32 0.0, %v3883
    %v3885 = vpop.f32.mrb[0].mxu0
    %3886 = vmatprep.mubr.f32.mxu0 0.0
    %3887 = vmatmul.mubr.f32.gmra.mrb[0].mxu0 %v3815
    %v3888 = vpop.f32.mrb[0].mxu0
    %v3889 = vadd.f32 0.0, %v3888
    %v3890 = vpop.f32.mrb[0].mxu0
    %3891 = vdwg.mxu0
    %v3893 = vsel %vm313, %v3603, 0
    %v3896 = vsel %vm313, %v3608, 0
    %3898 = vmatprep.subr.mxu0 0.0
    %3899 = vmatpush1.msra.mxu0 %v3298
    %3900 = vmatprep.subr.mxu0 0.0
    %3901 = vmatpush1.msra.mxu0 0.0
    %3902 = vmatprep.subr.mxu0 0.0
    %3903 = vmatpush1.msra.mxu0 0.0
    %3904 = vmatprep.subr.mxu0 0.0
    %3905 = vmatpush1.msra.mxu0 0.0
    %3906 = vmatprep.subr.mxu0 0.0
    %3907 = vmatpush1.msra.mxu0 0.0
    %3908 = vmatprep.subr.mxu0 0.0
    %3909 = vmatpush1.msra.mxu0 0.0
    %3910 = vmatprep.subr.mxu0 0.0
    %3911 = vmatpush1.msra.mxu0 0.0
    %3912 = vmatprep.subr.mxu0 0.0
    %3913 = vmatpush1.msra.mxu0 0.0
    %3914 = vmatprep.subr.mxu0 0.0
    %3915 = vmatpush1.msra.mxu0 0.0
    %3916 = vmatprep.subr.mxu0 0.0
    %3917 = vmatpush1.msra.mxu0 0.0
    %3918 = vmatprep.subr.mxu0 0.0
    %3919 = vmatpush1.msra.mxu0 0.0
    %3920 = vmatprep.subr.mxu0 0.0
    %3921 = vmatpush1.msra.mxu0 0.0
    %3922 = vmatprep.subr.mxu0 0.0
    %3923 = vmatpush1.msra.mxu0 0.0
    %3924 = vmatprep.subr.mxu0 0.0
    %3925 = vmatpush1.msra.mxu0 0.0
    %3926 = vmatprep.subr.mxu0 0.0
    %3927 = vmatpush1.msra.mxu0 0.0
    %3928 = vmatprep.subr.mxu0 0.0
    %3929 = vmatpush1.msra.mxu0 0.0
    %3930 = vmatprep.subr.mxu0 0.0
    %3931 = vmatpush1.msra.mxu0 0.0
    %3932 = vmatprep.subr.mxu0 0.0
    %3933 = vmatpush1.msra.mxu0 0.0
    %3934 = vmatprep.subr.mxu0 0.0
    %3935 = vmatpush1.msra.mxu0 0.0
    %3936 = vmatprep.subr.mxu0 0.0
    %3937 = vmatpush1.msra.mxu0 0.0
    %3938 = vmatprep.subr.mxu0 0.0
    %3939 = vmatpush1.msra.mxu0 0.0
    %3940 = vmatprep.subr.mxu0 0.0
    %3941 = vmatpush1.msra.mxu0 0.0
    %3942 = vmatprep.subr.mxu0 0.0
    %3943 = vmatpush1.msra.mxu0 0.0
    %3944 = vmatprep.subr.mxu0 0.0
    %3945 = vmatpush1.msra.mxu0 0.0
    %3946 = vmatprep.subr.mxu0 0.0
    %3947 = vmatpush1.msra.mxu0 0.0
    %3948 = vmatprep.subr.mxu0 0.0
    %3949 = vmatpush1.msra.mxu0 0.0
    %3950 = vmatprep.subr.mxu0 0.0
    %3951 = vmatpush1.msra.mxu0 0.0
    %3952 = vmatprep.subr.mxu0 0.0
    %3953 = vmatpush1.msra.mxu0 0.0
    %3954 = vmatprep.subr.mxu0 0.0
    %3955 = vmatpush1.msra.mxu0 0.0
    %3956 = vmatprep.subr.mxu0 0.0
    %3957 = vmatpush1.msra.mxu0 0.0
    %3958 = vmatprep.subr.mxu0 0.0
    %3959 = vmatpush1.msra.mxu0 0.0
    %3960 = vmatprep.subr.mxu0 0.0
    %3961 = vmatpush1.msra.mxu0 0.0
    %3962 = vmatprep.mubr.f32.mxu0 0.0
    %3963 = vmatmul.mubr.f32.gmra.mrb[0].mxu0 %v3893
    %v3964 = vpop.f32.mrb[0].mxu0
    %v3965 = vadd.f32 %v3884, %v3964
    %v3966 = vpop.f32.mrb[0].mxu0
    %3967 = vmatprep.mubr.f32.mxu0 0.0
    %3968 = vmatmul.mubr.f32.gmra.mrb[0].mxu0 %v3896
    %v3969 = vpop.f32.mrb[0].mxu0
    %v3970 = vadd.f32 %v3889, %v3969
    %v3971 = vpop.f32.mrb[0].mxu0
    %3972 = vdwg.mxu0
    %3973 = vrot.lane.b32.xlu0 %v3405, 112
    %v3974 = vpop.permute.xlu0 %3973
    %3975 = vrot.lane.b32.xlu0 %v3410, 112
    %v3976 = vpop.permute.xlu0 %3975
    %3977 = vrot.lane.b32.xlu0 %v3405, 80
    %v3978 = vpop.permute.xlu0 %3977
    %3979 = vrot.lane.b32.xlu0 %v3410, 80
    %v3980 = vpop.permute.xlu0 %3979
    %v3981 = vsel %vm313, %v3974, 0
    %v3983 = vsel %vm313, %v3976, 0
    %v3985 = vsel %vm313, %v3978, 0
    %v3987 = vsel %vm313, %v3980, 0
    %3989 = vmatprep.subr.mxu0 0.0
    %3990 = vmatpush1.xpose.msra.mxu0 %v3985
    %3991 = vmatprep.subr.mxu0 0.0
    %3992 = vmatpush1.xpose.msra.mxu0 %v3987
    %3993 = vmatprep.subr.mxu0 0.0
    %3994 = vmatpush1.xpose.msra.mxu0 0.0
    %3995 = vmatprep.subr.mxu0 0.0
    %3996 = vmatpush1.xpose.msra.mxu0 0.0
    %3997 = vmatprep.subr.mxu0 0.0
    %3998 = vmatpush1.xpose.msra.mxu0 0.0
    %3999 = vmatprep.subr.mxu0 0.0
    %4000 = vmatpush1.xpose.msra.mxu0 0.0
    %4001 = vmatprep.subr.mxu0 0.0
    %4002 = vmatpush1.xpose.msra.mxu0 0.0
    %4003 = vmatprep.subr.mxu0 0.0
    %4004 = vmatpush1.xpose.msra.mxu0 0.0
    %4005 = vmatprep.subr.mxu0 0.0
    %4006 = vmatpush1.xpose.msra.mxu0 0.0
    %4007 = vmatprep.subr.mxu0 0.0
    %4008 = vmatpush1.xpose.msra.mxu0 0.0
    %4009 = vmatprep.subr.mxu0 0.0
    %4010 = vmatpush1.xpose.msra.mxu0 0.0
    %4011 = vmatprep.subr.mxu0 0.0
    %4012 = vmatpush1.xpose.msra.mxu0 0.0
    %4013 = vmatprep.subr.mxu0 0.0
    %4014 = vmatpush1.xpose.msra.mxu0 0.0
    %4015 = vmatprep.subr.mxu0 0.0
    %4016 = vmatpush1.xpose.msra.mxu0 0.0
    %4017 = vmatprep.subr.mxu0 0.0
    %4018 = vmatpush1.xpose.msra.mxu0 0.0
    %4019 = vmatprep.subr.mxu0 0.0
    %4020 = vmatpush1.xpose.msra.mxu0 0.0
    %4021 = vmatprep.subr.mxu0 0.0
    %4022 = vmatpush1.xpose.msra.mxu0 0.0
    %4023 = vmatprep.subr.mxu0 0.0
    %4024 = vmatpush1.xpose.msra.mxu0 0.0
    %4025 = vmatprep.subr.mxu0 0.0
    %4026 = vmatpush1.xpose.msra.mxu0 0.0
    %4027 = vmatprep.subr.mxu0 0.0
    %4028 = vmatpush1.xpose.msra.mxu0 0.0
    %4029 = vmatprep.subr.mxu0 0.0
    %4030 = vmatpush1.xpose.msra.mxu0 0.0
    %4031 = vmatprep.subr.mxu0 0.0
    %4032 = vmatpush1.xpose.msra.mxu0 0.0
    %4033 = vmatprep.subr.mxu0 0.0
    %4034 = vmatpush1.xpose.msra.mxu0 0.0
    %4035 = vmatprep.subr.mxu0 0.0
    %4036 = vmatpush1.xpose.msra.mxu0 0.0
    %4037 = vmatprep.subr.mxu0 0.0
    %4038 = vmatpush1.xpose.msra.mxu0 0.0
    %4039 = vmatprep.subr.mxu0 0.0
    %4040 = vmatpush1.xpose.msra.mxu0 0.0
    %4041 = vmatprep.subr.mxu0 0.0
    %4042 = vmatpush1.xpose.msra.mxu0 0.0
    %4043 = vmatprep.subr.mxu0 0.0
    %4044 = vmatpush1.xpose.msra.mxu0 0.0
    %4045 = vmatprep.subr.mxu0 0.0
    %4046 = vmatpush1.xpose.msra.mxu0 0.0
    %4047 = vmatprep.subr.mxu0 0.0
    %4048 = vmatpush1.xpose.msra.mxu0 0.0
    %4049 = vmatprep.subr.mxu0 0.0
    %4050 = vmatpush1.xpose.msra.mxu0 0.0
    %4051 = vmatprep.subr.mxu0 0.0
    %4052 = vmatpush1.xpose.msra.mxu0 0.0
    %4053 = vmatprep.mubr.f32.mxu0 0.0
    %4054 = vmatmul.mubr.f32.gmra.mrb[0].mxu0 %v3981
    %v4055 = vpop.f32.mrb[0].mxu0
    %v4056 = vadd.f32 %v3290, %v4055
    %v4057 = vpop.f32.mrb[0].mxu0
    %4058 = vmatprep.mubr.f32.mxu0 0.0
    %4059 = vmatmul.mubr.f32.gmra.mrb[0].mxu0 %v3983
    %v4060 = vpop.f32.mrb[0].mxu0
    %v4061 = vadd.f32 %v3291, %v4060
    %v4062 = vpop.f32.mrb[0].mxu0
    %4063 = vdwg.mxu0
    %v4064 = vsel %vm397, %v4056, -inf
    %4065 = vmax.xlane.f32.xlu0 %v4064
    %v4066 = vpop.xlane.xlu0 %4065
    %v4067 = vsel %vm397, %v4061, -inf
    %4068 = vmax.xlane.f32.xlu0 %v4067
    %v4069 = vpop.xlane.xlu0 %4068
    %v4070 = vsub.f32 %v4056, %v4066
    %v4071 = vsub.f32 %v4061, %v4069
    %v4072 = vmul.f32 %v4070, 1.442695
    %v4073 = vpow.pop %v4072
    %v4074 = vmul.f32 %v4071, 1.442695
    %v4075 = vpow.pop %v4074
    %v4076 = vsel %vm397, %v4073, 0.0
    %4077 = vadd.xlane.f32.xlu0 %v4076
    %v4078 = vpop.xlane.xlu0 %4077
    %v4079 = vsel %vm397, %v4075, 0.0
    %4080 = vadd.xlane.f32.xlu0 %v4079
    %v4081 = vpop.xlane.xlu0 %4080
    %v4082 = vrcp.pop %v4078
    %v4083 = vrcp.pop %v4081
    %v4084 = vmul.f32 %v4073, %v4082
    %v4085 = vmul.f32 %v4075, %v4083
    %4086 = vrot.lane.b32.xlu0 %v3405, 48
    %v4087 = vpop.permute.xlu0 %4086
    %4088 = vrot.lane.b32.xlu0 %v3410, 48
    %v4089 = vpop.permute.xlu0 %4088
    %v4093 = vsel %vm397, %v4084, 0
    %v4096 = vsel %vm397, %v4085, 0
    %4098 = vmatprep.subr.mxu0 0.0
    %4099 = vmatpush1.msra.mxu0 %v4087
    %4100 = vmatprep.subr.mxu0 0.0
    %4101 = vmatpush1.msra.mxu0 %v4089
    %4102 = vmatprep.subr.mxu0 0.0
    %4103 = vmatpush1.msra.mxu0 0.0
    %4104 = vmatprep.subr.mxu0 0.0
    %4105 = vmatpush1.msra.mxu0 0.0
    %4106 = vmatprep.subr.mxu0 0.0
    %4107 = vmatpush1.msra.mxu0 0.0
    %4108 = vmatprep.subr.mxu0 0.0
    %4109 = vmatpush1.msra.mxu0 0.0
    %4110 = vmatprep.subr.mxu0 0.0
    %4111 = vmatpush1.msra.mxu0 0.0
    %4112 = vmatprep.subr.mxu0 0.0
    %4113 = vmatpush1.msra.mxu0 0.0
    %4114 = vmatprep.subr.mxu0 0.0
    %4115 = vmatpush1.msra.mxu0 0.0
    %4116 = vmatprep.subr.mxu0 0.0
    %4117 = vmatpush1.msra.mxu0 0.0
    %4118 = vmatprep.subr.mxu0 0.0
    %4119 = vmatpush1.msra.mxu0 0.0
    %4120 = vmatprep.subr.mxu0 0.0
    %4121 = vmatpush1.msra.mxu0 0.0
    %4122 = vmatprep.subr.mxu0 0.0
    %4123 = vmatpush1.msra.mxu0 0.0
    %4124 = vmatprep.subr.mxu0 0.0
    %4125 = vmatpush1.msra.mxu0 0.0
    %4126 = vmatprep.subr.mxu0 0.0
    %4127 = vmatpush1.msra.mxu0 0.0
    %4128 = vmatprep.subr.mxu0 0.0
    %4129 = vmatpush1.msra.mxu0 0.0
    %4130 = vmatprep.subr.mxu0 0.0
    %4131 = vmatpush1.msra.mxu0 0.0
    %4132 = vmatprep.subr.mxu0 0.0
    %4133 = vmatpush1.msra.mxu0 0.0
    %4134 = vmatprep.subr.mxu0 0.0
    %4135 = vmatpush1.msra.mxu0 0.0
    %4136 = vmatprep.subr.mxu0 0.0
    %4137 = vmatpush1.msra.mxu0 0.0
    %4138 = vmatprep.subr.mxu0 0.0
    %4139 = vmatpush1.msra.mxu0 0.0
    %4140 = vmatprep.subr.mxu0 0.0
    %4141 = vmatpush1.msra.mxu0 0.0
    %4142 = vmatprep.subr.mxu0 0.0
    %4143 = vmatpush1.msra.mxu0 0.0
    %4144 = vmatprep.subr.mxu0 0.0
    %4145 = vmatpush1.msra.mxu0 0.0
    %4146 = vmatprep.subr.mxu0 0.0
    %4147 = vmatpush1.msra.mxu0 0.0
    %4148 = vmatprep.subr.mxu0 0.0
    %4149 = vmatpush1.msra.mxu0 0.0
    %4150 = vmatprep.subr.mxu0 0.0
    %4151 = vmatpush1.msra.mxu0 0.0
    %4152 = vmatprep.subr.mxu0 0.0
    %4153 = vmatpush1.msra.mxu0 0.0
    %4154 = vmatprep.subr.mxu0 0.0
    %4155 = vmatpush1.msra.mxu0 0.0
    %4156 = vmatprep.subr.mxu0 0.0
    %4157 = vmatpush1.msra.mxu0 0.0
    %4158 = vmatprep.subr.mxu0 0.0
    %4159 = vmatpush1.msra.mxu0 0.0
    %4160 = vmatprep.subr.mxu0 0.0
    %4161 = vmatpush1.msra.mxu0 0.0
    %4162 = vmatprep.mubr.f32.mxu0 0.0
    %4163 = vmatmul.mubr.f32.gmra.mrb[0].mxu0 %v4093
    %v4164 = vpop.f32.mrb[0].mxu0
    %v4165 = vadd.f32 0.0, %v4164
    %v4166 = vpop.f32.mrb[0].mxu0
    %4167 = vmatprep.mubr.f32.mxu0 0.0
    %4168 = vmatmul.mubr.f32.gmra.mrb[0].mxu0 %v4096
    %v4169 = vpop.f32.mrb[0].mxu0
    %v4170 = vadd.f32 0.0, %v4169
    %v4171 = vpop.f32.mrb[0].mxu0
    %4172 = vdwg.mxu0
    %v4174 = vsel %vm313, %v4165, 0
    %v4177 = vsel %vm313, %v4170, 0
    %4179 = vmatprep.subr.mxu0 0.0
    %4180 = vmatpush1.msra.mxu0 %v3300
    %4181 = vmatprep.subr.mxu0 0.0
    %4182 = vmatpush1.msra.mxu0 0.0
    %4183 = vmatprep.subr.mxu0 0.0
    %4184 = vmatpush1.msra.mxu0 0.0
    %4185 = vmatprep.subr.mxu0 0.0
    %4186 = vmatpush1.msra.mxu0 0.0
    %4187 = vmatprep.subr.mxu0 0.0
    %4188 = vmatpush1.msra.mxu0 0.0
    %4189 = vmatprep.subr.mxu0 0.0
    %4190 = vmatpush1.msra.mxu0 0.0
    %4191 = vmatprep.subr.mxu0 0.0
    %4192 = vmatpush1.msra.mxu0 0.0
    %4193 = vmatprep.subr.mxu0 0.0
    %4194 = vmatpush1.msra.mxu0 0.0
    %4195 = vmatprep.subr.mxu0 0.0
    %4196 = vmatpush1.msra.mxu0 0.0
    %4197 = vmatprep.subr.mxu0 0.0
    %4198 = vmatpush1.msra.mxu0 0.0
    %4199 = vmatprep.subr.mxu0 0.0
    %4200 = vmatpush1.msra.mxu0 0.0
    %4201 = vmatprep.subr.mxu0 0.0
    %4202 = vmatpush1.msra.mxu0 0.0
    %4203 = vmatprep.subr.mxu0 0.0
    %4204 = vmatpush1.msra.mxu0 0.0
    %4205 = vmatprep.subr.mxu0 0.0
    %4206 = vmatpush1.msra.mxu0 0.0
    %4207 = vmatprep.subr.mxu0 0.0
    %4208 = vmatpush1.msra.mxu0 0.0
    %4209 = vmatprep.subr.mxu0 0.0
    %4210 = vmatpush1.msra.mxu0 0.0
    %4211 = vmatprep.subr.mxu0 0.0
    %4212 = vmatpush1.msra.mxu0 0.0
    %4213 = vmatprep.subr.mxu0 0.0
    %4214 = vmatpush1.msra.mxu0 0.0
    %4215 = vmatprep.subr.mxu0 0.0
    %4216 = vmatpush1.msra.mxu0 0.0
    %4217 = vmatprep.subr.mxu0 0.0
    %4218 = vmatpush1.msra.mxu0 0.0
    %4219 = vmatprep.subr.mxu0 0.0
    %4220 = vmatpush1.msra.mxu0 0.0
    %4221 = vmatprep.subr.mxu0 0.0
    %4222 = vmatpush1.msra.mxu0 0.0
    %4223 = vmatprep.subr.mxu0 0.0
    %4224 = vmatpush1.msra.mxu0 0.0
    %4225 = vmatprep.subr.mxu0 0.0
    %4226 = vmatpush1.msra.mxu0 0.0
    %4227 = vmatprep.subr.mxu0 0.0
    %4228 = vmatpush1.msra.mxu0 0.0
    %4229 = vmatprep.subr.mxu0 0.0
    %4230 = vmatpush1.msra.mxu0 0.0
    %4231 = vmatprep.subr.mxu0 0.0
    %4232 = vmatpush1.msra.mxu0 0.0
    %4233 = vmatprep.subr.mxu0 0.0
    %4234 = vmatpush1.msra.mxu0 0.0
    %4235 = vmatprep.subr.mxu0 0.0
    %4236 = vmatpush1.msra.mxu0 0.0
    %4237 = vmatprep.subr.mxu0 0.0
    %4238 = vmatpush1.msra.mxu0 0.0
    %4239 = vmatprep.subr.mxu0 0.0
    %4240 = vmatpush1.msra.mxu0 0.0
    %4241 = vmatprep.subr.mxu0 0.0
    %4242 = vmatpush1.msra.mxu0 0.0
    %4243 = vmatprep.mubr.f32.mxu0 0.0
    %4244 = vmatmul.mubr.f32.gmra.mrb[0].mxu0 %v4174
    %v4245 = vpop.f32.mrb[0].mxu0
    %v4246 = vadd.f32 0.0, %v4245
    %v4247 = vpop.f32.mrb[0].mxu0
    %4248 = vmatprep.mubr.f32.mxu0 0.0
    %4249 = vmatmul.mubr.f32.gmra.mrb[0].mxu0 %v4177
    %v4250 = vpop.f32.mrb[0].mxu0
    %v4251 = vadd.f32 0.0, %v4250
    %v4252 = vpop.f32.mrb[0].mxu0
    %4253 = vdwg.mxu0
    %v4254 = vadd.f32 %v3965, %v4246
    %v4255 = vadd.f32 %v3970, %v4251
    %4256 = vrot.lane.b32.xlu0 %v3405, 104
    %v4257 = vpop.permute.xlu0 %4256
    %4258 = vrot.lane.b32.xlu0 %v3410, 104
    %v4259 = vpop.permute.xlu0 %4258
    %4260 = vrot.lane.b32.xlu0 %v3405, 72
    %v4261 = vpop.permute.xlu0 %4260
    %4262 = vrot.lane.b32.xlu0 %v3410, 72
    %v4263 = vpop.permute.xlu0 %4262
    %v4264 = vsel %vm313, %v4257, 0
    %v4266 = vsel %vm313, %v4259, 0
    %v4268 = vsel %vm313, %v4261, 0
    %v4270 = vsel %vm313, %v4263, 0
    %4272 = vmatprep.subr.mxu0 0.0
    %4273 = vmatpush1.xpose.msra.mxu0 %v4268
    %4274 = vmatprep.subr.mxu0 0.0
    %4275 = vmatpush1.xpose.msra.mxu0 %v4270
    %4276 = vmatprep.subr.mxu0 0.0
    %4277 = vmatpush1.xpose.msra.mxu0 0.0
    %4278 = vmatprep.subr.mxu0 0.0
    %4279 = vmatpush1.xpose.msra.mxu0 0.0
    %4280 = vmatprep.subr.mxu0 0.0
    %4281 = vmatpush1.xpose.msra.mxu0 0.0
    %4282 = vmatprep.subr.mxu0 0.0
    %4283 = vmatpush1.xpose.msra.mxu0 0.0
    %4284 = vmatprep.subr.mxu0 0.0
    %4285 = vmatpush1.xpose.msra.mxu0 0.0
    %4286 = vmatprep.subr.mxu0 0.0
    %4287 = vmatpush1.xpose.msra.mxu0 0.0
    %4288 = vmatprep.subr.mxu0 0.0
    %4289 = vmatpush1.xpose.msra.mxu0 0.0
    %4290 = vmatprep.subr.mxu0 0.0
    %4291 = vmatpush1.xpose.msra.mxu0 0.0
    %4292 = vmatprep.subr.mxu0 0.0
    %4293 = vmatpush1.xpose.msra.mxu0 0.0
    %4294 = vmatprep.subr.mxu0 0.0
    %4295 = vmatpush1.xpose.msra.mxu0 0.0
    %4296 = vmatprep.subr.mxu0 0.0
    %4297 = vmatpush1.xpose.msra.mxu0 0.0
    %4298 = vmatprep.subr.mxu0 0.0
    %4299 = vmatpush1.xpose.msra.mxu0 0.0
    %4300 = vmatprep.subr.mxu0 0.0
    %4301 = vmatpush1.xpose.msra.mxu0 0.0
    %4302 = vmatprep.subr.mxu0 0.0
    %4303 = vmatpush1.xpose.msra.mxu0 0.0
    %4304 = vmatprep.subr.mxu0 0.0
    %4305 = vmatpush1.xpose.msra.mxu0 0.0
    %4306 = vmatprep.subr.mxu0 0.0
    %4307 = vmatpush1.xpose.msra.mxu0 0.0
    %4308 = vmatprep.subr.mxu0 0.0
    %4309 = vmatpush1.xpose.msra.mxu0 0.0
    %4310 = vmatprep.subr.mxu0 0.0
    %4311 = vmatpush1.xpose.msra.mxu0 0.0
    %4312 = vmatprep.subr.mxu0 0.0
    %4313 = vmatpush1.xpose.msra.mxu0 0.0
    %4314 = vmatprep.subr.mxu0 0.0
    %4315 = vmatpush1.xpose.msra.mxu0 0.0
    %4316 = vmatprep.subr.mxu0 0.0
    %4317 = vmatpush1.xpose.msra.mxu0 0.0
    %4318 = vmatprep.subr.mxu0 0.0
    %4319 = vmatpush1.xpose.msra.mxu0 0.0
    %4320 = vmatprep.subr.mxu0 0.0
    %4321 = vmatpush1.xpose.msra.mxu0 0.0
    %4322 = vmatprep.subr.mxu0 0.0
    %4323 = vmatpush1.xpose.msra.mxu0 0.0
    %4324 = vmatprep.subr.mxu0 0.0
    %4325 = vmatpush1.xpose.msra.mxu0 0.0
    %4326 = vmatprep.subr.mxu0 0.0
    %4327 = vmatpush1.xpose.msra.mxu0 0.0
    %4328 = vmatprep.subr.mxu0 0.0
    %4329 = vmatpush1.xpose.msra.mxu0 0.0
    %4330 = vmatprep.subr.mxu0 0.0
    %4331 = vmatpush1.xpose.msra.mxu0 0.0
    %4332 = vmatprep.subr.mxu0 0.0
    %4333 = vmatpush1.xpose.msra.mxu0 0.0
    %4334 = vmatprep.subr.mxu0 0.0
    %4335 = vmatpush1.xpose.msra.mxu0 0.0
    %4336 = vmatprep.mubr.f32.mxu0 0.0
    %4337 = vmatmul.mubr.f32.gmra.mrb[0].mxu0 %v4264
    %v4338 = vpop.f32.mrb[0].mxu0
    %v4339 = vadd.f32 %v3290, %v4338
    %v4340 = vpop.f32.mrb[0].mxu0
    %4341 = vmatprep.mubr.f32.mxu0 0.0
    %4342 = vmatmul.mubr.f32.gmra.mrb[0].mxu0 %v4266
    %v4343 = vpop.f32.mrb[0].mxu0
    %v4344 = vadd.f32 %v3291, %v4343
    %v4345 = vpop.f32.mrb[0].mxu0
    %4346 = vdwg.mxu0
    %v4347 = vsel %vm397, %v4339, -inf
    %4348 = vmax.xlane.f32.xlu0 %v4347
    %v4349 = vpop.xlane.xlu0 %4348
    %v4350 = vsel %vm397, %v4344, -inf
    %4351 = vmax.xlane.f32.xlu0 %v4350
    %v4352 = vpop.xlane.xlu0 %4351
    %v4353 = vsub.f32 %v4339, %v4349
    %v4354 = vsub.f32 %v4344, %v4352
    %v4355 = vmul.f32 %v4353, 1.442695
    %v4356 = vpow.pop %v4355
    %v4357 = vmul.f32 %v4354, 1.442695
    %v4358 = vpow.pop %v4357
    %v4359 = vsel %vm397, %v4356, 0.0
    %4360 = vadd.xlane.f32.xlu0 %v4359
    %v4361 = vpop.xlane.xlu0 %4360
    %v4362 = vsel %vm397, %v4358, 0.0
    %4363 = vadd.xlane.f32.xlu0 %v4362
    %v4364 = vpop.xlane.xlu0 %4363
    %v4365 = vrcp.pop %v4361
    %v4366 = vrcp.pop %v4364
    %v4367 = vmul.f32 %v4356, %v4365
    %v4368 = vmul.f32 %v4358, %v4366
    %4369 = vrot.lane.b32.xlu0 %v3405, 40
    %v4370 = vpop.permute.xlu0 %4369
    %4371 = vrot.lane.b32.xlu0 %v3410, 40
    %v4372 = vpop.permute.xlu0 %4371
    %v4376 = vsel %vm397, %v4367, 0
    %v4379 = vsel %vm397, %v4368, 0
    %4381 = vmatprep.subr.mxu0 0.0
    %4382 = vmatpush1.msra.mxu0 %v4370
    %4383 = vmatprep.subr.mxu0 0.0
    %4384 = vmatpush1.msra.mxu0 %v4372
    %4385 = vmatprep.subr.mxu0 0.0
    %4386 = vmatpush1.msra.mxu0 0.0
    %4387 = vmatprep.subr.mxu0 0.0
    %4388 = vmatpush1.msra.mxu0 0.0
    %4389 = vmatprep.subr.mxu0 0.0
    %4390 = vmatpush1.msra.mxu0 0.0
    %4391 = vmatprep.subr.mxu0 0.0
    %4392 = vmatpush1.msra.mxu0 0.0
    %4393 = vmatprep.subr.mxu0 0.0
    %4394 = vmatpush1.msra.mxu0 0.0
    %4395 = vmatprep.subr.mxu0 0.0
    %4396 = vmatpush1.msra.mxu0 0.0
    %4397 = vmatprep.subr.mxu0 0.0
    %4398 = vmatpush1.msra.mxu0 0.0
    %4399 = vmatprep.subr.mxu0 0.0
    %4400 = vmatpush1.msra.mxu0 0.0
    %4401 = vmatprep.subr.mxu0 0.0
    %4402 = vmatpush1.msra.mxu0 0.0
    %4403 = vmatprep.subr.mxu0 0.0
    %4404 = vmatpush1.msra.mxu0 0.0
    %4405 = vmatprep.subr.mxu0 0.0
    %4406 = vmatpush1.msra.mxu0 0.0
    %4407 = vmatprep.subr.mxu0 0.0
    %4408 = vmatpush1.msra.mxu0 0.0
    %4409 = vmatprep.subr.mxu0 0.0
    %4410 = vmatpush1.msra.mxu0 0.0
    %4411 = vmatprep.subr.mxu0 0.0
    %4412 = vmatpush1.msra.mxu0 0.0
    %4413 = vmatprep.subr.mxu0 0.0
    %4414 = vmatpush1.msra.mxu0 0.0
    %4415 = vmatprep.subr.mxu0 0.0
    %4416 = vmatpush1.msra.mxu0 0.0
    %4417 = vmatprep.subr.mxu0 0.0
    %4418 = vmatpush1.msra.mxu0 0.0
    %4419 = vmatprep.subr.mxu0 0.0
    %4420 = vmatpush1.msra.mxu0 0.0
    %4421 = vmatprep.subr.mxu0 0.0
    %4422 = vmatpush1.msra.mxu0 0.0
    %4423 = vmatprep.subr.mxu0 0.0
    %4424 = vmatpush1.msra.mxu0 0.0
    %4425 = vmatprep.subr.mxu0 0.0
    %4426 = vmatpush1.msra.mxu0 0.0
    %4427 = vmatprep.subr.mxu0 0.0
    %4428 = vmatpush1.msra.mxu0 0.0
    %4429 = vmatprep.subr.mxu0 0.0
    %4430 = vmatpush1.msra.mxu0 0.0
    %4431 = vmatprep.subr.mxu0 0.0
    %4432 = vmatpush1.msra.mxu0 0.0
    %4433 = vmatprep.subr.mxu0 0.0
    %4434 = vmatpush1.msra.mxu0 0.0
    %4435 = vmatprep.subr.mxu0 0.0
    %4436 = vmatpush1.msra.mxu0 0.0
    %4437 = vmatprep.subr.mxu0 0.0
    %4438 = vmatpush1.msra.mxu0 0.0
    %4439 = vmatprep.subr.mxu0 0.0
    %4440 = vmatpush1.msra.mxu0 0.0
    %4441 = vmatprep.subr.mxu0 0.0
    %4442 = vmatpush1.msra.mxu0 0.0
    %4443 = vmatprep.subr.mxu0 0.0
    %4444 = vmatpush1.msra.mxu0 0.0
    %4445 = vmatprep.mubr.f32.mxu0 0.0
    %4446 = vmatmul.mubr.f32.gmra.mrb[0].mxu0 %v4376
    %v4447 = vpop.f32.mrb[0].mxu0
    %v4448 = vadd.f32 0.0, %v4447
    %v4449 = vpop.f32.mrb[0].mxu0
    %4450 = vmatprep.mubr.f32.mxu0 0.0
    %4451 = vmatmul.mubr.f32.gmra.mrb[0].mxu0 %v4379
    %v4452 = vpop.f32.mrb[0].mxu0
    %v4453 = vadd.f32 0.0, %v4452
    %v4454 = vpop.f32.mrb[0].mxu0
    %4455 = vdwg.mxu0
    %v4457 = vsel %vm313, %v4448, 0
    %v4460 = vsel %vm313, %v4453, 0
    %4462 = vmatprep.subr.mxu0 0.0
    %4463 = vmatpush1.msra.mxu0 %v3301
    %4464 = vmatprep.subr.mxu0 0.0
    %4465 = vmatpush1.msra.mxu0 0.0
    %4466 = vmatprep.subr.mxu0 0.0
    %4467 = vmatpush1.msra.mxu0 0.0
    %4468 = vmatprep.subr.mxu0 0.0
    %4469 = vmatpush1.msra.mxu0 0.0
    %4470 = vmatprep.subr.mxu0 0.0
    %4471 = vmatpush1.msra.mxu0 0.0
    %4472 = vmatprep.subr.mxu0 0.0
    %4473 = vmatpush1.msra.mxu0 0.0
    %4474 = vmatprep.subr.mxu0 0.0
    %4475 = vmatpush1.msra.mxu0 0.0
    %4476 = vmatprep.subr.mxu0 0.0
    %4477 = vmatpush1.msra.mxu0 0.0
    %4478 = vmatprep.subr.mxu0 0.0
    %4479 = vmatpush1.msra.mxu0 0.0
    %4480 = vmatprep.subr.mxu0 0.0
    %4481 = vmatpush1.msra.mxu0 0.0
    %4482 = vmatprep.subr.mxu0 0.0
    %4483 = vmatpush1.msra.mxu0 0.0
    %4484 = vmatprep.subr.mxu0 0.0
    %4485 = vmatpush1.msra.mxu0 0.0
    %4486 = vmatprep.subr.mxu0 0.0
    %4487 = vmatpush1.msra.mxu0 0.0
    %4488 = vmatprep.subr.mxu0 0.0
    %4489 = vmatpush1.msra.mxu0 0.0
    %4490 = vmatprep.subr.mxu0 0.0
    %4491 = vmatpush1.msra.mxu0 0.0
    %4492 = vmatprep.subr.mxu0 0.0
    %4493 = vmatpush1.msra.mxu0 0.0
    %4494 = vmatprep.subr.mxu0 0.0
    %4495 = vmatpush1.msra.mxu0 0.0
    %4496 = vmatprep.subr.mxu0 0.0
    %4497 = vmatpush1.msra.mxu0 0.0
    %4498 = vmatprep.subr.mxu0 0.0
    %4499 = vmatpush1.msra.mxu0 0.0
    %4500 = vmatprep.subr.mxu0 0.0
    %4501 = vmatpush1.msra.mxu0 0.0
    %4502 = vmatprep.subr.mxu0 0.0
    %4503 = vmatpush1.msra.mxu0 0.0
    %4504 = vmatprep.subr.mxu0 0.0
    %4505 = vmatpush1.msra.mxu0 0.0
    %4506 = vmatprep.subr.mxu0 0.0
    %4507 = vmatpush1.msra.mxu0 0.0
    %4508 = vmatprep.subr.mxu0 0.0
    %4509 = vmatpush1.msra.mxu0 0.0
    %4510 = vmatprep.subr.mxu0 0.0
    %4511 = vmatpush1.msra.mxu0 0.0
    %4512 = vmatprep.subr.mxu0 0.0
    %4513 = vmatpush1.msra.mxu0 0.0
    %4514 = vmatprep.subr.mxu0 0.0
    %4515 = vmatpush1.msra.mxu0 0.0
    %4516 = vmatprep.subr.mxu0 0.0
    %4517 = vmatpush1.msra.mxu0 0.0
    %4518 = vmatprep.subr.mxu0 0.0
    %4519 = vmatpush1.msra.mxu0 0.0
    %4520 = vmatprep.subr.mxu0 0.0
    %4521 = vmatpush1.msra.mxu0 0.0
    %4522 = vmatprep.subr.mxu0 0.0
    %4523 = vmatpush1.msra.mxu0 0.0
    %4524 = vmatprep.subr.mxu0 0.0
    %4525 = vmatpush1.msra.mxu0 0.0
    %4526 = vmatprep.mubr.f32.mxu0 0.0
    %4527 = vmatmul.mubr.f32.gmra.mrb[0].mxu0 %v4457
    %v4528 = vpop.f32.mrb[0].mxu0
    %v4529 = vadd.f32 0.0, %v4528
    %v4530 = vpop.f32.mrb[0].mxu0
    %4531 = vmatprep.mubr.f32.mxu0 0.0
    %4532 = vmatmul.mubr.f32.gmra.mrb[0].mxu0 %v4460
    %v4533 = vpop.f32.mrb[0].mxu0
    %v4534 = vadd.f32 0.0, %v4533
    %v4535 = vpop.f32.mrb[0].mxu0
    %4536 = vdwg.mxu0
    %v4537 = vadd.f32 %v4254, %v4529
    %v4538 = vadd.f32 %v4255, %v4534
    %v4539 = vlaneseq
    %v4540 = vshrl.u32 %v4539, 7
    %v4541 = vsub.s32 1, %v4540
    %v4542 = vrot.slane %v3326, %v4541
    %v4543 = vadd.f32 %v4537, %v4542
    %v4544 = vadd.f32 %v4538, %v4542
    %v4545 = vadd.f32 %v3288, %v4543
    %v4546 = vadd.f32 %v3289, %v4544
    %v4547 = vsel %vm225, %v4545, 0.0
    %4548 = vadd.xlane.f32.xlu0 %v4547
    %v4549 = vpop.xlane.xlu0 %4548
    %v4550 = vsel %vm225, %v4546, 0.0
    %4551 = vadd.xlane.f32.xlu0 %v4550
    %v4552 = vpop.xlane.xlu0 %4551
    %v4553 = vmul.f32 %v4549, %v1449
    %v4554 = vmul.f32 %v4552, %v1449
    %v4555 = vsub.f32 %v4545, %v4553
    %v4556 = vsub.f32 %v4546, %v4554
    %v4557 = vmul.f32 %v4555, %v4555
    %v4558 = vmul.f32 %v4556, %v4556
    %v4559 = vsel %vm225, %v4557, 0.0
    %4560 = vadd.xlane.f32.xlu0 %v4559
    %v4561 = vpop.xlane.xlu0 %4560
    %v4562 = vsel %vm225, %v4558, 0.0
    %4563 = vadd.xlane.f32.xlu0 %v4562
    %v4564 = vpop.xlane.xlu0 %4563
    %v4565 = vmul.f32 %v4561, %v1449
    %v4566 = vmul.f32 %v4564, %v1449
    %v4567 = vadd.f32 %v4565, 1e-05
    %v4568 = vadd.f32 %v4566, 1e-05
    %v4569 = vrsqrt.pop %v4567
    %v4570 = vrsqrt.pop %v4568
    %v4571 = vmul.f32 %v4555, %v4569
    %v4572 = vmul.f32 %v4556, %v4570
    %v4573 = vlaneseq
    %v4574 = vshrl.u32 %v4573, 7
    %v4575 = vsub.s32 7, %v4574
    %v4576 = vrot.slane %v3326, %v4575
    %v4577 = vmul.f32 %v4571, %v4576
    %v4578 = vmul.f32 %v4572, %v4576
    %v4579 = vlaneseq
    %v4580 = vshrl.u32 %v4579, 7
    %v4581 = vsub.s32 0, %v4580
    %v4582 = vrot.slane %v3327, %v4581
    %v4583 = vadd.f32 %v4577, %v4582
    %v4584 = vadd.f32 %v4578, %v4582
    %v4585 = vlaneseq
    %v4586 = vshrl.u32 %v4585, 7
    %v4587 = vsub.s32 2, %v4586
    %v4588 = vrot.slane %v3326, %v4587
    %v4590 = vsel %vm225, %v4583, 0
    %v4593 = vsel %vm225, %v4584, 0
    %4595 = vmatprep.subr.mxu0 0.0
    %4596 = vmatpush1.msra.mxu0 %v3302
    %4597 = vmatprep.subr.mxu0 0.0
    %4598 = vmatpush1.msra.mxu0 %v3303
    %4599 = vmatprep.subr.mxu0 0.0
    %4600 = vmatpush1.msra.mxu0 %v3304
    %4601 = vmatprep.subr.mxu0 0.0
    %4602 = vmatpush1.msra.mxu0 %v3305
    %4603 = vmatprep.subr.mxu0 0.0
    %4604 = vmatpush1.msra.mxu0 0.0
    %4605 = vmatprep.subr.mxu0 0.0
    %4606 = vmatpush1.msra.mxu0 0.0
    %4607 = vmatprep.subr.mxu0 0.0
    %4608 = vmatpush1.msra.mxu0 0.0
    %4609 = vmatprep.subr.mxu0 0.0
    %4610 = vmatpush1.msra.mxu0 0.0
    %4611 = vmatprep.subr.mxu0 0.0
    %4612 = vmatpush1.msra.mxu0 0.0
    %4613 = vmatprep.subr.mxu0 0.0
    %4614 = vmatpush1.msra.mxu0 0.0
    %4615 = vmatprep.subr.mxu0 0.0
    %4616 = vmatpush1.msra.mxu0 0.0
    %4617 = vmatprep.subr.mxu0 0.0
    %4618 = vmatpush1.msra.mxu0 0.0
    %4619 = vmatprep.subr.mxu0 0.0
    %4620 = vmatpush1.msra.mxu0 0.0
    %4621 = vmatprep.subr.mxu0 0.0
    %4622 = vmatpush1.msra.mxu0 0.0
    %4623 = vmatprep.subr.mxu0 0.0
    %4624 = vmatpush1.msra.mxu0 0.0
    %4625 = vmatprep.subr.mxu0 0.0
    %4626 = vmatpush1.msra.mxu0 0.0
    %4627 = vmatprep.subr.mxu0 0.0
    %4628 = vmatpush1.msra.mxu0 0.0
    %4629 = vmatprep.subr.mxu0 0.0
    %4630 = vmatpush1.msra.mxu0 0.0
    %4631 = vmatprep.subr.mxu0 0.0
    %4632 = vmatpush1.msra.mxu0 0.0
    %4633 = vmatprep.subr.mxu0 0.0
    %4634 = vmatpush1.msra.mxu0 0.0
    %4635 = vmatprep.subr.mxu0 0.0
    %4636 = vmatpush1.msra.mxu0 0.0
    %4637 = vmatprep.subr.mxu0 0.0
    %4638 = vmatpush1.msra.mxu0 0.0
    %4639 = vmatprep.subr.mxu0 0.0
    %4640 = vmatpush1.msra.mxu0 0.0
    %4641 = vmatprep.subr.mxu0 0.0
    %4642 = vmatpush1.msra.mxu0 0.0
    %4643 = vmatprep.subr.mxu0 0.0
    %4644 = vmatpush1.msra.mxu0 0.0
    %4645 = vmatprep.subr.mxu0 0.0
    %4646 = vmatpush1.msra.mxu0 0.0
    %4647 = vmatprep.subr.mxu0 0.0
    %4648 = vmatpush1.msra.mxu0 0.0
    %4649 = vmatprep.subr.mxu0 0.0
    %4650 = vmatpush1.msra.mxu0 0.0
    %4651 = vmatprep.subr.mxu0 0.0
    %4652 = vmatpush1.msra.mxu0 0.0
    %4653 = vmatprep.subr.mxu0 0.0
    %4654 = vmatpush1.msra.mxu0 0.0
    %4655 = vmatprep.subr.mxu0 0.0
    %4656 = vmatpush1.msra.mxu0 0.0
    %4657 = vmatprep.subr.mxu0 0.0
    %4658 = vmatpush1.msra.mxu0 0.0
    %4659 = vmatprep.mubr.f32.mxu0 0.0
    %4660 = vmatmul.mubr.f32.gmra.mrb[0].mxu0 %v4590
    %v4661 = vpop.f32.mrb[0].mxu0
    %v4662 = vadd.f32 %v4588, %v4661
    %v4663 = vpop.f32.mrb[0].mxu0
    %4664 = vmatprep.mubr.f32.mxu0 0.0
    %4665 = vmatmul.mubr.f32.gmra.mrb[0].mxu0 %v4593
    %v4666 = vpop.f32.mrb[0].mxu0
    %v4667 = vadd.f32 %v4588, %v4666
    %v4668 = vpop.f32.mrb[0].mxu0
    %4669 = vdwg.mxu0
    %v4670 = vlaneseq
    %v4671 = vshrl.u32 %v4670, 7
    %v4672 = vsub.s32 3, %v4671
    %v4673 = vrot.slane %v3326, %v4672
    %v4675 = vsel %vm225, %v3187, 0
    %v4678 = vsel %vm225, %v3188, 0
    %4680 = vmatprep.subr.mxu0 0.0
    %4681 = vmatpush1.msra.mxu0 %v3306
    %4682 = vmatprep.subr.mxu0 0.0
    %4683 = vmatpush1.msra.mxu0 %v3307
    %4684 = vmatprep.subr.mxu0 0.0
    %4685 = vmatpush1.msra.mxu0 %v3308
    %4686 = vmatprep.subr.mxu0 0.0
    %4687 = vmatpush1.msra.mxu0 %v3309
    %4688 = vmatprep.subr.mxu0 0.0
    %4689 = vmatpush1.msra.mxu0 0.0
    %4690 = vmatprep.subr.mxu0 0.0
    %4691 = vmatpush1.msra.mxu0 0.0
    %4692 = vmatprep.subr.mxu0 0.0
    %4693 = vmatpush1.msra.mxu0 0.0
    %4694 = vmatprep.subr.mxu0 0.0
    %4695 = vmatpush1.msra.mxu0 0.0
    %4696 = vmatprep.subr.mxu0 0.0
    %4697 = vmatpush1.msra.mxu0 0.0
    %4698 = vmatprep.subr.mxu0 0.0
    %4699 = vmatpush1.msra.mxu0 0.0
    %4700 = vmatprep.subr.mxu0 0.0
    %4701 = vmatpush1.msra.mxu0 0.0
    %4702 = vmatprep.subr.mxu0 0.0
    %4703 = vmatpush1.msra.mxu0 0.0
    %4704 = vmatprep.subr.mxu0 0.0
    %4705 = vmatpush1.msra.mxu0 0.0
    %4706 = vmatprep.subr.mxu0 0.0
    %4707 = vmatpush1.msra.mxu0 0.0
    %4708 = vmatprep.subr.mxu0 0.0
    %4709 = vmatpush1.msra.mxu0 0.0
    %4710 = vmatprep.subr.mxu0 0.0
    %4711 = vmatpush1.msra.mxu0 0.0
    %4712 = vmatprep.subr.mxu0 0.0
    %4713 = vmatpush1.msra.mxu0 0.0
    %4714 = vmatprep.subr.mxu0 0.0
    %4715 = vmatpush1.msra.mxu0 0.0
    %4716 = vmatprep.subr.mxu0 0.0
    %4717 = vmatpush1.msra.mxu0 0.0
    %4718 = vmatprep.subr.mxu0 0.0
    %4719 = vmatpush1.msra.mxu0 0.0
    %4720 = vmatprep.subr.mxu0 0.0
    %4721 = vmatpush1.msra.mxu0 0.0
    %4722 = vmatprep.subr.mxu0 0.0
    %4723 = vmatpush1.msra.mxu0 0.0
    %4724 = vmatprep.subr.mxu0 0.0
    %4725 = vmatpush1.msra.mxu0 0.0
    %4726 = vmatprep.subr.mxu0 0.0
    %4727 = vmatpush1.msra.mxu0 0.0
    %4728 = vmatprep.subr.mxu0 0.0
    %4729 = vmatpush1.msra.mxu0 0.0
    %4730 = vmatprep.subr.mxu0 0.0
    %4731 = vmatpush1.msra.mxu0 0.0
    %4732 = vmatprep.subr.mxu0 0.0
    %4733 = vmatpush1.msra.mxu0 0.0
    %4734 = vmatprep.subr.mxu0 0.0
    %4735 = vmatpush1.msra.mxu0 0.0
    %4736 = vmatprep.subr.mxu0 0.0
    %4737 = vmatpush1.msra.mxu0 0.0
    %4738 = vmatprep.subr.mxu0 0.0
    %4739 = vmatpush1.msra.mxu0 0.0
    %4740 = vmatprep.subr.mxu0 0.0
    %4741 = vmatpush1.msra.mxu0 0.0
    %4742 = vmatprep.subr.mxu0 0.0
    %4743 = vmatpush1.msra.mxu0 0.0
    %4744 = vmatprep.mubr.f32.mxu0 0.0
    %4745 = vmatmul.mubr.f32.gmra.mrb[0].mxu0 %v4675
    %v4746 = vpop.f32.mrb[0].mxu0
    %v4747 = vadd.f32 %v4673, %v4746
    %v4748 = vpop.f32.mrb[0].mxu0
    %4749 = vmatprep.mubr.f32.mxu0 0.0
    %4750 = vmatmul.mubr.f32.gmra.mrb[0].mxu0 %v4678
    %v4751 = vpop.f32.mrb[0].mxu0
    %v4752 = vadd.f32 %v4673, %v4751
    %v4753 = vpop.f32.mrb[0].mxu0
    %4754 = vdwg.mxu0
    %v4756 = vsel %vm313, %v4662, 0
    %v4759 = vsel %vm313, %v4667, 0
    %v4762 = vsel %vm313, %v4747, 0
    %v4765 = vsel %vm313, %v4752, 0
    %4767 = vmatprep.subr.mxu0 0.0
    %4768 = vmatpush1.xpose.msra.mxu0 %v4762
    %4769 = vmatprep.subr.mxu0 0.0
    %4770 = vmatpush1.xpose.msra.mxu0 %v4765
    %4771 = vmatprep.subr.mxu0 0.0
    %4772 = vmatpush1.xpose.msra.mxu0 0.0
    %4773 = vmatprep.subr.mxu0 0.0
    %4774 = vmatpush1.xpose.msra.mxu0 0.0
    %4775 = vmatprep.subr.mxu0 0.0
    %4776 = vmatpush1.xpose.msra.mxu0 0.0
    %4777 = vmatprep.subr.mxu0 0.0
    %4778 = vmatpush1.xpose.msra.mxu0 0.0
    %4779 = vmatprep.subr.mxu0 0.0
    %4780 = vmatpush1.xpose.msra.mxu0 0.0
    %4781 = vmatprep.subr.mxu0 0.0
    %4782 = vmatpush1.xpose.msra.mxu0 0.0
    %4783 = vmatprep.subr.mxu0 0.0
    %4784 = vmatpush1.xpose.msra.mxu0 0.0
    %4785 = vmatprep.subr.mxu0 0.0
    %4786 = vmatpush1.xpose.msra.mxu0 0.0
    %4787 = vmatprep.subr.mxu0 0.0
    %4788 = vmatpush1.xpose.msra.mxu0 0.0
    %4789 = vmatprep.subr.mxu0 0.0
    %4790 = vmatpush1.xpose.msra.mxu0 0.0
    %4791 = vmatprep.subr.mxu0 0.0
    %4792 = vmatpush1.xpose.msra.mxu0 0.0
    %4793 = vmatprep.subr.mxu0 0.0
    %4794 = vmatpush1.xpose.msra.mxu0 0.0
    %4795 = vmatprep.subr.mxu0 0.0
    %4796 = vmatpush1.xpose.msra.mxu0 0.0
    %4797 = vmatprep.subr.mxu0 0.0
    %4798 = vmatpush1.xpose.msra.mxu0 0.0
    %4799 = vmatprep.subr.mxu0 0.0
    %4800 = vmatpush1.xpose.msra.mxu0 0.0
    %4801 = vmatprep.subr.mxu0 0.0
    %4802 = vmatpush1.xpose.msra.mxu0 0.0
    %4803 = vmatprep.subr.mxu0 0.0
    %4804 = vmatpush1.xpose.msra.mxu0 0.0
    %4805 = vmatprep.subr.mxu0 0.0
    %4806 = vmatpush1.xpose.msra.mxu0 0.0
    %4807 = vmatprep.subr.mxu0 0.0
    %4808 = vmatpush1.xpose.msra.mxu0 0.0
    %4809 = vmatprep.subr.mxu0 0.0
    %4810 = vmatpush1.xpose.msra.mxu0 0.0
    %4811 = vmatprep.subr.mxu0 0.0
    %4812 = vmatpush1.xpose.msra.mxu0 0.0
    %4813 = vmatprep.subr.mxu0 0.0
    %4814 = vmatpush1.xpose.msra.mxu0 0.0
    %4815 = vmatprep.subr.mxu0 0.0
    %4816 = vmatpush1.xpose.msra.mxu0 0.0
    %4817 = vmatprep.subr.mxu0 0.0
    %4818 = vmatpush1.xpose.msra.mxu0 0.0
    %4819 = vmatprep.subr.mxu0 0.0
    %4820 = vmatpush1.xpose.msra.mxu0 0.0
    %4821 = vmatprep.subr.mxu0 0.0
    %4822 = vmatpush1.xpose.msra.mxu0 0.0
    %4823 = vmatprep.subr.mxu0 0.0
    %4824 = vmatpush1.xpose.msra.mxu0 0.0
    %4825 = vmatprep.subr.mxu0 0.0
    %4826 = vmatpush1.xpose.msra.mxu0 0.0
    %4827 = vmatprep.subr.mxu0 0.0
    %4828 = vmatpush1.xpose.msra.mxu0 0.0
    %4829 = vmatprep.subr.mxu0 0.0
    %4830 = vmatpush1.xpose.msra.mxu0 0.0
    %4831 = vmatprep.mubr.f32.mxu0 0.0
    %4832 = vmatmul.mubr.f32.gmra.mrb[0].mxu0 %v4756
    %v4833 = vpop.f32.mrb[0].mxu0
    %v4834 = vadd.f32 %v3292, %v4833
    %v4835 = vpop.f32.mrb[0].mxu0
    %4836 = vmatprep.mubr.f32.mxu0 0.0
    %4837 = vmatmul.mubr.f32.gmra.mrb[0].mxu0 %v4759
    %v4838 = vpop.f32.mrb[0].mxu0
    %v4839 = vadd.f32 %v3293, %v4838
    %v4840 = vpop.f32.mrb[0].mxu0
    %4841 = vdwg.mxu0
    %v4842 = vsel %vm397, %v4834, -inf
    %4843 = vmax.xlane.f32.xlu0 %v4842
    %v4844 = vpop.xlane.xlu0 %4843
    %v4845 = vsel %vm397, %v4839, -inf
    %4846 = vmax.xlane.f32.xlu0 %v4845
    %v4847 = vpop.xlane.xlu0 %4846
    %v4848 = vsub.f32 %v4834, %v4844
    %v4849 = vsub.f32 %v4839, %v4847
    %v4850 = vmul.f32 %v4848, 1.442695
    %v4851 = vpow.pop %v4850
    %v4852 = vmul.f32 %v4849, 1.442695
    %v4853 = vpow.pop %v4852
    %v4854 = vsel %vm397, %v4851, 0.0
    %4855 = vadd.xlane.f32.xlu0 %v4854
    %v4856 = vpop.xlane.xlu0 %4855
    %v4857 = vsel %vm397, %v4853, 0.0
    %4858 = vadd.xlane.f32.xlu0 %v4857
    %v4859 = vpop.xlane.xlu0 %4858
    %v4860 = vrcp.pop %v4856
    %v4861 = vrcp.pop %v4859
    %v4862 = vmul.f32 %v4851, %v4860
    %v4863 = vmul.f32 %v4853, %v4861
    %4864 = vrot.lane.b32.xlu0 %v4747, 96
    %v4865 = vpop.permute.xlu0 %4864
    %4866 = vrot.lane.b32.xlu0 %v4752, 96
    %v4867 = vpop.permute.xlu0 %4866
    %v4871 = vsel %vm397, %v4862, 0
    %v4874 = vsel %vm397, %v4863, 0
    %4876 = vmatprep.subr.mxu0 0.0
    %4877 = vmatpush1.msra.mxu0 %v4865
    %4878 = vmatprep.subr.mxu0 0.0
    %4879 = vmatpush1.msra.mxu0 %v4867
    %4880 = vmatprep.subr.mxu0 0.0
    %4881 = vmatpush1.msra.mxu0 0.0
    %4882 = vmatprep.subr.mxu0 0.0
    %4883 = vmatpush1.msra.mxu0 0.0
    %4884 = vmatprep.subr.mxu0 0.0
    %4885 = vmatpush1.msra.mxu0 0.0
    %4886 = vmatprep.subr.mxu0 0.0
    %4887 = vmatpush1.msra.mxu0 0.0
    %4888 = vmatprep.subr.mxu0 0.0
    %4889 = vmatpush1.msra.mxu0 0.0
    %4890 = vmatprep.subr.mxu0 0.0
    %4891 = vmatpush1.msra.mxu0 0.0
    %4892 = vmatprep.subr.mxu0 0.0
    %4893 = vmatpush1.msra.mxu0 0.0
    %4894 = vmatprep.subr.mxu0 0.0
    %4895 = vmatpush1.msra.mxu0 0.0
    %4896 = vmatprep.subr.mxu0 0.0
    %4897 = vmatpush1.msra.mxu0 0.0
    %4898 = vmatprep.subr.mxu0 0.0
    %4899 = vmatpush1.msra.mxu0 0.0
    %4900 = vmatprep.subr.mxu0 0.0
    %4901 = vmatpush1.msra.mxu0 0.0
    %4902 = vmatprep.subr.mxu0 0.0
    %4903 = vmatpush1.msra.mxu0 0.0
    %4904 = vmatprep.subr.mxu0 0.0
    %4905 = vmatpush1.msra.mxu0 0.0
    %4906 = vmatprep.subr.mxu0 0.0
    %4907 = vmatpush1.msra.mxu0 0.0
    %4908 = vmatprep.subr.mxu0 0.0
    %4909 = vmatpush1.msra.mxu0 0.0
    %4910 = vmatprep.subr.mxu0 0.0
    %4911 = vmatpush1.msra.mxu0 0.0
    %4912 = vmatprep.subr.mxu0 0.0
    %4913 = vmatpush1.msra.mxu0 0.0
    %4914 = vmatprep.subr.mxu0 0.0
    %4915 = vmatpush1.msra.mxu0 0.0
    %4916 = vmatprep.subr.mxu0 0.0
    %4917 = vmatpush1.msra.mxu0 0.0
    %4918 = vmatprep.subr.mxu0 0.0
    %4919 = vmatpush1.msra.mxu0 0.0
    %4920 = vmatprep.subr.mxu0 0.0
    %4921 = vmatpush1.msra.mxu0 0.0
    %4922 = vmatprep.subr.mxu0 0.0
    %4923 = vmatpush1.msra.mxu0 0.0
    %4924 = vmatprep.subr.mxu0 0.0
    %4925 = vmatpush1.msra.mxu0 0.0
    %4926 = vmatprep.subr.mxu0 0.0
    %4927 = vmatpush1.msra.mxu0 0.0
    %4928 = vmatprep.subr.mxu0 0.0
    %4929 = vmatpush1.msra.mxu0 0.0
    %4930 = vmatprep.subr.mxu0 0.0
    %4931 = vmatpush1.msra.mxu0 0.0
    %4932 = vmatprep.subr.mxu0 0.0
    %4933 = vmatpush1.msra.mxu0 0.0
    %4934 = vmatprep.subr.mxu0 0.0
    %4935 = vmatpush1.msra.mxu0 0.0
    %4936 = vmatprep.subr.mxu0 0.0
    %4937 = vmatpush1.msra.mxu0 0.0
    %4938 = vmatprep.subr.mxu0 0.0
    %4939 = vmatpush1.msra.mxu0 0.0
    %4940 = vmatprep.mubr.f32.mxu0 0.0
    %4941 = vmatmul.mubr.f32.gmra.mrb[0].mxu0 %v4871
    %v4942 = vpop.f32.mrb[0].mxu0
    %v4943 = vadd.f32 0.0, %v4942
    %v4944 = vpop.f32.mrb[0].mxu0
    %4945 = vmatprep.mubr.f32.mxu0 0.0
    %4946 = vmatmul.mubr.f32.gmra.mrb[0].mxu0 %v4874
    %v4947 = vpop.f32.mrb[0].mxu0
    %v4948 = vadd.f32 0.0, %v4947
    %v4949 = vpop.f32.mrb[0].mxu0
    %4950 = vdwg.mxu0
    %4951 = vrot.lane.b32.xlu0 %v4662, 120
    %v4952 = vpop.permute.xlu0 %4951
    %4953 = vrot.lane.b32.xlu0 %v4667, 120
    %v4954 = vpop.permute.xlu0 %4953
    %4955 = vrot.lane.b32.xlu0 %v4747, 120
    %v4956 = vpop.permute.xlu0 %4955
    %4957 = vrot.lane.b32.xlu0 %v4752, 120
    %v4958 = vpop.permute.xlu0 %4957
    %v4959 = vsel %vm313, %v4952, 0
    %v4961 = vsel %vm313, %v4954, 0
    %v4963 = vsel %vm313, %v4956, 0
    %v4965 = vsel %vm313, %v4958, 0
    %4967 = vmatprep.subr.mxu0 0.0
    %4968 = vmatpush1.xpose.msra.mxu0 %v4963
    %4969 = vmatprep.subr.mxu0 0.0
    %4970 = vmatpush1.xpose.msra.mxu0 %v4965
    %4971 = vmatprep.subr.mxu0 0.0
    %4972 = vmatpush1.xpose.msra.mxu0 0.0
    %4973 = vmatprep.subr.mxu0 0.0
    %4974 = vmatpush1.xpose.msra.mxu0 0.0
    %4975 = vmatprep.subr.mxu0 0.0
    %4976 = vmatpush1.xpose.msra.mxu0 0.0
    %4977 = vmatprep.subr.mxu0 0.0
    %4978 = vmatpush1.xpose.msra.mxu0 0.0
    %4979 = vmatprep.subr.mxu0 0.0
    %4980 = vmatpush1.xpose.msra.mxu0 0.0
    %4981 = vmatprep.subr.mxu0 0.0
    %4982 = vmatpush1.xpose.msra.mxu0 0.0
    %4983 = vmatprep.subr.mxu0 0.0
    %4984 = vmatpush1.xpose.msra.mxu0 0.0
    %4985 = vmatprep.subr.mxu0 0.0
    %4986 = vmatpush1.xpose.msra.mxu0 0.0
    %4987 = vmatprep.subr.mxu0 0.0
    %4988 = vmatpush1.xpose.msra.mxu0 0.0
    %4989 = vmatprep.subr.mxu0 0.0
    %4990 = vmatpush1.xpose.msra.mxu0 0.0
    %4991 = vmatprep.subr.mxu0 0.0
    %4992 = vmatpush1.xpose.msra.mxu0 0.0
    %4993 = vmatprep.subr.mxu0 0.0
    %4994 = vmatpush1.xpose.msra.mxu0 0.0
    %4995 = vmatprep.subr.mxu0 0.0
    %4996 = vmatpush1.xpose.msra.mxu0 0.0
    %4997 = vmatprep.subr.mxu0 0.0
    %4998 = vmatpush1.xpose.msra.mxu0 0.0
    %4999 = vmatprep.subr.mxu0 0.0
    %5000 = vmatpush1.xpose.msra.mxu0 0.0
    %5001 = vmatprep.subr.mxu0 0.0
    %5002 = vmatpush1.xpose.msra.mxu0 0.0
    %5003 = vmatprep.subr.mxu0 0.0
    %5004 = vmatpush1.xpose.msra.mxu0 0.0
    %5005 = vmatprep.subr.mxu0 0.0
    %5006 = vmatpush1.xpose.msra.mxu0 0.0
    %5007 = vmatprep.subr.mxu0 0.0
    %5008 = vmatpush1.xpose.msra.mxu0 0.0
    %5009 = vmatprep.subr.mxu0 0.0
    %5010 = vmatpush1.xpose.msra.mxu0 0.0
    %5011 = vmatprep.subr.mxu0 0.0
    %5012 = vmatpush1.xpose.msra.mxu0 0.0
    %5013 = vmatprep.subr.mxu0 0.0
    %5014 = vmatpush1.xpose.msra.mxu0 0.0
    %5015 = vmatprep.subr.mxu0 0.0
    %5016 = vmatpush1.xpose.msra.mxu0 0.0
    %5017 = vmatprep.subr.mxu0 0.0
    %5018 = vmatpush1.xpose.msra.mxu0 0.0
    %5019 = vmatprep.subr.mxu0 0.0
    %5020 = vmatpush1.xpose.msra.mxu0 0.0
    %5021 = vmatprep.subr.mxu0 0.0
    %5022 = vmatpush1.xpose.msra.mxu0 0.0
    %5023 = vmatprep.subr.mxu0 0.0
    %5024 = vmatpush1.xpose.msra.mxu0 0.0
    %5025 = vmatprep.subr.mxu0 0.0
    %5026 = vmatpush1.xpose.msra.mxu0 0.0
    %5027 = vmatprep.subr.mxu0 0.0
    %5028 = vmatpush1.xpose.msra.mxu0 0.0
    %5029 = vmatprep.subr.mxu0 0.0
    %5030 = vmatpush1.xpose.msra.mxu0 0.0
    %5031 = vmatprep.mubr.f32.mxu0 0.0
    %5032 = vmatmul.mubr.f32.gmra.mrb[0].mxu0 %v4959
    %v5033 = vpop.f32.mrb[0].mxu0
    %v5034 = vadd.f32 %v3292, %v5033
    %v5035 = vpop.f32.mrb[0].mxu0
    %5036 = vmatprep.mubr.f32.mxu0 0.0
    %5037 = vmatmul.mubr.f32.gmra.mrb[0].mxu0 %v4961
    %v5038 = vpop.f32.mrb[0].mxu0
    %v5039 = vadd.f32 %v3293, %v5038
    %v5040 = vpop.f32.mrb[0].mxu0
    %5041 = vdwg.mxu0
    %v5042 = vsel %vm397, %v5034, -inf
    %5043 = vmax.xlane.f32.xlu0 %v5042
    %v5044 = vpop.xlane.xlu0 %5043
    %v5045 = vsel %vm397, %v5039, -inf
    %5046 = vmax.xlane.f32.xlu0 %v5045
    %v5047 = vpop.xlane.xlu0 %5046
    %v5048 = vsub.f32 %v5034, %v5044
    %v5049 = vsub.f32 %v5039, %v5047
    %v5050 = vmul.f32 %v5048, 1.442695
    %v5051 = vpow.pop %v5050
    %v5052 = vmul.f32 %v5049, 1.442695
    %v5053 = vpow.pop %v5052
    %v5054 = vsel %vm397, %v5051, 0.0
    %5055 = vadd.xlane.f32.xlu0 %v5054
    %v5056 = vpop.xlane.xlu0 %5055
    %v5057 = vsel %vm397, %v5053, 0.0
    %5058 = vadd.xlane.f32.xlu0 %v5057
    %v5059 = vpop.xlane.xlu0 %5058
    %v5060 = vrcp.pop %v5056
    %v5061 = vrcp.pop %v5059
    %v5062 = vmul.f32 %v5051, %v5060
    %v5063 = vmul.f32 %v5053, %v5061
    %5064 = vrot.lane.b32.xlu0 %v4747, 88
    %v5065 = vpop.permute.xlu0 %5064
    %5066 = vrot.lane.b32.xlu0 %v4752, 88
    %v5067 = vpop.permute.xlu0 %5066
    %v5071 = vsel %vm397, %v5062, 0
    %v5074 = vsel %vm397, %v5063, 0
    %5076 = vmatprep.subr.mxu0 0.0
    %5077 = vmatpush1.msra.mxu0 %v5065
    %5078 = vmatprep.subr.mxu0 0.0
    %5079 = vmatpush1.msra.mxu0 %v5067
    %5080 = vmatprep.subr.mxu0 0.0
    %5081 = vmatpush1.msra.mxu0 0.0
    %5082 = vmatprep.subr.mxu0 0.0
    %5083 = vmatpush1.msra.mxu0 0.0
    %5084 = vmatprep.subr.mxu0 0.0
    %5085 = vmatpush1.msra.mxu0 0.0
    %5086 = vmatprep.subr.mxu0 0.0
    %5087 = vmatpush1.msra.mxu0 0.0
    %5088 = vmatprep.subr.mxu0 0.0
    %5089 = vmatpush1.msra.mxu0 0.0
    %5090 = vmatprep.subr.mxu0 0.0
    %5091 = vmatpush1.msra.mxu0 0.0
    %5092 = vmatprep.subr.mxu0 0.0
    %5093 = vmatpush1.msra.mxu0 0.0
    %5094 = vmatprep.subr.mxu0 0.0
    %5095 = vmatpush1.msra.mxu0 0.0
    %5096 = vmatprep.subr.mxu0 0.0
    %5097 = vmatpush1.msra.mxu0 0.0
    %5098 = vmatprep.subr.mxu0 0.0
    %5099 = vmatpush1.msra.mxu0 0.0
    %5100 = vmatprep.subr.mxu0 0.0
    %5101 = vmatpush1.msra.mxu0 0.0
    %5102 = vmatprep.subr.mxu0 0.0
    %5103 = vmatpush1.msra.mxu0 0.0
    %5104 = vmatprep.subr.mxu0 0.0
    %5105 = vmatpush1.msra.mxu0 0.0
    %5106 = vmatprep.subr.mxu0 0.0
    %5107 = vmatpush1.msra.mxu0 0.0
    %5108 = vmatprep.subr.mxu0 0.0
    %5109 = vmatpush1.msra.mxu0 0.0
    %5110 = vmatprep.subr.mxu0 0.0
    %5111 = vmatpush1.msra.mxu0 0.0
    %5112 = vmatprep.subr.mxu0 0.0
    %5113 = vmatpush1.msra.mxu0 0.0
    %5114 = vmatprep.subr.mxu0 0.0
    %5115 = vmatpush1.msra.mxu0 0.0
    %5116 = vmatprep.subr.mxu0 0.0
    %5117 = vmatpush1.msra.mxu0 0.0
    %5118 = vmatprep.subr.mxu0 0.0
    %5119 = vmatpush1.msra.mxu0 0.0
    %5120 = vmatprep.subr.mxu0 0.0
    %5121 = vmatpush1.msra.mxu0 0.0
    %5122 = vmatprep.subr.mxu0 0.0
    %5123 = vmatpush1.msra.mxu0 0.0
    %5124 = vmatprep.subr.mxu0 0.0
    %5125 = vmatpush1.msra.mxu0 0.0
    %5126 = vmatprep.subr.mxu0 0.0
    %5127 = vmatpush1.msra.mxu0 0.0
    %5128 = vmatprep.subr.mxu0 0.0
    %5129 = vmatpush1.msra.mxu0 0.0
    %5130 = vmatprep.subr.mxu0 0.0
    %5131 = vmatpush1.msra.mxu0 0.0
    %5132 = vmatprep.subr.mxu0 0.0
    %5133 = vmatpush1.msra.mxu0 0.0
    %5134 = vmatprep.subr.mxu0 0.0
    %5135 = vmatpush1.msra.mxu0 0.0
    %5136 = vmatprep.subr.mxu0 0.0
    %5137 = vmatpush1.msra.mxu0 0.0
    %5138 = vmatprep.subr.mxu0 0.0
    %5139 = vmatpush1.msra.mxu0 0.0
    %5140 = vmatprep.mubr.f32.mxu0 0.0
    %5141 = vmatmul.mubr.f32.gmra.mrb[0].mxu0 %v5071
    %v5142 = vpop.f32.mrb[0].mxu0
    %v5143 = vadd.f32 0.0, %v5142
    %v5144 = vpop.f32.mrb[0].mxu0
    %5145 = vmatprep.mubr.f32.mxu0 0.0
    %5146 = vmatmul.mubr.f32.gmra.mrb[0].mxu0 %v5074
    %v5147 = vpop.f32.mrb[0].mxu0
    %v5148 = vadd.f32 0.0, %v5147
    %v5149 = vpop.f32.mrb[0].mxu0
    %5150 = vdwg.mxu0
    %v5152 = vsel %vm313, %v5143, 0
    %v5155 = vsel %vm313, %v5148, 0
    %5157 = vmatprep.subr.mxu0 0.0
    %5158 = vmatpush1.msra.mxu0 %v3311
    %5159 = vmatprep.subr.mxu0 0.0
    %5160 = vmatpush1.msra.mxu0 0.0
    %5161 = vmatprep.subr.mxu0 0.0
    %5162 = vmatpush1.msra.mxu0 0.0
    %5163 = vmatprep.subr.mxu0 0.0
    %5164 = vmatpush1.msra.mxu0 0.0
    %5165 = vmatprep.subr.mxu0 0.0
    %5166 = vmatpush1.msra.mxu0 0.0
    %5167 = vmatprep.subr.mxu0 0.0
    %5168 = vmatpush1.msra.mxu0 0.0
    %5169 = vmatprep.subr.mxu0 0.0
    %5170 = vmatpush1.msra.mxu0 0.0
    %5171 = vmatprep.subr.mxu0 0.0
    %5172 = vmatpush1.msra.mxu0 0.0
    %5173 = vmatprep.subr.mxu0 0.0
    %5174 = vmatpush1.msra.mxu0 0.0
    %5175 = vmatprep.subr.mxu0 0.0
    %5176 = vmatpush1.msra.mxu0 0.0
    %5177 = vmatprep.subr.mxu0 0.0
    %5178 = vmatpush1.msra.mxu0 0.0
    %5179 = vmatprep.subr.mxu0 0.0
    %5180 = vmatpush1.msra.mxu0 0.0
    %5181 = vmatprep.subr.mxu0 0.0
    %5182 = vmatpush1.msra.mxu0 0.0
    %5183 = vmatprep.subr.mxu0 0.0
    %5184 = vmatpush1.msra.mxu0 0.0
    %5185 = vmatprep.subr.mxu0 0.0
    %5186 = vmatpush1.msra.mxu0 0.0
    %5187 = vmatprep.subr.mxu0 0.0
    %5188 = vmatpush1.msra.mxu0 0.0
    %5189 = vmatprep.subr.mxu0 0.0
    %5190 = vmatpush1.msra.mxu0 0.0
    %5191 = vmatprep.subr.mxu0 0.0
    %5192 = vmatpush1.msra.mxu0 0.0
    %5193 = vmatprep.subr.mxu0 0.0
    %5194 = vmatpush1.msra.mxu0 0.0
    %5195 = vmatprep.subr.mxu0 0.0
    %5196 = vmatpush1.msra.mxu0 0.0
    %5197 = vmatprep.subr.mxu0 0.0
    %5198 = vmatpush1.msra.mxu0 0.0
    %5199 = vmatprep.subr.mxu0 0.0
    %5200 = vmatpush1.msra.mxu0 0.0
    %5201 = vmatprep.subr.mxu0 0.0
    %5202 = vmatpush1.msra.mxu0 0.0
    %5203 = vmatprep.subr.mxu0 0.0
    %5204 = vmatpush1.msra.mxu0 0.0
    %5205 = vmatprep.subr.mxu0 0.0
    %5206 = vmatpush1.msra.mxu0 0.0
    %5207 = vmatprep.subr.mxu0 0.0
    %5208 = vmatpush1.msra.mxu0 0.0
    %5209 = vmatprep.subr.mxu0 0.0
    %5210 = vmatpush1.msra.mxu0 0.0
    %5211 = vmatprep.subr.mxu0 0.0
    %5212 = vmatpush1.msra.mxu0 0.0
    %5213 = vmatprep.subr.mxu0 0.0
    %5214 = vmatpush1.msra.mxu0 0.0
    %5215 = vmatprep.subr.mxu0 0.0
    %5216 = vmatpush1.msra.mxu0 0.0
    %5217 = vmatprep.subr.mxu0 0.0
    %5218 = vmatpush1.msra.mxu0 0.0
    %5219 = vmatprep.subr.mxu0 0.0
    %5220 = vmatpush1.msra.mxu0 0.0
    %5221 = vmatprep.mubr.f32.mxu0 0.0
    %5222 = vmatmul.mubr.f32.gmra.mrb[0].mxu0 %v5152
    %v5223 = vpop.f32.mrb[0].mxu0
    %v5224 = vadd.f32 0.0, %v5223
    %v5225 = vpop.f32.mrb[0].mxu0
    %5226 = vmatprep.mubr.f32.mxu0 0.0
    %5227 = vmatmul.mubr.f32.gmra.mrb[0].mxu0 %v5155
    %v5228 = vpop.f32.mrb[0].mxu0
    %v5229 = vadd.f32 0.0, %v5228
    %v5230 = vpop.f32.mrb[0].mxu0
    %5231 = vdwg.mxu0
    %v5233 = vsel %vm313, %v4943, 0
    %v5236 = vsel %vm313, %v4948, 0
    %5238 = vmatprep.subr.mxu0 0.0
    %5239 = vmatpush1.msra.mxu0 %v3310
    %5240 = vmatprep.subr.mxu0 0.0
    %5241 = vmatpush1.msra.mxu0 0.0
    %5242 = vmatprep.subr.mxu0 0.0
    %5243 = vmatpush1.msra.mxu0 0.0
    %5244 = vmatprep.subr.mxu0 0.0
    %5245 = vmatpush1.msra.mxu0 0.0
    %5246 = vmatprep.subr.mxu0 0.0
    %5247 = vmatpush1.msra.mxu0 0.0
    %5248 = vmatprep.subr.mxu0 0.0
    %5249 = vmatpush1.msra.mxu0 0.0
    %5250 = vmatprep.subr.mxu0 0.0
    %5251 = vmatpush1.msra.mxu0 0.0
    %5252 = vmatprep.subr.mxu0 0.0
    %5253 = vmatpush1.msra.mxu0 0.0
    %5254 = vmatprep.subr.mxu0 0.0
    %5255 = vmatpush1.msra.mxu0 0.0
    %5256 = vmatprep.subr.mxu0 0.0
    %5257 = vmatpush1.msra.mxu0 0.0
    %5258 = vmatprep.subr.mxu0 0.0
    %5259 = vmatpush1.msra.mxu0 0.0
    %5260 = vmatprep.subr.mxu0 0.0
    %5261 = vmatpush1.msra.mxu0 0.0
    %5262 = vmatprep.subr.mxu0 0.0
    %5263 = vmatpush1.msra.mxu0 0.0
    %5264 = vmatprep.subr.mxu0 0.0
    %5265 = vmatpush1.msra.mxu0 0.0
    %5266 = vmatprep.subr.mxu0 0.0
    %5267 = vmatpush1.msra.mxu0 0.0
    %5268 = vmatprep.subr.mxu0 0.0
    %5269 = vmatpush1.msra.mxu0 0.0
    %5270 = vmatprep.subr.mxu0 0.0
    %5271 = vmatpush1.msra.mxu0 0.0
    %5272 = vmatprep.subr.mxu0 0.0
    %5273 = vmatpush1.msra.mxu0 0.0
    %5274 = vmatprep.subr.mxu0 0.0
    %5275 = vmatpush1.msra.mxu0 0.0
    %5276 = vmatprep.subr.mxu0 0.0
    %5277 = vmatpush1.msra.mxu0 0.0
    %5278 = vmatprep.subr.mxu0 0.0
    %5279 = vmatpush1.msra.mxu0 0.0
    %5280 = vmatprep.subr.mxu0 0.0
    %5281 = vmatpush1.msra.mxu0 0.0
    %5282 = vmatprep.subr.mxu0 0.0
    %5283 = vmatpush1.msra.mxu0 0.0
    %5284 = vmatprep.subr.mxu0 0.0
    %5285 = vmatpush1.msra.mxu0 0.0
    %5286 = vmatprep.subr.mxu0 0.0
    %5287 = vmatpush1.msra.mxu0 0.0
    %5288 = vmatprep.subr.mxu0 0.0
    %5289 = vmatpush1.msra.mxu0 0.0
    %5290 = vmatprep.subr.mxu0 0.0
    %5291 = vmatpush1.msra.mxu0 0.0
    %5292 = vmatprep.subr.mxu0 0.0
    %5293 = vmatpush1.msra.mxu0 0.0
    %5294 = vmatprep.subr.mxu0 0.0
    %5295 = vmatpush1.msra.mxu0 0.0
    %5296 = vmatprep.subr.mxu0 0.0
    %5297 = vmatpush1.msra.mxu0 0.0
    %5298 = vmatprep.subr.mxu0 0.0
    %5299 = vmatpush1.msra.mxu0 0.0
    %5300 = vmatprep.subr.mxu0 0.0
    %5301 = vmatpush1.msra.mxu0 0.0
    %5302 = vmatprep.mubr.f32.mxu0 0.0
    %5303 = vmatmul.mubr.f32.gmra.mrb[0].mxu0 %v5233
    %v5304 = vpop.f32.mrb[0].mxu0
    %v5305 = vadd.f32 %v5224, %v5304
    %v5306 = vpop.f32.mrb[0].mxu0
    %5307 = vmatprep.mubr.f32.mxu0 0.0
    %5308 = vmatmul.mubr.f32.gmra.mrb[0].mxu0 %v5236
    %v5309 = vpop.f32.mrb[0].mxu0
    %v5310 = vadd.f32 %v5229, %v5309
    %v5311 = vpop.f32.mrb[0].mxu0
    %5312 = vdwg.mxu0
    %5313 = vrot.lane.b32.xlu0 %v4662, 112
    %v5314 = vpop.permute.xlu0 %5313
    %5315 = vrot.lane.b32.xlu0 %v4667, 112
    %v5316 = vpop.permute.xlu0 %5315
    %5317 = vrot.lane.b32.xlu0 %v4747, 112
    %v5318 = vpop.permute.xlu0 %5317
    %5319 = vrot.lane.b32.xlu0 %v4752, 112
    %v5320 = vpop.permute.xlu0 %5319
    %v5321 = vsel %vm313, %v5314, 0
    %v5323 = vsel %vm313, %v5316, 0
    %v5325 = vsel %vm313, %v5318, 0
    %v5327 = vsel %vm313, %v5320, 0
    %5329 = vmatprep.subr.mxu0 0.0
    %5330 = vmatpush1.xpose.msra.mxu0 %v5325
    %5331 = vmatprep.subr.mxu0 0.0
    %5332 = vmatpush1.xpose.msra.mxu0 %v5327
    %5333 = vmatprep.subr.mxu0 0.0
    %5334 = vmatpush1.xpose.msra.mxu0 0.0
    %5335 = vmatprep.subr.mxu0 0.0
    %5336 = vmatpush1.xpose.msra.mxu0 0.0
    %5337 = vmatprep.subr.mxu0 0.0
    %5338 = vmatpush1.xpose.msra.mxu0 0.0
    %5339 = vmatprep.subr.mxu0 0.0
    %5340 = vmatpush1.xpose.msra.mxu0 0.0
    %5341 = vmatprep.subr.mxu0 0.0
    %5342 = vmatpush1.xpose.msra.mxu0 0.0
    %5343 = vmatprep.subr.mxu0 0.0
    %5344 = vmatpush1.xpose.msra.mxu0 0.0
    %5345 = vmatprep.subr.mxu0 0.0
    %5346 = vmatpush1.xpose.msra.mxu0 0.0
    %5347 = vmatprep.subr.mxu0 0.0
    %5348 = vmatpush1.xpose.msra.mxu0 0.0
    %5349 = vmatprep.subr.mxu0 0.0
    %5350 = vmatpush1.xpose.msra.mxu0 0.0
    %5351 = vmatprep.subr.mxu0 0.0
    %5352 = vmatpush1.xpose.msra.mxu0 0.0
    %5353 = vmatprep.subr.mxu0 0.0
    %5354 = vmatpush1.xpose.msra.mxu0 0.0
    %5355 = vmatprep.subr.mxu0 0.0
    %5356 = vmatpush1.xpose.msra.mxu0 0.0
    %5357 = vmatprep.subr.mxu0 0.0
    %5358 = vmatpush1.xpose.msra.mxu0 0.0
    %5359 = vmatprep.subr.mxu0 0.0
    %5360 = vmatpush1.xpose.msra.mxu0 0.0
    %5361 = vmatprep.subr.mxu0 0.0
    %5362 = vmatpush1.xpose.msra.mxu0 0.0
    %5363 = vmatprep.subr.mxu0 0.0
    %5364 = vmatpush1.xpose.msra.mxu0 0.0
    %5365 = vmatprep.subr.mxu0 0.0
    %5366 = vmatpush1.xpose.msra.mxu0 0.0
    %5367 = vmatprep.subr.mxu0 0.0
    %5368 = vmatpush1.xpose.msra.mxu0 0.0
    %5369 = vmatprep.subr.mxu0 0.0
    %5370 = vmatpush1.xpose.msra.mxu0 0.0
    %5371 = vmatprep.subr.mxu0 0.0
    %5372 = vmatpush1.xpose.msra.mxu0 0.0
    %5373 = vmatprep.subr.mxu0 0.0
    %5374 = vmatpush1.xpose.msra.mxu0 0.0
    %5375 = vmatprep.subr.mxu0 0.0
    %5376 = vmatpush1.xpose.msra.mxu0 0.0
    %5377 = vmatprep.subr.mxu0 0.0
    %5378 = vmatpush1.xpose.msra.mxu0 0.0
    %5379 = vmatprep.subr.mxu0 0.0
    %5380 = vmatpush1.xpose.msra.mxu0 0.0
    %5381 = vmatprep.subr.mxu0 0.0
    %5382 = vmatpush1.xpose.msra.mxu0 0.0
    %5383 = vmatprep.subr.mxu0 0.0
    %5384 = vmatpush1.xpose.msra.mxu0 0.0
    %5385 = vmatprep.subr.mxu0 0.0
    %5386 = vmatpush1.xpose.msra.mxu0 0.0
    %5387 = vmatprep.subr.mxu0 0.0
    %5388 = vmatpush1.xpose.msra.mxu0 0.0
    %5389 = vmatprep.subr.mxu0 0.0
    %5390 = vmatpush1.xpose.msra.mxu0 0.0
    %5391 = vmatprep.subr.mxu0 0.0
    %5392 = vmatpush1.xpose.msra.mxu0 0.0
    %5393 = vmatprep.mubr.f32.mxu0 0.0
    %5394 = vmatmul.mubr.f32.gmra.mrb[0].mxu0 %v5321
    %v5395 = vpop.f32.mrb[0].mxu0
    %v5396 = vadd.f32 %v3292, %v5395
    %v5397 = vpop.f32.mrb[0].mxu0
    %5398 = vmatprep.mubr.f32.mxu0 0.0
    %5399 = vmatmul.mubr.f32.gmra.mrb[0].mxu0 %v5323
    %v5400 = vpop.f32.mrb[0].mxu0
    %v5401 = vadd.f32 %v3293, %v5400
    %v5402 = vpop.f32.mrb[0].mxu0
    %5403 = vdwg.mxu0
    %v5404 = vsel %vm397, %v5396, -inf
    %5405 = vmax.xlane.f32.xlu0 %v5404
    %v5406 = vpop.xlane.xlu0 %5405
    %v5407 = vsel %vm397, %v5401, -inf
    %5408 = vmax.xlane.f32.xlu0 %v5407
    %v5409 = vpop.xlane.xlu0 %5408
    %v5410 = vsub.f32 %v5396, %v5406
    %v5411 = vsub.f32 %v5401, %v5409
    %v5412 = vmul.f32 %v5410, 1.442695
    %v5413 = vpow.pop %v5412
    %v5414 = vmul.f32 %v5411, 1.442695
    %v5415 = vpow.pop %v5414
    %v5416 = vsel %vm397, %v5413, 0.0
    %5417 = vadd.xlane.f32.xlu0 %v5416
    %v5418 = vpop.xlane.xlu0 %5417
    %v5419 = vsel %vm397, %v5415, 0.0
    %5420 = vadd.xlane.f32.xlu0 %v5419
    %v5421 = vpop.xlane.xlu0 %5420
    %v5422 = vrcp.pop %v5418
    %v5423 = vrcp.pop %v5421
    %v5424 = vmul.f32 %v5413, %v5422
    %v5425 = vmul.f32 %v5415, %v5423
    %5426 = vrot.lane.b32.xlu0 %v4747, 80
    %v5427 = vpop.permute.xlu0 %5426
    %5428 = vrot.lane.b32.xlu0 %v4752, 80
    %v5429 = vpop.permute.xlu0 %5428
    %v5433 = vsel %vm397, %v5424, 0
    %v5436 = vsel %vm397, %v5425, 0
    %5438 = vmatprep.subr.mxu0 0.0
    %5439 = vmatpush1.msra.mxu0 %v5427
    %5440 = vmatprep.subr.mxu0 0.0
    %5441 = vmatpush1.msra.mxu0 %v5429
    %5442 = vmatprep.subr.mxu0 0.0
    %5443 = vmatpush1.msra.mxu0 0.0
    %5444 = vmatprep.subr.mxu0 0.0
    %5445 = vmatpush1.msra.mxu0 0.0
    %5446 = vmatprep.subr.mxu0 0.0
    %5447 = vmatpush1.msra.mxu0 0.0
    %5448 = vmatprep.subr.mxu0 0.0
    %5449 = vmatpush1.msra.mxu0 0.0
    %5450 = vmatprep.subr.mxu0 0.0
    %5451 = vmatpush1.msra.mxu0 0.0
    %5452 = vmatprep.subr.mxu0 0.0
    %5453 = vmatpush1.msra.mxu0 0.0
    %5454 = vmatprep.subr.mxu0 0.0
    %5455 = vmatpush1.msra.mxu0 0.0
    %5456 = vmatprep.subr.mxu0 0.0
    %5457 = vmatpush1.msra.mxu0 0.0
    %5458 = vmatprep.subr.mxu0 0.0
    %5459 = vmatpush1.msra.mxu0 0.0
    %5460 = vmatprep.subr.mxu0 0.0
    %5461 = vmatpush1.msra.mxu0 0.0
    %5462 = vmatprep.subr.mxu0 0.0
    %5463 = vmatpush1.msra.mxu0 0.0
    %5464 = vmatprep.subr.mxu0 0.0
    %5465 = vmatpush1.msra.mxu0 0.0
    %5466 = vmatprep.subr.mxu0 0.0
    %5467 = vmatpush1.msra.mxu0 0.0
    %5468 = vmatprep.subr.mxu0 0.0
    %5469 = vmatpush1.msra.mxu0 0.0
    %5470 = vmatprep.subr.mxu0 0.0
    %5471 = vmatpush1.msra.mxu0 0.0
    %5472 = vmatprep.subr.mxu0 0.0
    %5473 = vmatpush1.msra.mxu0 0.0
    %5474 = vmatprep.subr.mxu0 0.0
    %5475 = vmatpush1.msra.mxu0 0.0
    %5476 = vmatprep.subr.mxu0 0.0
    %5477 = vmatpush1.msra.mxu0 0.0
    %5478 = vmatprep.subr.mxu0 0.0
    %5479 = vmatpush1.msra.mxu0 0.0
    %5480 = vmatprep.subr.mxu0 0.0
    %5481 = vmatpush1.msra.mxu0 0.0
    %5482 = vmatprep.subr.mxu0 0.0
    %5483 = vmatpush1.msra.mxu0 0.0
    %5484 = vmatprep.subr.mxu0 0.0
    %5485 = vmatpush1.msra.mxu0 0.0
    %5486 = vmatprep.subr.mxu0 0.0
    %5487 = vmatpush1.msra.mxu0 0.0
    %5488 = vmatprep.subr.mxu0 0.0
    %5489 = vmatpush1.msra.mxu0 0.0
    %5490 = vmatprep.subr.mxu0 0.0
    %5491 = vmatpush1.msra.mxu0 0.0
    %5492 = vmatprep.subr.mxu0 0.0
    %5493 = vmatpush1.msra.mxu0 0.0
    %5494 = vmatprep.subr.mxu0 0.0
    %5495 = vmatpush1.msra.mxu0 0.0
    %5496 = vmatprep.subr.mxu0 0.0
    %5497 = vmatpush1.msra.mxu0 0.0
    %5498 = vmatprep.subr.mxu0 0.0
    %5499 = vmatpush1.msra.mxu0 0.0
    %5500 = vmatprep.subr.mxu0 0.0
    %5501 = vmatpush1.msra.mxu0 0.0
    %5502 = vmatprep.mubr.f32.mxu0 0.0
    %5503 = vmatmul.mubr.f32.gmra.mrb[0].mxu0 %v5433
    %v5504 = vpop.f32.mrb[0].mxu0
    %v5505 = vadd.f32 0.0, %v5504
    %v5506 = vpop.f32.mrb[0].mxu0
    %5507 = vmatprep.mubr.f32.mxu0 0.0
    %5508 = vmatmul.mubr.f32.gmra.mrb[0].mxu0 %v5436
    %v5509 = vpop.f32.mrb[0].mxu0
    %v5510 = vadd.f32 0.0, %v5509
    %v5511 = vpop.f32.mrb[0].mxu0
    %5512 = vdwg.mxu0
    %v5514 = vsel %vm313, %v5505, 0
    %v5517 = vsel %vm313, %v5510, 0
    %5519 = vmatprep.subr.mxu0 0.0
    %5520 = vmatpush1.msra.mxu0 %v3312
    %5521 = vmatprep.subr.mxu0 0.0
    %5522 = vmatpush1.msra.mxu0 0.0
    %5523 = vmatprep.subr.mxu0 0.0
    %5524 = vmatpush1.msra.mxu0 0.0
    %5525 = vmatprep.subr.mxu0 0.0
    %5526 = vmatpush1.msra.mxu0 0.0
    %5527 = vmatprep.subr.mxu0 0.0
    %5528 = vmatpush1.msra.mxu0 0.0
    %5529 = vmatprep.subr.mxu0 0.0
    %5530 = vmatpush1.msra.mxu0 0.0
    %5531 = vmatprep.subr.mxu0 0.0
    %5532 = vmatpush1.msra.mxu0 0.0
    %5533 = vmatprep.subr.mxu0 0.0
    %5534 = vmatpush1.msra.mxu0 0.0
    %5535 = vmatprep.subr.mxu0 0.0
    %5536 = vmatpush1.msra.mxu0 0.0
    %5537 = vmatprep.subr.mxu0 0.0
    %5538 = vmatpush1.msra.mxu0 0.0
    %5539 = vmatprep.subr.mxu0 0.0
    %5540 = vmatpush1.msra.mxu0 0.0
    %5541 = vmatprep.subr.mxu0 0.0
    %5542 = vmatpush1.msra.mxu0 0.0
    %5543 = vmatprep.subr.mxu0 0.0
    %5544 = vmatpush1.msra.mxu0 0.0
    %5545 = vmatprep.subr.mxu0 0.0
    %5546 = vmatpush1.msra.mxu0 0.0
    %5547 = vmatprep.subr.mxu0 0.0
    %5548 = vmatpush1.msra.mxu0 0.0
    %5549 = vmatprep.subr.mxu0 0.0
    %5550 = vmatpush1.msra.mxu0 0.0
    %5551 = vmatprep.subr.mxu0 0.0
    %5552 = vmatpush1.msra.mxu0 0.0
    %5553 = vmatprep.subr.mxu0 0.0
    %5554 = vmatpush1.msra.mxu0 0.0
    %5555 = vmatprep.subr.mxu0 0.0
    %5556 = vmatpush1.msra.mxu0 0.0
    %5557 = vmatprep.subr.mxu0 0.0
    %5558 = vmatpush1.msra.mxu0 0.0
    %5559 = vmatprep.subr.mxu0 0.0
    %5560 = vmatpush1.msra.mxu0 0.0
    %5561 = vmatprep.subr.mxu0 0.0
    %5562 = vmatpush1.msra.mxu0 0.0
    %5563 = vmatprep.subr.mxu0 0.0
    %5564 = vmatpush1.msra.mxu0 0.0
    %5565 = vmatprep.subr.mxu0 0.0
    %5566 = vmatpush1.msra.mxu0 0.0
    %5567 = vmatprep.subr.mxu0 0.0
    %5568 = vmatpush1.msra.mxu0 0.0
    %5569 = vmatprep.subr.mxu0 0.0
    %5570 = vmatpush1.msra.mxu0 0.0
    %5571 = vmatprep.subr.mxu0 0.0
    %5572 = vmatpush1.msra.mxu0 0.0
    %5573 = vmatprep.subr.mxu0 0.0
    %5574 = vmatpush1.msra.mxu0 0.0
    %5575 = vmatprep.subr.mxu0 0.0
    %5576 = vmatpush1.msra.mxu0 0.0
    %5577 = vmatprep.subr.mxu0 0.0
    %5578 = vmatpush1.msra.mxu0 0.0
    %5579 = vmatprep.subr.mxu0 0.0
    %5580 = vmatpush1.msra.mxu0 0.0
    %5581 = vmatprep.subr.mxu0 0.0
    %5582 = vmatpush1.msra.mxu0 0.0
    %5583 = vmatprep.mubr.f32.mxu0 0.0
    %5584 = vmatmul.mubr.f32.gmra.mrb[0].mxu0 %v5514
    %v5585 = vpop.f32.mrb[0].mxu0
    %v5586 = vadd.f32 0.0, %v5585
    %v5587 = vpop.f32.mrb[0].mxu0
    %5588 = vmatprep.mubr.f32.mxu0 0.0
    %5589 = vmatmul.mubr.f32.gmra.mrb[0].mxu0 %v5517
    %v5590 = vpop.f32.mrb[0].mxu0
    %v5591 = vadd.f32 0.0, %v5590
    %v5592 = vpop.f32.mrb[0].mxu0
    %5593 = vdwg.mxu0
    %v5594 = vadd.f32 %v5305, %v5586
    %v5595 = vadd.f32 %v5310, %v5591
    %5596 = vrot.lane.b32.xlu0 %v4662, 104
    %v5597 = vpop.permute.xlu0 %5596
    %5598 = vrot.lane.b32.xlu0 %v4667, 104
    %v5599 = vpop.permute.xlu0 %5598
    %5600 = vrot.lane.b32.xlu0 %v4747, 104
    %v5601 = vpop.permute.xlu0 %5600
    %5602 = vrot.lane.b32.xlu0 %v4752, 104
    %v5603 = vpop.permute.xlu0 %5602
    %v5604 = vsel %vm313, %v5597, 0
    %v5606 = vsel %vm313, %v5599, 0
    %v5608 = vsel %vm313, %v5601, 0
    %v5610 = vsel %vm313, %v5603, 0
    %5612 = vmatprep.subr.mxu0 0.0
    %5613 = vmatpush1.xpose.msra.mxu0 %v5608
    %5614 = vmatprep.subr.mxu0 0.0
    %5615 = vmatpush1.xpose.msra.mxu0 %v5610
    %5616 = vmatprep.subr.mxu0 0.0
    %5617 = vmatpush1.xpose.msra.mxu0 0.0
    %5618 = vmatprep.subr.mxu0 0.0
    %5619 = vmatpush1.xpose.msra.mxu0 0.0
    %5620 = vmatprep.subr.mxu0 0.0
    %5621 = vmatpush1.xpose.msra.mxu0 0.0
    %5622 = vmatprep.subr.mxu0 0.0
    %5623 = vmatpush1.xpose.msra.mxu0 0.0
    %5624 = vmatprep.subr.mxu0 0.0
    %5625 = vmatpush1.xpose.msra.mxu0 0.0
    %5626 = vmatprep.subr.mxu0 0.0
    %5627 = vmatpush1.xpose.msra.mxu0 0.0
    %5628 = vmatprep.subr.mxu0 0.0
    %5629 = vmatpush1.xpose.msra.mxu0 0.0
    %5630 = vmatprep.subr.mxu0 0.0
    %5631 = vmatpush1.xpose.msra.mxu0 0.0
    %5632 = vmatprep.subr.mxu0 0.0
    %5633 = vmatpush1.xpose.msra.mxu0 0.0
    %5634 = vmatprep.subr.mxu0 0.0
    %5635 = vmatpush1.xpose.msra.mxu0 0.0
    %5636 = vmatprep.subr.mxu0 0.0
    %5637 = vmatpush1.xpose.msra.mxu0 0.0
    %5638 = vmatprep.subr.mxu0 0.0
    %5639 = vmatpush1.xpose.msra.mxu0 0.0
    %5640 = vmatprep.subr.mxu0 0.0
    %5641 = vmatpush1.xpose.msra.mxu0 0.0
    %5642 = vmatprep.subr.mxu0 0.0
    %5643 = vmatpush1.xpose.msra.mxu0 0.0
    %5644 = vmatprep.subr.mxu0 0.0
    %5645 = vmatpush1.xpose.msra.mxu0 0.0
    %5646 = vmatprep.subr.mxu0 0.0
    %5647 = vmatpush1.xpose.msra.mxu0 0.0
    %5648 = vmatprep.subr.mxu0 0.0
    %5649 = vmatpush1.xpose.msra.mxu0 0.0
    %5650 = vmatprep.subr.mxu0 0.0
    %5651 = vmatpush1.xpose.msra.mxu0 0.0
    %5652 = vmatprep.subr.mxu0 0.0
    %5653 = vmatpush1.xpose.msra.mxu0 0.0
    %5654 = vmatprep.subr.mxu0 0.0
    %5655 = vmatpush1.xpose.msra.mxu0 0.0
    %5656 = vmatprep.subr.mxu0 0.0
    %5657 = vmatpush1.xpose.msra.mxu0 0.0
    %5658 = vmatprep.subr.mxu0 0.0
    %5659 = vmatpush1.xpose.msra.mxu0 0.0
    %5660 = vmatprep.subr.mxu0 0.0
    %5661 = vmatpush1.xpose.msra.mxu0 0.0
    %5662 = vmatprep.subr.mxu0 0.0
    %5663 = vmatpush1.xpose.msra.mxu0 0.0
    %5664 = vmatprep.subr.mxu0 0.0
    %5665 = vmatpush1.xpose.msra.mxu0 0.0
    %5666 = vmatprep.subr.mxu0 0.0
    %5667 = vmatpush1.xpose.msra.mxu0 0.0
    %5668 = vmatprep.subr.mxu0 0.0
    %5669 = vmatpush1.xpose.msra.mxu0 0.0
    %5670 = vmatprep.subr.mxu0 0.0
    %5671 = vmatpush1.xpose.msra.mxu0 0.0
    %5672 = vmatprep.subr.mxu0 0.0
    %5673 = vmatpush1.xpose.msra.mxu0 0.0
    %5674 = vmatprep.subr.mxu0 0.0
    %5675 = vmatpush1.xpose.msra.mxu0 0.0
    %5676 = vmatprep.mubr.f32.mxu0 0.0
    %5677 = vmatmul.mubr.f32.gmra.mrb[0].mxu0 %v5604
    %v5678 = vpop.f32.mrb[0].mxu0
    %v5679 = vadd.f32 %v3292, %v5678
    %v5680 = vpop.f32.mrb[0].mxu0
    %5681 = vmatprep.mubr.f32.mxu0 0.0
    %5682 = vmatmul.mubr.f32.gmra.mrb[0].mxu0 %v5606
    %v5683 = vpop.f32.mrb[0].mxu0
    %v5684 = vadd.f32 %v3293, %v5683
    %v5685 = vpop.f32.mrb[0].mxu0
    %5686 = vdwg.mxu0
    %v5687 = vsel %vm397, %v5679, -inf
    %5688 = vmax.xlane.f32.xlu0 %v5687
    %v5689 = vpop.xlane.xlu0 %5688
    %v5690 = vsel %vm397, %v5684, -inf
    %5691 = vmax.xlane.f32.xlu0 %v5690
    %v5692 = vpop.xlane.xlu0 %5691
    %v5693 = vsub.f32 %v5679, %v5689
    %v5694 = vsub.f32 %v5684, %v5692
    %v5695 = vmul.f32 %v5693, 1.442695
    %v5696 = vpow.pop %v5695
    %v5697 = vmul.f32 %v5694, 1.442695
    %v5698 = vpow.pop %v5697
    %v5699 = vsel %vm397, %v5696, 0.0
    %5700 = vadd.xlane.f32.xlu0 %v5699
    %v5701 = vpop.xlane.xlu0 %5700
    %v5702 = vsel %vm397, %v5698, 0.0
    %5703 = vadd.xlane.f32.xlu0 %v5702
    %v5704 = vpop.xlane.xlu0 %5703
    %v5705 = vrcp.pop %v5701
    %v5706 = vrcp.pop %v5704
    %v5707 = vmul.f32 %v5696, %v5705
    %v5708 = vmul.f32 %v5698, %v5706
    %5709 = vrot.lane.b32.xlu0 %v4747, 72
    %v5710 = vpop.permute.xlu0 %5709
    %5711 = vrot.lane.b32.xlu0 %v4752, 72
    %v5712 = vpop.permute.xlu0 %5711
    %v5716 = vsel %vm397, %v5707, 0
    %v5719 = vsel %vm397, %v5708, 0
    %5721 = vmatprep.subr.mxu0 0.0
    %5722 = vmatpush1.msra.mxu0 %v5710
    %5723 = vmatprep.subr.mxu0 0.0
    %5724 = vmatpush1.msra.mxu0 %v5712
    %5725 = vmatprep.subr.mxu0 0.0
    %5726 = vmatpush1.msra.mxu0 0.0
    %5727 = vmatprep.subr.mxu0 0.0
    %5728 = vmatpush1.msra.mxu0 0.0
    %5729 = vmatprep.subr.mxu0 0.0
    %5730 = vmatpush1.msra.mxu0 0.0
    %5731 = vmatprep.subr.mxu0 0.0
    %5732 = vmatpush1.msra.mxu0 0.0
    %5733 = vmatprep.subr.mxu0 0.0
    %5734 = vmatpush1.msra.mxu0 0.0
    %5735 = vmatprep.subr.mxu0 0.0
    %5736 = vmatpush1.msra.mxu0 0.0
    %5737 = vmatprep.subr.mxu0 0.0
    %5738 = vmatpush1.msra.mxu0 0.0
    %5739 = vmatprep.subr.mxu0 0.0
    %5740 = vmatpush1.msra.mxu0 0.0
    %5741 = vmatprep.subr.mxu0 0.0
    %5742 = vmatpush1.msra.mxu0 0.0
    %5743 = vmatprep.subr.mxu0 0.0
    %5744 = vmatpush1.msra.mxu0 0.0
    %5745 = vmatprep.subr.mxu0 0.0
    %5746 = vmatpush1.msra.mxu0 0.0
    %5747 = vmatprep.subr.mxu0 0.0
    %5748 = vmatpush1.msra.mxu0 0.0
    %5749 = vmatprep.subr.mxu0 0.0
    %5750 = vmatpush1.msra.mxu0 0.0
    %5751 = vmatprep.subr.mxu0 0.0
    %5752 = vmatpush1.msra.mxu0 0.0
    %5753 = vmatprep.subr.mxu0 0.0
    %5754 = vmatpush1.msra.mxu0 0.0
    %5755 = vmatprep.subr.mxu0 0.0
    %5756 = vmatpush1.msra.mxu0 0.0
    %5757 = vmatprep.subr.mxu0 0.0
    %5758 = vmatpush1.msra.mxu0 0.0
    %5759 = vmatprep.subr.mxu0 0.0
    %5760 = vmatpush1.msra.mxu0 0.0
    %5761 = vmatprep.subr.mxu0 0.0
    %5762 = vmatpush1.msra.mxu0 0.0
    %5763 = vmatprep.subr.mxu0 0.0
    %5764 = vmatpush1.msra.mxu0 0.0
    %5765 = vmatprep.subr.mxu0 0.0
    %5766 = vmatpush1.msra.mxu0 0.0
    %5767 = vmatprep.subr.mxu0 0.0
    %5768 = vmatpush1.msra.mxu0 0.0
    %5769 = vmatprep.subr.mxu0 0.0
    %5770 = vmatpush1.msra.mxu0 0.0
    %5771 = vmatprep.subr.mxu0 0.0
    %5772 = vmatpush1.msra.mxu0 0.0
    %5773 = vmatprep.subr.mxu0 0.0
    %5774 = vmatpush1.msra.mxu0 0.0
    %5775 = vmatprep.subr.mxu0 0.0
    %5776 = vmatpush1.msra.mxu0 0.0
    %5777 = vmatprep.subr.mxu0 0.0
    %5778 = vmatpush1.msra.mxu0 0.0
    %5779 = vmatprep.subr.mxu0 0.0
    %5780 = vmatpush1.msra.mxu0 0.0
    %5781 = vmatprep.subr.mxu0 0.0
    %5782 = vmatpush1.msra.mxu0 0.0
    %5783 = vmatprep.subr.mxu0 0.0
    %5784 = vmatpush1.msra.mxu0 0.0
    %5785 = vmatprep.mubr.f32.mxu0 0.0
    %5786 = vmatmul.mubr.f32.gmra.mrb[0].mxu0 %v5716
    %v5787 = vpop.f32.mrb[0].mxu0
    %v5788 = vadd.f32 0.0, %v5787
    %v5789 = vpop.f32.mrb[0].mxu0
    %5790 = vmatprep.mubr.f32.mxu0 0.0
    %5791 = vmatmul.mubr.f32.gmra.mrb[0].mxu0 %v5719
    %v5792 = vpop.f32.mrb[0].mxu0
    %v5793 = vadd.f32 0.0, %v5792
    %v5794 = vpop.f32.mrb[0].mxu0
    %5795 = vdwg.mxu0
    %v5797 = vsel %vm313, %v5788, 0
    %v5800 = vsel %vm313, %v5793, 0
    %5802 = vmatprep.subr.mxu0 0.0
    %5803 = vmatpush1.msra.mxu0 %v3313
    %5804 = vmatprep.subr.mxu0 0.0
    %5805 = vmatpush1.msra.mxu0 0.0
    %5806 = vmatprep.subr.mxu0 0.0
    %5807 = vmatpush1.msra.mxu0 0.0
    %5808 = vmatprep.subr.mxu0 0.0
    %5809 = vmatpush1.msra.mxu0 0.0
    %5810 = vmatprep.subr.mxu0 0.0
    %5811 = vmatpush1.msra.mxu0 0.0
    %5812 = vmatprep.subr.mxu0 0.0
    %5813 = vmatpush1.msra.mxu0 0.0
    %5814 = vmatprep.subr.mxu0 0.0
    %5815 = vmatpush1.msra.mxu0 0.0
    %5816 = vmatprep.subr.mxu0 0.0
    %5817 = vmatpush1.msra.mxu0 0.0
    %5818 = vmatprep.subr.mxu0 0.0
    %5819 = vmatpush1.msra.mxu0 0.0
    %5820 = vmatprep.subr.mxu0 0.0
    %5821 = vmatpush1.msra.mxu0 0.0
    %5822 = vmatprep.subr.mxu0 0.0
    %5823 = vmatpush1.msra.mxu0 0.0
    %5824 = vmatprep.subr.mxu0 0.0
    %5825 = vmatpush1.msra.mxu0 0.0
    %5826 = vmatprep.subr.mxu0 0.0
    %5827 = vmatpush1.msra.mxu0 0.0
    %5828 = vmatprep.subr.mxu0 0.0
    %5829 = vmatpush1.msra.mxu0 0.0
    %5830 = vmatprep.subr.mxu0 0.0
    %5831 = vmatpush1.msra.mxu0 0.0
    %5832 = vmatprep.subr.mxu0 0.0
    %5833 = vmatpush1.msra.mxu0 0.0
    %5834 = vmatprep.subr.mxu0 0.0
    %5835 = vmatpush1.msra.mxu0 0.0
    %5836 = vmatprep.subr.mxu0 0.0
    %5837 = vmatpush1.msra.mxu0 0.0
    %5838 = vmatprep.subr.mxu0 0.0
    %5839 = vmatpush1.msra.mxu0 0.0
    %5840 = vmatprep.subr.mxu0 0.0
    %5841 = vmatpush1.msra.mxu0 0.0
    %5842 = vmatprep.subr.mxu0 0.0
    %5843 = vmatpush1.msra.mxu0 0.0
    %5844 = vmatprep.subr.mxu0 0.0
    %5845 = vmatpush1.msra.mxu0 0.0
    %5846 = vmatprep.subr.mxu0 0.0
    %5847 = vmatpush1.msra.mxu0 0.0
    %5848 = vmatprep.subr.mxu0 0.0
    %5849 = vmatpush1.msra.mxu0 0.0
    %5850 = vmatprep.subr.mxu0 0.0
    %5851 = vmatpush1.msra.mxu0 0.0
    %5852 = vmatprep.subr.mxu0 0.0
    %5853 = vmatpush1.msra.mxu0 0.0
    %5854 = vmatprep.subr.mxu0 0.0
    %5855 = vmatpush1.msra.mxu0 0.0
    %5856 = vmatprep.subr.mxu0 0.0
    %5857 = vmatpush1.msra.mxu0 0.0
    %5858 = vmatprep.subr.mxu0 0.0
    %5859 = vmatpush1.msra.mxu0 0.0
    %5860 = vmatprep.subr.mxu0 0.0
    %5861 = vmatpush1.msra.mxu0 0.0
    %5862 = vmatprep.subr.mxu0 0.0
    %5863 = vmatpush1.msra.mxu0 0.0
    %5864 = vmatprep.subr.mxu0 0.0
    %5865 = vmatpush1.msra.mxu0 0.0
    %5866 = vmatprep.mubr.f32.mxu0 0.0
    %5867 = vmatmul.mubr.f32.gmra.mrb[0].mxu0 %v5797
    %v5868 = vpop.f32.mrb[0].mxu0
    %v5869 = vadd.f32 0.0, %v5868
    %v5870 = vpop.f32.mrb[0].mxu0
    %5871 = vmatprep.mubr.f32.mxu0 0.0
    %5872 = vmatmul.mubr.f32.gmra.mrb[0].mxu0 %v5800
    %v5873 = vpop.f32.mrb[0].mxu0
    %v5874 = vadd.f32 0.0, %v5873
    %v5875 = vpop.f32.mrb[0].mxu0
    %5876 = vdwg.mxu0
    %v5877 = vadd.f32 %v5594, %v5869
    %v5878 = vadd.f32 %v5595, %v5874
    %v5879 = vlaneseq
    %v5880 = vshrl.u32 %v5879, 7
    %v5881 = vsub.s32 4, %v5880
    %v5882 = vrot.slane %v3326, %v5881
    %v5883 = vadd.f32 %v5877, %v5882
    %v5884 = vadd.f32 %v5878, %v5882
    %v5885 = vadd.f32 %v4583, %v5883
    %v5886 = vadd.f32 %v4584, %v5884
    %v5887 = vsel %vm225, %v5885, 0.0
    %5888 = vadd.xlane.f32.xlu0 %v5887
    %v5889 = vpop.xlane.xlu0 %5888
    %v5890 = vsel %vm225, %v5886, 0.0
    %5891 = vadd.xlane.f32.xlu0 %v5890
    %v5892 = vpop.xlane.xlu0 %5891
    %v5893 = vmul.f32 %v5889, %v1449
    %v5894 = vmul.f32 %v5892, %v1449
    %v5895 = vsub.f32 %v5885, %v5893
    %v5896 = vsub.f32 %v5886, %v5894
    %v5897 = vmul.f32 %v5895, %v5895
    %v5898 = vmul.f32 %v5896, %v5896
    %v5899 = vsel %vm225, %v5897, 0.0
    %5900 = vadd.xlane.f32.xlu0 %v5899
    %v5901 = vpop.xlane.xlu0 %5900
    %v5902 = vsel %vm225, %v5898, 0.0
    %5903 = vadd.xlane.f32.xlu0 %v5902
    %v5904 = vpop.xlane.xlu0 %5903
    %v5905 = vmul.f32 %v5901, %v1449
    %v5906 = vmul.f32 %v5904, %v1449
    %v5907 = vadd.f32 %v5905, 1e-05
    %v5908 = vadd.f32 %v5906, 1e-05
    %v5909 = vrsqrt.pop %v5907
    %v5910 = vrsqrt.pop %v5908
    %v5911 = vmul.f32 %v5895, %v5909
    %v5912 = vmul.f32 %v5896, %v5910
    %v5913 = vlaneseq
    %v5914 = vshrl.u32 %v5913, 7
    %v5915 = vsub.s32 1, %v5914
    %v5916 = vrot.slane %v3327, %v5915
    %v5917 = vmul.f32 %v5911, %v5916
    %v5918 = vmul.f32 %v5912, %v5916
    %v5919 = vlaneseq
    %v5920 = vshrl.u32 %v5919, 7
    %v5921 = vsub.s32 2, %v5920
    %v5922 = vrot.slane %v3327, %v5921
    %v5923 = vadd.f32 %v5917, %v5922
    %v5924 = vadd.f32 %v5918, %v5922
    %v5925 = vlaneseq
    %v5926 = vshrl.u32 %v5925, 7
    %v5927 = vsub.s32 5, %v5926
    %v5928 = vrot.slane %v3326, %v5927
    %v5930 = vsel %vm225, %v5923, 0
    %v5933 = vsel %vm225, %v5924, 0
    %5935 = vmatprep.subr.mxu0 0.0
    %5936 = vmatpush1.msra.mxu0 %v3314
    %5937 = vmatprep.subr.mxu0 0.0
    %5938 = vmatpush1.msra.mxu0 %v3315
    %5939 = vmatprep.subr.mxu0 0.0
    %5940 = vmatpush1.msra.mxu0 %v3316
    %5941 = vmatprep.subr.mxu0 0.0
    %5942 = vmatpush1.msra.mxu0 %v3317
    %5943 = vmatprep.subr.mxu0 0.0
    %5944 = vmatpush1.msra.mxu0 0.0
    %5945 = vmatprep.subr.mxu0 0.0
    %5946 = vmatpush1.msra.mxu0 0.0
    %5947 = vmatprep.subr.mxu0 0.0
    %5948 = vmatpush1.msra.mxu0 0.0
    %5949 = vmatprep.subr.mxu0 0.0
    %5950 = vmatpush1.msra.mxu0 0.0
    %5951 = vmatprep.subr.mxu0 0.0
    %5952 = vmatpush1.msra.mxu0 0.0
    %5953 = vmatprep.subr.mxu0 0.0
    %5954 = vmatpush1.msra.mxu0 0.0
    %5955 = vmatprep.subr.mxu0 0.0
    %5956 = vmatpush1.msra.mxu0 0.0
    %5957 = vmatprep.subr.mxu0 0.0
    %5958 = vmatpush1.msra.mxu0 0.0
    %5959 = vmatprep.subr.mxu0 0.0
    %5960 = vmatpush1.msra.mxu0 0.0
    %5961 = vmatprep.subr.mxu0 0.0
    %5962 = vmatpush1.msra.mxu0 0.0
    %5963 = vmatprep.subr.mxu0 0.0
    %5964 = vmatpush1.msra.mxu0 0.0
    %5965 = vmatprep.subr.mxu0 0.0
    %5966 = vmatpush1.msra.mxu0 0.0
    %5967 = vmatprep.subr.mxu0 0.0
    %5968 = vmatpush1.msra.mxu0 0.0
    %5969 = vmatprep.subr.mxu0 0.0
    %5970 = vmatpush1.msra.mxu0 0.0
    %5971 = vmatprep.subr.mxu0 0.0
    %5972 = vmatpush1.msra.mxu0 0.0
    %5973 = vmatprep.subr.mxu0 0.0
    %5974 = vmatpush1.msra.mxu0 0.0
    %5975 = vmatprep.subr.mxu0 0.0
    %5976 = vmatpush1.msra.mxu0 0.0
    %5977 = vmatprep.subr.mxu0 0.0
    %5978 = vmatpush1.msra.mxu0 0.0
    %5979 = vmatprep.subr.mxu0 0.0
    %5980 = vmatpush1.msra.mxu0 0.0
    %5981 = vmatprep.subr.mxu0 0.0
    %5982 = vmatpush1.msra.mxu0 0.0
    %5983 = vmatprep.subr.mxu0 0.0
    %5984 = vmatpush1.msra.mxu0 0.0
    %5985 = vmatprep.subr.mxu0 0.0
    %5986 = vmatpush1.msra.mxu0 0.0
    %5987 = vmatprep.subr.mxu0 0.0
    %5988 = vmatpush1.msra.mxu0 0.0
    %5989 = vmatprep.subr.mxu0 0.0
    %5990 = vmatpush1.msra.mxu0 0.0
    %5991 = vmatprep.subr.mxu0 0.0
    %5992 = vmatpush1.msra.mxu0 0.0
    %5993 = vmatprep.subr.mxu0 0.0
    %5994 = vmatpush1.msra.mxu0 0.0
    %5995 = vmatprep.subr.mxu0 0.0
    %5996 = vmatpush1.msra.mxu0 0.0
    %5997 = vmatprep.subr.mxu0 0.0
    %5998 = vmatpush1.msra.mxu0 0.0
    %5999 = vmatprep.mubr.f32.mxu0 0.0
    %6000 = vmatmul.mubr.f32.gmra.mrb[0].mxu0 %v5930
    %v6001 = vpop.f32.mrb[0].mxu0
    %v6002 = vadd.f32 %v5928, %v6001
    %v6003 = vpop.f32.mrb[0].mxu0
    %6004 = vmatprep.mubr.f32.mxu0 0.0
    %6005 = vmatmul.mubr.f32.gmra.mrb[0].mxu0 %v5933
    %v6006 = vpop.f32.mrb[0].mxu0
    %v6007 = vadd.f32 %v5928, %v6006
    %v6008 = vpop.f32.mrb[0].mxu0
    %6009 = vdwg.mxu0
    %v6010 = vmax.f32 %v6002, 0.0
    %v6011 = vmax.f32 %v6007, 0.0
    %v6012 = vlaneseq
    %v6013 = vshrl.u32 %v6012, 7
    %v6014 = vsub.s32 6, %v6013
    %v6015 = vrot.slane %v3326, %v6014
    %v6017 = vsel %vm110, %v6010, 0
    %v6020 = vsel %vm110, %v6011, 0
    %6022 = vmatprep.subr.mxu0 0.0
    %6023 = vmatpush1.msra.mxu0 %v3318
    %6024 = vmatprep.subr.mxu0 0.0
    %6025 = vmatpush1.msra.mxu0 %v3319
    %6026 = vmatprep.subr.mxu0 0.0
    %6027 = vmatpush1.msra.mxu0 %v3320
    %6028 = vmatprep.subr.mxu0 0.0
    %6029 = vmatpush1.msra.mxu0 %v3321
    %6030 = vmatprep.subr.mxu0 0.0
    %6031 = vmatpush1.msra.mxu0 %v3322
    %6032 = vmatprep.subr.mxu0 0.0
    %6033 = vmatpush1.msra.mxu0 %v3323
    %6034 = vmatprep.subr.mxu0 0.0
    %6035 = vmatpush1.msra.mxu0 %v3324
    %6036 = vmatprep.subr.mxu0 0.0
    %6037 = vmatpush1.msra.mxu0 %v3325
    %6038 = vmatprep.subr.mxu0 0.0
    %6039 = vmatpush1.msra.mxu0 0.0
    %6040 = vmatprep.subr.mxu0 0.0
    %6041 = vmatpush1.msra.mxu0 0.0
    %6042 = vmatprep.subr.mxu0 0.0
    %6043 = vmatpush1.msra.mxu0 0.0
    %6044 = vmatprep.subr.mxu0 0.0
    %6045 = vmatpush1.msra.mxu0 0.0
    %6046 = vmatprep.subr.mxu0 0.0
    %6047 = vmatpush1.msra.mxu0 0.0
    %6048 = vmatprep.subr.mxu0 0.0
    %6049 = vmatpush1.msra.mxu0 0.0
    %6050 = vmatprep.subr.mxu0 0.0
    %6051 = vmatpush1.msra.mxu0 0.0
    %6052 = vmatprep.subr.mxu0 0.0
    %6053 = vmatpush1.msra.mxu0 0.0
    %6054 = vmatprep.subr.mxu0 0.0
    %6055 = vmatpush1.msra.mxu0 0.0
    %6056 = vmatprep.subr.mxu0 0.0
    %6057 = vmatpush1.msra.mxu0 0.0
    %6058 = vmatprep.subr.mxu0 0.0
    %6059 = vmatpush1.msra.mxu0 0.0
    %6060 = vmatprep.subr.mxu0 0.0
    %6061 = vmatpush1.msra.mxu0 0.0
    %6062 = vmatprep.subr.mxu0 0.0
    %6063 = vmatpush1.msra.mxu0 0.0
    %6064 = vmatprep.subr.mxu0 0.0
    %6065 = vmatpush1.msra.mxu0 0.0
    %6066 = vmatprep.subr.mxu0 0.0
    %6067 = vmatpush1.msra.mxu0 0.0
    %6068 = vmatprep.subr.mxu0 0.0
    %6069 = vmatpush1.msra.mxu0 0.0
    %6070 = vmatprep.subr.mxu0 0.0
    %6071 = vmatpush1.msra.mxu0 0.0
    %6072 = vmatprep.subr.mxu0 0.0
    %6073 = vmatpush1.msra.mxu0 0.0
    %6074 = vmatprep.subr.mxu0 0.0
    %6075 = vmatpush1.msra.mxu0 0.0
    %6076 = vmatprep.subr.mxu0 0.0
    %6077 = vmatpush1.msra.mxu0 0.0
    %6078 = vmatprep.subr.mxu0 0.0
    %6079 = vmatpush1.msra.mxu0 0.0
    %6080 = vmatprep.subr.mxu0 0.0
    %6081 = vmatpush1.msra.mxu0 0.0
    %6082 = vmatprep.subr.mxu0 0.0
    %6083 = vmatpush1.msra.mxu0 0.0
    %6084 = vmatprep.subr.mxu0 0.0
    %6085 = vmatpush1.msra.mxu0 0.0
    %6086 = vmatprep.mubr.f32.mxu0 0.0
    %6087 = vmatmul.mubr.f32.gmra.mrb[0].mxu0 %v6017
    %v6088 = vpop.f32.mrb[0].mxu0
    %v6089 = vadd.f32 %v6015, %v6088
    %v6090 = vpop.f32.mrb[0].mxu0
    %6091 = vmatprep.mubr.f32.mxu0 0.0
    %6092 = vmatmul.mubr.f32.gmra.mrb[0].mxu0 %v6020
    %v6093 = vpop.f32.mrb[0].mxu0
    %v6094 = vadd.f32 %v6015, %v6093
    %v6095 = vpop.f32.mrb[0].mxu0
    %6096 = vdwg.mxu0
    %v6097 = vadd.f32 %v5923, %v6089
    %v6098 = vadd.f32 %v5924, %v6094
    %v6099 = vsel %vm225, %v6097, 0.0
    %6100 = vadd.xlane.f32.xlu0 %v6099
    %v6101 = vpop.xlane.xlu0 %6100
    %v6102 = vsel %vm225, %v6098, 0.0
    %6103 = vadd.xlane.f32.xlu0 %v6102
    %v6104 = vpop.xlane.xlu0 %6103
    %v6105 = vmul.f32 %v6101, %v1449
    %v6106 = vmul.f32 %v6104, %v1449
    %v6107 = vsub.f32 %v6097, %v6105
    %v6108 = vsub.f32 %v6098, %v6106
    %v6109 = vmul.f32 %v6107, %v6107
    %v6110 = vmul.f32 %v6108, %v6108
    %v6111 = vsel %vm225, %v6109, 0.0
    %6112 = vadd.xlane.f32.xlu0 %v6111
    %v6113 = vpop.xlane.xlu0 %6112
    %v6114 = vsel %vm225, %v6110, 0.0
    %6115 = vadd.xlane.f32.xlu0 %v6114
    %v6116 = vpop.xlane.xlu0 %6115
    %v6117 = vmul.f32 %v6113, %v1449
    %v6118 = vmul.f32 %v6116, %v1449
    %v6119 = vadd.f32 %v6117, 1e-05
    %v6120 = vadd.f32 %v6118, 1e-05
    %v6121 = vrsqrt.pop %v6119
    %v6122 = vrsqrt.pop %v6120
    %v6123 = vmul.f32 %v6107, %v6121
    %v6124 = vmul.f32 %v6108, %v6122
    %v6125 = vlaneseq
    %v6126 = vshrl.u32 %v6125, 7
    %v6127 = vsub.s32 3, %v6126
    %v6128 = vrot.slane %v3327, %v6127
    %v6129 = vmul.f32 %v6123, %v6128
    %v6130 = vmul.f32 %v6124, %v6128
    %v6131 = vlaneseq
    %v6132 = vshrl.u32 %v6131, 7
    %v6133 = vsub.s32 4, %v6132
    %v6134 = vrot.slane %v3327, %v6133
    %v6135 = vadd.f32 %v6129, %v6134
    %v6136 = vadd.f32 %v6130, %v6134
    %s6137 = scalar_lea.vmem %s13, 32
    %v6138 = vld [vmem:[%s6137] sm:$0xff]
    %v6139 = vld [vmem:[%s6137 + $0x8] sm:$0xff]
    %v6140 = vld [vmem:[%s6137 + $0x10] sm:$0xff]
    %v6141 = vld [vmem:[%s6137 + $0x18] sm:$0xff]
    %s6142 = scalar_lea.vmem %s14, 32
    %v6143 = vld [vmem:[%s6142] sm:$0xff]
    %v6144 = vld [vmem:[%s6142 + $0x8] sm:$0xff]
    %v6145 = vld [vmem:[%s6142 + $0x10] sm:$0xff]
    %v6146 = vld [vmem:[%s6142 + $0x18] sm:$0xff]
    %s6147 = scalar_lea.vmem %s15, 32
    %v6148 = vld [vmem:[%s6147] sm:$0xff]
    %v6149 = vld [vmem:[%s6147 + $0x8] sm:$0xff]
    %v6150 = vld [vmem:[%s6147 + $0x10] sm:$0xff]
    %v6151 = vld [vmem:[%s6147 + $0x18] sm:$0xff]
    %s6152 = scalar_lea.vmem %s16, 32
    %v6153 = vld [vmem:[%s6152] sm:$0xff]
    %v6154 = vld [vmem:[%s6152 + $0x8] sm:$0xff]
    %v6155 = vld [vmem:[%s6152 + $0x10] sm:$0xff]
    %v6156 = vld [vmem:[%s6152 + $0x18] sm:$0xff]
    %s6157 = scalar_lea.vmem %s17, 32
    %v6158 = vld [vmem:[%s6157] sm:$0xff]
    %v6159 = vld [vmem:[%s6157 + $0x8] sm:$0xff]
    %v6160 = vld [vmem:[%s6157 + $0x10] sm:$0xff]
    %v6161 = vld [vmem:[%s6157 + $0x18] sm:$0xff]
    %s6162 = scalar_lea.vmem %s18, 32
    %v6163 = vld [vmem:[%s6162] sm:$0xff]
    %v6164 = vld [vmem:[%s6162 + $0x8] sm:$0xff]
    %v6165 = vld [vmem:[%s6162 + $0x10] sm:$0xff]
    %v6166 = vld [vmem:[%s6162 + $0x18] sm:$0xff]
    %s6167 = scalar_lea.vmem %s19, 64
    %v6168 = vld [vmem:[%s6167] sm:$0xff]
    %v6169 = vld [vmem:[%s6167 + $0x8] sm:$0xff]
    %v6170 = vld [vmem:[%s6167 + $0x10] sm:$0xff]
    %v6171 = vld [vmem:[%s6167 + $0x18] sm:$0xff]
    %v6172 = vld [vmem:[%s6167 + $0x20] sm:$0xff]
    %v6173 = vld [vmem:[%s6167 + $0x28] sm:$0xff]
    %v6174 = vld [vmem:[%s6167 + $0x30] sm:$0xff]
    %v6175 = vld [vmem:[%s6167 + $0x38] sm:$0xff]
    %s6176 = scalar_lea.vmem %s20, 16
    %v6177 = vld [vmem:[%s6176] sm:$0xff]
    %v6178 = vld [vmem:[%s6176 + $0x8] sm:$0xff]
    %v6179 = vlaneseq
    %v6180 = vshrl.u32 %v6179, 7
    %v6181 = vsub.s32 0, %v6180
    %v6182 = vrot.slane %v6177, %v6181
    %v6184 = vsel %vm225, %v6135, 0
    %v6187 = vsel %vm225, %v6136, 0
    %6189 = vmatprep.subr.mxu0 0.0
    %6190 = vmatpush1.msra.mxu0 %v6138
    %6191 = vmatprep.subr.mxu0 0.0
    %6192 = vmatpush1.msra.mxu0 %v6139
    %6193 = vmatprep.subr.mxu0 0.0
    %6194 = vmatpush1.msra.mxu0 %v6140
    %6195 = vmatprep.subr.mxu0 0.0
    %6196 = vmatpush1.msra.mxu0 %v6141
    %6197 = vmatprep.subr.mxu0 0.0
    %6198 = vmatpush1.msra.mxu0 0.0
    %6199 = vmatprep.subr.mxu0 0.0
    %6200 = vmatpush1.msra.mxu0 0.0
    %6201 = vmatprep.subr.mxu0 0.0
    %6202 = vmatpush1.msra.mxu0 0.0
    %6203 = vmatprep.subr.mxu0 0.0
    %6204 = vmatpush1.msra.mxu0 0.0
    %6205 = vmatprep.subr.mxu0 0.0
    %6206 = vmatpush1.msra.mxu0 0.0
    %6207 = vmatprep.subr.mxu0 0.0
    %6208 = vmatpush1.msra.mxu0 0.0
    %6209 = vmatprep.subr.mxu0 0.0
    %6210 = vmatpush1.msra.mxu0 0.0
    %6211 = vmatprep.subr.mxu0 0.0
    %6212 = vmatpush1.msra.mxu0 0.0
    %6213 = vmatprep.subr.mxu0 0.0
    %6214 = vmatpush1.msra.mxu0 0.0
    %6215 = vmatprep.subr.mxu0 0.0
    %6216 = vmatpush1.msra.mxu0 0.0
    %6217 = vmatprep.subr.mxu0 0.0
    %6218 = vmatpush1.msra.mxu0 0.0
    %6219 = vmatprep.subr.mxu0 0.0
    %6220 = vmatpush1.msra.mxu0 0.0
    %6221 = vmatprep.subr.mxu0 0.0
    %6222 = vmatpush1.msra.mxu0 0.0
    %6223 = vmatprep.subr.mxu0 0.0
    %6224 = vmatpush1.msra.mxu0 0.0
    %6225 = vmatprep.subr.mxu0 0.0
    %6226 = vmatpush1.msra.mxu0 0.0
    %6227 = vmatprep.subr.mxu0 0.0
    %6228 = vmatpush1.msra.mxu0 0.0
    %6229 = vmatprep.subr.mxu0 0.0
    %6230 = vmatpush1.msra.mxu0 0.0
    %6231 = vmatprep.subr.mxu0 0.0
    %6232 = vmatpush1.msra.mxu0 0.0
    %6233 = vmatprep.subr.mxu0 0.0
    %6234 = vmatpush1.msra.mxu0 0.0
    %6235 = vmatprep.subr.mxu0 0.0
    %6236 = vmatpush1.msra.mxu0 0.0
    %6237 = vmatprep.subr.mxu0 0.0
    %6238 = vmatpush1.msra.mxu0 0.0
    %6239 = vmatprep.subr.mxu0 0.0
    %6240 = vmatpush1.msra.mxu0 0.0
    %6241 = vmatprep.subr.mxu0 0.0
    %6242 = vmatpush1.msra.mxu0 0.0
    %6243 = vmatprep.subr.mxu0 0.0
    %6244 = vmatpush1.msra.mxu0 0.0
    %6245 = vmatprep.subr.mxu0 0.0
    %6246 = vmatpush1.msra.mxu0 0.0
    %6247 = vmatprep.subr.mxu0 0.0
    %6248 = vmatpush1.msra.mxu0 0.0
    %6249 = vmatprep.subr.mxu0 0.0
    %6250 = vmatpush1.msra.mxu0 0.0
    %6251 = vmatprep.subr.mxu0 0.0
    %6252 = vmatpush1.msra.mxu0 0.0
    %6253 = vmatprep.mubr.f32.mxu0 0.0
    %6254 = vmatmul.mubr.f32.gmra.mrb[0].mxu0 %v6184
    %v6255 = vpop.f32.mrb[0].mxu0
    %v6256 = vadd.f32 %v6182, %v6255
    %v6257 = vpop.f32.mrb[0].mxu0
    %6258 = vmatprep.mubr.f32.mxu0 0.0
    %6259 = vmatmul.mubr.f32.gmra.mrb[0].mxu0 %v6187
    %v6260 = vpop.f32.mrb[0].mxu0
    %v6261 = vadd.f32 %v6182, %v6260
    %v6262 = vpop.f32.mrb[0].mxu0
    %6263 = vdwg.mxu0
    %6266 = vrot.lane.b32.xlu0 %v6256, 96
    %v6267 = vpop.permute.xlu0 %6266
    %6268 = vrot.lane.b32.xlu0 %v6261, 96
    %v6269 = vpop.permute.xlu0 %6268
    %v6270 = vsel %vm313, %v6256, 0
    %v6272 = vsel %vm313, %v6261, 0
    %v6274 = vsel %vm313, %v6267, 0
    %v6276 = vsel %vm313, %v6269, 0
    %6278 = vmatprep.subr.mxu0 0.0
    %6279 = vmatpush1.xpose.msra.mxu0 %v6274
    %6280 = vmatprep.subr.mxu0 0.0
    %6281 = vmatpush1.xpose.msra.mxu0 %v6276
    %6282 = vmatprep.subr.mxu0 0.0
    %6283 = vmatpush1.xpose.msra.mxu0 0.0
    %6284 = vmatprep.subr.mxu0 0.0
    %6285 = vmatpush1.xpose.msra.mxu0 0.0
    %6286 = vmatprep.subr.mxu0 0.0
    %6287 = vmatpush1.xpose.msra.mxu0 0.0
    %6288 = vmatprep.subr.mxu0 0.0
    %6289 = vmatpush1.xpose.msra.mxu0 0.0
    %6290 = vmatprep.subr.mxu0 0.0
    %6291 = vmatpush1.xpose.msra.mxu0 0.0
    %6292 = vmatprep.subr.mxu0 0.0
    %6293 = vmatpush1.xpose.msra.mxu0 0.0
    %6294 = vmatprep.subr.mxu0 0.0
    %6295 = vmatpush1.xpose.msra.mxu0 0.0
    %6296 = vmatprep.subr.mxu0 0.0
    %6297 = vmatpush1.xpose.msra.mxu0 0.0
    %6298 = vmatprep.subr.mxu0 0.0
    %6299 = vmatpush1.xpose.msra.mxu0 0.0
    %6300 = vmatprep.subr.mxu0 0.0
    %6301 = vmatpush1.xpose.msra.mxu0 0.0
    %6302 = vmatprep.subr.mxu0 0.0
    %6303 = vmatpush1.xpose.msra.mxu0 0.0
    %6304 = vmatprep.subr.mxu0 0.0
    %6305 = vmatpush1.xpose.msra.mxu0 0.0
    %6306 = vmatprep.subr.mxu0 0.0
    %6307 = vmatpush1.xpose.msra.mxu0 0.0
    %6308 = vmatprep.subr.mxu0 0.0
    %6309 = vmatpush1.xpose.msra.mxu0 0.0
    %6310 = vmatprep.subr.mxu0 0.0
    %6311 = vmatpush1.xpose.msra.mxu0 0.0
    %6312 = vmatprep.subr.mxu0 0.0
    %6313 = vmatpush1.xpose.msra.mxu0 0.0
    %6314 = vmatprep.subr.mxu0 0.0
    %6315 = vmatpush1.xpose.msra.mxu0 0.0
    %6316 = vmatprep.subr.mxu0 0.0
    %6317 = vmatpush1.xpose.msra.mxu0 0.0
    %6318 = vmatprep.subr.mxu0 0.0
    %6319 = vmatpush1.xpose.msra.mxu0 0.0
    %6320 = vmatprep.subr.mxu0 0.0
    %6321 = vmatpush1.xpose.msra.mxu0 0.0
    %6322 = vmatprep.subr.mxu0 0.0
    %6323 = vmatpush1.xpose.msra.mxu0 0.0
    %6324 = vmatprep.subr.mxu0 0.0
    %6325 = vmatpush1.xpose.msra.mxu0 0.0
    %6326 = vmatprep.subr.mxu0 0.0
    %6327 = vmatpush1.xpose.msra.mxu0 0.0
    %6328 = vmatprep.subr.mxu0 0.0
    %6329 = vmatpush1.xpose.msra.mxu0 0.0
    %6330 = vmatprep.subr.mxu0 0.0
    %6331 = vmatpush1.xpose.msra.mxu0 0.0
    %6332 = vmatprep.subr.mxu0 0.0
    %6333 = vmatpush1.xpose.msra.mxu0 0.0
    %6334 = vmatprep.subr.mxu0 0.0
    %6335 = vmatpush1.xpose.msra.mxu0 0.0
    %6336 = vmatprep.subr.mxu0 0.0
    %6337 = vmatpush1.xpose.msra.mxu0 0.0
    %6338 = vmatprep.subr.mxu0 0.0
    %6339 = vmatpush1.xpose.msra.mxu0 0.0
    %6340 = vmatprep.subr.mxu0 0.0
    %6341 = vmatpush1.xpose.msra.mxu0 0.0
    %6342 = vmatprep.mubr.f32.mxu0 0.0
    %6343 = vmatmul.mubr.f32.gmra.mrb[0].mxu0 %v6270
    %v6344 = vpop.f32.mrb[0].mxu0
    %v6345 = vadd.f32 %v3290, %v6344
    %v6346 = vpop.f32.mrb[0].mxu0
    %6347 = vmatprep.mubr.f32.mxu0 0.0
    %6348 = vmatmul.mubr.f32.gmra.mrb[0].mxu0 %v6272
    %v6349 = vpop.f32.mrb[0].mxu0
    %v6350 = vadd.f32 %v3291, %v6349
    %v6351 = vpop.f32.mrb[0].mxu0
    %6352 = vdwg.mxu0
    %v6353 = vsel %vm397, %v6345, -inf
    %6354 = vmax.xlane.f32.xlu0 %v6353
    %v6355 = vpop.xlane.xlu0 %6354
    %v6356 = vsel %vm397, %v6350, -inf
    %6357 = vmax.xlane.f32.xlu0 %v6356
    %v6358 = vpop.xlane.xlu0 %6357
    %v6359 = vsub.f32 %v6345, %v6355
    %v6360 = vsub.f32 %v6350, %v6358
    %v6361 = vmul.f32 %v6359, 1.442695
    %v6362 = vpow.pop %v6361
    %v6363 = vmul.f32 %v6360, 1.442695
    %v6364 = vpow.pop %v6363
    %v6365 = vsel %vm397, %v6362, 0.0
    %6366 = vadd.xlane.f32.xlu0 %v6365
    %v6367 = vpop.xlane.xlu0 %6366
    %v6368 = vsel %vm397, %v6364, 0.0
    %6369 = vadd.xlane.f32.xlu0 %v6368
    %v6370 = vpop.xlane.xlu0 %6369
    %v6371 = vrcp.pop %v6367
    %v6372 = vrcp.pop %v6370
    %v6373 = vmul.f32 %v6362, %v6371
    %v6374 = vmul.f32 %v6364, %v6372
    %6375 = vrot.lane.b32.xlu0 %v6256, 64
    %v6376 = vpop.permute.xlu0 %6375
    %6377 = vrot.lane.b32.xlu0 %v6261, 64
    %v6378 = vpop.permute.xlu0 %6377
    %v6382 = vsel %vm397, %v6373, 0
    %v6385 = vsel %vm397, %v6374, 0
    %6387 = vmatprep.subr.mxu0 0.0
    %6388 = vmatpush1.msra.mxu0 %v6376
    %6389 = vmatprep.subr.mxu0 0.0
    %6390 = vmatpush1.msra.mxu0 %v6378
    %6391 = vmatprep.subr.mxu0 0.0
    %6392 = vmatpush1.msra.mxu0 0.0
    %6393 = vmatprep.subr.mxu0 0.0
    %6394 = vmatpush1.msra.mxu0 0.0
    %6395 = vmatprep.subr.mxu0 0.0
    %6396 = vmatpush1.msra.mxu0 0.0
    %6397 = vmatprep.subr.mxu0 0.0
    %6398 = vmatpush1.msra.mxu0 0.0
    %6399 = vmatprep.subr.mxu0 0.0
    %6400 = vmatpush1.msra.mxu0 0.0
    %6401 = vmatprep.subr.mxu0 0.0
    %6402 = vmatpush1.msra.mxu0 0.0
    %6403 = vmatprep.subr.mxu0 0.0
    %6404 = vmatpush1.msra.mxu0 0.0
    %6405 = vmatprep.subr.mxu0 0.0
    %6406 = vmatpush1.msra.mxu0 0.0
    %6407 = vmatprep.subr.mxu0 0.0
    %6408 = vmatpush1.msra.mxu0 0.0
    %6409 = vmatprep.subr.mxu0 0.0
    %6410 = vmatpush1.msra.mxu0 0.0
    %6411 = vmatprep.subr.mxu0 0.0
    %6412 = vmatpush1.msra.mxu0 0.0
    %6413 = vmatprep.subr.mxu0 0.0
    %6414 = vmatpush1.msra.mxu0 0.0
    %6415 = vmatprep.subr.mxu0 0.0
    %6416 = vmatpush1.msra.mxu0 0.0
    %6417 = vmatprep.subr.mxu0 0.0
    %6418 = vmatpush1.msra.mxu0 0.0
    %6419 = vmatprep.subr.mxu0 0.0
    %6420 = vmatpush1.msra.mxu0 0.0
    %6421 = vmatprep.subr.mxu0 0.0
    %6422 = vmatpush1.msra.mxu0 0.0
    %6423 = vmatprep.subr.mxu0 0.0
    %6424 = vmatpush1.msra.mxu0 0.0
    %6425 = vmatprep.subr.mxu0 0.0
    %6426 = vmatpush1.msra.mxu0 0.0
    %6427 = vmatprep.subr.mxu0 0.0
    %6428 = vmatpush1.msra.mxu0 0.0
    %6429 = vmatprep.subr.mxu0 0.0
    %6430 = vmatpush1.msra.mxu0 0.0
    %6431 = vmatprep.subr.mxu0 0.0
    %6432 = vmatpush1.msra.mxu0 0.0
    %6433 = vmatprep.subr.mxu0 0.0
    %6434 = vmatpush1.msra.mxu0 0.0
    %6435 = vmatprep.subr.mxu0 0.0
    %6436 = vmatpush1.msra.mxu0 0.0
    %6437 = vmatprep.subr.mxu0 0.0
    %6438 = vmatpush1.msra.mxu0 0.0
    %6439 = vmatprep.subr.mxu0 0.0
    %6440 = vmatpush1.msra.mxu0 0.0
    %6441 = vmatprep.subr.mxu0 0.0
    %6442 = vmatpush1.msra.mxu0 0.0
    %6443 = vmatprep.subr.mxu0 0.0
    %6444 = vmatpush1.msra.mxu0 0.0
    %6445 = vmatprep.subr.mxu0 0.0
    %6446 = vmatpush1.msra.mxu0 0.0
    %6447 = vmatprep.subr.mxu0 0.0
    %6448 = vmatpush1.msra.mxu0 0.0
    %6449 = vmatprep.subr.mxu0 0.0
    %6450 = vmatpush1.msra.mxu0 0.0
    %6451 = vmatprep.mubr.f32.mxu0 0.0
    %6452 = vmatmul.mubr.f32.gmra.mrb[0].mxu0 %v6382
    %v6453 = vpop.f32.mrb[0].mxu0
    %v6454 = vadd.f32 0.0, %v6453
    %v6455 = vpop.f32.mrb[0].mxu0
    %6456 = vmatprep.mubr.f32.mxu0 0.0
    %6457 = vmatmul.mubr.f32.gmra.mrb[0].mxu0 %v6385
    %v6458 = vpop.f32.mrb[0].mxu0
    %v6459 = vadd.f32 0.0, %v6458
    %v6460 = vpop.f32.mrb[0].mxu0
    %6461 = vdwg.mxu0
    %6462 = vrot.lane.b32.xlu0 %v6256, 120
    %v6463 = vpop.permute.xlu0 %6462
    %6464 = vrot.lane.b32.xlu0 %v6261, 120
    %v6465 = vpop.permute.xlu0 %6464
    %6466 = vrot.lane.b32.xlu0 %v6256, 88
    %v6467 = vpop.permute.xlu0 %6466
    %6468 = vrot.lane.b32.xlu0 %v6261, 88
    %v6469 = vpop.permute.xlu0 %6468
    %v6470 = vsel %vm313, %v6463, 0
    %v6472 = vsel %vm313, %v6465, 0
    %v6474 = vsel %vm313, %v6467, 0
    %v6476 = vsel %vm313, %v6469, 0
    %6478 = vmatprep.subr.mxu0 0.0
    %6479 = vmatpush1.xpose.msra.mxu0 %v6474
    %6480 = vmatprep.subr.mxu0 0.0
    %6481 = vmatpush1.xpose.msra.mxu0 %v6476
    %6482 = vmatprep.subr.mxu0 0.0
    %6483 = vmatpush1.xpose.msra.mxu0 0.0
    %6484 = vmatprep.subr.mxu0 0.0
    %6485 = vmatpush1.xpose.msra.mxu0 0.0
    %6486 = vmatprep.subr.mxu0 0.0
    %6487 = vmatpush1.xpose.msra.mxu0 0.0
    %6488 = vmatprep.subr.mxu0 0.0
    %6489 = vmatpush1.xpose.msra.mxu0 0.0
    %6490 = vmatprep.subr.mxu0 0.0
    %6491 = vmatpush1.xpose.msra.mxu0 0.0
    %6492 = vmatprep.subr.mxu0 0.0
    %6493 = vmatpush1.xpose.msra.mxu0 0.0
    %6494 = vmatprep.subr.mxu0 0.0
    %6495 = vmatpush1.xpose.msra.mxu0 0.0
    %6496 = vmatprep.subr.mxu0 0.0
    %6497 = vmatpush1.xpose.msra.mxu0 0.0
    %6498 = vmatprep.subr.mxu0 0.0
    %6499 = vmatpush1.xpose.msra.mxu0 0.0
    %6500 = vmatprep.subr.mxu0 0.0
    %6501 = vmatpush1.xpose.msra.mxu0 0.0
    %6502 = vmatprep.subr.mxu0 0.0
    %6503 = vmatpush1.xpose.msra.mxu0 0.0
    %6504 = vmatprep.subr.mxu0 0.0
    %6505 = vmatpush1.xpose.msra.mxu0 0.0
    %6506 = vmatprep.subr.mxu0 0.0
    %6507 = vmatpush1.xpose.msra.mxu0 0.0
    %6508 = vmatprep.subr.mxu0 0.0
    %6509 = vmatpush1.xpose.msra.mxu0 0.0
    %6510 = vmatprep.subr.mxu0 0.0
    %6511 = vmatpush1.xpose.msra.mxu0 0.0
    %6512 = vmatprep.subr.mxu0 0.0
    %6513 = vmatpush1.xpose.msra.mxu0 0.0
    %6514 = vmatprep.subr.mxu0 0.0
    %6515 = vmatpush1.xpose.msra.mxu0 0.0
    %6516 = vmatprep.subr.mxu0 0.0
    %6517 = vmatpush1.xpose.msra.mxu0 0.0
    %6518 = vmatprep.subr.mxu0 0.0
    %6519 = vmatpush1.xpose.msra.mxu0 0.0
    %6520 = vmatprep.subr.mxu0 0.0
    %6521 = vmatpush1.xpose.msra.mxu0 0.0
    %6522 = vmatprep.subr.mxu0 0.0
    %6523 = vmatpush1.xpose.msra.mxu0 0.0
    %6524 = vmatprep.subr.mxu0 0.0
    %6525 = vmatpush1.xpose.msra.mxu0 0.0
    %6526 = vmatprep.subr.mxu0 0.0
    %6527 = vmatpush1.xpose.msra.mxu0 0.0
    %6528 = vmatprep.subr.mxu0 0.0
    %6529 = vmatpush1.xpose.msra.mxu0 0.0
    %6530 = vmatprep.subr.mxu0 0.0
    %6531 = vmatpush1.xpose.msra.mxu0 0.0
    %6532 = vmatprep.subr.mxu0 0.0
    %6533 = vmatpush1.xpose.msra.mxu0 0.0
    %6534 = vmatprep.subr.mxu0 0.0
    %6535 = vmatpush1.xpose.msra.mxu0 0.0
    %6536 = vmatprep.subr.mxu0 0.0
    %6537 = vmatpush1.xpose.msra.mxu0 0.0
    %6538 = vmatprep.subr.mxu0 0.0
    %6539 = vmatpush1.xpose.msra.mxu0 0.0
    %6540 = vmatprep.subr.mxu0 0.0
    %6541 = vmatpush1.xpose.msra.mxu0 0.0
    %6542 = vmatprep.mubr.f32.mxu0 0.0
    %6543 = vmatmul.mubr.f32.gmra.mrb[0].mxu0 %v6470
    %v6544 = vpop.f32.mrb[0].mxu0
    %v6545 = vadd.f32 %v3290, %v6544
    %v6546 = vpop.f32.mrb[0].mxu0
    %6547 = vmatprep.mubr.f32.mxu0 0.0
    %6548 = vmatmul.mubr.f32.gmra.mrb[0].mxu0 %v6472
    %v6549 = vpop.f32.mrb[0].mxu0
    %v6550 = vadd.f32 %v3291, %v6549
    %v6551 = vpop.f32.mrb[0].mxu0
    %6552 = vdwg.mxu0
    %v6553 = vsel %vm397, %v6545, -inf
    %6554 = vmax.xlane.f32.xlu0 %v6553
    %v6555 = vpop.xlane.xlu0 %6554
    %v6556 = vsel %vm397, %v6550, -inf
    %6557 = vmax.xlane.f32.xlu0 %v6556
    %v6558 = vpop.xlane.xlu0 %6557
    %v6559 = vsub.f32 %v6545, %v6555
    %v6560 = vsub.f32 %v6550, %v6558
    %v6561 = vmul.f32 %v6559, 1.442695
    %v6562 = vpow.pop %v6561
    %v6563 = vmul.f32 %v6560, 1.442695
    %v6564 = vpow.pop %v6563
    %v6565 = vsel %vm397, %v6562, 0.0
    %6566 = vadd.xlane.f32.xlu0 %v6565
    %v6567 = vpop.xlane.xlu0 %6566
    %v6568 = vsel %vm397, %v6564, 0.0
    %6569 = vadd.xlane.f32.xlu0 %v6568
    %v6570 = vpop.xlane.xlu0 %6569
    %v6571 = vrcp.pop %v6567
    %v6572 = vrcp.pop %v6570
    %v6573 = vmul.f32 %v6562, %v6571
    %v6574 = vmul.f32 %v6564, %v6572
    %6575 = vrot.lane.b32.xlu0 %v6256, 56
    %v6576 = vpop.permute.xlu0 %6575
    %6577 = vrot.lane.b32.xlu0 %v6261, 56
    %v6578 = vpop.permute.xlu0 %6577
    %v6582 = vsel %vm397, %v6573, 0
    %v6585 = vsel %vm397, %v6574, 0
    %6587 = vmatprep.subr.mxu0 0.0
    %6588 = vmatpush1.msra.mxu0 %v6576
    %6589 = vmatprep.subr.mxu0 0.0
    %6590 = vmatpush1.msra.mxu0 %v6578
    %6591 = vmatprep.subr.mxu0 0.0
    %6592 = vmatpush1.msra.mxu0 0.0
    %6593 = vmatprep.subr.mxu0 0.0
    %6594 = vmatpush1.msra.mxu0 0.0
    %6595 = vmatprep.subr.mxu0 0.0
    %6596 = vmatpush1.msra.mxu0 0.0
    %6597 = vmatprep.subr.mxu0 0.0
    %6598 = vmatpush1.msra.mxu0 0.0
    %6599 = vmatprep.subr.mxu0 0.0
    %6600 = vmatpush1.msra.mxu0 0.0
    %6601 = vmatprep.subr.mxu0 0.0
    %6602 = vmatpush1.msra.mxu0 0.0
    %6603 = vmatprep.subr.mxu0 0.0
    %6604 = vmatpush1.msra.mxu0 0.0
    %6605 = vmatprep.subr.mxu0 0.0
    %6606 = vmatpush1.msra.mxu0 0.0
    %6607 = vmatprep.subr.mxu0 0.0
    %6608 = vmatpush1.msra.mxu0 0.0
    %6609 = vmatprep.subr.mxu0 0.0
    %6610 = vmatpush1.msra.mxu0 0.0
    %6611 = vmatprep.subr.mxu0 0.0
    %6612 = vmatpush1.msra.mxu0 0.0
    %6613 = vmatprep.subr.mxu0 0.0
    %6614 = vmatpush1.msra.mxu0 0.0
    %6615 = vmatprep.subr.mxu0 0.0
    %6616 = vmatpush1.msra.mxu0 0.0
    %6617 = vmatprep.subr.mxu0 0.0
    %6618 = vmatpush1.msra.mxu0 0.0
    %6619 = vmatprep.subr.mxu0 0.0
    %6620 = vmatpush1.msra.mxu0 0.0
    %6621 = vmatprep.subr.mxu0 0.0
    %6622 = vmatpush1.msra.mxu0 0.0
    %6623 = vmatprep.subr.mxu0 0.0
    %6624 = vmatpush1.msra.mxu0 0.0
    %6625 = vmatprep.subr.mxu0 0.0
    %6626 = vmatpush1.msra.mxu0 0.0
    %6627 = vmatprep.subr.mxu0 0.0
    %6628 = vmatpush1.msra.mxu0 0.0
    %6629 = vmatprep.subr.mxu0 0.0
    %6630 = vmatpush1.msra.mxu0 0.0
    %6631 = vmatprep.subr.mxu0 0.0
    %6632 = vmatpush1.msra.mxu0 0.0
    %6633 = vmatprep.subr.mxu0 0.0
    %6634 = vmatpush1.msra.mxu0 0.0
    %6635 = vmatprep.subr.mxu0 0.0
    %6636 = vmatpush1.msra.mxu0 0.0
    %6637 = vmatprep.subr.mxu0 0.0
    %6638 = vmatpush1.msra.mxu0 0.0
    %6639 = vmatprep.subr.mxu0 0.0
    %6640 = vmatpush1.msra.mxu0 0.0
    %6641 = vmatprep.subr.mxu0 0.0
    %6642 = vmatpush1.msra.mxu0 0.0
    %6643 = vmatprep.subr.mxu0 0.0
    %6644 = vmatpush1.msra.mxu0 0.0
    %6645 = vmatprep.subr.mxu0 0.0
    %6646 = vmatpush1.msra.mxu0 0.0
    %6647 = vmatprep.subr.mxu0 0.0
    %6648 = vmatpush1.msra.mxu0 0.0
    %6649 = vmatprep.subr.mxu0 0.0
    %6650 = vmatpush1.msra.mxu0 0.0
    %6651 = vmatprep.mubr.f32.mxu0 0.0
    %6652 = vmatmul.mubr.f32.gmra.mrb[0].mxu0 %v6582
    %v6653 = vpop.f32.mrb[0].mxu0
    %v6654 = vadd.f32 0.0, %v6653
    %v6655 = vpop.f32.mrb[0].mxu0
    %6656 = vmatprep.mubr.f32.mxu0 0.0
    %6657 = vmatmul.mubr.f32.gmra.mrb[0].mxu0 %v6585
    %v6658 = vpop.f32.mrb[0].mxu0
    %v6659 = vadd.f32 0.0, %v6658
    %v6660 = vpop.f32.mrb[0].mxu0
    %6661 = vdwg.mxu0
    %v6663 = vsel %vm313, %v6654, 0
    %v6666 = vsel %vm313, %v6659, 0
    %6668 = vmatprep.subr.mxu0 0.0
    %6669 = vmatpush1.msra.mxu0 %v6144
    %6670 = vmatprep.subr.mxu0 0.0
    %6671 = vmatpush1.msra.mxu0 0.0
    %6672 = vmatprep.subr.mxu0 0.0
    %6673 = vmatpush1.msra.mxu0 0.0
    %6674 = vmatprep.subr.mxu0 0.0
    %6675 = vmatpush1.msra.mxu0 0.0
    %6676 = vmatprep.subr.mxu0 0.0
    %6677 = vmatpush1.msra.mxu0 0.0
    %6678 = vmatprep.subr.mxu0 0.0
    %6679 = vmatpush1.msra.mxu0 0.0
    %6680 = vmatprep.subr.mxu0 0.0
    %6681 = vmatpush1.msra.mxu0 0.0
    %6682 = vmatprep.subr.mxu0 0.0
    %6683 = vmatpush1.msra.mxu0 0.0
    %6684 = vmatprep.subr.mxu0 0.0
    %6685 = vmatpush1.msra.mxu0 0.0
    %6686 = vmatprep.subr.mxu0 0.0
    %6687 = vmatpush1.msra.mxu0 0.0
    %6688 = vmatprep.subr.mxu0 0.0
    %6689 = vmatpush1.msra.mxu0 0.0
    %6690 = vmatprep.subr.mxu0 0.0
    %6691 = vmatpush1.msra.mxu0 0.0
    %6692 = vmatprep.subr.mxu0 0.0
    %6693 = vmatpush1.msra.mxu0 0.0
    %6694 = vmatprep.subr.mxu0 0.0
    %6695 = vmatpush1.msra.mxu0 0.0
    %6696 = vmatprep.subr.mxu0 0.0
    %6697 = vmatpush1.msra.mxu0 0.0
    %6698 = vmatprep.subr.mxu0 0.0
    %6699 = vmatpush1.msra.mxu0 0.0
    %6700 = vmatprep.subr.mxu0 0.0
    %6701 = vmatpush1.msra.mxu0 0.0
    %6702 = vmatprep.subr.mxu0 0.0
    %6703 = vmatpush1.msra.mxu0 0.0
    %6704 = vmatprep.subr.mxu0 0.0
    %6705 = vmatpush1.msra.mxu0 0.0
    %6706 = vmatprep.subr.mxu0 0.0
    %6707 = vmatpush1.msra.mxu0 0.0
    %6708 = vmatprep.subr.mxu0 0.0
    %6709 = vmatpush1.msra.mxu0 0.0
    %6710 = vmatprep.subr.mxu0 0.0
    %6711 = vmatpush1.msra.mxu0 0.0
    %6712 = vmatprep.subr.mxu0 0.0
    %6713 = vmatpush1.msra.mxu0 0.0
    %6714 = vmatprep.subr.mxu0 0.0
    %6715 = vmatpush1.msra.mxu0 0.0
    %6716 = vmatprep.subr.mxu0 0.0
    %6717 = vmatpush1.msra.mxu0 0.0
    %6718 = vmatprep.subr.mxu0 0.0
    %6719 = vmatpush1.msra.mxu0 0.0
    %6720 = vmatprep.subr.mxu0 0.0
    %6721 = vmatpush1.msra.mxu0 0.0
    %6722 = vmatprep.subr.mxu0 0.0
    %6723 = vmatpush1.msra.mxu0 0.0
    %6724 = vmatprep.subr.mxu0 0.0
    %6725 = vmatpush1.msra.mxu0 0.0
    %6726 = vmatprep.subr.mxu0 0.0
    %6727 = vmatpush1.msra.mxu0 0.0
    %6728 = vmatprep.subr.mxu0 0.0
    %6729 = vmatpush1.msra.mxu0 0.0
    %6730 = vmatprep.subr.mxu0 0.0
    %6731 = vmatpush1.msra.mxu0 0.0
    %6732 = vmatprep.mubr.f32.mxu0 0.0
    %6733 = vmatmul.mubr.f32.gmra.mrb[0].mxu0 %v6663
    %v6734 = vpop.f32.mrb[0].mxu0
    %v6735 = vadd.f32 0.0, %v6734
    %v6736 = vpop.f32.mrb[0].mxu0
    %6737 = vmatprep.mubr.f32.mxu0 0.0
    %6738 = vmatmul.mubr.f32.gmra.mrb[0].mxu0 %v6666
    %v6739 = vpop.f32.mrb[0].mxu0
    %v6740 = vadd.f32 0.0, %v6739
    %v6741 = vpop.f32.mrb[0].mxu0
    %6742 = vdwg.mxu0
    %v6744 = vsel %vm313, %v6454, 0
    %v6747 = vsel %vm313, %v6459, 0
    %6749 = vmatprep.subr.mxu0 0.0
    %6750 = vmatpush1.msra.mxu0 %v6143
    %6751 = vmatprep.subr.mxu0 0.0
    %6752 = vmatpush1.msra.mxu0 0.0
    %6753 = vmatprep.subr.mxu0 0.0
    %6754 = vmatpush1.msra.mxu0 0.0
    %6755 = vmatprep.subr.mxu0 0.0
    %6756 = vmatpush1.msra.mxu0 0.0
    %6757 = vmatprep.subr.mxu0 0.0
    %6758 = vmatpush1.msra.mxu0 0.0
    %6759 = vmatprep.subr.mxu0 0.0
    %6760 = vmatpush1.msra.mxu0 0.0
    %6761 = vmatprep.subr.mxu0 0.0
    %6762 = vmatpush1.msra.mxu0 0.0
    %6763 = vmatprep.subr.mxu0 0.0
    %6764 = vmatpush1.msra.mxu0 0.0
    %6765 = vmatprep.subr.mxu0 0.0
    %6766 = vmatpush1.msra.mxu0 0.0
    %6767 = vmatprep.subr.mxu0 0.0
    %6768 = vmatpush1.msra.mxu0 0.0
    %6769 = vmatprep.subr.mxu0 0.0
    %6770 = vmatpush1.msra.mxu0 0.0
    %6771 = vmatprep.subr.mxu0 0.0
    %6772 = vmatpush1.msra.mxu0 0.0
    %6773 = vmatprep.subr.mxu0 0.0
    %6774 = vmatpush1.msra.mxu0 0.0
    %6775 = vmatprep.subr.mxu0 0.0
    %6776 = vmatpush1.msra.mxu0 0.0
    %6777 = vmatprep.subr.mxu0 0.0
    %6778 = vmatpush1.msra.mxu0 0.0
    %6779 = vmatprep.subr.mxu0 0.0
    %6780 = vmatpush1.msra.mxu0 0.0
    %6781 = vmatprep.subr.mxu0 0.0
    %6782 = vmatpush1.msra.mxu0 0.0
    %6783 = vmatprep.subr.mxu0 0.0
    %6784 = vmatpush1.msra.mxu0 0.0
    %6785 = vmatprep.subr.mxu0 0.0
    %6786 = vmatpush1.msra.mxu0 0.0
    %6787 = vmatprep.subr.mxu0 0.0
    %6788 = vmatpush1.msra.mxu0 0.0
    %6789 = vmatprep.subr.mxu0 0.0
    %6790 = vmatpush1.msra.mxu0 0.0
    %6791 = vmatprep.subr.mxu0 0.0
    %6792 = vmatpush1.msra.mxu0 0.0
    %6793 = vmatprep.subr.mxu0 0.0
    %6794 = vmatpush1.msra.mxu0 0.0
    %6795 = vmatprep.subr.mxu0 0.0
    %6796 = vmatpush1.msra.mxu0 0.0
    %6797 = vmatprep.subr.mxu0 0.0
    %6798 = vmatpush1.msra.mxu0 0.0
    %6799 = vmatprep.subr.mxu0 0.0
    %6800 = vmatpush1.msra.mxu0 0.0
    %6801 = vmatprep.subr.mxu0 0.0
    %6802 = vmatpush1.msra.mxu0 0.0
    %6803 = vmatprep.subr.mxu0 0.0
    %6804 = vmatpush1.msra.mxu0 0.0
    %6805 = vmatprep.subr.mxu0 0.0
    %6806 = vmatpush1.msra.mxu0 0.0
    %6807 = vmatprep.subr.mxu0 0.0
    %6808 = vmatpush1.msra.mxu0 0.0
    %6809 = vmatprep.subr.mxu0 0.0
    %6810 = vmatpush1.msra.mxu0 0.0
    %6811 = vmatprep.subr.mxu0 0.0
    %6812 = vmatpush1.msra.mxu0 0.0
    %6813 = vmatprep.mubr.f32.mxu0 0.0
    %6814 = vmatmul.mubr.f32.gmra.mrb[0].mxu0 %v6744
    %v6815 = vpop.f32.mrb[0].mxu0
    %v6816 = vadd.f32 %v6735, %v6815
    %v6817 = vpop.f32.mrb[0].mxu0
    %6818 = vmatprep.mubr.f32.mxu0 0.0
    %6819 = vmatmul.mubr.f32.gmra.mrb[0].mxu0 %v6747
    %v6820 = vpop.f32.mrb[0].mxu0
    %v6821 = vadd.f32 %v6740, %v6820
    %v6822 = vpop.f32.mrb[0].mxu0
    %6823 = vdwg.mxu0
    %6824 = vrot.lane.b32.xlu0 %v6256, 112
    %v6825 = vpop.permute.xlu0 %6824
    %6826 = vrot.lane.b32.xlu0 %v6261, 112
    %v6827 = vpop.permute.xlu0 %6826
    %6828 = vrot.lane.b32.xlu0 %v6256, 80
    %v6829 = vpop.permute.xlu0 %6828
    %6830 = vrot.lane.b32.xlu0 %v6261, 80
    %v6831 = vpop.permute.xlu0 %6830
    %v6832 = vsel %vm313, %v6825, 0
    %v6834 = vsel %vm313, %v6827, 0
    %v6836 = vsel %vm313, %v6829, 0
    %v6838 = vsel %vm313, %v6831, 0
    %6840 = vmatprep.subr.mxu0 0.0
    %6841 = vmatpush1.xpose.msra.mxu0 %v6836
    %6842 = vmatprep.subr.mxu0 0.0
    %6843 = vmatpush1.xpose.msra.mxu0 %v6838
    %6844 = vmatprep.subr.mxu0 0.0
    %6845 = vmatpush1.xpose.msra.mxu0 0.0
    %6846 = vmatprep.subr.mxu0 0.0
    %6847 = vmatpush1.xpose.msra.mxu0 0.0
    %6848 = vmatprep.subr.mxu0 0.0
    %6849 = vmatpush1.xpose.msra.mxu0 0.0
    %6850 = vmatprep.subr.mxu0 0.0
    %6851 = vmatpush1.xpose.msra.mxu0 0.0
    %6852 = vmatprep.subr.mxu0 0.0
    %6853 = vmatpush1.xpose.msra.mxu0 0.0
    %6854 = vmatprep.subr.mxu0 0.0
    %6855 = vmatpush1.xpose.msra.mxu0 0.0
    %6856 = vmatprep.subr.mxu0 0.0
    %6857 = vmatpush1.xpose.msra.mxu0 0.0
    %6858 = vmatprep.subr.mxu0 0.0
    %6859 = vmatpush1.xpose.msra.mxu0 0.0
    %6860 = vmatprep.subr.mxu0 0.0
    %6861 = vmatpush1.xpose.msra.mxu0 0.0
    %6862 = vmatprep.subr.mxu0 0.0
    %6863 = vmatpush1.xpose.msra.mxu0 0.0
    %6864 = vmatprep.subr.mxu0 0.0
    %6865 = vmatpush1.xpose.msra.mxu0 0.0
    %6866 = vmatprep.subr.mxu0 0.0
    %6867 = vmatpush1.xpose.msra.mxu0 0.0
    %6868 = vmatprep.subr.mxu0 0.0
    %6869 = vmatpush1.xpose.msra.mxu0 0.0
    %6870 = vmatprep.subr.mxu0 0.0
    %6871 = vmatpush1.xpose.msra.mxu0 0.0
    %6872 = vmatprep.subr.mxu0 0.0
    %6873 = vmatpush1.xpose.msra.mxu0 0.0
    %6874 = vmatprep.subr.mxu0 0.0
    %6875 = vmatpush1.xpose.msra.mxu0 0.0
    %6876 = vmatprep.subr.mxu0 0.0
    %6877 = vmatpush1.xpose.msra.mxu0 0.0
    %6878 = vmatprep.subr.mxu0 0.0
    %6879 = vmatpush1.xpose.msra.mxu0 0.0
    %6880 = vmatprep.subr.mxu0 0.0
    %6881 = vmatpush1.xpose.msra.mxu0 0.0
    %6882 = vmatprep.subr.mxu0 0.0
    %6883 = vmatpush1.xpose.msra.mxu0 0.0
    %6884 = vmatprep.subr.mxu0 0.0
    %6885 = vmatpush1.xpose.msra.mxu0 0.0
    %6886 = vmatprep.subr.mxu0 0.0
    %6887 = vmatpush1.xpose.msra.mxu0 0.0
    %6888 = vmatprep.subr.mxu0 0.0
    %6889 = vmatpush1.xpose.msra.mxu0 0.0
    %6890 = vmatprep.subr.mxu0 0.0
    %6891 = vmatpush1.xpose.msra.mxu0 0.0
    %6892 = vmatprep.subr.mxu0 0.0
    %6893 = vmatpush1.xpose.msra.mxu0 0.0
    %6894 = vmatprep.subr.mxu0 0.0
    %6895 = vmatpush1.xpose.msra.mxu0 0.0
    %6896 = vmatprep.subr.mxu0 0.0
    %6897 = vmatpush1.xpose.msra.mxu0 0.0
    %6898 = vmatprep.subr.mxu0 0.0
    %6899 = vmatpush1.xpose.msra.mxu0 0.0
    %6900 = vmatprep.subr.mxu0 0.0
    %6901 = vmatpush1.xpose.msra.mxu0 0.0
    %6902 = vmatprep.subr.mxu0 0.0
    %6903 = vmatpush1.xpose.msra.mxu0 0.0
    %6904 = vmatprep.mubr.f32.mxu0 0.0
    %6905 = vmatmul.mubr.f32.gmra.mrb[0].mxu0 %v6832
    %v6906 = vpop.f32.mrb[0].mxu0
    %v6907 = vadd.f32 %v3290, %v6906
    %v6908 = vpop.f32.mrb[0].mxu0
    %6909 = vmatprep.mubr.f32.mxu0 0.0
    %6910 = vmatmul.mubr.f32.gmra.mrb[0].mxu0 %v6834
    %v6911 = vpop.f32.mrb[0].mxu0
    %v6912 = vadd.f32 %v3291, %v6911
    %v6913 = vpop.f32.mrb[0].mxu0
    %6914 = vdwg.mxu0
    %v6915 = vsel %vm397, %v6907, -inf
    %6916 = vmax.xlane.f32.xlu0 %v6915
    %v6917 = vpop.xlane.xlu0 %6916
    %v6918 = vsel %vm397, %v6912, -inf
    %6919 = vmax.xlane.f32.xlu0 %v6918
    %v6920 = vpop.xlane.xlu0 %6919
    %v6921 = vsub.f32 %v6907, %v6917
    %v6922 = vsub.f32 %v6912, %v6920
    %v6923 = vmul.f32 %v6921, 1.442695
    %v6924 = vpow.pop %v6923
    %v6925 = vmul.f32 %v6922, 1.442695
    %v6926 = vpow.pop %v6925
    %v6927 = vsel %vm397, %v6924, 0.0
    %6928 = vadd.xlane.f32.xlu0 %v6927
    %v6929 = vpop.xlane.xlu0 %6928
    %v6930 = vsel %vm397, %v6926, 0.0
    %6931 = vadd.xlane.f32.xlu0 %v6930
    %v6932 = vpop.xlane.xlu0 %6931
    %v6933 = vrcp.pop %v6929
    %v6934 = vrcp.pop %v6932
    %v6935 = vmul.f32 %v6924, %v6933
    %v6936 = vmul.f32 %v6926, %v6934
    %6937 = vrot.lane.b32.xlu0 %v6256, 48
    %v6938 = vpop.permute.xlu0 %6937
    %6939 = vrot.lane.b32.xlu0 %v6261, 48
    %v6940 = vpop.permute.xlu0 %6939
    %v6944 = vsel %vm397, %v6935, 0
    %v6947 = vsel %vm397, %v6936, 0
    %6949 = vmatprep.subr.mxu0 0.0
    %6950 = vmatpush1.msra.mxu0 %v6938
    %6951 = vmatprep.subr.mxu0 0.0
    %6952 = vmatpush1.msra.mxu0 %v6940
    %6953 = vmatprep.subr.mxu0 0.0
    %6954 = vmatpush1.msra.mxu0 0.0
    %6955 = vmatprep.subr.mxu0 0.0
    %6956 = vmatpush1.msra.mxu0 0.0
    %6957 = vmatprep.subr.mxu0 0.0
    %6958 = vmatpush1.msra.mxu0 0.0
    %6959 = vmatprep.subr.mxu0 0.0
    %6960 = vmatpush1.msra.mxu0 0.0
    %6961 = vmatprep.subr.mxu0 0.0
    %6962 = vmatpush1.msra.mxu0 0.0
    %6963 = vmatprep.subr.mxu0 0.0
    %6964 = vmatpush1.msra.mxu0 0.0
    %6965 = vmatprep.subr.mxu0 0.0
    %6966 = vmatpush1.msra.mxu0 0.0
    %6967 = vmatprep.subr.mxu0 0.0
    %6968 = vmatpush1.msra.mxu0 0.0
    %6969 = vmatprep.subr.mxu0 0.0
    %6970 = vmatpush1.msra.mxu0 0.0
    %6971 = vmatprep.subr.mxu0 0.0
    %6972 = vmatpush1.msra.mxu0 0.0
    %6973 = vmatprep.subr.mxu0 0.0
    %6974 = vmatpush1.msra.mxu0 0.0
    %6975 = vmatprep.subr.mxu0 0.0
    %6976 = vmatpush1.msra.mxu0 0.0
    %6977 = vmatprep.subr.mxu0 0.0
    %6978 = vmatpush1.msra.mxu0 0.0
    %6979 = vmatprep.subr.mxu0 0.0
    %6980 = vmatpush1.msra.mxu0 0.0
    %6981 = vmatprep.subr.mxu0 0.0
    %6982 = vmatpush1.msra.mxu0 0.0
    %6983 = vmatprep.subr.mxu0 0.0
    %6984 = vmatpush1.msra.mxu0 0.0
    %6985 = vmatprep.subr.mxu0 0.0
    %6986 = vmatpush1.msra.mxu0 0.0
    %6987 = vmatprep.subr.mxu0 0.0
    %6988 = vmatpush1.msra.mxu0 0.0
    %6989 = vmatprep.subr.mxu0 0.0
    %6990 = vmatpush1.msra.mxu0 0.0
    %6991 = vmatprep.subr.mxu0 0.0
    %6992 = vmatpush1.msra.mxu0 0.0
    %6993 = vmatprep.subr.mxu0 0.0
    %6994 = vmatpush1.msra.mxu0 0.0
    %6995 = vmatprep.subr.mxu0 0.0
    %6996 = vmatpush1.msra.mxu0 0.0
    %6997 = vmatprep.subr.mxu0 0.0
    %6998 = vmatpush1.msra.mxu0 0.0
    %6999 = vmatprep.subr.mxu0 0.0
    %7000 = vmatpush1.msra.mxu0 0.0
    %7001 = vmatprep.subr.mxu0 0.0
    %7002 = vmatpush1.msra.mxu0 0.0
    %7003 = vmatprep.subr.mxu0 0.0
    %7004 = vmatpush1.msra.mxu0 0.0
    %7005 = vmatprep.subr.mxu0 0.0
    %7006 = vmatpush1.msra.mxu0 0.0
    %7007 = vmatprep.subr.mxu0 0.0
    %7008 = vmatpush1.msra.mxu0 0.0
    %7009 = vmatprep.subr.mxu0 0.0
    %7010 = vmatpush1.msra.mxu0 0.0
    %7011 = vmatprep.subr.mxu0 0.0
    %7012 = vmatpush1.msra.mxu0 0.0
    %7013 = vmatprep.mubr.f32.mxu0 0.0
    %7014 = vmatmul.mubr.f32.gmra.mrb[0].mxu0 %v6944
    %v7015 = vpop.f32.mrb[0].mxu0
    %v7016 = vadd.f32 0.0, %v7015
    %v7017 = vpop.f32.mrb[0].mxu0
    %7018 = vmatprep.mubr.f32.mxu0 0.0
    %7019 = vmatmul.mubr.f32.gmra.mrb[0].mxu0 %v6947
    %v7020 = vpop.f32.mrb[0].mxu0
    %v7021 = vadd.f32 0.0, %v7020
    %v7022 = vpop.f32.mrb[0].mxu0
    %7023 = vdwg.mxu0
    %v7025 = vsel %vm313, %v7016, 0
    %v7028 = vsel %vm313, %v7021, 0
    %7030 = vmatprep.subr.mxu0 0.0
    %7031 = vmatpush1.msra.mxu0 %v6145
    %7032 = vmatprep.subr.mxu0 0.0
    %7033 = vmatpush1.msra.mxu0 0.0
    %7034 = vmatprep.subr.mxu0 0.0
    %7035 = vmatpush1.msra.mxu0 0.0
    %7036 = vmatprep.subr.mxu0 0.0
    %7037 = vmatpush1.msra.mxu0 0.0
    %7038 = vmatprep.subr.mxu0 0.0
    %7039 = vmatpush1.msra.mxu0 0.0
    %7040 = vmatprep.subr.mxu0 0.0
    %7041 = vmatpush1.msra.mxu0 0.0
    %7042 = vmatprep.subr.mxu0 0.0
    %7043 = vmatpush1.msra.mxu0 0.0
    %7044 = vmatprep.subr.mxu0 0.0
    %7045 = vmatpush1.msra.mxu0 0.0
    %7046 = vmatprep.subr.mxu0 0.0
    %7047 = vmatpush1.msra.mxu0 0.0
    %7048 = vmatprep.subr.mxu0 0.0
    %7049 = vmatpush1.msra.mxu0 0.0
    %7050 = vmatprep.subr.mxu0 0.0
    %7051 = vmatpush1.msra.mxu0 0.0
    %7052 = vmatprep.subr.mxu0 0.0
    %7053 = vmatpush1.msra.mxu0 0.0
    %7054 = vmatprep.subr.mxu0 0.0
    %7055 = vmatpush1.msra.mxu0 0.0
    %7056 = vmatprep.subr.mxu0 0.0
    %7057 = vmatpush1.msra.mxu0 0.0
    %7058 = vmatprep.subr.mxu0 0.0
    %7059 = vmatpush1.msra.mxu0 0.0
    %7060 = vmatprep.subr.mxu0 0.0
    %7061 = vmatpush1.msra.mxu0 0.0
    %7062 = vmatprep.subr.mxu0 0.0
    %7063 = vmatpush1.msra.mxu0 0.0
    %7064 = vmatprep.subr.mxu0 0.0
    %7065 = vmatpush1.msra.mxu0 0.0
    %7066 = vmatprep.subr.mxu0 0.0
    %7067 = vmatpush1.msra.mxu0 0.0
    %7068 = vmatprep.subr.mxu0 0.0
    %7069 = vmatpush1.msra.mxu0 0.0
    %7070 = vmatprep.subr.mxu0 0.0
    %7071 = vmatpush1.msra.mxu0 0.0
    %7072 = vmatprep.subr.mxu0 0.0
    %7073 = vmatpush1.msra.mxu0 0.0
    %7074 = vmatprep.subr.mxu0 0.0
    %7075 = vmatpush1.msra.mxu0 0.0
    %7076 = vmatprep.subr.mxu0 0.0
    %7077 = vmatpush1.msra.mxu0 0.0
    %7078 = vmatprep.subr.mxu0 0.0
    %7079 = vmatpush1.msra.mxu0 0.0
    %7080 = vmatprep.subr.mxu0 0.0
    %7081 = vmatpush1.msra.mxu0 0.0
    %7082 = vmatprep.subr.mxu0 0.0
    %7083 = vmatpush1.msra.mxu0 0.0
    %7084 = vmatprep.subr.mxu0 0.0
    %7085 = vmatpush1.msra.mxu0 0.0
    %7086 = vmatprep.subr.mxu0 0.0
    %7087 = vmatpush1.msra.mxu0 0.0
    %7088 = vmatprep.subr.mxu0 0.0
    %7089 = vmatpush1.msra.mxu0 0.0
    %7090 = vmatprep.subr.mxu0 0.0
    %7091 = vmatpush1.msra.mxu0 0.0
    %7092 = vmatprep.subr.mxu0 0.0
    %7093 = vmatpush1.msra.mxu0 0.0
    %7094 = vmatprep.mubr.f32.mxu0 0.0
    %7095 = vmatmul.mubr.f32.gmra.mrb[0].mxu0 %v7025
    %v7096 = vpop.f32.mrb[0].mxu0
    %v7097 = vadd.f32 0.0, %v7096
    %v7098 = vpop.f32.mrb[0].mxu0
    %7099 = vmatprep.mubr.f32.mxu0 0.0
    %7100 = vmatmul.mubr.f32.gmra.mrb[0].mxu0 %v7028
    %v7101 = vpop.f32.mrb[0].mxu0
    %v7102 = vadd.f32 0.0, %v7101
    %v7103 = vpop.f32.mrb[0].mxu0
    %7104 = vdwg.mxu0
    %v7105 = vadd.f32 %v6816, %v7097
    %v7106 = vadd.f32 %v6821, %v7102
    %7107 = vrot.lane.b32.xlu0 %v6256, 104
    %v7108 = vpop.permute.xlu0 %7107
    %7109 = vrot.lane.b32.xlu0 %v6261, 104
    %v7110 = vpop.permute.xlu0 %7109
    %7111 = vrot.lane.b32.xlu0 %v6256, 72
    %v7112 = vpop.permute.xlu0 %7111
    %7113 = vrot.lane.b32.xlu0 %v6261, 72
    %v7114 = vpop.permute.xlu0 %7113
    %v7115 = vsel %vm313, %v7108, 0
    %v7117 = vsel %vm313, %v7110, 0
    %v7119 = vsel %vm313, %v7112, 0
    %v7121 = vsel %vm313, %v7114, 0
    %7123 = vmatprep.subr.mxu0 0.0
    %7124 = vmatpush1.xpose.msra.mxu0 %v7119
    %7125 = vmatprep.subr.mxu0 0.0
    %7126 = vmatpush1.xpose.msra.mxu0 %v7121
    %7127 = vmatprep.subr.mxu0 0.0
    %7128 = vmatpush1.xpose.msra.mxu0 0.0
    %7129 = vmatprep.subr.mxu0 0.0
    %7130 = vmatpush1.xpose.msra.mxu0 0.0
    %7131 = vmatprep.subr.mxu0 0.0
    %7132 = vmatpush1.xpose.msra.mxu0 0.0
    %7133 = vmatprep.subr.mxu0 0.0
    %7134 = vmatpush1.xpose.msra.mxu0 0.0
    %7135 = vmatprep.subr.mxu0 0.0
    %7136 = vmatpush1.xpose.msra.mxu0 0.0
    %7137 = vmatprep.subr.mxu0 0.0
    %7138 = vmatpush1.xpose.msra.mxu0 0.0
    %7139 = vmatprep.subr.mxu0 0.0
    %7140 = vmatpush1.xpose.msra.mxu0 0.0
    %7141 = vmatprep.subr.mxu0 0.0
    %7142 = vmatpush1.xpose.msra.mxu0 0.0
    %7143 = vmatprep.subr.mxu0 0.0
    %7144 = vmatpush1.xpose.msra.mxu0 0.0
    %7145 = vmatprep.subr.mxu0 0.0
    %7146 = vmatpush1.xpose.msra.mxu0 0.0
    %7147 = vmatprep.subr.mxu0 0.0
    %7148 = vmatpush1.xpose.msra.mxu0 0.0
    %7149 = vmatprep.subr.mxu0 0.0
    %7150 = vmatpush1.xpose.msra.mxu0 0.0
    %7151 = vmatprep.subr.mxu0 0.0
    %7152 = vmatpush1.xpose.msra.mxu0 0.0
    %7153 = vmatprep.subr.mxu0 0.0
    %7154 = vmatpush1.xpose.msra.mxu0 0.0
    %7155 = vmatprep.subr.mxu0 0.0
    %7156 = vmatpush1.xpose.msra.mxu0 0.0
    %7157 = vmatprep.subr.mxu0 0.0
    %7158 = vmatpush1.xpose.msra.mxu0 0.0
    %7159 = vmatprep.subr.mxu0 0.0
    %7160 = vmatpush1.xpose.msra.mxu0 0.0
    %7161 = vmatprep.subr.mxu0 0.0
    %7162 = vmatpush1.xpose.msra.mxu0 0.0
    %7163 = vmatprep.subr.mxu0 0.0
    %7164 = vmatpush1.xpose.msra.mxu0 0.0
    %7165 = vmatprep.subr.mxu0 0.0
    %7166 = vmatpush1.xpose.msra.mxu0 0.0
    %7167 = vmatprep.subr.mxu0 0.0
    %7168 = vmatpush1.xpose.msra.mxu0 0.0
    %7169 = vmatprep.subr.mxu0 0.0
    %7170 = vmatpush1.xpose.msra.mxu0 0.0
    %7171 = vmatprep.subr.mxu0 0.0
    %7172 = vmatpush1.xpose.msra.mxu0 0.0
    %7173 = vmatprep.subr.mxu0 0.0
    %7174 = vmatpush1.xpose.msra.mxu0 0.0
    %7175 = vmatprep.subr.mxu0 0.0
    %7176 = vmatpush1.xpose.msra.mxu0 0.0
    %7177 = vmatprep.subr.mxu0 0.0
    %7178 = vmatpush1.xpose.msra.mxu0 0.0
    %7179 = vmatprep.subr.mxu0 0.0
    %7180 = vmatpush1.xpose.msra.mxu0 0.0
    %7181 = vmatprep.subr.mxu0 0.0
    %7182 = vmatpush1.xpose.msra.mxu0 0.0
    %7183 = vmatprep.subr.mxu0 0.0
    %7184 = vmatpush1.xpose.msra.mxu0 0.0
    %7185 = vmatprep.subr.mxu0 0.0
    %7186 = vmatpush1.xpose.msra.mxu0 0.0
    %7187 = vmatprep.mubr.f32.mxu0 0.0
    %7188 = vmatmul.mubr.f32.gmra.mrb[0].mxu0 %v7115
    %v7189 = vpop.f32.mrb[0].mxu0
    %v7190 = vadd.f32 %v3290, %v7189
    %v7191 = vpop.f32.mrb[0].mxu0
    %7192 = vmatprep.mubr.f32.mxu0 0.0
    %7193 = vmatmul.mubr.f32.gmra.mrb[0].mxu0 %v7117
    %v7194 = vpop.f32.mrb[0].mxu0
    %v7195 = vadd.f32 %v3291, %v7194
    %v7196 = vpop.f32.mrb[0].mxu0
    %7197 = vdwg.mxu0
    %v7198 = vsel %vm397, %v7190, -inf
    %7199 = vmax.xlane.f32.xlu0 %v7198
    %v7200 = vpop.xlane.xlu0 %7199
    %v7201 = vsel %vm397, %v7195, -inf
    %7202 = vmax.xlane.f32.xlu0 %v7201
    %v7203 = vpop.xlane.xlu0 %7202
    %v7204 = vsub.f32 %v7190, %v7200
    %v7205 = vsub.f32 %v7195, %v7203
    %v7206 = vmul.f32 %v7204, 1.442695
    %v7207 = vpow.pop %v7206
    %v7208 = vmul.f32 %v7205, 1.442695
    %v7209 = vpow.pop %v7208
    %v7210 = vsel %vm397, %v7207, 0.0
    %7211 = vadd.xlane.f32.xlu0 %v7210
    %v7212 = vpop.xlane.xlu0 %7211
    %v7213 = vsel %vm397, %v7209, 0.0
    %7214 = vadd.xlane.f32.xlu0 %v7213
    %v7215 = vpop.xlane.xlu0 %7214
    %v7216 = vrcp.pop %v7212
    %v7217 = vrcp.pop %v7215
    %v7218 = vmul.f32 %v7207, %v7216
    %v7219 = vmul.f32 %v7209, %v7217
    %7220 = vrot.lane.b32.xlu0 %v6256, 40
    %v7221 = vpop.permute.xlu0 %7220
    %7222 = vrot.lane.b32.xlu0 %v6261, 40
    %v7223 = vpop.permute.xlu0 %7222
    %v7227 = vsel %vm397, %v7218, 0
    %v7230 = vsel %vm397, %v7219, 0
    %7232 = vmatprep.subr.mxu0 0.0
    %7233 = vmatpush1.msra.mxu0 %v7221
    %7234 = vmatprep.subr.mxu0 0.0
    %7235 = vmatpush1.msra.mxu0 %v7223
    %7236 = vmatprep.subr.mxu0 0.0
    %7237 = vmatpush1.msra.mxu0 0.0
    %7238 = vmatprep.subr.mxu0 0.0
    %7239 = vmatpush1.msra.mxu0 0.0
    %7240 = vmatprep.subr.mxu0 0.0
    %7241 = vmatpush1.msra.mxu0 0.0
    %7242 = vmatprep.subr.mxu0 0.0
    %7243 = vmatpush1.msra.mxu0 0.0
    %7244 = vmatprep.subr.mxu0 0.0
    %7245 = vmatpush1.msra.mxu0 0.0
    %7246 = vmatprep.subr.mxu0 0.0
    %7247 = vmatpush1.msra.mxu0 0.0
    %7248 = vmatprep.subr.mxu0 0.0
    %7249 = vmatpush1.msra.mxu0 0.0
    %7250 = vmatprep.subr.mxu0 0.0
    %7251 = vmatpush1.msra.mxu0 0.0
    %7252 = vmatprep.subr.mxu0 0.0
    %7253 = vmatpush1.msra.mxu0 0.0
    %7254 = vmatprep.subr.mxu0 0.0
    %7255 = vmatpush1.msra.mxu0 0.0
    %7256 = vmatprep.subr.mxu0 0.0
    %7257 = vmatpush1.msra.mxu0 0.0
    %7258 = vmatprep.subr.mxu0 0.0
    %7259 = vmatpush1.msra.mxu0 0.0
    %7260 = vmatprep.subr.mxu0 0.0
    %7261 = vmatpush1.msra.mxu0 0.0
    %7262 = vmatprep.subr.mxu0 0.0
    %7263 = vmatpush1.msra.mxu0 0.0
    %7264 = vmatprep.subr.mxu0 0.0
    %7265 = vmatpush1.msra.mxu0 0.0
    %7266 = vmatprep.subr.mxu0 0.0
    %7267 = vmatpush1.msra.mxu0 0.0
    %7268 = vmatprep.subr.mxu0 0.0
    %7269 = vmatpush1.msra.mxu0 0.0
    %7270 = vmatprep.subr.mxu0 0.0
    %7271 = vmatpush1.msra.mxu0 0.0
    %7272 = vmatprep.subr.mxu0 0.0
    %7273 = vmatpush1.msra.mxu0 0.0
    %7274 = vmatprep.subr.mxu0 0.0
    %7275 = vmatpush1.msra.mxu0 0.0
    %7276 = vmatprep.subr.mxu0 0.0
    %7277 = vmatpush1.msra.mxu0 0.0
    %7278 = vmatprep.subr.mxu0 0.0
    %7279 = vmatpush1.msra.mxu0 0.0
    %7280 = vmatprep.subr.mxu0 0.0
    %7281 = vmatpush1.msra.mxu0 0.0
    %7282 = vmatprep.subr.mxu0 0.0
    %7283 = vmatpush1.msra.mxu0 0.0
    %7284 = vmatprep.subr.mxu0 0.0
    %7285 = vmatpush1.msra.mxu0 0.0
    %7286 = vmatprep.subr.mxu0 0.0
    %7287 = vmatpush1.msra.mxu0 0.0
    %7288 = vmatprep.subr.mxu0 0.0
    %7289 = vmatpush1.msra.mxu0 0.0
    %7290 = vmatprep.subr.mxu0 0.0
    %7291 = vmatpush1.msra.mxu0 0.0
    %7292 = vmatprep.subr.mxu0 0.0
    %7293 = vmatpush1.msra.mxu0 0.0
    %7294 = vmatprep.subr.mxu0 0.0
    %7295 = vmatpush1.msra.mxu0 0.0
    %7296 = vmatprep.mubr.f32.mxu0 0.0
    %7297 = vmatmul.mubr.f32.gmra.mrb[0].mxu0 %v7227
    %v7298 = vpop.f32.mrb[0].mxu0
    %v7299 = vadd.f32 0.0, %v7298
    %v7300 = vpop.f32.mrb[0].mxu0
    %7301 = vmatprep.mubr.f32.mxu0 0.0
    %7302 = vmatmul.mubr.f32.gmra.mrb[0].mxu0 %v7230
    %v7303 = vpop.f32.mrb[0].mxu0
    %v7304 = vadd.f32 0.0, %v7303
    %v7305 = vpop.f32.mrb[0].mxu0
    %7306 = vdwg.mxu0
    %v7308 = vsel %vm313, %v7299, 0
    %v7311 = vsel %vm313, %v7304, 0
    %7313 = vmatprep.subr.mxu0 0.0
    %7314 = vmatpush1.msra.mxu0 %v6146
    %7315 = vmatprep.subr.mxu0 0.0
    %7316 = vmatpush1.msra.mxu0 0.0
    %7317 = vmatprep.subr.mxu0 0.0
    %7318 = vmatpush1.msra.mxu0 0.0
    %7319 = vmatprep.subr.mxu0 0.0
    %7320 = vmatpush1.msra.mxu0 0.0
    %7321 = vmatprep.subr.mxu0 0.0
    %7322 = vmatpush1.msra.mxu0 0.0
    %7323 = vmatprep.subr.mxu0 0.0
    %7324 = vmatpush1.msra.mxu0 0.0
    %7325 = vmatprep.subr.mxu0 0.0
    %7326 = vmatpush1.msra.mxu0 0.0
    %7327 = vmatprep.subr.mxu0 0.0
    %7328 = vmatpush1.msra.mxu0 0.0
    %7329 = vmatprep.subr.mxu0 0.0
    %7330 = vmatpush1.msra.mxu0 0.0
    %7331 = vmatprep.subr.mxu0 0.0
    %7332 = vmatpush1.msra.mxu0 0.0
    %7333 = vmatprep.subr.mxu0 0.0
    %7334 = vmatpush1.msra.mxu0 0.0
    %7335 = vmatprep.subr.mxu0 0.0
    %7336 = vmatpush1.msra.mxu0 0.0
    %7337 = vmatprep.subr.mxu0 0.0
    %7338 = vmatpush1.msra.mxu0 0.0
    %7339 = vmatprep.subr.mxu0 0.0
    %7340 = vmatpush1.msra.mxu0 0.0
    %7341 = vmatprep.subr.mxu0 0.0
    %7342 = vmatpush1.msra.mxu0 0.0
    %7343 = vmatprep.subr.mxu0 0.0
    %7344 = vmatpush1.msra.mxu0 0.0
    %7345 = vmatprep.subr.mxu0 0.0
    %7346 = vmatpush1.msra.mxu0 0.0
    %7347 = vmatprep.subr.mxu0 0.0
    %7348 = vmatpush1.msra.mxu0 0.0
    %7349 = vmatprep.subr.mxu0 0.0
    %7350 = vmatpush1.msra.mxu0 0.0
    %7351 = vmatprep.subr.mxu0 0.0
    %7352 = vmatpush1.msra.mxu0 0.0
    %7353 = vmatprep.subr.mxu0 0.0
    %7354 = vmatpush1.msra.mxu0 0.0
    %7355 = vmatprep.subr.mxu0 0.0
    %7356 = vmatpush1.msra.mxu0 0.0
    %7357 = vmatprep.subr.mxu0 0.0
    %7358 = vmatpush1.msra.mxu0 0.0
    %7359 = vmatprep.subr.mxu0 0.0
    %7360 = vmatpush1.msra.mxu0 0.0
    %7361 = vmatprep.subr.mxu0 0.0
    %7362 = vmatpush1.msra.mxu0 0.0
    %7363 = vmatprep.subr.mxu0 0.0
    %7364 = vmatpush1.msra.mxu0 0.0
    %7365 = vmatprep.subr.mxu0 0.0
    %7366 = vmatpush1.msra.mxu0 0.0
    %7367 = vmatprep.subr.mxu0 0.0
    %7368 = vmatpush1.msra.mxu0 0.0
    %7369 = vmatprep.subr.mxu0 0.0
    %7370 = vmatpush1.msra.mxu0 0.0
    %7371 = vmatprep.subr.mxu0 0.0
    %7372 = vmatpush1.msra.mxu0 0.0
    %7373 = vmatprep.subr.mxu0 0.0
    %7374 = vmatpush1.msra.mxu0 0.0
    %7375 = vmatprep.subr.mxu0 0.0
    %7376 = vmatpush1.msra.mxu0 0.0
    %7377 = vmatprep.mubr.f32.mxu0 0.0
    %7378 = vmatmul.mubr.f32.gmra.mrb[0].mxu0 %v7308
    %v7379 = vpop.f32.mrb[0].mxu0
    %v7380 = vadd.f32 0.0, %v7379
    %v7381 = vpop.f32.mrb[0].mxu0
    %7382 = vmatprep.mubr.f32.mxu0 0.0
    %7383 = vmatmul.mubr.f32.gmra.mrb[0].mxu0 %v7311
    %v7384 = vpop.f32.mrb[0].mxu0
    %v7385 = vadd.f32 0.0, %v7384
    %v7386 = vpop.f32.mrb[0].mxu0
    %7387 = vdwg.mxu0
    %v7388 = vadd.f32 %v7105, %v7380
    %v7389 = vadd.f32 %v7106, %v7385
    %v7390 = vlaneseq
    %v7391 = vshrl.u32 %v7390, 7
    %v7392 = vsub.s32 1, %v7391
    %v7393 = vrot.slane %v6177, %v7392
    %v7394 = vadd.f32 %v7388, %v7393
    %v7395 = vadd.f32 %v7389, %v7393
    %v7396 = vadd.f32 %v6135, %v7394
    %v7397 = vadd.f32 %v6136, %v7395
    %v7398 = vsel %vm225, %v7396, 0.0
    %7399 = vadd.xlane.f32.xlu0 %v7398
    %v7400 = vpop.xlane.xlu0 %7399
    %v7401 = vsel %vm225, %v7397, 0.0
    %7402 = vadd.xlane.f32.xlu0 %v7401
    %v7403 = vpop.xlane.xlu0 %7402
    %v7404 = vmul.f32 %v7400, %v1449
    %v7405 = vmul.f32 %v7403, %v1449
    %v7406 = vsub.f32 %v7396, %v7404
    %v7407 = vsub.f32 %v7397, %v7405
    %v7408 = vmul.f32 %v7406, %v7406
    %v7409 = vmul.f32 %v7407, %v7407
    %v7410 = vsel %vm225, %v7408, 0.0
    %7411 = vadd.xlane.f32.xlu0 %v7410
    %v7412 = vpop.xlane.xlu0 %7411
    %v7413 = vsel %vm225, %v7409, 0.0
    %7414 = vadd.xlane.f32.xlu0 %v7413
    %v7415 = vpop.xlane.xlu0 %7414
    %v7416 = vmul.f32 %v7412, %v1449
    %v7417 = vmul.f32 %v7415, %v1449
    %v7418 = vadd.f32 %v7416, 1e-05
    %v7419 = vadd.f32 %v7417, 1e-05
    %v7420 = vrsqrt.pop %v7418
    %v7421 = vrsqrt.pop %v7419
    %v7422 = vmul.f32 %v7406, %v7420
    %v7423 = vmul.f32 %v7407, %v7421
    %v7424 = vlaneseq
    %v7425 = vshrl.u32 %v7424, 7
    %v7426 = vsub.s32 7, %v7425
    %v7427 = vrot.slane %v6177, %v7426
    %v7428 = vmul.f32 %v7422, %v7427
    %v7429 = vmul.f32 %v7423, %v7427
    %v7430 = vlaneseq
    %v7431 = vshrl.u32 %v7430, 7
    %v7432 = vsub.s32 0, %v7431
    %v7433 = vrot.slane %v6178, %v7432
    %v7434 = vadd.f32 %v7428, %v7433
    %v7435 = vadd.f32 %v7429, %v7433
    %v7436 = vlaneseq
    %v7437 = vshrl.u32 %v7436, 7
    %v7438 = vsub.s32 2, %v7437
    %v7439 = vrot.slane %v6177, %v7438
    %v7441 = vsel %vm225, %v7434, 0
    %v7444 = vsel %vm225, %v7435, 0
    %7446 = vmatprep.subr.mxu0 0.0
    %7447 = vmatpush1.msra.mxu0 %v6148
    %7448 = vmatprep.subr.mxu0 0.0
    %7449 = vmatpush1.msra.mxu0 %v6149
    %7450 = vmatprep.subr.mxu0 0.0
    %7451 = vmatpush1.msra.mxu0 %v6150
    %7452 = vmatprep.subr.mxu0 0.0
    %7453 = vmatpush1.msra.mxu0 %v6151
    %7454 = vmatprep.subr.mxu0 0.0
    %7455 = vmatpush1.msra.mxu0 0.0
    %7456 = vmatprep.subr.mxu0 0.0
    %7457 = vmatpush1.msra.mxu0 0.0
    %7458 = vmatprep.subr.mxu0 0.0
    %7459 = vmatpush1.msra.mxu0 0.0
    %7460 = vmatprep.subr.mxu0 0.0
    %7461 = vmatpush1.msra.mxu0 0.0
    %7462 = vmatprep.subr.mxu0 0.0
    %7463 = vmatpush1.msra.mxu0 0.0
    %7464 = vmatprep.subr.mxu0 0.0
    %7465 = vmatpush1.msra.mxu0 0.0
    %7466 = vmatprep.subr.mxu0 0.0
    %7467 = vmatpush1.msra.mxu0 0.0
    %7468 = vmatprep.subr.mxu0 0.0
    %7469 = vmatpush1.msra.mxu0 0.0
    %7470 = vmatprep.subr.mxu0 0.0
    %7471 = vmatpush1.msra.mxu0 0.0
    %7472 = vmatprep.subr.mxu0 0.0
    %7473 = vmatpush1.msra.mxu0 0.0
    %7474 = vmatprep.subr.mxu0 0.0
    %7475 = vmatpush1.msra.mxu0 0.0
    %7476 = vmatprep.subr.mxu0 0.0
    %7477 = vmatpush1.msra.mxu0 0.0
    %7478 = vmatprep.subr.mxu0 0.0
    %7479 = vmatpush1.msra.mxu0 0.0
    %7480 = vmatprep.subr.mxu0 0.0
    %7481 = vmatpush1.msra.mxu0 0.0
    %7482 = vmatprep.subr.mxu0 0.0
    %7483 = vmatpush1.msra.mxu0 0.0
    %7484 = vmatprep.subr.mxu0 0.0
    %7485 = vmatpush1.msra.mxu0 0.0
    %7486 = vmatprep.subr.mxu0 0.0
    %7487 = vmatpush1.msra.mxu0 0.0
    %7488 = vmatprep.subr.mxu0 0.0
    %7489 = vmatpush1.msra.mxu0 0.0
    %7490 = vmatprep.subr.mxu0 0.0
    %7491 = vmatpush1.msra.mxu0 0.0
    %7492 = vmatprep.subr.mxu0 0.0
    %7493 = vmatpush1.msra.mxu0 0.0
    %7494 = vmatprep.subr.mxu0 0.0
    %7495 = vmatpush1.msra.mxu0 0.0
    %7496 = vmatprep.subr.mxu0 0.0
    %7497 = vmatpush1.msra.mxu0 0.0
    %7498 = vmatprep.subr.mxu0 0.0
    %7499 = vmatpush1.msra.mxu0 0.0
    %7500 = vmatprep.subr.mxu0 0.0
    %7501 = vmatpush1.msra.mxu0 0.0
    %7502 = vmatprep.subr.mxu0 0.0
    %7503 = vmatpush1.msra.mxu0 0.0
    %7504 = vmatprep.subr.mxu0 0.0
    %7505 = vmatpush1.msra.mxu0 0.0
    %7506 = vmatprep.subr.mxu0 0.0
    %7507 = vmatpush1.msra.mxu0 0.0
    %7508 = vmatprep.subr.mxu0 0.0
    %7509 = vmatpush1.msra.mxu0 0.0
    %7510 = vmatprep.mubr.f32.mxu0 0.0
    %7511 = vmatmul.mubr.f32.gmra.mrb[0].mxu0 %v7441
    %v7512 = vpop.f32.mrb[0].mxu0
    %v7513 = vadd.f32 %v7439, %v7512
    %v7514 = vpop.f32.mrb[0].mxu0
    %7515 = vmatprep.mubr.f32.mxu0 0.0
    %7516 = vmatmul.mubr.f32.gmra.mrb[0].mxu0 %v7444
    %v7517 = vpop.f32.mrb[0].mxu0
    %v7518 = vadd.f32 %v7439, %v7517
    %v7519 = vpop.f32.mrb[0].mxu0
    %7520 = vdwg.mxu0
    %v7521 = vlaneseq
    %v7522 = vshrl.u32 %v7521, 7
    %v7523 = vsub.s32 3, %v7522
    %v7524 = vrot.slane %v6177, %v7523
    %7525 = vmatprep.subr.mxu0 0.0
    %7526 = vmatpush1.msra.mxu0 %v6153
    %7527 = vmatprep.subr.mxu0 0.0
    %7528 = vmatpush1.msra.mxu0 %v6154
    %7529 = vmatprep.subr.mxu0 0.0
    %7530 = vmatpush1.msra.mxu0 %v6155
    %7531 = vmatprep.subr.mxu0 0.0
    %7532 = vmatpush1.msra.mxu0 %v6156
    %7533 = vmatprep.subr.mxu0 0.0
    %7534 = vmatpush1.msra.mxu0 0.0
    %7535 = vmatprep.subr.mxu0 0.0
    %7536 = vmatpush1.msra.mxu0 0.0
    %7537 = vmatprep.subr.mxu0 0.0
    %7538 = vmatpush1.msra.mxu0 0.0
    %7539 = vmatprep.subr.mxu0 0.0
    %7540 = vmatpush1.msra.mxu0 0.0
    %7541 = vmatprep.subr.mxu0 0.0
    %7542 = vmatpush1.msra.mxu0 0.0
    %7543 = vmatprep.subr.mxu0 0.0
    %7544 = vmatpush1.msra.mxu0 0.0
    %7545 = vmatprep.subr.mxu0 0.0
    %7546 = vmatpush1.msra.mxu0 0.0
    %7547 = vmatprep.subr.mxu0 0.0
    %7548 = vmatpush1.msra.mxu0 0.0
    %7549 = vmatprep.subr.mxu0 0.0
    %7550 = vmatpush1.msra.mxu0 0.0
    %7551 = vmatprep.subr.mxu0 0.0
    %7552 = vmatpush1.msra.mxu0 0.0
    %7553 = vmatprep.subr.mxu0 0.0
    %7554 = vmatpush1.msra.mxu0 0.0
    %7555 = vmatprep.subr.mxu0 0.0
    %7556 = vmatpush1.msra.mxu0 0.0
    %7557 = vmatprep.subr.mxu0 0.0
    %7558 = vmatpush1.msra.mxu0 0.0
    %7559 = vmatprep.subr.mxu0 0.0
    %7560 = vmatpush1.msra.mxu0 0.0
    %7561 = vmatprep.subr.mxu0 0.0
    %7562 = vmatpush1.msra.mxu0 0.0
    %7563 = vmatprep.subr.mxu0 0.0
    %7564 = vmatpush1.msra.mxu0 0.0
    %7565 = vmatprep.subr.mxu0 0.0
    %7566 = vmatpush1.msra.mxu0 0.0
    %7567 = vmatprep.subr.mxu0 0.0
    %7568 = vmatpush1.msra.mxu0 0.0
    %7569 = vmatprep.subr.mxu0 0.0
    %7570 = vmatpush1.msra.mxu0 0.0
    %7571 = vmatprep.subr.mxu0 0.0
    %7572 = vmatpush1.msra.mxu0 0.0
    %7573 = vmatprep.subr.mxu0 0.0
    %7574 = vmatpush1.msra.mxu0 0.0
    %7575 = vmatprep.subr.mxu0 0.0
    %7576 = vmatpush1.msra.mxu0 0.0
    %7577 = vmatprep.subr.mxu0 0.0
    %7578 = vmatpush1.msra.mxu0 0.0
    %7579 = vmatprep.subr.mxu0 0.0
    %7580 = vmatpush1.msra.mxu0 0.0
    %7581 = vmatprep.subr.mxu0 0.0
    %7582 = vmatpush1.msra.mxu0 0.0
    %7583 = vmatprep.subr.mxu0 0.0
    %7584 = vmatpush1.msra.mxu0 0.0
    %7585 = vmatprep.subr.mxu0 0.0
    %7586 = vmatpush1.msra.mxu0 0.0
    %7587 = vmatprep.subr.mxu0 0.0
    %7588 = vmatpush1.msra.mxu0 0.0
    %7589 = vmatprep.mubr.f32.mxu0 0.0
    %7590 = vmatmul.mubr.f32.gmra.mrb[0].mxu0 %v4675
    %v7591 = vpop.f32.mrb[0].mxu0
    %v7592 = vadd.f32 %v7524, %v7591
    %v7593 = vpop.f32.mrb[0].mxu0
    %7594 = vmatprep.mubr.f32.mxu0 0.0
    %7595 = vmatmul.mubr.f32.gmra.mrb[0].mxu0 %v4678
    %v7596 = vpop.f32.mrb[0].mxu0
    %v7597 = vadd.f32 %v7524, %v7596
    %v7598 = vpop.f32.mrb[0].mxu0
    %7599 = vdwg.mxu0
    %v7601 = vsel %vm313, %v7513, 0
    %v7604 = vsel %vm313, %v7518, 0
    %v7607 = vsel %vm313, %v7592, 0
    %v7610 = vsel %vm313, %v7597, 0
    %7612 = vmatprep.subr.mxu0 0.0
    %7613 = vmatpush1.xpose.msra.mxu0 %v7607
    %7614 = vmatprep.subr.mxu0 0.0
    %7615 = vmatpush1.xpose.msra.mxu0 %v7610
    %7616 = vmatprep.subr.mxu0 0.0
    %7617 = vmatpush1.xpose.msra.mxu0 0.0
    %7618 = vmatprep.subr.mxu0 0.0
    %7619 = vmatpush1.xpose.msra.mxu0 0.0
    %7620 = vmatprep.subr.mxu0 0.0
    %7621 = vmatpush1.xpose.msra.mxu0 0.0
    %7622 = vmatprep.subr.mxu0 0.0
    %7623 = vmatpush1.xpose.msra.mxu0 0.0
    %7624 = vmatprep.subr.mxu0 0.0
    %7625 = vmatpush1.xpose.msra.mxu0 0.0
    %7626 = vmatprep.subr.mxu0 0.0
    %7627 = vmatpush1.xpose.msra.mxu0 0.0
    %7628 = vmatprep.subr.mxu0 0.0
    %7629 = vmatpush1.xpose.msra.mxu0 0.0
    %7630 = vmatprep.subr.mxu0 0.0
    %7631 = vmatpush1.xpose.msra.mxu0 0.0
    %7632 = vmatprep.subr.mxu0 0.0
    %7633 = vmatpush1.xpose.msra.mxu0 0.0
    %7634 = vmatprep.subr.mxu0 0.0
    %7635 = vmatpush1.xpose.msra.mxu0 0.0
    %7636 = vmatprep.subr.mxu0 0.0
    %7637 = vmatpush1.xpose.msra.mxu0 0.0
    %7638 = vmatprep.subr.mxu0 0.0
    %7639 = vmatpush1.xpose.msra.mxu0 0.0
    %7640 = vmatprep.subr.mxu0 0.0
    %7641 = vmatpush1.xpose.msra.mxu0 0.0
    %7642 = vmatprep.subr.mxu0 0.0
    %7643 = vmatpush1.xpose.msra.mxu0 0.0
    %7644 = vmatprep.subr.mxu0 0.0
    %7645 = vmatpush1.xpose.msra.mxu0 0.0
    %7646 = vmatprep.subr.mxu0 0.0
    %7647 = vmatpush1.xpose.msra.mxu0 0.0
    %7648 = vmatprep.subr.mxu0 0.0
    %7649 = vmatpush1.xpose.msra.mxu0 0.0
    %7650 = vmatprep.subr.mxu0 0.0
    %7651 = vmatpush1.xpose.msra.mxu0 0.0
    %7652 = vmatprep.subr.mxu0 0.0
    %7653 = vmatpush1.xpose.msra.mxu0 0.0
    %7654 = vmatprep.subr.mxu0 0.0
    %7655 = vmatpush1.xpose.msra.mxu0 0.0
    %7656 = vmatprep.subr.mxu0 0.0
    %7657 = vmatpush1.xpose.msra.mxu0 0.0
    %7658 = vmatprep.subr.mxu0 0.0
    %7659 = vmatpush1.xpose.msra.mxu0 0.0
    %7660 = vmatprep.subr.mxu0 0.0
    %7661 = vmatpush1.xpose.msra.mxu0 0.0
    %7662 = vmatprep.subr.mxu0 0.0
    %7663 = vmatpush1.xpose.msra.mxu0 0.0
    %7664 = vmatprep.subr.mxu0 0.0
    %7665 = vmatpush1.xpose.msra.mxu0 0.0
    %7666 = vmatprep.subr.mxu0 0.0
    %7667 = vmatpush1.xpose.msra.mxu0 0.0
    %7668 = vmatprep.subr.mxu0 0.0
    %7669 = vmatpush1.xpose.msra.mxu0 0.0
    %7670 = vmatprep.subr.mxu0 0.0
    %7671 = vmatpush1.xpose.msra.mxu0 0.0
    %7672 = vmatprep.subr.mxu0 0.0
    %7673 = vmatpush1.xpose.msra.mxu0 0.0
    %7674 = vmatprep.subr.mxu0 0.0
    %7675 = vmatpush1.xpose.msra.mxu0 0.0
    %7676 = vmatprep.mubr.f32.mxu0 0.0
    %7677 = vmatmul.mubr.f32.gmra.mrb[0].mxu0 %v7601
    %v7678 = vpop.f32.mrb[0].mxu0
    %v7679 = vadd.f32 %v3292, %v7678
    %v7680 = vpop.f32.mrb[0].mxu0
    %7681 = vmatprep.mubr.f32.mxu0 0.0
    %7682 = vmatmul.mubr.f32.gmra.mrb[0].mxu0 %v7604
    %v7683 = vpop.f32.mrb[0].mxu0
    %v7684 = vadd.f32 %v3293, %v7683
    %v7685 = vpop.f32.mrb[0].mxu0
    %7686 = vdwg.mxu0
    %v7687 = vsel %vm397, %v7679, -inf
    %7688 = vmax.xlane.f32.xlu0 %v7687
    %v7689 = vpop.xlane.xlu0 %7688
    %v7690 = vsel %vm397, %v7684, -inf
    %7691 = vmax.xlane.f32.xlu0 %v7690
    %v7692 = vpop.xlane.xlu0 %7691
    %v7693 = vsub.f32 %v7679, %v7689
    %v7694 = vsub.f32 %v7684, %v7692
    %v7695 = vmul.f32 %v7693, 1.442695
    %v7696 = vpow.pop %v7695
    %v7697 = vmul.f32 %v7694, 1.442695
    %v7698 = vpow.pop %v7697
    %v7699 = vsel %vm397, %v7696, 0.0
    %7700 = vadd.xlane.f32.xlu0 %v7699
    %v7701 = vpop.xlane.xlu0 %7700
    %v7702 = vsel %vm397, %v7698, 0.0
    %7703 = vadd.xlane.f32.xlu0 %v7702
    %v7704 = vpop.xlane.xlu0 %7703
    %v7705 = vrcp.pop %v7701
    %v7706 = vrcp.pop %v7704
    %v7707 = vmul.f32 %v7696, %v7705
    %v7708 = vmul.f32 %v7698, %v7706
    %7709 = vrot.lane.b32.xlu0 %v7592, 96
    %v7710 = vpop.permute.xlu0 %7709
    %7711 = vrot.lane.b32.xlu0 %v7597, 96
    %v7712 = vpop.permute.xlu0 %7711
    %v7716 = vsel %vm397, %v7707, 0
    %v7719 = vsel %vm397, %v7708, 0
    %7721 = vmatprep.subr.mxu0 0.0
    %7722 = vmatpush1.msra.mxu0 %v7710
    %7723 = vmatprep.subr.mxu0 0.0
    %7724 = vmatpush1.msra.mxu0 %v7712
    %7725 = vmatprep.subr.mxu0 0.0
    %7726 = vmatpush1.msra.mxu0 0.0
    %7727 = vmatprep.subr.mxu0 0.0
    %7728 = vmatpush1.msra.mxu0 0.0
    %7729 = vmatprep.subr.mxu0 0.0
    %7730 = vmatpush1.msra.mxu0 0.0
    %7731 = vmatprep.subr.mxu0 0.0
    %7732 = vmatpush1.msra.mxu0 0.0
    %7733 = vmatprep.subr.mxu0 0.0
    %7734 = vmatpush1.msra.mxu0 0.0
    %7735 = vmatprep.subr.mxu0 0.0
    %7736 = vmatpush1.msra.mxu0 0.0
    %7737 = vmatprep.subr.mxu0 0.0
    %7738 = vmatpush1.msra.mxu0 0.0
    %7739 = vmatprep.subr.mxu0 0.0
    %7740 = vmatpush1.msra.mxu0 0.0
    %7741 = vmatprep.subr.mxu0 0.0
    %7742 = vmatpush1.msra.mxu0 0.0
    %7743 = vmatprep.subr.mxu0 0.0
    %7744 = vmatpush1.msra.mxu0 0.0
    %7745 = vmatprep.subr.mxu0 0.0
    %7746 = vmatpush1.msra.mxu0 0.0
    %7747 = vmatprep.subr.mxu0 0.0
    %7748 = vmatpush1.msra.mxu0 0.0
    %7749 = vmatprep.subr.mxu0 0.0
    %7750 = vmatpush1.msra.mxu0 0.0
    %7751 = vmatprep.subr.mxu0 0.0
    %7752 = vmatpush1.msra.mxu0 0.0
    %7753 = vmatprep.subr.mxu0 0.0
    %7754 = vmatpush1.msra.mxu0 0.0
    %7755 = vmatprep.subr.mxu0 0.0
    %7756 = vmatpush1.msra.mxu0 0.0
    %7757 = vmatprep.subr.mxu0 0.0
    %7758 = vmatpush1.msra.mxu0 0.0
    %7759 = vmatprep.subr.mxu0 0.0
    %7760 = vmatpush1.msra.mxu0 0.0
    %7761 = vmatprep.subr.mxu0 0.0
    %7762 = vmatpush1.msra.mxu0 0.0
    %7763 = vmatprep.subr.mxu0 0.0
    %7764 = vmatpush1.msra.mxu0 0.0
    %7765 = vmatprep.subr.mxu0 0.0
    %7766 = vmatpush1.msra.mxu0 0.0
    %7767 = vmatprep.subr.mxu0 0.0
    %7768 = vmatpush1.msra.mxu0 0.0
    %7769 = vmatprep.subr.mxu0 0.0
    %7770 = vmatpush1.msra.mxu0 0.0
    %7771 = vmatprep.subr.mxu0 0.0
    %7772 = vmatpush1.msra.mxu0 0.0
    %7773 = vmatprep.subr.mxu0 0.0
    %7774 = vmatpush1.msra.mxu0 0.0
    %7775 = vmatprep.subr.mxu0 0.0
    %7776 = vmatpush1.msra.mxu0 0.0
    %7777 = vmatprep.subr.mxu0 0.0
    %7778 = vmatpush1.msra.mxu0 0.0
    %7779 = vmatprep.subr.mxu0 0.0
    %7780 = vmatpush1.msra.mxu0 0.0
    %7781 = vmatprep.subr.mxu0 0.0
    %7782 = vmatpush1.msra.mxu0 0.0
    %7783 = vmatprep.subr.mxu0 0.0
    %7784 = vmatpush1.msra.mxu0 0.0
    %7785 = vmatprep.mubr.f32.mxu0 0.0
    %7786 = vmatmul.mubr.f32.gmra.mrb[0].mxu0 %v7716
    %v7787 = vpop.f32.mrb[0].mxu0
    %v7788 = vadd.f32 0.0, %v7787
    %v7789 = vpop.f32.mrb[0].mxu0
    %7790 = vmatprep.mubr.f32.mxu0 0.0
    %7791 = vmatmul.mubr.f32.gmra.mrb[0].mxu0 %v7719
    %v7792 = vpop.f32.mrb[0].mxu0
    %v7793 = vadd.f32 0.0, %v7792
    %v7794 = vpop.f32.mrb[0].mxu0
    %7795 = vdwg.mxu0
    %7796 = vrot.lane.b32.xlu0 %v7513, 120
    %v7797 = vpop.permute.xlu0 %7796
    %7798 = vrot.lane.b32.xlu0 %v7518, 120
    %v7799 = vpop.permute.xlu0 %7798
    %7800 = vrot.lane.b32.xlu0 %v7592, 120
    %v7801 = vpop.permute.xlu0 %7800
    %7802 = vrot.lane.b32.xlu0 %v7597, 120
    %v7803 = vpop.permute.xlu0 %7802
    %v7804 = vsel %vm313, %v7797, 0
    %v7806 = vsel %vm313, %v7799, 0
    %v7808 = vsel %vm313, %v7801, 0
    %v7810 = vsel %vm313, %v7803, 0
    %7812 = vmatprep.subr.mxu0 0.0
    %7813 = vmatpush1.xpose.msra.mxu0 %v7808
    %7814 = vmatprep.subr.mxu0 0.0
    %7815 = vmatpush1.xpose.msra.mxu0 %v7810
    %7816 = vmatprep.subr.mxu0 0.0
    %7817 = vmatpush1.xpose.msra.mxu0 0.0
    %7818 = vmatprep.subr.mxu0 0.0
    %7819 = vmatpush1.xpose.msra.mxu0 0.0
    %7820 = vmatprep.subr.mxu0 0.0
    %7821 = vmatpush1.xpose.msra.mxu0 0.0
    %7822 = vmatprep.subr.mxu0 0.0
    %7823 = vmatpush1.xpose.msra.mxu0 0.0
    %7824 = vmatprep.subr.mxu0 0.0
    %7825 = vmatpush1.xpose.msra.mxu0 0.0
    %7826 = vmatprep.subr.mxu0 0.0
    %7827 = vmatpush1.xpose.msra.mxu0 0.0
    %7828 = vmatprep.subr.mxu0 0.0
    %7829 = vmatpush1.xpose.msra.mxu0 0.0
    %7830 = vmatprep.subr.mxu0 0.0
    %7831 = vmatpush1.xpose.msra.mxu0 0.0
    %7832 = vmatprep.subr.mxu0 0.0
    %7833 = vmatpush1.xpose.msra.mxu0 0.0
    %7834 = vmatprep.subr.mxu0 0.0
    %7835 = vmatpush1.xpose.msra.mxu0 0.0
    %7836 = vmatprep.subr.mxu0 0.0
    %7837 = vmatpush1.xpose.msra.mxu0 0.0
    %7838 = vmatprep.subr.mxu0 0.0
    %7839 = vmatpush1.xpose.msra.mxu0 0.0
    %7840 = vmatprep.subr.mxu0 0.0
    %7841 = vmatpush1.xpose.msra.mxu0 0.0
    %7842 = vmatprep.subr.mxu0 0.0
    %7843 = vmatpush1.xpose.msra.mxu0 0.0
    %7844 = vmatprep.subr.mxu0 0.0
    %7845 = vmatpush1.xpose.msra.mxu0 0.0
    %7846 = vmatprep.subr.mxu0 0.0
    %7847 = vmatpush1.xpose.msra.mxu0 0.0
    %7848 = vmatprep.subr.mxu0 0.0
    %7849 = vmatpush1.xpose.msra.mxu0 0.0
    %7850 = vmatprep.subr.mxu0 0.0
    %7851 = vmatpush1.xpose.msra.mxu0 0.0
    %7852 = vmatprep.subr.mxu0 0.0
    %7853 = vmatpush1.xpose.msra.mxu0 0.0
    %7854 = vmatprep.subr.mxu0 0.0
    %7855 = vmatpush1.xpose.msra.mxu0 0.0
    %7856 = vmatprep.subr.mxu0 0.0
    %7857 = vmatpush1.xpose.msra.mxu0 0.0
    %7858 = vmatprep.subr.mxu0 0.0
    %7859 = vmatpush1.xpose.msra.mxu0 0.0
    %7860 = vmatprep.subr.mxu0 0.0
    %7861 = vmatpush1.xpose.msra.mxu0 0.0
    %7862 = vmatprep.subr.mxu0 0.0
    %7863 = vmatpush1.xpose.msra.mxu0 0.0
    %7864 = vmatprep.subr.mxu0 0.0
    %7865 = vmatpush1.xpose.msra.mxu0 0.0
    %7866 = vmatprep.subr.mxu0 0.0
    %7867 = vmatpush1.xpose.msra.mxu0 0.0
    %7868 = vmatprep.subr.mxu0 0.0
    %7869 = vmatpush1.xpose.msra.mxu0 0.0
    %7870 = vmatprep.subr.mxu0 0.0
    %7871 = vmatpush1.xpose.msra.mxu0 0.0
    %7872 = vmatprep.subr.mxu0 0.0
    %7873 = vmatpush1.xpose.msra.mxu0 0.0
    %7874 = vmatprep.subr.mxu0 0.0
    %7875 = vmatpush1.xpose.msra.mxu0 0.0
    %7876 = vmatprep.mubr.f32.mxu0 0.0
    %7877 = vmatmul.mubr.f32.gmra.mrb[0].mxu0 %v7804
    %v7878 = vpop.f32.mrb[0].mxu0
    %v7879 = vadd.f32 %v3292, %v7878
    %v7880 = vpop.f32.mrb[0].mxu0
    %7881 = vmatprep.mubr.f32.mxu0 0.0
    %7882 = vmatmul.mubr.f32.gmra.mrb[0].mxu0 %v7806
    %v7883 = vpop.f32.mrb[0].mxu0
    %v7884 = vadd.f32 %v3293, %v7883
    %v7885 = vpop.f32.mrb[0].mxu0
    %7886 = vdwg.mxu0
    %v7887 = vsel %vm397, %v7879, -inf
    %7888 = vmax.xlane.f32.xlu0 %v7887
    %v7889 = vpop.xlane.xlu0 %7888
    %v7890 = vsel %vm397, %v7884, -inf
    %7891 = vmax.xlane.f32.xlu0 %v7890
    %v7892 = vpop.xlane.xlu0 %7891
    %v7893 = vsub.f32 %v7879, %v7889
    %v7894 = vsub.f32 %v7884, %v7892
    %v7895 = vmul.f32 %v7893, 1.442695
    %v7896 = vpow.pop %v7895
    %v7897 = vmul.f32 %v7894, 1.442695
    %v7898 = vpow.pop %v7897
    %v7899 = vsel %vm397, %v7896, 0.0
    %7900 = vadd.xlane.f32.xlu0 %v7899
    %v7901 = vpop.xlane.xlu0 %7900
    %v7902 = vsel %vm397, %v7898, 0.0
    %7903 = vadd.xlane.f32.xlu0 %v7902
    %v7904 = vpop.xlane.xlu0 %7903
    %v7905 = vrcp.pop %v7901
    %v7906 = vrcp.pop %v7904
    %v7907 = vmul.f32 %v7896, %v7905
    %v7908 = vmul.f32 %v7898, %v7906
    %7909 = vrot.lane.b32.xlu0 %v7592, 88
    %v7910 = vpop.permute.xlu0 %7909
    %7911 = vrot.lane.b32.xlu0 %v7597, 88
    %v7912 = vpop.permute.xlu0 %7911
    %v7916 = vsel %vm397, %v7907, 0
    %v7919 = vsel %vm397, %v7908, 0
    %7921 = vmatprep.subr.mxu0 0.0
    %7922 = vmatpush1.msra.mxu0 %v7910
    %7923 = vmatprep.subr.mxu0 0.0
    %7924 = vmatpush1.msra.mxu0 %v7912
    %7925 = vmatprep.subr.mxu0 0.0
    %7926 = vmatpush1.msra.mxu0 0.0
    %7927 = vmatprep.subr.mxu0 0.0
    %7928 = vmatpush1.msra.mxu0 0.0
    %7929 = vmatprep.subr.mxu0 0.0
    %7930 = vmatpush1.msra.mxu0 0.0
    %7931 = vmatprep.subr.mxu0 0.0
    %7932 = vmatpush1.msra.mxu0 0.0
    %7933 = vmatprep.subr.mxu0 0.0
    %7934 = vmatpush1.msra.mxu0 0.0
    %7935 = vmatprep.subr.mxu0 0.0
    %7936 = vmatpush1.msra.mxu0 0.0
    %7937 = vmatprep.subr.mxu0 0.0
    %7938 = vmatpush1.msra.mxu0 0.0
    %7939 = vmatprep.subr.mxu0 0.0
    %7940 = vmatpush1.msra.mxu0 0.0
    %7941 = vmatprep.subr.mxu0 0.0
    %7942 = vmatpush1.msra.mxu0 0.0
    %7943 = vmatprep.subr.mxu0 0.0
    %7944 = vmatpush1.msra.mxu0 0.0
    %7945 = vmatprep.subr.mxu0 0.0
    %7946 = vmatpush1.msra.mxu0 0.0
    %7947 = vmatprep.subr.mxu0 0.0
    %7948 = vmatpush1.msra.mxu0 0.0
    %7949 = vmatprep.subr.mxu0 0.0
    %7950 = vmatpush1.msra.mxu0 0.0
    %7951 = vmatprep.subr.mxu0 0.0
    %7952 = vmatpush1.msra.mxu0 0.0
    %7953 = vmatprep.subr.mxu0 0.0
    %7954 = vmatpush1.msra.mxu0 0.0
    %7955 = vmatprep.subr.mxu0 0.0
    %7956 = vmatpush1.msra.mxu0 0.0
    %7957 = vmatprep.subr.mxu0 0.0
    %7958 = vmatpush1.msra.mxu0 0.0
    %7959 = vmatprep.subr.mxu0 0.0
    %7960 = vmatpush1.msra.mxu0 0.0
    %7961 = vmatprep.subr.mxu0 0.0
    %7962 = vmatpush1.msra.mxu0 0.0
    %7963 = vmatprep.subr.mxu0 0.0
    %7964 = vmatpush1.msra.mxu0 0.0
    %7965 = vmatprep.subr.mxu0 0.0
    %7966 = vmatpush1.msra.mxu0 0.0
    %7967 = vmatprep.subr.mxu0 0.0
    %7968 = vmatpush1.msra.mxu0 0.0
    %7969 = vmatprep.subr.mxu0 0.0
    %7970 = vmatpush1.msra.mxu0 0.0
    %7971 = vmatprep.subr.mxu0 0.0
    %7972 = vmatpush1.msra.mxu0 0.0
    %7973 = vmatprep.subr.mxu0 0.0
    %7974 = vmatpush1.msra.mxu0 0.0
    %7975 = vmatprep.subr.mxu0 0.0
    %7976 = vmatpush1.msra.mxu0 0.0
    %7977 = vmatprep.subr.mxu0 0.0
    %7978 = vmatpush1.msra.mxu0 0.0
    %7979 = vmatprep.subr.mxu0 0.0
    %7980 = vmatpush1.msra.mxu0 0.0
    %7981 = vmatprep.subr.mxu0 0.0
    %7982 = vmatpush1.msra.mxu0 0.0
    %7983 = vmatprep.subr.mxu0 0.0
    %7984 = vmatpush1.msra.mxu0 0.0
    %7985 = vmatprep.mubr.f32.mxu0 0.0
    %7986 = vmatmul.mubr.f32.gmra.mrb[0].mxu0 %v7916
    %v7987 = vpop.f32.mrb[0].mxu0
    %v7988 = vadd.f32 0.0, %v7987
    %v7989 = vpop.f32.mrb[0].mxu0
    %7990 = vmatprep.mubr.f32.mxu0 0.0
    %7991 = vmatmul.mubr.f32.gmra.mrb[0].mxu0 %v7919
    %v7992 = vpop.f32.mrb[0].mxu0
    %v7993 = vadd.f32 0.0, %v7992
    %v7994 = vpop.f32.mrb[0].mxu0
    %7995 = vdwg.mxu0
    %v7997 = vsel %vm313, %v7988, 0
    %v8000 = vsel %vm313, %v7993, 0
    %8002 = vmatprep.subr.mxu0 0.0
    %8003 = vmatpush1.msra.mxu0 %v6159
    %8004 = vmatprep.subr.mxu0 0.0
    %8005 = vmatpush1.msra.mxu0 0.0
    %8006 = vmatprep.subr.mxu0 0.0
    %8007 = vmatpush1.msra.mxu0 0.0
    %8008 = vmatprep.subr.mxu0 0.0
    %8009 = vmatpush1.msra.mxu0 0.0
    %8010 = vmatprep.subr.mxu0 0.0
    %8011 = vmatpush1.msra.mxu0 0.0
    %8012 = vmatprep.subr.mxu0 0.0
    %8013 = vmatpush1.msra.mxu0 0.0
    %8014 = vmatprep.subr.mxu0 0.0
    %8015 = vmatpush1.msra.mxu0 0.0
    %8016 = vmatprep.subr.mxu0 0.0
    %8017 = vmatpush1.msra.mxu0 0.0
    %8018 = vmatprep.subr.mxu0 0.0
    %8019 = vmatpush1.msra.mxu0 0.0
    %8020 = vmatprep.subr.mxu0 0.0
    %8021 = vmatpush1.msra.mxu0 0.0
    %8022 = vmatprep.subr.mxu0 0.0
    %8023 = vmatpush1.msra.mxu0 0.0
    %8024 = vmatprep.subr.mxu0 0.0
    %8025 = vmatpush1.msra.mxu0 0.0
    %8026 = vmatprep.subr.mxu0 0.0
    %8027 = vmatpush1.msra.mxu0 0.0
    %8028 = vmatprep.subr.mxu0 0.0
    %8029 = vmatpush1.msra.mxu0 0.0
    %8030 = vmatprep.subr.mxu0 0.0
    %8031 = vmatpush1.msra.mxu0 0.0
    %8032 = vmatprep.subr.mxu0 0.0
    %8033 = vmatpush1.msra.mxu0 0.0
    %8034 = vmatprep.subr.mxu0 0.0
    %8035 = vmatpush1.msra.mxu0 0.0
    %8036 = vmatprep.subr.mxu0 0.0
    %8037 = vmatpush1.msra.mxu0 0.0
    %8038 = vmatprep.subr.mxu0 0.0
    %8039 = vmatpush1.msra.mxu0 0.0
    %8040 = vmatprep.subr.mxu0 0.0
    %8041 = vmatpush1.msra.mxu0 0.0
    %8042 = vmatprep.subr.mxu0 0.0
    %8043 = vmatpush1.msra.mxu0 0.0
    %8044 = vmatprep.subr.mxu0 0.0
    %8045 = vmatpush1.msra.mxu0 0.0
    %8046 = vmatprep.subr.mxu0 0.0
    %8047 = vmatpush1.msra.mxu0 0.0
    %8048 = vmatprep.subr.mxu0 0.0
    %8049 = vmatpush1.msra.mxu0 0.0
    %8050 = vmatprep.subr.mxu0 0.0
    %8051 = vmatpush1.msra.mxu0 0.0
    %8052 = vmatprep.subr.mxu0 0.0
    %8053 = vmatpush1.msra.mxu0 0.0
    %8054 = vmatprep.subr.mxu0 0.0
    %8055 = vmatpush1.msra.mxu0 0.0
    %8056 = vmatprep.subr.mxu0 0.0
    %8057 = vmatpush1.msra.mxu0 0.0
    %8058 = vmatprep.subr.mxu0 0.0
    %8059 = vmatpush1.msra.mxu0 0.0
    %8060 = vmatprep.subr.mxu0 0.0
    %8061 = vmatpush1.msra.mxu0 0.0
    %8062 = vmatprep.subr.mxu0 0.0
    %8063 = vmatpush1.msra.mxu0 0.0
    %8064 = vmatprep.subr.mxu0 0.0
    %8065 = vmatpush1.msra.mxu0 0.0
    %8066 = vmatprep.mubr.f32.mxu0 0.0
    %8067 = vmatmul.mubr.f32.gmra.mrb[0].mxu0 %v7997
    %v8068 = vpop.f32.mrb[0].mxu0
    %v8069 = vadd.f32 0.0, %v8068
    %v8070 = vpop.f32.mrb[0].mxu0
    %8071 = vmatprep.mubr.f32.mxu0 0.0
    %8072 = vmatmul.mubr.f32.gmra.mrb[0].mxu0 %v8000
    %v8073 = vpop.f32.mrb[0].mxu0
    %v8074 = vadd.f32 0.0, %v8073
    %v8075 = vpop.f32.mrb[0].mxu0
    %8076 = vdwg.mxu0
    %v8078 = vsel %vm313, %v7788, 0
    %v8081 = vsel %vm313, %v7793, 0
    %8083 = vmatprep.subr.mxu0 0.0
    %8084 = vmatpush1.msra.mxu0 %v6158
    %8085 = vmatprep.subr.mxu0 0.0
    %8086 = vmatpush1.msra.mxu0 0.0
    %8087 = vmatprep.subr.mxu0 0.0
    %8088 = vmatpush1.msra.mxu0 0.0
    %8089 = vmatprep.subr.mxu0 0.0
    %8090 = vmatpush1.msra.mxu0 0.0
    %8091 = vmatprep.subr.mxu0 0.0
    %8092 = vmatpush1.msra.mxu0 0.0
    %8093 = vmatprep.subr.mxu0 0.0
    %8094 = vmatpush1.msra.mxu0 0.0
    %8095 = vmatprep.subr.mxu0 0.0
    %8096 = vmatpush1.msra.mxu0 0.0
    %8097 = vmatprep.subr.mxu0 0.0
    %8098 = vmatpush1.msra.mxu0 0.0
    %8099 = vmatprep.subr.mxu0 0.0
    %8100 = vmatpush1.msra.mxu0 0.0
    %8101 = vmatprep.subr.mxu0 0.0
    %8102 = vmatpush1.msra.mxu0 0.0
    %8103 = vmatprep.subr.mxu0 0.0
    %8104 = vmatpush1.msra.mxu0 0.0
    %8105 = vmatprep.subr.mxu0 0.0
    %8106 = vmatpush1.msra.mxu0 0.0
    %8107 = vmatprep.subr.mxu0 0.0
    %8108 = vmatpush1.msra.mxu0 0.0
    %8109 = vmatprep.subr.mxu0 0.0
    %8110 = vmatpush1.msra.mxu0 0.0
    %8111 = vmatprep.subr.mxu0 0.0
    %8112 = vmatpush1.msra.mxu0 0.0
    %8113 = vmatprep.subr.mxu0 0.0
    %8114 = vmatpush1.msra.mxu0 0.0
    %8115 = vmatprep.subr.mxu0 0.0
    %8116 = vmatpush1.msra.mxu0 0.0
    %8117 = vmatprep.subr.mxu0 0.0
    %8118 = vmatpush1.msra.mxu0 0.0
    %8119 = vmatprep.subr.mxu0 0.0
    %8120 = vmatpush1.msra.mxu0 0.0
    %8121 = vmatprep.subr.mxu0 0.0
    %8122 = vmatpush1.msra.mxu0 0.0
    %8123 = vmatprep.subr.mxu0 0.0
    %8124 = vmatpush1.msra.mxu0 0.0
    %8125 = vmatprep.subr.mxu0 0.0
    %8126 = vmatpush1.msra.mxu0 0.0
    %8127 = vmatprep.subr.mxu0 0.0
    %8128 = vmatpush1.msra.mxu0 0.0
    %8129 = vmatprep.subr.mxu0 0.0
    %8130 = vmatpush1.msra.mxu0 0.0
    %8131 = vmatprep.subr.mxu0 0.0
    %8132 = vmatpush1.msra.mxu0 0.0
    %8133 = vmatprep.subr.mxu0 0.0
    %8134 = vmatpush1.msra.mxu0 0.0
    %8135 = vmatprep.subr.mxu0 0.0
    %8136 = vmatpush1.msra.mxu0 0.0
    %8137 = vmatprep.subr.mxu0 0.0
    %8138 = vmatpush1.msra.mxu0 0.0
    %8139 = vmatprep.subr.mxu0 0.0
    %8140 = vmatpush1.msra.mxu0 0.0
    %8141 = vmatprep.subr.mxu0 0.0
    %8142 = vmatpush1.msra.mxu0 0.0
    %8143 = vmatprep.subr.mxu0 0.0
    %8144 = vmatpush1.msra.mxu0 0.0
    %8145 = vmatprep.subr.mxu0 0.0
    %8146 = vmatpush1.msra.mxu0 0.0
    %8147 = vmatprep.mubr.f32.mxu0 0.0
    %8148 = vmatmul.mubr.f32.gmra.mrb[0].mxu0 %v8078
    %v8149 = vpop.f32.mrb[0].mxu0
    %v8150 = vadd.f32 %v8069, %v8149
    %v8151 = vpop.f32.mrb[0].mxu0
    %8152 = vmatprep.mubr.f32.mxu0 0.0
    %8153 = vmatmul.mubr.f32.gmra.mrb[0].mxu0 %v8081
    %v8154 = vpop.f32.mrb[0].mxu0
    %v8155 = vadd.f32 %v8074, %v8154
    %v8156 = vpop.f32.mrb[0].mxu0
    %8157 = vdwg.mxu0
    %8158 = vrot.lane.b32.xlu0 %v7513, 112
    %v8159 = vpop.permute.xlu0 %8158
    %8160 = vrot.lane.b32.xlu0 %v7518, 112
    %v8161 = vpop.permute.xlu0 %8160
    %8162 = vrot.lane.b32.xlu0 %v7592, 112
    %v8163 = vpop.permute.xlu0 %8162
    %8164 = vrot.lane.b32.xlu0 %v7597, 112
    %v8165 = vpop.permute.xlu0 %8164
    %v8166 = vsel %vm313, %v8159, 0
    %v8168 = vsel %vm313, %v8161, 0
    %v8170 = vsel %vm313, %v8163, 0
    %v8172 = vsel %vm313, %v8165, 0
    %8174 = vmatprep.subr.mxu0 0.0
    %8175 = vmatpush1.xpose.msra.mxu0 %v8170
    %8176 = vmatprep.subr.mxu0 0.0
    %8177 = vmatpush1.xpose.msra.mxu0 %v8172
    %8178 = vmatprep.subr.mxu0 0.0
    %8179 = vmatpush1.xpose.msra.mxu0 0.0
    %8180 = vmatprep.subr.mxu0 0.0
    %8181 = vmatpush1.xpose.msra.mxu0 0.0
    %8182 = vmatprep.subr.mxu0 0.0
    %8183 = vmatpush1.xpose.msra.mxu0 0.0
    %8184 = vmatprep.subr.mxu0 0.0
    %8185 = vmatpush1.xpose.msra.mxu0 0.0
    %8186 = vmatprep.subr.mxu0 0.0
    %8187 = vmatpush1.xpose.msra.mxu0 0.0
    %8188 = vmatprep.subr.mxu0 0.0
    %8189 = vmatpush1.xpose.msra.mxu0 0.0
    %8190 = vmatprep.subr.mxu0 0.0
    %8191 = vmatpush1.xpose.msra.mxu0 0.0
    %8192 = vmatprep.subr.mxu0 0.0
    %8193 = vmatpush1.xpose.msra.mxu0 0.0
    %8194 = vmatprep.subr.mxu0 0.0
    %8195 = vmatpush1.xpose.msra.mxu0 0.0
    %8196 = vmatprep.subr.mxu0 0.0
    %8197 = vmatpush1.xpose.msra.mxu0 0.0
    %8198 = vmatprep.subr.mxu0 0.0
    %8199 = vmatpush1.xpose.msra.mxu0 0.0
    %8200 = vmatprep.subr.mxu0 0.0
    %8201 = vmatpush1.xpose.msra.mxu0 0.0
    %8202 = vmatprep.subr.mxu0 0.0
    %8203 = vmatpush1.xpose.msra.mxu0 0.0
    %8204 = vmatprep.subr.mxu0 0.0
    %8205 = vmatpush1.xpose.msra.mxu0 0.0
    %8206 = vmatprep.subr.mxu0 0.0
    %8207 = vmatpush1.xpose.msra.mxu0 0.0
    %8208 = vmatprep.subr.mxu0 0.0
    %8209 = vmatpush1.xpose.msra.mxu0 0.0
    %8210 = vmatprep.subr.mxu0 0.0
    %8211 = vmatpush1.xpose.msra.mxu0 0.0
    %8212 = vmatprep.subr.mxu0 0.0
    %8213 = vmatpush1.xpose.msra.mxu0 0.0
    %8214 = vmatprep.subr.mxu0 0.0
    %8215 = vmatpush1.xpose.msra.mxu0 0.0
    %8216 = vmatprep.subr.mxu0 0.0
    %8217 = vmatpush1.xpose.msra.mxu0 0.0
    %8218 = vmatprep.subr.mxu0 0.0
    %8219 = vmatpush1.xpose.msra.mxu0 0.0
    %8220 = vmatprep.subr.mxu0 0.0
    %8221 = vmatpush1.xpose.msra.mxu0 0.0
    %8222 = vmatprep.subr.mxu0 0.0
    %8223 = vmatpush1.xpose.msra.mxu0 0.0
    %8224 = vmatprep.subr.mxu0 0.0
    %8225 = vmatpush1.xpose.msra.mxu0 0.0
    %8226 = vmatprep.subr.mxu0 0.0
    %8227 = vmatpush1.xpose.msra.mxu0 0.0
    %8228 = vmatprep.subr.mxu0 0.0
    %8229 = vmatpush1.xpose.msra.mxu0 0.0
    %8230 = vmatprep.subr.mxu0 0.0
    %8231 = vmatpush1.xpose.msra.mxu0 0.0
    %8232 = vmatprep.subr.mxu0 0.0
    %8233 = vmatpush1.xpose.msra.mxu0 0.0
    %8234 = vmatprep.subr.mxu0 0.0
    %8235 = vmatpush1.xpose.msra.mxu0 0.0
    %8236 = vmatprep.subr.mxu0 0.0
    %8237 = vmatpush1.xpose.msra.mxu0 0.0
    %8238 = vmatprep.mubr.f32.mxu0 0.0
    %8239 = vmatmul.mubr.f32.gmra.mrb[0].mxu0 %v8166
    %v8240 = vpop.f32.mrb[0].mxu0
    %v8241 = vadd.f32 %v3292, %v8240
    %v8242 = vpop.f32.mrb[0].mxu0
    %8243 = vmatprep.mubr.f32.mxu0 0.0
    %8244 = vmatmul.mubr.f32.gmra.mrb[0].mxu0 %v8168
    %v8245 = vpop.f32.mrb[0].mxu0
    %v8246 = vadd.f32 %v3293, %v8245
    %v8247 = vpop.f32.mrb[0].mxu0
    %8248 = vdwg.mxu0
    %v8249 = vsel %vm397, %v8241, -inf
    %8250 = vmax.xlane.f32.xlu0 %v8249
    %v8251 = vpop.xlane.xlu0 %8250
    %v8252 = vsel %vm397, %v8246, -inf
    %8253 = vmax.xlane.f32.xlu0 %v8252
    %v8254 = vpop.xlane.xlu0 %8253
    %v8255 = vsub.f32 %v8241, %v8251
    %v8256 = vsub.f32 %v8246, %v8254
    %v8257 = vmul.f32 %v8255, 1.442695
    %v8258 = vpow.pop %v8257
    %v8259 = vmul.f32 %v8256, 1.442695
    %v8260 = vpow.pop %v8259
    %v8261 = vsel %vm397, %v8258, 0.0
    %8262 = vadd.xlane.f32.xlu0 %v8261
    %v8263 = vpop.xlane.xlu0 %8262
    %v8264 = vsel %vm397, %v8260, 0.0
    %8265 = vadd.xlane.f32.xlu0 %v8264
    %v8266 = vpop.xlane.xlu0 %8265
    %v8267 = vrcp.pop %v8263
    %v8268 = vrcp.pop %v8266
    %v8269 = vmul.f32 %v8258, %v8267
    %v8270 = vmul.f32 %v8260, %v8268
    %8271 = vrot.lane.b32.xlu0 %v7592, 80
    %v8272 = vpop.permute.xlu0 %8271
    %8273 = vrot.lane.b32.xlu0 %v7597, 80
    %v8274 = vpop.permute.xlu0 %8273
    %v8278 = vsel %vm397, %v8269, 0
    %v8281 = vsel %vm397, %v8270, 0
    %8283 = vmatprep.subr.mxu0 0.0
    %8284 = vmatpush1.msra.mxu0 %v8272
    %8285 = vmatprep.subr.mxu0 0.0
    %8286 = vmatpush1.msra.mxu0 %v8274
    %8287 = vmatprep.subr.mxu0 0.0
    %8288 = vmatpush1.msra.mxu0 0.0
    %8289 = vmatprep.subr.mxu0 0.0
    %8290 = vmatpush1.msra.mxu0 0.0
    %8291 = vmatprep.subr.mxu0 0.0
    %8292 = vmatpush1.msra.mxu0 0.0
    %8293 = vmatprep.subr.mxu0 0.0
    %8294 = vmatpush1.msra.mxu0 0.0
    %8295 = vmatprep.subr.mxu0 0.0
    %8296 = vmatpush1.msra.mxu0 0.0
    %8297 = vmatprep.subr.mxu0 0.0
    %8298 = vmatpush1.msra.mxu0 0.0
    %8299 = vmatprep.subr.mxu0 0.0
    %8300 = vmatpush1.msra.mxu0 0.0
    %8301 = vmatprep.subr.mxu0 0.0
    %8302 = vmatpush1.msra.mxu0 0.0
    %8303 = vmatprep.subr.mxu0 0.0
    %8304 = vmatpush1.msra.mxu0 0.0
    %8305 = vmatprep.subr.mxu0 0.0
    %8306 = vmatpush1.msra.mxu0 0.0
    %8307 = vmatprep.subr.mxu0 0.0
    %8308 = vmatpush1.msra.mxu0 0.0
    %8309 = vmatprep.subr.mxu0 0.0
    %8310 = vmatpush1.msra.mxu0 0.0
    %8311 = vmatprep.subr.mxu0 0.0
    %8312 = vmatpush1.msra.mxu0 0.0
    %8313 = vmatprep.subr.mxu0 0.0
    %8314 = vmatpush1.msra.mxu0 0.0
    %8315 = vmatprep.subr.mxu0 0.0
    %8316 = vmatpush1.msra.mxu0 0.0
    %8317 = vmatprep.subr.mxu0 0.0
    %8318 = vmatpush1.msra.mxu0 0.0
    %8319 = vmatprep.subr.mxu0 0.0
    %8320 = vmatpush1.msra.mxu0 0.0
    %8321 = vmatprep.subr.mxu0 0.0
    %8322 = vmatpush1.msra.mxu0 0.0
    %8323 = vmatprep.subr.mxu0 0.0
    %8324 = vmatpush1.msra.mxu0 0.0
    %8325 = vmatprep.subr.mxu0 0.0
    %8326 = vmatpush1.msra.mxu0 0.0
    %8327 = vmatprep.subr.mxu0 0.0
    %8328 = vmatpush1.msra.mxu0 0.0
    %8329 = vmatprep.subr.mxu0 0.0
    %8330 = vmatpush1.msra.mxu0 0.0
    %8331 = vmatprep.subr.mxu0 0.0
    %8332 = vmatpush1.msra.mxu0 0.0
    %8333 = vmatprep.subr.mxu0 0.0
    %8334 = vmatpush1.msra.mxu0 0.0
    %8335 = vmatprep.subr.mxu0 0.0
    %8336 = vmatpush1.msra.mxu0 0.0
    %8337 = vmatprep.subr.mxu0 0.0
    %8338 = vmatpush1.msra.mxu0 0.0
    %8339 = vmatprep.subr.mxu0 0.0
    %8340 = vmatpush1.msra.mxu0 0.0
    %8341 = vmatprep.subr.mxu0 0.0
    %8342 = vmatpush1.msra.mxu0 0.0
    %8343 = vmatprep.subr.mxu0 0.0
    %8344 = vmatpush1.msra.mxu0 0.0
    %8345 = vmatprep.subr.mxu0 0.0
    %8346 = vmatpush1.msra.mxu0 0.0
    %8347 = vmatprep.mubr.f32.mxu0 0.0
    %8348 = vmatmul.mubr.f32.gmra.mrb[0].mxu0 %v8278
    %v8349 = vpop.f32.mrb[0].mxu0
    %v8350 = vadd.f32 0.0, %v8349
    %v8351 = vpop.f32.mrb[0].mxu0
    %8352 = vmatprep.mubr.f32.mxu0 0.0
    %8353 = vmatmul.mubr.f32.gmra.mrb[0].mxu0 %v8281
    %v8354 = vpop.f32.mrb[0].mxu0
    %v8355 = vadd.f32 0.0, %v8354
    %v8356 = vpop.f32.mrb[0].mxu0
    %8357 = vdwg.mxu0
    %v8359 = vsel %vm313, %v8350, 0
    %v8362 = vsel %vm313, %v8355, 0
    %8364 = vmatprep.subr.mxu0 0.0
    %8365 = vmatpush1.msra.mxu0 %v6160
    %8366 = vmatprep.subr.mxu0 0.0
    %8367 = vmatpush1.msra.mxu0 0.0
    %8368 = vmatprep.subr.mxu0 0.0
    %8369 = vmatpush1.msra.mxu0 0.0
    %8370 = vmatprep.subr.mxu0 0.0
    %8371 = vmatpush1.msra.mxu0 0.0
    %8372 = vmatprep.subr.mxu0 0.0
    %8373 = vmatpush1.msra.mxu0 0.0
    %8374 = vmatprep.subr.mxu0 0.0
    %8375 = vmatpush1.msra.mxu0 0.0
    %8376 = vmatprep.subr.mxu0 0.0
    %8377 = vmatpush1.msra.mxu0 0.0
    %8378 = vmatprep.subr.mxu0 0.0
    %8379 = vmatpush1.msra.mxu0 0.0
    %8380 = vmatprep.subr.mxu0 0.0
    %8381 = vmatpush1.msra.mxu0 0.0
    %8382 = vmatprep.subr.mxu0 0.0
    %8383 = vmatpush1.msra.mxu0 0.0
    %8384 = vmatprep.subr.mxu0 0.0
    %8385 = vmatpush1.msra.mxu0 0.0
    %8386 = vmatprep.subr.mxu0 0.0
    %8387 = vmatpush1.msra.mxu0 0.0
    %8388 = vmatprep.subr.mxu0 0.0
    %8389 = vmatpush1.msra.mxu0 0.0
    %8390 = vmatprep.subr.mxu0 0.0
    %8391 = vmatpush1.msra.mxu0 0.0
    %8392 = vmatprep.subr.mxu0 0.0
    %8393 = vmatpush1.msra.mxu0 0.0
    %8394 = vmatprep.subr.mxu0 0.0
    %8395 = vmatpush1.msra.mxu0 0.0
    %8396 = vmatprep.subr.mxu0 0.0
    %8397 = vmatpush1.msra.mxu0 0.0
    %8398 = vmatprep.subr.mxu0 0.0
    %8399 = vmatpush1.msra.mxu0 0.0
    %8400 = vmatprep.subr.mxu0 0.0
    %8401 = vmatpush1.msra.mxu0 0.0
    %8402 = vmatprep.subr.mxu0 0.0
    %8403 = vmatpush1.msra.mxu0 0.0
    %8404 = vmatprep.subr.mxu0 0.0
    %8405 = vmatpush1.msra.mxu0 0.0
    %8406 = vmatprep.subr.mxu0 0.0
    %8407 = vmatpush1.msra.mxu0 0.0
    %8408 = vmatprep.subr.mxu0 0.0
    %8409 = vmatpush1.msra.mxu0 0.0
    %8410 = vmatprep.subr.mxu0 0.0
    %8411 = vmatpush1.msra.mxu0 0.0
    %8412 = vmatprep.subr.mxu0 0.0
    %8413 = vmatpush1.msra.mxu0 0.0
    %8414 = vmatprep.subr.mxu0 0.0
    %8415 = vmatpush1.msra.mxu0 0.0
    %8416 = vmatprep.subr.mxu0 0.0
    %8417 = vmatpush1.msra.mxu0 0.0
    %8418 = vmatprep.subr.mxu0 0.0
    %8419 = vmatpush1.msra.mxu0 0.0
    %8420 = vmatprep.subr.mxu0 0.0
    %8421 = vmatpush1.msra.mxu0 0.0
    %8422 = vmatprep.subr.mxu0 0.0
    %8423 = vmatpush1.msra.mxu0 0.0
    %8424 = vmatprep.subr.mxu0 0.0
    %8425 = vmatpush1.msra.mxu0 0.0
    %8426 = vmatprep.subr.mxu0 0.0
    %8427 = vmatpush1.msra.mxu0 0.0
    %8428 = vmatprep.mubr.f32.mxu0 0.0
    %8429 = vmatmul.mubr.f32.gmra.mrb[0].mxu0 %v8359
    %v8430 = vpop.f32.mrb[0].mxu0
    %v8431 = vadd.f32 0.0, %v8430
    %v8432 = vpop.f32.mrb[0].mxu0
    %8433 = vmatprep.mubr.f32.mxu0 0.0
    %8434 = vmatmul.mubr.f32.gmra.mrb[0].mxu0 %v8362
    %v8435 = vpop.f32.mrb[0].mxu0
    %v8436 = vadd.f32 0.0, %v8435
    %v8437 = vpop.f32.mrb[0].mxu0
    %8438 = vdwg.mxu0
    %v8439 = vadd.f32 %v8150, %v8431
    %v8440 = vadd.f32 %v8155, %v8436
    %8441 = vrot.lane.b32.xlu0 %v7513, 104
    %v8442 = vpop.permute.xlu0 %8441
    %8443 = vrot.lane.b32.xlu0 %v7518, 104
    %v8444 = vpop.permute.xlu0 %8443
    %8445 = vrot.lane.b32.xlu0 %v7592, 104
    %v8446 = vpop.permute.xlu0 %8445
    %8447 = vrot.lane.b32.xlu0 %v7597, 104
    %v8448 = vpop.permute.xlu0 %8447
    %v8449 = vsel %vm313, %v8442, 0
    %v8451 = vsel %vm313, %v8444, 0
    %v8453 = vsel %vm313, %v8446, 0
    %v8455 = vsel %vm313, %v8448, 0
    %8457 = vmatprep.subr.mxu0 0.0
    %8458 = vmatpush1.xpose.msra.mxu0 %v8453
    %8459 = vmatprep.subr.mxu0 0.0
    %8460 = vmatpush1.xpose.msra.mxu0 %v8455
    %8461 = vmatprep.subr.mxu0 0.0
    %8462 = vmatpush1.xpose.msra.mxu0 0.0
    %8463 = vmatprep.subr.mxu0 0.0
    %8464 = vmatpush1.xpose.msra.mxu0 0.0
    %8465 = vmatprep.subr.mxu0 0.0
    %8466 = vmatpush1.xpose.msra.mxu0 0.0
    %8467 = vmatprep.subr.mxu0 0.0
    %8468 = vmatpush1.xpose.msra.mxu0 0.0
    %8469 = vmatprep.subr.mxu0 0.0
    %8470 = vmatpush1.xpose.msra.mxu0 0.0
    %8471 = vmatprep.subr.mxu0 0.0
    %8472 = vmatpush1.xpose.msra.mxu0 0.0
    %8473 = vmatprep.subr.mxu0 0.0
    %8474 = vmatpush1.xpose.msra.mxu0 0.0
    %8475 = vmatprep.subr.mxu0 0.0
    %8476 = vmatpush1.xpose.msra.mxu0 0.0
    %8477 = vmatprep.subr.mxu0 0.0
    %8478 = vmatpush1.xpose.msra.mxu0 0.0
    %8479 = vmatprep.subr.mxu0 0.0
    %8480 = vmatpush1.xpose.msra.mxu0 0.0
    %8481 = vmatprep.subr.mxu0 0.0
    %8482 = vmatpush1.xpose.msra.mxu0 0.0
    %8483 = vmatprep.subr.mxu0 0.0
    %8484 = vmatpush1.xpose.msra.mxu0 0.0
    %8485 = vmatprep.subr.mxu0 0.0
    %8486 = vmatpush1.xpose.msra.mxu0 0.0
    %8487 = vmatprep.subr.mxu0 0.0
    %8488 = vmatpush1.xpose.msra.mxu0 0.0
    %8489 = vmatprep.subr.mxu0 0.0
    %8490 = vmatpush1.xpose.msra.mxu0 0.0
    %8491 = vmatprep.subr.mxu0 0.0
    %8492 = vmatpush1.xpose.msra.mxu0 0.0
    %8493 = vmatprep.subr.mxu0 0.0
    %8494 = vmatpush1.xpose.msra.mxu0 0.0
    %8495 = vmatprep.subr.mxu0 0.0
    %8496 = vmatpush1.xpose.msra.mxu0 0.0
    %8497 = vmatprep.subr.mxu0 0.0
    %8498 = vmatpush1.xpose.msra.mxu0 0.0
    %8499 = vmatprep.subr.mxu0 0.0
    %8500 = vmatpush1.xpose.msra.mxu0 0.0
    %8501 = vmatprep.subr.mxu0 0.0
    %8502 = vmatpush1.xpose.msra.mxu0 0.0
    %8503 = vmatprep.subr.mxu0 0.0
    %8504 = vmatpush1.xpose.msra.mxu0 0.0
    %8505 = vmatprep.subr.mxu0 0.0
    %8506 = vmatpush1.xpose.msra.mxu0 0.0
    %8507 = vmatprep.subr.mxu0 0.0
    %8508 = vmatpush1.xpose.msra.mxu0 0.0
    %8509 = vmatprep.subr.mxu0 0.0
    %8510 = vmatpush1.xpose.msra.mxu0 0.0
    %8511 = vmatprep.subr.mxu0 0.0
    %8512 = vmatpush1.xpose.msra.mxu0 0.0
    %8513 = vmatprep.subr.mxu0 0.0
    %8514 = vmatpush1.xpose.msra.mxu0 0.0
    %8515 = vmatprep.subr.mxu0 0.0
    %8516 = vmatpush1.xpose.msra.mxu0 0.0
    %8517 = vmatprep.subr.mxu0 0.0
    %8518 = vmatpush1.xpose.msra.mxu0 0.0
    %8519 = vmatprep.subr.mxu0 0.0
    %8520 = vmatpush1.xpose.msra.mxu0 0.0
    %8521 = vmatprep.mubr.f32.mxu0 0.0
    %8522 = vmatmul.mubr.f32.gmra.mrb[0].mxu0 %v8449
    %v8523 = vpop.f32.mrb[0].mxu0
    %v8524 = vadd.f32 %v3292, %v8523
    %v8525 = vpop.f32.mrb[0].mxu0
    %8526 = vmatprep.mubr.f32.mxu0 0.0
    %8527 = vmatmul.mubr.f32.gmra.mrb[0].mxu0 %v8451
    %v8528 = vpop.f32.mrb[0].mxu0
    %v8529 = vadd.f32 %v3293, %v8528
    %v8530 = vpop.f32.mrb[0].mxu0
    %8531 = vdwg.mxu0
    %v8532 = vsel %vm397, %v8524, -inf
    %8533 = vmax.xlane.f32.xlu0 %v8532
    %v8534 = vpop.xlane.xlu0 %8533
    %v8535 = vsel %vm397, %v8529, -inf
    %8536 = vmax.xlane.f32.xlu0 %v8535
    %v8537 = vpop.xlane.xlu0 %8536
    %v8538 = vsub.f32 %v8524, %v8534
    %v8539 = vsub.f32 %v8529, %v8537
    %v8540 = vmul.f32 %v8538, 1.442695
    %v8541 = vpow.pop %v8540
    %v8542 = vmul.f32 %v8539, 1.442695
    %v8543 = vpow.pop %v8542
    %v8544 = vsel %vm397, %v8541, 0.0
    %8545 = vadd.xlane.f32.xlu0 %v8544
    %v8546 = vpop.xlane.xlu0 %8545
    %v8547 = vsel %vm397, %v8543, 0.0
    %8548 = vadd.xlane.f32.xlu0 %v8547
    %v8549 = vpop.xlane.xlu0 %8548
    %v8550 = vrcp.pop %v8546
    %v8551 = vrcp.pop %v8549
    %v8552 = vmul.f32 %v8541, %v8550
    %v8553 = vmul.f32 %v8543, %v8551
    %8554 = vrot.lane.b32.xlu0 %v7592, 72
    %v8555 = vpop.permute.xlu0 %8554
    %8556 = vrot.lane.b32.xlu0 %v7597, 72
    %v8557 = vpop.permute.xlu0 %8556
    %v8561 = vsel %vm397, %v8552, 0
    %v8564 = vsel %vm397, %v8553, 0
    %8566 = vmatprep.subr.mxu0 0.0
    %8567 = vmatpush1.msra.mxu0 %v8555
    %8568 = vmatprep.subr.mxu0 0.0
    %8569 = vmatpush1.msra.mxu0 %v8557
    %8570 = vmatprep.subr.mxu0 0.0
    %8571 = vmatpush1.msra.mxu0 0.0
    %8572 = vmatprep.subr.mxu0 0.0
    %8573 = vmatpush1.msra.mxu0 0.0
    %8574 = vmatprep.subr.mxu0 0.0
    %8575 = vmatpush1.msra.mxu0 0.0
    %8576 = vmatprep.subr.mxu0 0.0
    %8577 = vmatpush1.msra.mxu0 0.0
    %8578 = vmatprep.subr.mxu0 0.0
    %8579 = vmatpush1.msra.mxu0 0.0
    %8580 = vmatprep.subr.mxu0 0.0
    %8581 = vmatpush1.msra.mxu0 0.0
    %8582 = vmatprep.subr.mxu0 0.0
    %8583 = vmatpush1.msra.mxu0 0.0
    %8584 = vmatprep.subr.mxu0 0.0
    %8585 = vmatpush1.msra.mxu0 0.0
    %8586 = vmatprep.subr.mxu0 0.0
    %8587 = vmatpush1.msra.mxu0 0.0
    %8588 = vmatprep.subr.mxu0 0.0
    %8589 = vmatpush1.msra.mxu0 0.0
    %8590 = vmatprep.subr.mxu0 0.0
    %8591 = vmatpush1.msra.mxu0 0.0
    %8592 = vmatprep.subr.mxu0 0.0
    %8593 = vmatpush1.msra.mxu0 0.0
    %8594 = vmatprep.subr.mxu0 0.0
    %8595 = vmatpush1.msra.mxu0 0.0
    %8596 = vmatprep.subr.mxu0 0.0
    %8597 = vmatpush1.msra.mxu0 0.0
    %8598 = vmatprep.subr.mxu0 0.0
    %8599 = vmatpush1.msra.mxu0 0.0
    %8600 = vmatprep.subr.mxu0 0.0
    %8601 = vmatpush1.msra.mxu0 0.0
    %8602 = vmatprep.subr.mxu0 0.0
    %8603 = vmatpush1.msra.mxu0 0.0
    %8604 = vmatprep.subr.mxu0 0.0
    %8605 = vmatpush1.msra.mxu0 0.0
    %8606 = vmatprep.subr.mxu0 0.0
    %8607 = vmatpush1.msra.mxu0 0.0
    %8608 = vmatprep.subr.mxu0 0.0
    %8609 = vmatpush1.msra.mxu0 0.0
    %8610 = vmatprep.subr.mxu0 0.0
    %8611 = vmatpush1.msra.mxu0 0.0
    %8612 = vmatprep.subr.mxu0 0.0
    %8613 = vmatpush1.msra.mxu0 0.0
    %8614 = vmatprep.subr.mxu0 0.0
    %8615 = vmatpush1.msra.mxu0 0.0
    %8616 = vmatprep.subr.mxu0 0.0
    %8617 = vmatpush1.msra.mxu0 0.0
    %8618 = vmatprep.subr.mxu0 0.0
    %8619 = vmatpush1.msra.mxu0 0.0
    %8620 = vmatprep.subr.mxu0 0.0
    %8621 = vmatpush1.msra.mxu0 0.0
    %8622 = vmatprep.subr.mxu0 0.0
    %8623 = vmatpush1.msra.mxu0 0.0
    %8624 = vmatprep.subr.mxu0 0.0
    %8625 = vmatpush1.msra.mxu0 0.0
    %8626 = vmatprep.subr.mxu0 0.0
    %8627 = vmatpush1.msra.mxu0 0.0
    %8628 = vmatprep.subr.mxu0 0.0
    %8629 = vmatpush1.msra.mxu0 0.0
    %8630 = vmatprep.mubr.f32.mxu0 0.0
    %8631 = vmatmul.mubr.f32.gmra.mrb[0].mxu0 %v8561
    %v8632 = vpop.f32.mrb[0].mxu0
    %v8633 = vadd.f32 0.0, %v8632
    %v8634 = vpop.f32.mrb[0].mxu0
    %8635 = vmatprep.mubr.f32.mxu0 0.0
    %8636 = vmatmul.mubr.f32.gmra.mrb[0].mxu0 %v8564
    %v8637 = vpop.f32.mrb[0].mxu0
    %v8638 = vadd.f32 0.0, %v8637
    %v8639 = vpop.f32.mrb[0].mxu0
    %8640 = vdwg.mxu0
    %v8642 = vsel %vm313, %v8633, 0
    %v8645 = vsel %vm313, %v8638, 0
    %8647 = vmatprep.subr.mxu0 0.0
    %8648 = vmatpush1.msra.mxu0 %v6161
    %8649 = vmatprep.subr.mxu0 0.0
    %8650 = vmatpush1.msra.mxu0 0.0
    %8651 = vmatprep.subr.mxu0 0.0
    %8652 = vmatpush1.msra.mxu0 0.0
    %8653 = vmatprep.subr.mxu0 0.0
    %8654 = vmatpush1.msra.mxu0 0.0
    %8655 = vmatprep.subr.mxu0 0.0
    %8656 = vmatpush1.msra.mxu0 0.0
    %8657 = vmatprep.subr.mxu0 0.0
    %8658 = vmatpush1.msra.mxu0 0.0
    %8659 = vmatprep.subr.mxu0 0.0
    %8660 = vmatpush1.msra.mxu0 0.0
    %8661 = vmatprep.subr.mxu0 0.0
    %8662 = vmatpush1.msra.mxu0 0.0
    %8663 = vmatprep.subr.mxu0 0.0
    %8664 = vmatpush1.msra.mxu0 0.0
    %8665 = vmatprep.subr.mxu0 0.0
    %8666 = vmatpush1.msra.mxu0 0.0
    %8667 = vmatprep.subr.mxu0 0.0
    %8668 = vmatpush1.msra.mxu0 0.0
    %8669 = vmatprep.subr.mxu0 0.0
    %8670 = vmatpush1.msra.mxu0 0.0
    %8671 = vmatprep.subr.mxu0 0.0
    %8672 = vmatpush1.msra.mxu0 0.0
    %8673 = vmatprep.subr.mxu0 0.0
    %8674 = vmatpush1.msra.mxu0 0.0
    %8675 = vmatprep.subr.mxu0 0.0
    %8676 = vmatpush1.msra.mxu0 0.0
    %8677 = vmatprep.subr.mxu0 0.0
    %8678 = vmatpush1.msra.mxu0 0.0
    %8679 = vmatprep.subr.mxu0 0.0
    %8680 = vmatpush1.msra.mxu0 0.0
    %8681 = vmatprep.subr.mxu0 0.0
    %8682 = vmatpush1.msra.mxu0 0.0
    %8683 = vmatprep.subr.mxu0 0.0
    %8684 = vmatpush1.msra.mxu0 0.0
    %8685 = vmatprep.subr.mxu0 0.0
    %8686 = vmatpush1.msra.mxu0 0.0
    %8687 = vmatprep.subr.mxu0 0.0
    %8688 = vmatpush1.msra.mxu0 0.0
    %8689 = vmatprep.subr.mxu0 0.0
    %8690 = vmatpush1.msra.mxu0 0.0
    %8691 = vmatprep.subr.mxu0 0.0
    %8692 = vmatpush1.msra.mxu0 0.0
    %8693 = vmatprep.subr.mxu0 0.0
    %8694 = vmatpush1.msra.mxu0 0.0
    %8695 = vmatprep.subr.mxu0 0.0
    %8696 = vmatpush1.msra.mxu0 0.0
    %8697 = vmatprep.subr.mxu0 0.0
    %8698 = vmatpush1.msra.mxu0 0.0
    %8699 = vmatprep.subr.mxu0 0.0
    %8700 = vmatpush1.msra.mxu0 0.0
    %8701 = vmatprep.subr.mxu0 0.0
    %8702 = vmatpush1.msra.mxu0 0.0
    %8703 = vmatprep.subr.mxu0 0.0
    %8704 = vmatpush1.msra.mxu0 0.0
    %8705 = vmatprep.subr.mxu0 0.0
    %8706 = vmatpush1.msra.mxu0 0.0
    %8707 = vmatprep.subr.mxu0 0.0
    %8708 = vmatpush1.msra.mxu0 0.0
    %8709 = vmatprep.subr.mxu0 0.0
    %8710 = vmatpush1.msra.mxu0 0.0
    %8711 = vmatprep.mubr.f32.mxu0 0.0
    %8712 = vmatmul.mubr.f32.gmra.mrb[0].mxu0 %v8642
    %v8713 = vpop.f32.mrb[0].mxu0
    %v8714 = vadd.f32 0.0, %v8713
    %v8715 = vpop.f32.mrb[0].mxu0
    %8716 = vmatprep.mubr.f32.mxu0 0.0
    %8717 = vmatmul.mubr.f32.gmra.mrb[0].mxu0 %v8645
    %v8718 = vpop.f32.mrb[0].mxu0
    %v8719 = vadd.f32 0.0, %v8718
    %v8720 = vpop.f32.mrb[0].mxu0
    %8721 = vdwg.mxu0
    %v8722 = vadd.f32 %v8439, %v8714
    %v8723 = vadd.f32 %v8440, %v8719
    %v8724 = vlaneseq
    %v8725 = vshrl.u32 %v8724, 7
    %v8726 = vsub.s32 4, %v8725
    %v8727 = vrot.slane %v6177, %v8726
    %v8728 = vadd.f32 %v8722, %v8727
    %v8729 = vadd.f32 %v8723, %v8727
    %v8730 = vadd.f32 %v7434, %v8728
    %v8731 = vadd.f32 %v7435, %v8729
    %v8732 = vsel %vm225, %v8730, 0.0
    %8733 = vadd.xlane.f32.xlu0 %v8732
    %v8734 = vpop.xlane.xlu0 %8733
    %v8735 = vsel %vm225, %v8731, 0.0
    %8736 = vadd.xlane.f32.xlu0 %v8735
    %v8737 = vpop.xlane.xlu0 %8736
    %v8738 = vmul.f32 %v8734, %v1449
    %v8739 = vmul.f32 %v8737, %v1449
    %v8740 = vsub.f32 %v8730, %v8738
    %v8741 = vsub.f32 %v8731, %v8739
    %v8742 = vmul.f32 %v8740, %v8740
    %v8743 = vmul.f32 %v8741, %v8741
    %v8744 = vsel %vm225, %v8742, 0.0
    %8745 = vadd.xlane.f32.xlu0 %v8744
    %v8746 = vpop.xlane.xlu0 %8745
    %v8747 = vsel %vm225, %v8743, 0.0
    %8748 = vadd.xlane.f32.xlu0 %v8747
    %v8749 = vpop.xlane.xlu0 %8748
    %v8750 = vmul.f32 %v8746, %v1449
    %v8751 = vmul.f32 %v8749, %v1449
    %v8752 = vadd.f32 %v8750, 1e-05
    %v8753 = vadd.f32 %v8751, 1e-05
    %v8754 = vrsqrt.pop %v8752
    %v8755 = vrsqrt.pop %v8753
    %v8756 = vmul.f32 %v8740, %v8754
    %v8757 = vmul.f32 %v8741, %v8755
    %v8758 = vlaneseq
    %v8759 = vshrl.u32 %v8758, 7
    %v8760 = vsub.s32 1, %v8759
    %v8761 = vrot.slane %v6178, %v8760
    %v8762 = vmul.f32 %v8756, %v8761
    %v8763 = vmul.f32 %v8757, %v8761
    %v8764 = vlaneseq
    %v8765 = vshrl.u32 %v8764, 7
    %v8766 = vsub.s32 2, %v8765
    %v8767 = vrot.slane %v6178, %v8766
    %v8768 = vadd.f32 %v8762, %v8767
    %v8769 = vadd.f32 %v8763, %v8767
    %v8770 = vlaneseq
    %v8771 = vshrl.u32 %v8770, 7
    %v8772 = vsub.s32 5, %v8771
    %v8773 = vrot.slane %v6177, %v8772
    %v8775 = vsel %vm225, %v8768, 0
    %v8778 = vsel %vm225, %v8769, 0
    %8780 = vmatprep.subr.mxu0 0.0
    %8781 = vmatpush1.msra.mxu0 %v6163
    %8782 = vmatprep.subr.mxu0 0.0
    %8783 = vmatpush1.msra.mxu0 %v6164
    %8784 = vmatprep.subr.mxu0 0.0
    %8785 = vmatpush1.msra.mxu0 %v6165
    %8786 = vmatprep.subr.mxu0 0.0
    %8787 = vmatpush1.msra.mxu0 %v6166
    %8788 = vmatprep.subr.mxu0 0.0
    %8789 = vmatpush1.msra.mxu0 0.0
    %8790 = vmatprep.subr.mxu0 0.0
    %8791 = vmatpush1.msra.mxu0 0.0
    %8792 = vmatprep.subr.mxu0 0.0
    %8793 = vmatpush1.msra.mxu0 0.0
    %8794 = vmatprep.subr.mxu0 0.0
    %8795 = vmatpush1.msra.mxu0 0.0
    %8796 = vmatprep.subr.mxu0 0.0
    %8797 = vmatpush1.msra.mxu0 0.0
    %8798 = vmatprep.subr.mxu0 0.0
    %8799 = vmatpush1.msra.mxu0 0.0
    %8800 = vmatprep.subr.mxu0 0.0
    %8801 = vmatpush1.msra.mxu0 0.0
    %8802 = vmatprep.subr.mxu0 0.0
    %8803 = vmatpush1.msra.mxu0 0.0
    %8804 = vmatprep.subr.mxu0 0.0
    %8805 = vmatpush1.msra.mxu0 0.0
    %8806 = vmatprep.subr.mxu0 0.0
    %8807 = vmatpush1.msra.mxu0 0.0
    %8808 = vmatprep.subr.mxu0 0.0
    %8809 = vmatpush1.msra.mxu0 0.0
    %8810 = vmatprep.subr.mxu0 0.0
    %8811 = vmatpush1.msra.mxu0 0.0
    %8812 = vmatprep.subr.mxu0 0.0
    %8813 = vmatpush1.msra.mxu0 0.0
    %8814 = vmatprep.subr.mxu0 0.0
    %8815 = vmatpush1.msra.mxu0 0.0
    %8816 = vmatprep.subr.mxu0 0.0
    %8817 = vmatpush1.msra.mxu0 0.0
    %8818 = vmatprep.subr.mxu0 0.0
    %8819 = vmatpush1.msra.mxu0 0.0
    %8820 = vmatprep.subr.mxu0 0.0
    %8821 = vmatpush1.msra.mxu0 0.0
    %8822 = vmatprep.subr.mxu0 0.0
    %8823 = vmatpush1.msra.mxu0 0.0
    %8824 = vmatprep.subr.mxu0 0.0
    %8825 = vmatpush1.msra.mxu0 0.0
    %8826 = vmatprep.subr.mxu0 0.0
    %8827 = vmatpush1.msra.mxu0 0.0
    %8828 = vmatprep.subr.mxu0 0.0
    %8829 = vmatpush1.msra.mxu0 0.0
    %8830 = vmatprep.subr.mxu0 0.0
    %8831 = vmatpush1.msra.mxu0 0.0
    %8832 = vmatprep.subr.mxu0 0.0
    %8833 = vmatpush1.msra.mxu0 0.0
    %8834 = vmatprep.subr.mxu0 0.0
    %8835 = vmatpush1.msra.mxu0 0.0
    %8836 = vmatprep.subr.mxu0 0.0
    %8837 = vmatpush1.msra.mxu0 0.0
    %8838 = vmatprep.subr.mxu0 0.0
    %8839 = vmatpush1.msra.mxu0 0.0
    %8840 = vmatprep.subr.mxu0 0.0
    %8841 = vmatpush1.msra.mxu0 0.0
    %8842 = vmatprep.subr.mxu0 0.0
    %8843 = vmatpush1.msra.mxu0 0.0
    %8844 = vmatprep.mubr.f32.mxu0 0.0
    %8845 = vmatmul.mubr.f32.gmra.mrb[0].mxu0 %v8775
    %v8846 = vpop.f32.mrb[0].mxu0
    %v8847 = vadd.f32 %v8773, %v8846
    %v8848 = vpop.f32.mrb[0].mxu0
    %8849 = vmatprep.mubr.f32.mxu0 0.0
    %8850 = vmatmul.mubr.f32.gmra.mrb[0].mxu0 %v8778
    %v8851 = vpop.f32.mrb[0].mxu0
    %v8852 = vadd.f32 %v8773, %v8851
    %v8853 = vpop.f32.mrb[0].mxu0
    %8854 = vdwg.mxu0
    %v8855 = vmax.f32 %v8847, 0.0
    %v8856 = vmax.f32 %v8852, 0.0
    %v8857 = vlaneseq
    %v8858 = vshrl.u32 %v8857, 7
    %v8859 = vsub.s32 6, %v8858
    %v8860 = vrot.slane %v6177, %v8859
    %v8862 = vsel %vm110, %v8855, 0
    %v8865 = vsel %vm110, %v8856, 0
    %8867 = vmatprep.subr.mxu0 0.0
    %8868 = vmatpush1.msra.mxu0 %v6168
    %8869 = vmatprep.subr.mxu0 0.0
    %8870 = vmatpush1.msra.mxu0 %v6169
    %8871 = vmatprep.subr.mxu0 0.0
    %8872 = vmatpush1.msra.mxu0 %v6170
    %8873 = vmatprep.subr.mxu0 0.0
    %8874 = vmatpush1.msra.mxu0 %v6171
    %8875 = vmatprep.subr.mxu0 0.0
    %8876 = vmatpush1.msra.mxu0 %v6172
    %8877 = vmatprep.subr.mxu0 0.0
    %8878 = vmatpush1.msra.mxu0 %v6173
    %8879 = vmatprep.subr.mxu0 0.0
    %8880 = vmatpush1.msra.mxu0 %v6174
    %8881 = vmatprep.subr.mxu0 0.0
    %8882 = vmatpush1.msra.mxu0 %v6175
    %8883 = vmatprep.subr.mxu0 0.0
    %8884 = vmatpush1.msra.mxu0 0.0
    %8885 = vmatprep.subr.mxu0 0.0
    %8886 = vmatpush1.msra.mxu0 0.0
    %8887 = vmatprep.subr.mxu0 0.0
    %8888 = vmatpush1.msra.mxu0 0.0
    %8889 = vmatprep.subr.mxu0 0.0
    %8890 = vmatpush1.msra.mxu0 0.0
    %8891 = vmatprep.subr.mxu0 0.0
    %8892 = vmatpush1.msra.mxu0 0.0
    %8893 = vmatprep.subr.mxu0 0.0
    %8894 = vmatpush1.msra.mxu0 0.0
    %8895 = vmatprep.subr.mxu0 0.0
    %8896 = vmatpush1.msra.mxu0 0.0
    %8897 = vmatprep.subr.mxu0 0.0
    %8898 = vmatpush1.msra.mxu0 0.0
    %8899 = vmatprep.subr.mxu0 0.0
    %8900 = vmatpush1.msra.mxu0 0.0
    %8901 = vmatprep.subr.mxu0 0.0
    %8902 = vmatpush1.msra.mxu0 0.0
    %8903 = vmatprep.subr.mxu0 0.0
    %8904 = vmatpush1.msra.mxu0 0.0
    %8905 = vmatprep.subr.mxu0 0.0
    %8906 = vmatpush1.msra.mxu0 0.0
    %8907 = vmatprep.subr.mxu0 0.0
    %8908 = vmatpush1.msra.mxu0 0.0
    %8909 = vmatprep.subr.mxu0 0.0
    %8910 = vmatpush1.msra.mxu0 0.0
    %8911 = vmatprep.subr.mxu0 0.0
    %8912 = vmatpush1.msra.mxu0 0.0
    %8913 = vmatprep.subr.mxu0 0.0
    %8914 = vmatpush1.msra.mxu0 0.0
    %8915 = vmatprep.subr.mxu0 0.0
    %8916 = vmatpush1.msra.mxu0 0.0
    %8917 = vmatprep.subr.mxu0 0.0
    %8918 = vmatpush1.msra.mxu0 0.0
    %8919 = vmatprep.subr.mxu0 0.0
    %8920 = vmatpush1.msra.mxu0 0.0
    %8921 = vmatprep.subr.mxu0 0.0
    %8922 = vmatpush1.msra.mxu0 0.0
    %8923 = vmatprep.subr.mxu0 0.0
    %8924 = vmatpush1.msra.mxu0 0.0
    %8925 = vmatprep.subr.mxu0 0.0
    %8926 = vmatpush1.msra.mxu0 0.0
    %8927 = vmatprep.subr.mxu0 0.0
    %8928 = vmatpush1.msra.mxu0 0.0
    %8929 = vmatprep.subr.mxu0 0.0
    %8930 = vmatpush1.msra.mxu0 0.0
    %8931 = vmatprep.mubr.f32.mxu0 0.0
    %8932 = vmatmul.mubr.f32.gmra.mrb[0].mxu0 %v8862
    %v8933 = vpop.f32.mrb[0].mxu0
    %v8934 = vadd.f32 %v8860, %v8933
    %v8935 = vpop.f32.mrb[0].mxu0
    %8936 = vmatprep.mubr.f32.mxu0 0.0
    %8937 = vmatmul.mubr.f32.gmra.mrb[0].mxu0 %v8865
    %v8938 = vpop.f32.mrb[0].mxu0
    %v8939 = vadd.f32 %v8860, %v8938
    %v8940 = vpop.f32.mrb[0].mxu0
    %8941 = vdwg.mxu0
    %v8942 = vadd.f32 %v8768, %v8934
    %v8943 = vadd.f32 %v8769, %v8939
    %v8944 = vsel %vm225, %v8942, 0.0
    %8945 = vadd.xlane.f32.xlu0 %v8944
    %v8946 = vpop.xlane.xlu0 %8945
    %v8947 = vsel %vm225, %v8943, 0.0
    %8948 = vadd.xlane.f32.xlu0 %v8947
    %v8949 = vpop.xlane.xlu0 %8948
    %v8950 = vmul.f32 %v8946, %v1449
    %v8951 = vmul.f32 %v8949, %v1449
    %v8952 = vsub.f32 %v8942, %v8950
    %v8953 = vsub.f32 %v8943, %v8951
    %v8954 = vmul.f32 %v8952, %v8952
    %v8955 = vmul.f32 %v8953, %v8953
    %v8956 = vsel %vm225, %v8954, 0.0
    %8957 = vadd.xlane.f32.xlu0 %v8956
    %v8958 = vpop.xlane.xlu0 %8957
    %v8959 = vsel %vm225, %v8955, 0.0
    %8960 = vadd.xlane.f32.xlu0 %v8959
    %v8961 = vpop.xlane.xlu0 %8960
    %v8962 = vmul.f32 %v8958, %v1449
    %v8963 = vmul.f32 %v8961, %v1449
    %v8964 = vadd.f32 %v8962, 1e-05
    %v8965 = vadd.f32 %v8963, 1e-05
    %v8966 = vrsqrt.pop %v8964
    %v8967 = vrsqrt.pop %v8965
    %v8968 = vmul.f32 %v8952, %v8966
    %v8969 = vmul.f32 %v8953, %v8967
    %v8970 = vlaneseq
    %v8971 = vshrl.u32 %v8970, 7
    %v8972 = vsub.s32 3, %v8971
    %v8973 = vrot.slane %v6178, %v8972
    %v8974 = vmul.f32 %v8968, %v8973
    %v8975 = vmul.f32 %v8969, %v8973
    %v8976 = vlaneseq
    %v8977 = vshrl.u32 %v8976, 7
    %v8978 = vsub.s32 4, %v8977
    %v8979 = vrot.slane %v6178, %v8978
    %v8980 = vadd.f32 %v8974, %v8979
    %v8981 = vadd.f32 %v8975, %v8979
    %v8982 = vld [vmem:[%s21] sm:$0xff]
    %v8983 = vld [vmem:[%s21 + $0x8] sm:$0xff]
    %v8984 = vld [vmem:[%s21 + $0x10] sm:$0xff]
    %v8985 = vld [vmem:[%s21 + $0x18] sm:$0xff]
    %v8986 = vld [vmem:[#allocation2] sm:$0x1]
    %v8988 = vlaneseq
    %v8989 = vshrl.u32 %v8988, 7
    %v8990 = vsub.s32 0, %v8989
    %v8991 = vrot.slane %v8986, %v8990
    %v8994 = vsel %vm225, %v8980, 0
    %v8997 = vsel %vm225, %v8981, 0
    %8999 = vmatprep.subr.mxu0 0.0
    %9000 = vmatpush1.msra.mxu0 %v8982
    %9001 = vmatprep.subr.mxu0 0.0
    %9002 = vmatpush1.msra.mxu0 %v8983
    %9003 = vmatprep.subr.mxu0 0.0
    %9004 = vmatpush1.msra.mxu0 %v8984
    %9005 = vmatprep.subr.mxu0 0.0
    %9006 = vmatpush1.msra.mxu0 %v8985
    %9007 = vmatprep.subr.mxu0 0.0
    %9008 = vmatpush1.msra.mxu0 0.0
    %9009 = vmatprep.subr.mxu0 0.0
    %9010 = vmatpush1.msra.mxu0 0.0
    %9011 = vmatprep.subr.mxu0 0.0
    %9012 = vmatpush1.msra.mxu0 0.0
    %9013 = vmatprep.subr.mxu0 0.0
    %9014 = vmatpush1.msra.mxu0 0.0
    %9015 = vmatprep.subr.mxu0 0.0
    %9016 = vmatpush1.msra.mxu0 0.0
    %9017 = vmatprep.subr.mxu0 0.0
    %9018 = vmatpush1.msra.mxu0 0.0
    %9019 = vmatprep.subr.mxu0 0.0
    %9020 = vmatpush1.msra.mxu0 0.0
    %9021 = vmatprep.subr.mxu0 0.0
    %9022 = vmatpush1.msra.mxu0 0.0
    %9023 = vmatprep.subr.mxu0 0.0
    %9024 = vmatpush1.msra.mxu0 0.0
    %9025 = vmatprep.subr.mxu0 0.0
    %9026 = vmatpush1.msra.mxu0 0.0
    %9027 = vmatprep.subr.mxu0 0.0
    %9028 = vmatpush1.msra.mxu0 0.0
    %9029 = vmatprep.subr.mxu0 0.0
    %9030 = vmatpush1.msra.mxu0 0.0
    %9031 = vmatprep.subr.mxu0 0.0
    %9032 = vmatpush1.msra.mxu0 0.0
    %9033 = vmatprep.subr.mxu0 0.0
    %9034 = vmatpush1.msra.mxu0 0.0
    %9035 = vmatprep.subr.mxu0 0.0
    %9036 = vmatpush1.msra.mxu0 0.0
    %9037 = vmatprep.subr.mxu0 0.0
    %9038 = vmatpush1.msra.mxu0 0.0
    %9039 = vmatprep.subr.mxu0 0.0
    %9040 = vmatpush1.msra.mxu0 0.0
    %9041 = vmatprep.subr.mxu0 0.0
    %9042 = vmatpush1.msra.mxu0 0.0
    %9043 = vmatprep.subr.mxu0 0.0
    %9044 = vmatpush1.msra.mxu0 0.0
    %9045 = vmatprep.subr.mxu0 0.0
    %9046 = vmatpush1.msra.mxu0 0.0
    %9047 = vmatprep.subr.mxu0 0.0
    %9048 = vmatpush1.msra.mxu0 0.0
    %9049 = vmatprep.subr.mxu0 0.0
    %9050 = vmatpush1.msra.mxu0 0.0
    %9051 = vmatprep.subr.mxu0 0.0
    %9052 = vmatpush1.msra.mxu0 0.0
    %9053 = vmatprep.subr.mxu0 0.0
    %9054 = vmatpush1.msra.mxu0 0.0
    %9055 = vmatprep.subr.mxu0 0.0
    %9056 = vmatpush1.msra.mxu0 0.0
    %9057 = vmatprep.subr.mxu0 0.0
    %9058 = vmatpush1.msra.mxu0 0.0
    %9059 = vmatprep.subr.mxu0 0.0
    %9060 = vmatpush1.msra.mxu0 0.0
    %9061 = vmatprep.subr.mxu0 0.0
    %9062 = vmatpush1.msra.mxu0 0.0
    %9063 = vmatprep.mubr.f32.mxu0 0.0
    %9064 = vmatmul.mubr.f32.gmra.mrb[0].mxu0 %v8994
    %v9065 = vpop.f32.mrb[0].mxu0
    %v9066 = vadd.f32 %v8991, %v9065
    %v9067 = vpop.f32.mrb[0].mxu0
    %9068 = vmatprep.mubr.f32.mxu0 0.0
    %9069 = vmatmul.mubr.f32.gmra.mrb[0].mxu0 %v8997
    %v9070 = vpop.f32.mrb[0].mxu0
    %v9071 = vadd.f32 %v8991, %v9070
    %v9072 = vpop.f32.mrb[0].mxu0
    %9073 = vdwg.mxu0
    %9074 = vst [vmem:[%s23] sm:$0xff] %v9066
    %9075 = vst [vmem:[%s23 + $0x8] sm:$0xff] %v9071
    // Predicated region
    $region98: #{transformer_forward.1} parent=1 // pred_check
      _
    $region99: #{transformer_forward.1} parent=1 // pred_check_branch
      %9077 = sbr.rel (0) target = $region101
    $region100: #{transformer_forward.1} parent=1 // pred_region
      _
    $region101: #{transformer_forward.1} parent=1 // pred_fallthru
      _
    // Predicated region
    $region102: #{transformer_forward.1} parent=1 // pred_check
      _
    $region103: #{transformer_forward.1} parent=1 // pred_check_branch
      %9079 = sbr.rel (0) target = $region105
    $region104: #{transformer_forward.1} parent=1 // pred_region
      _
    $region105: #{transformer_forward.1} parent=1 // pred_fallthru
      _
    %9080 = vsyncpa [#allocation3], 1

</llo_original>
